<compile_context>
chip_gen: v5e
topology: v5e:2x2
jax: 0.10.0
libtpu: 0.0.40
codegen_flags: <defaults>
</compile_context>

<pallas_src>
import numpy as np
import jax
import jax.numpy as jnp
from jax.experimental import pallas as pl
from jax.experimental.pallas import tpu as pltpu


def _round_up(n, m):
    return ((n + m - 1) // m) * m


# ----------------------------------------------------------------------------
# Pallas kernel factory: whole 3-layer GroupKAN MLP for one batch-lane tile.
# ----------------------------------------------------------------------------
def _make_kernel(dims):
    d1, d2, d3, d_out = dims        # layer widths: 8 -> 64 -> 32 -> 1
    o2 = d1                         # row offset of layer-2 coeffs
    o3 = d1 + d2                    # row offset of layer-3 coeffs

    def rational(h, coef):
        # h: (F, TB) activations with batch on lanes.
        # coef: (F, 10) per-feature coeffs; cols 0..5 = P, cols 6..9 = Q.
        # (F, 1) coefficient columns broadcast along lanes (cheapest bcast).
        num = coef[:, 5:6]
        for k in (4, 3, 2, 1, 0):                   # Horner, pure VPU work
            num = num * h + coef[:, k:k + 1]
        den = coef[:, 9:10]
        for k in (8, 7, 6):
            den = den * h + coef[:, k:k + 1]
        den = 1.0 + jnp.abs(h * den)                # den >= 1, always safe
        # Exact divide (matches the reference).  NOTE: pl.reciprocal(approx=
        # True) was removed -- its seed error amplified to ~0.07 abs through
        # the 3 layers and failed the correctness check.
        return num / den

    def kernel(x_ref, coef_ref, bias_ref, w1_ref, w2_ref, w3_ref, o_ref):
        coef = coef_ref[...]                        # (d1+d2+d3, 10)
        bias = bias_ref[...]                        # (max_out, 3), zero-padded

        h = x_ref[...]                                              # (d1, TB)
        # Layer 1: (d2, d1) @ (d1, TB) -> (d2, TB); N = batch is lane-dense.
        h = jnp.dot(w1_ref[...], rational(h, coef[:o2, :]),
                    preferred_element_type=jnp.float32) + bias[:d2, 0:1]
        h = jnp.maximum(h, 0.0)
        # Layer 2: (d3, d2) @ (d2, TB) -> (d3, TB)
        h = jnp.dot(w2_ref[...], rational(h, coef[o2:o3, :]),
                    preferred_element_type=jnp.float32) + bias[:d3, 1:2]
        h = jnp.maximum(h, 0.0)
        # Layer 3: (d_out, d3) @ (d3, TB) -> (d_out, TB); N = batch keeps the
        # MXU lane-dense even though d_out == 1.
        h = jnp.dot(w3_ref[...], rational(h, coef[o3:, :]),
                    preferred_element_type=jnp.float32) + bias[:d_out, 2:3]
        o_ref[...] = h                                              # lane-dense

    return kernel


# ----------------------------------------------------------------------------
# Wrapper: batch on the lane axis, one grid axis over lane-dense batch tiles.
# ----------------------------------------------------------------------------
def groupkan_forward(x, p1, p2, p3, *, tm=2048):
    """x: (B, in_features) -> (B, 1); same semantics as the PyTorch module."""
    B, d1 = x.shape
    d2 = p1["w"].shape[0]
    d3 = p2["w"].shape[0]
    d_out = p3["w"].shape[0]
    dims = (d1, d2, d3, d_out)

    # ---- batch-lane tile selection ------------------------------------------
    # Big tiles amortize the ~0.35 us per-grid-step overhead (kernel is
    # VALU-bound), but keep >= 2 grid steps when the batch allows so both v7x
    # TensorCores are fed via dimension_semantics=("parallel",).
    b128 = _round_up(B, 128)
    tm_eff = min(_round_up(tm, 128), b128)
    if b128 // tm_eff < 2 and b128 >= 256:
        tm_eff = _round_up(b128 // 2, 128)
    Bp = _round_up(B, tm_eff)

    # ---- pack parameters: 1 coeff table + 1 bias table + 3 weights ----------
    coef = jnp.concatenate([p1["coef"], p2["coef"], p3["coef"]], axis=0)
    max_out = max(d2, d3, d_out)
    bias = jnp.stack(
        [jnp.pad(p["bias"], (0, max_out - p["bias"].shape[0]))
         for p in (p1, p2, p3)], axis=1)                    # (max_out, 3)

    # ---- batch on lanes ------------------------------------------------------
    xt = x.T                                                # (d1, B)
    if Bp != B:
        xt = jnp.pad(xt, ((0, 0), (0, Bp - B)))             # (d1, Bp)

    def full(arr):
        shp = arr.shape
        return pl.BlockSpec(shp, lambda i, _n=len(shp): (0,) * _n)

    out_t = pl.pallas_call(
        _make_kernel(dims),
        out_shape=jax.ShapeDtypeStruct((d_out, Bp), jnp.float32),
        grid_spec=pltpu.PrefetchScalarGridSpec(
            num_scalar_prefetch=0,
            grid=(Bp // tm_eff,),
            in_specs=[
                pl.BlockSpec((d1, tm_eff), lambda i: (0, i)),  # x, lane-tiled
                full(coef), full(bias),
                full(p1["w"]), full(p2["w"]), full(p3["w"]),
            ],
            out_specs=pl.BlockSpec((d_out, tm_eff), lambda i: (0, i)),
        ),
        compiler_params=pltpu.CompilerParams(
            dimension_semantics=("parallel",)),
    )(xt, coef, bias, p1["w"], p2["w"], p3["w"])

    return out_t[:, :B].T                                   # (B, d_out)


# ----------------------------------------------------------------------------
# Deterministic parameter initialization (synthetic — no checkpoint).
# ----------------------------------------------------------------------------
def init_group_kan_linear(key, in_f, out_f, num_groups):
    k_w, k_b, k_a, k_q = jax.random.split(key, 4)
    w = jax.random.normal(k_w, (out_f, in_f), jnp.float32) / np.sqrt(in_f)
    bias = 0.01 * jax.random.normal(k_b, (out_f,), jnp.float32)
    # Per-group rational coefficients, biased toward the identity function.
    a_g = 0.1 * jax.random.normal(k_a, (num_groups, 6), jnp.float32)
    a_g = a_g.at[:, 1].add(1.0)                 # P(x) ~ x + small terms
    b_g = 0.1 * jax.random.normal(k_q, (num_groups, 4), jnp.float32)
    # Expand group coefficients to a per-feature table (in_f, 10) = [P | Q].
    gidx = jnp.repeat(jnp.arange(num_groups), in_f // num_groups)
    coef = jnp.concatenate([a_g[gidx], b_g[gidx]], axis=1)
    return dict(w=w, bias=bias, coef=coef)


# ----------------------------------------------------------------------------
# Pure-JAX reference (same math, (batch, feature) layout) for correctness.
# Matmuls run at Precision.HIGHEST so the reference is true-f32 on TPU.
# ----------------------------------------------------------------------------
def ref_forward(x, p1, p2, p3):
    hp = jax.lax.Precision.HIGHEST

    def rational(h, coef):                       # h: (B, F), coef: (F, 10)
        num = coef[:, 5][None, :]
        for k in (4, 3, 2, 1, 0):
            num = num * h + coef[:, k][None, :]
        den = coef[:, 9][None, :]
        for k in (8, 7, 6):
            den = den * h + coef[:, k][None, :]
        return num / (1.0 + jnp.abs(h * den))

    def layer(h, p):
        return (jnp.dot(rational(h, p["coef"]), p["w"].T, precision=hp)
                + p["bias"][None, :])

    h = jnp.maximum(layer(x, p1), 0.0)
    h = jnp.maximum(layer(h, p2), 0.0)
    return layer(h, p3)


if __name__ == "__main__":
    input_size = 8
    batch = 4096          # 2 lane-dense grid steps of 2048 (feeds both v7x TCs)

    root = jax.random.PRNGKey(0)
    kx, k1, k2, k3 = jax.random.split(root, 4)

    x = jax.random.normal(kx, (batch, input_size), jnp.float32)
    p1 = init_group_kan_linear(k1, input_size, 64, num_groups=4)
    p2 = init_group_kan_linear(k2, 64, 32, num_groups=4)
    p3 = init_group_kan_linear(k3, 32, 1, num_groups=4)

    fwd = jax.jit(lambda xx: groupkan_forward(xx, p1, p2, p3, tm=2048))
    out = jax.block_until_ready(fwd(x))
    assert out.shape == (batch, 1)

    ref = jax.block_until_ready(ref_forward(x, p1, p2, p3))
    # f32 everywhere + exact divide: only matmul decomposition/order differs.
    np.testing.assert_allclose(np.asarray(out), np.asarray(ref),
                               rtol=2e-3, atol=2e-3)
    print("KERNEL_OK")
</pallas_src>

<mosaic_0001>
module attributes {stable_mosaic.version = 11 : i64} {
  func.func @kernel(%arg0: i32, %arg1: memref<8x2048xf32, #tpu.memory_space<vmem>>, %arg2: memref<104x10xf32, #tpu.memory_space<vmem>>, %arg3: memref<64x3xf32, #tpu.memory_space<vmem>>, %arg4: memref<64x8xf32, #tpu.memory_space<vmem>>, %arg5: memref<32x64xf32, #tpu.memory_space<vmem>>, %arg6: memref<1x32xf32, #tpu.memory_space<vmem>>, %arg7: memref<1x2048xf32, #tpu.memory_space<vmem>>) attributes {dimension_semantics = [#tpu.dimension_semantics<parallel>], iteration_bounds = array<i64: 2>, scalar_prefetch = 0 : i64, scratch_operands = 0 : i64, tpu.core_type = #tpu.core_type<tc>, window_params = [{transform_indices = @transform_0, window_bounds = array<i64: 8, 2048>}, {pipeline_mode = #tpu.pipeline_mode<synchronous>, transform_indices = @transform_1, window_bounds = array<i64: 104, 10>}, {pipeline_mode = #tpu.pipeline_mode<synchronous>, transform_indices = @transform_2, window_bounds = array<i64: 64, 3>}, {pipeline_mode = #tpu.pipeline_mode<synchronous>, transform_indices = @transform_3, window_bounds = array<i64: 64, 8>}, {pipeline_mode = #tpu.pipeline_mode<synchronous>, transform_indices = @transform_4, window_bounds = array<i64: 32, 64>}, {pipeline_mode = #tpu.pipeline_mode<synchronous>, transform_indices = @transform_5, window_bounds = array<i64: 1, 32>}, {transform_indices = @transform_6, window_bounds = array<i64: 1, 2048>}]} {
    %c0 = arith.constant 0 : index
    %c0_0 = arith.constant 0 : index
    %0 = vector.load %arg2[%c0, %c0_0] : memref<104x10xf32, #tpu.memory_space<vmem>>, vector<104x10xf32>
    %c0_1 = arith.constant 0 : index
    %c0_2 = arith.constant 0 : index
    %1 = vector.load %arg3[%c0_1, %c0_2] : memref<64x3xf32, #tpu.memory_space<vmem>>, vector<64x3xf32>
    %c0_3 = arith.constant 0 : index
    %c0_4 = arith.constant 0 : index
    %2 = vector.load %arg1[%c0_3, %c0_4] : memref<8x2048xf32, #tpu.memory_space<vmem>>, vector<8x2048xf32>
    %c0_5 = arith.constant 0 : index
    %c0_6 = arith.constant 0 : index
    %3 = vector.load %arg4[%c0_5, %c0_6] : memref<64x8xf32, #tpu.memory_space<vmem>>, vector<64x8xf32>
    %4 = vector.extract_strided_slice %0 {offsets = [0, 0], sizes = [8, 10], strides = [1, 1]} : vector<104x10xf32> to vector<8x10xf32>
    %5 = vector.extract_strided_slice %4 {offsets = [0, 5], sizes = [8, 1], strides = [1, 1]} : vector<8x10xf32> to vector<8x1xf32>
    %6 = vector.broadcast %5 : vector<8x1xf32> to vector<8x2048xf32>
    %7 = arith.mulf %6, %2 : vector<8x2048xf32>
    %8 = vector.extract_strided_slice %4 {offsets = [0, 4], sizes = [8, 1], strides = [1, 1]} : vector<8x10xf32> to vector<8x1xf32>
    %9 = vector.broadcast %8 : vector<8x1xf32> to vector<8x2048xf32>
    %10 = arith.addf %7, %9 : vector<8x2048xf32>
    %11 = arith.mulf %10, %2 : vector<8x2048xf32>
    %12 = vector.extract_strided_slice %4 {offsets = [0, 3], sizes = [8, 1], strides = [1, 1]} : vector<8x10xf32> to vector<8x1xf32>
    %13 = vector.broadcast %12 : vector<8x1xf32> to vector<8x2048xf32>
    %14 = arith.addf %11, %13 : vector<8x2048xf32>
    %15 = arith.mulf %14, %2 : vector<8x2048xf32>
    %16 = vector.extract_strided_slice %4 {offsets = [0, 2], sizes = [8, 1], strides = [1, 1]} : vector<8x10xf32> to vector<8x1xf32>
    %17 = vector.broadcast %16 : vector<8x1xf32> to vector<8x2048xf32>
    %18 = arith.addf %15, %17 : vector<8x2048xf32>
    %19 = arith.mulf %18, %2 : vector<8x2048xf32>
    %20 = vector.extract_strided_slice %4 {offsets = [0, 1], sizes = [8, 1], strides = [1, 1]} : vector<8x10xf32> to vector<8x1xf32>
    %21 = vector.broadcast %20 : vector<8x1xf32> to vector<8x2048xf32>
    %22 = arith.addf %19, %21 : vector<8x2048xf32>
    %23 = arith.mulf %22, %2 : vector<8x2048xf32>
    %24 = vector.extract_strided_slice %4 {offsets = [0, 0], sizes = [8, 1], strides = [1, 1]} : vector<8x10xf32> to vector<8x1xf32>
    %25 = vector.broadcast %24 : vector<8x1xf32> to vector<8x2048xf32>
    %26 = arith.addf %23, %25 : vector<8x2048xf32>
    %27 = vector.extract_strided_slice %4 {offsets = [0, 9], sizes = [8, 1], strides = [1, 1]} : vector<8x10xf32> to vector<8x1xf32>
    %28 = vector.broadcast %27 : vector<8x1xf32> to vector<8x2048xf32>
    %29 = arith.mulf %28, %2 : vector<8x2048xf32>
    %30 = vector.extract_strided_slice %4 {offsets = [0, 8], sizes = [8, 1], strides = [1, 1]} : vector<8x10xf32> to vector<8x1xf32>
    %31 = vector.broadcast %30 : vector<8x1xf32> to vector<8x2048xf32>
    %32 = arith.addf %29, %31 : vector<8x2048xf32>
    %33 = arith.mulf %32, %2 : vector<8x2048xf32>
    %34 = vector.extract_strided_slice %4 {offsets = [0, 7], sizes = [8, 1], strides = [1, 1]} : vector<8x10xf32> to vector<8x1xf32>
    %35 = vector.broadcast %34 : vector<8x1xf32> to vector<8x2048xf32>
    %36 = arith.addf %33, %35 : vector<8x2048xf32>
    %37 = arith.mulf %36, %2 : vector<8x2048xf32>
    %38 = vector.extract_strided_slice %4 {offsets = [0, 6], sizes = [8, 1], strides = [1, 1]} : vector<8x10xf32> to vector<8x1xf32>
    %39 = vector.broadcast %38 : vector<8x1xf32> to vector<8x2048xf32>
    %40 = arith.addf %37, %39 : vector<8x2048xf32>
    %41 = arith.mulf %2, %40 : vector<8x2048xf32>
    %42 = math.absf %41 : vector<8x2048xf32>
    %cst = arith.constant 1.000000e+00 : f32
    %43 = vector.broadcast %cst : f32 to vector<8x2048xf32>
    %44 = arith.addf %43, %42 : vector<8x2048xf32>
    %45 = arith.divf %26, %44 : vector<8x2048xf32>
    %cst_7 = arith.constant dense<0.000000e+00> : vector<64x2048xf32>
    %46 = tpu.matmul %3, %45, %cst_7 {dimension_numbers = #tpu.dot_dimension_numbers<[1], [0], [0], [1], [0, 0, 1, 1], [], []>} : vector<64x8xf32>, vector<8x2048xf32>, vector<64x2048xf32> -> vector<64x2048xf32>
    %47 = vector.extract_strided_slice %1 {offsets = [0, 0], sizes = [64, 1], strides = [1, 1]} : vector<64x3xf32> to vector<64x1xf32>
    %48 = vector.broadcast %47 : vector<64x1xf32> to vector<64x2048xf32>
    %49 = arith.addf %46, %48 : vector<64x2048xf32>
    %cst_8 = arith.constant 0.000000e+00 : f32
    %50 = vector.broadcast %cst_8 : f32 to vector<64x2048xf32>
    %51 = arith.maximumf %49, %50 : vector<64x2048xf32>
    %c0_9 = arith.constant 0 : index
    %c0_10 = arith.constant 0 : index
    %52 = vector.load %arg5[%c0_9, %c0_10] : memref<32x64xf32, #tpu.memory_space<vmem>>, vector<32x64xf32>
    %53 = vector.extract_strided_slice %0 {offsets = [8, 0], sizes = [64, 10], strides = [1, 1]} : vector<104x10xf32> to vector<64x10xf32>
    %54 = vector.extract_strided_slice %53 {offsets = [0, 5], sizes = [64, 1], strides = [1, 1]} : vector<64x10xf32> to vector<64x1xf32>
    %55 = vector.broadcast %54 : vector<64x1xf32> to vector<64x2048xf32>
    %56 = arith.mulf %55, %51 : vector<64x2048xf32>
    %57 = vector.extract_strided_slice %53 {offsets = [0, 4], sizes = [64, 1], strides = [1, 1]} : vector<64x10xf32> to vector<64x1xf32>
    %58 = vector.broadcast %57 : vector<64x1xf32> to vector<64x2048xf32>
    %59 = arith.addf %56, %58 : vector<64x2048xf32>
    %60 = arith.mulf %59, %51 : vector<64x2048xf32>
    %61 = vector.extract_strided_slice %53 {offsets = [0, 3], sizes = [64, 1], strides = [1, 1]} : vector<64x10xf32> to vector<64x1xf32>
    %62 = vector.broadcast %61 : vector<64x1xf32> to vector<64x2048xf32>
    %63 = arith.addf %60, %62 : vector<64x2048xf32>
    %64 = arith.mulf %63, %51 : vector<64x2048xf32>
    %65 = vector.extract_strided_slice %53 {offsets = [0, 2], sizes = [64, 1], strides = [1, 1]} : vector<64x10xf32> to vector<64x1xf32>
    %66 = vector.broadcast %65 : vector<64x1xf32> to vector<64x2048xf32>
    %67 = arith.addf %64, %66 : vector<64x2048xf32>
    %68 = arith.mulf %67, %51 : vector<64x2048xf32>
    %69 = vector.extract_strided_slice %53 {offsets = [0, 1], sizes = [64, 1], strides = [1, 1]} : vector<64x10xf32> to vector<64x1xf32>
    %70 = vector.broadcast %69 : vector<64x1xf32> to vector<64x2048xf32>
    %71 = arith.addf %68, %70 : vector<64x2048xf32>
    %72 = arith.mulf %71, %51 : vector<64x2048xf32>
    %73 = vector.extract_strided_slice %53 {offsets = [0, 0], sizes = [64, 1], strides = [1, 1]} : vector<64x10xf32> to vector<64x1xf32>
    %74 = vector.broadcast %73 : vector<64x1xf32> to vector<64x2048xf32>
    %75 = arith.addf %72, %74 : vector<64x2048xf32>
    %76 = vector.extract_strided_slice %53 {offsets = [0, 9], sizes = [64, 1], strides = [1, 1]} : vector<64x10xf32> to vector<64x1xf32>
    %77 = vector.broadcast %76 : vector<64x1xf32> to vector<64x2048xf32>
    %78 = arith.mulf %77, %51 : vector<64x2048xf32>
    %79 = vector.extract_strided_slice %53 {offsets = [0, 8], sizes = [64, 1], strides = [1, 1]} : vector<64x10xf32> to vector<64x1xf32>
    %80 = vector.broadcast %79 : vector<64x1xf32> to vector<64x2048xf32>
    %81 = arith.addf %78, %80 : vector<64x2048xf32>
    %82 = arith.mulf %81, %51 : vector<64x2048xf32>
    %83 = vector.extract_strided_slice %53 {offsets = [0, 7], sizes = [64, 1], strides = [1, 1]} : vector<64x10xf32> to vector<64x1xf32>
    %84 = vector.broadcast %83 : vector<64x1xf32> to vector<64x2048xf32>
    %85 = arith.addf %82, %84 : vector<64x2048xf32>
    %86 = arith.mulf %85, %51 : vector<64x2048xf32>
    %87 = vector.extract_strided_slice %53 {offsets = [0, 6], sizes = [64, 1], strides = [1, 1]} : vector<64x10xf32> to vector<64x1xf32>
    %88 = vector.broadcast %87 : vector<64x1xf32> to vector<64x2048xf32>
    %89 = arith.addf %86, %88 : vector<64x2048xf32>
    %90 = arith.mulf %51, %89 : vector<64x2048xf32>
    %91 = math.absf %90 : vector<64x2048xf32>
    %cst_11 = arith.constant 1.000000e+00 : f32
    %92 = vector.broadcast %cst_11 : f32 to vector<64x2048xf32>
    %93 = arith.addf %92, %91 : vector<64x2048xf32>
    %94 = arith.divf %75, %93 : vector<64x2048xf32>
    %cst_12 = arith.constant dense<0.000000e+00> : vector<32x2048xf32>
    %95 = tpu.matmul %52, %94, %cst_12 {dimension_numbers = #tpu.dot_dimension_numbers<[1], [0], [0], [1], [0, 0, 1, 1], [], []>} : vector<32x64xf32>, vector<64x2048xf32>, vector<32x2048xf32> -> vector<32x2048xf32>
    %96 = vector.extract_strided_slice %1 {offsets = [0, 1], sizes = [32, 1], strides = [1, 1]} : vector<64x3xf32> to vector<32x1xf32>
    %97 = vector.broadcast %96 : vector<32x1xf32> to vector<32x2048xf32>
    %98 = arith.addf %95, %97 : vector<32x2048xf32>
    %cst_13 = arith.constant 0.000000e+00 : f32
    %99 = vector.broadcast %cst_13 : f32 to vector<32x2048xf32>
    %100 = arith.maximumf %98, %99 : vector<32x2048xf32>
    %c0_14 = arith.constant 0 : index
    %c0_15 = arith.constant 0 : index
    %101 = vector.load %arg6[%c0_14, %c0_15] : memref<1x32xf32, #tpu.memory_space<vmem>>, vector<1x32xf32>
    %102 = vector.extract_strided_slice %0 {offsets = [72, 0], sizes = [32, 10], strides = [1, 1]} : vector<104x10xf32> to vector<32x10xf32>
    %103 = vector.extract_strided_slice %102 {offsets = [0, 5], sizes = [32, 1], strides = [1, 1]} : vector<32x10xf32> to vector<32x1xf32>
    %104 = vector.broadcast %103 : vector<32x1xf32> to vector<32x2048xf32>
    %105 = arith.mulf %104, %100 : vector<32x2048xf32>
    %106 = vector.extract_strided_slice %102 {offsets = [0, 4], sizes = [32, 1], strides = [1, 1]} : vector<32x10xf32> to vector<32x1xf32>
    %107 = vector.broadcast %106 : vector<32x1xf32> to vector<32x2048xf32>
    %108 = arith.addf %105, %107 : vector<32x2048xf32>
    %109 = arith.mulf %108, %100 : vector<32x2048xf32>
    %110 = vector.extract_strided_slice %102 {offsets = [0, 3], sizes = [32, 1], strides = [1, 1]} : vector<32x10xf32> to vector<32x1xf32>
    %111 = vector.broadcast %110 : vector<32x1xf32> to vector<32x2048xf32>
    %112 = arith.addf %109, %111 : vector<32x2048xf32>
    %113 = arith.mulf %112, %100 : vector<32x2048xf32>
    %114 = vector.extract_strided_slice %102 {offsets = [0, 2], sizes = [32, 1], strides = [1, 1]} : vector<32x10xf32> to vector<32x1xf32>
    %115 = vector.broadcast %114 : vector<32x1xf32> to vector<32x2048xf32>
    %116 = arith.addf %113, %115 : vector<32x2048xf32>
    %117 = arith.mulf %116, %100 : vector<32x2048xf32>
    %118 = vector.extract_strided_slice %102 {offsets = [0, 1], sizes = [32, 1], strides = [1, 1]} : vector<32x10xf32> to vector<32x1xf32>
    %119 = vector.broadcast %118 : vector<32x1xf32> to vector<32x2048xf32>
    %120 = arith.addf %117, %119 : vector<32x2048xf32>
    %121 = arith.mulf %120, %100 : vector<32x2048xf32>
    %122 = vector.extract_strided_slice %102 {offsets = [0, 0], sizes = [32, 1], strides = [1, 1]} : vector<32x10xf32> to vector<32x1xf32>
    %123 = vector.broadcast %122 : vector<32x1xf32> to vector<32x2048xf32>
    %124 = arith.addf %121, %123 : vector<32x2048xf32>
    %125 = vector.extract_strided_slice %102 {offsets = [0, 9], sizes = [32, 1], strides = [1, 1]} : vector<32x10xf32> to vector<32x1xf32>
    %126 = vector.broadcast %125 : vector<32x1xf32> to vector<32x2048xf32>
    %127 = arith.mulf %126, %100 : vector<32x2048xf32>
    %128 = vector.extract_strided_slice %102 {offsets = [0, 8], sizes = [32, 1], strides = [1, 1]} : vector<32x10xf32> to vector<32x1xf32>
    %129 = vector.broadcast %128 : vector<32x1xf32> to vector<32x2048xf32>
    %130 = arith.addf %127, %129 : vector<32x2048xf32>
    %131 = arith.mulf %130, %100 : vector<32x2048xf32>
    %132 = vector.extract_strided_slice %102 {offsets = [0, 7], sizes = [32, 1], strides = [1, 1]} : vector<32x10xf32> to vector<32x1xf32>
    %133 = vector.broadcast %132 : vector<32x1xf32> to vector<32x2048xf32>
    %134 = arith.addf %131, %133 : vector<32x2048xf32>
    %135 = arith.mulf %134, %100 : vector<32x2048xf32>
    %136 = vector.extract_strided_slice %102 {offsets = [0, 6], sizes = [32, 1], strides = [1, 1]} : vector<32x10xf32> to vector<32x1xf32>
    %137 = vector.broadcast %136 : vector<32x1xf32> to vector<32x2048xf32>
    %138 = arith.addf %135, %137 : vector<32x2048xf32>
    %139 = arith.mulf %100, %138 : vector<32x2048xf32>
    %140 = math.absf %139 : vector<32x2048xf32>
    %cst_16 = arith.constant 1.000000e+00 : f32
    %141 = vector.broadcast %cst_16 : f32 to vector<32x2048xf32>
    %142 = arith.addf %141, %140 : vector<32x2048xf32>
    %143 = arith.divf %124, %142 : vector<32x2048xf32>
    %cst_17 = arith.constant dense<0.000000e+00> : vector<1x2048xf32>
    %144 = tpu.matmul %101, %143, %cst_17 {dimension_numbers = #tpu.dot_dimension_numbers<[1], [0], [0], [1], [0, 0, 1, 1], [], []>} : vector<1x32xf32>, vector<32x2048xf32>, vector<1x2048xf32> -> vector<1x2048xf32>
    %145 = vector.extract_strided_slice %1 {offsets = [0, 2], sizes = [1, 1], strides = [1, 1]} : vector<64x3xf32> to vector<1x1xf32>
    %146 = vector.broadcast %145 : vector<1x1xf32> to vector<1x2048xf32>
    %147 = arith.addf %144, %146 : vector<1x2048xf32>
    %c0_18 = arith.constant 0 : index
    %c0_19 = arith.constant 0 : index
    %148 = vector.load %arg7[%c0_18, %c0_19] : memref<1x2048xf32, #tpu.memory_space<vmem>>, vector<1x2048xf32>
    tpu.vector_store %arg7[%c0_18, %c0_19], %147 {strides = array<i32>} : memref<1x2048xf32, #tpu.memory_space<vmem>>, vector<1x2048xf32>,
    return
  }
  func.func @transform_0(%arg0: i32) -> (i32, i32) {
    %c0_i32 = arith.constant 0 : i32
    %c0_i32_0 = arith.constant 0 : i32
    return %c0_i32, %arg0 : i32, i32
  }
  func.func @transform_1(%arg0: i32) -> (i32, i32) {
    %c0_i32 = arith.constant 0 : i32
    %c0_i32_0 = arith.constant 0 : i32
    %c0_i32_1 = arith.constant 0 : i32
    return %c0_i32, %c0_i32_0 : i32, i32
  }
  func.func @transform_2(%arg0: i32) -> (i32, i32) {
    %c0_i32 = arith.constant 0 : i32
    %c0_i32_0 = arith.constant 0 : i32
    %c0_i32_1 = arith.constant 0 : i32
    return %c0_i32, %c0_i32_0 : i32, i32
  }
  func.func @transform_3(%arg0: i32) -> (i32, i32) {
    %c0_i32 = arith.constant 0 : i32
    %c0_i32_0 = arith.constant 0 : i32
    %c0_i32_1 = arith.constant 0 : i32
    return %c0_i32, %c0_i32_0 : i32, i32
  }
  func.func @transform_4(%arg0: i32) -> (i32, i32) {
    %c0_i32 = arith.constant 0 : i32
    %c0_i32_0 = arith.constant 0 : i32
    %c0_i32_1 = arith.constant 0 : i32
    return %c0_i32, %c0_i32_0 : i32, i32
  }
  func.func @transform_5(%arg0: i32) -> (i32, i32) {
    %c0_i32 = arith.constant 0 : i32
    %c0_i32_0 = arith.constant 0 : i32
    %c0_i32_1 = arith.constant 0 : i32
    return %c0_i32, %c0_i32_0 : i32, i32
  }
  func.func @transform_6(%arg0: i32) -> (i32, i32) {
    %c0_i32 = arith.constant 0 : i32
    %c0_i32_0 = arith.constant 0 : i32
    return %c0_i32, %arg0 : i32, i32
  }
}

</mosaic_0001>

<llo_original>
// kernel: _lambda_.1
$region0: #{_lambda_.1}
  #allocation0 [shape = 'u32[]', space=smem, size = 0x4, offset = 0x4, fixed_abs, tag = 'smem constant byte address 0x4 - core index']
  #allocation1 [shape = 'u32[72,128]{1,0:T(1,128)}', space=vmem, size = 0x9000, scoped, tag = 'internal scratch']
  %s0 = inlined_call_operand.hbm [shape: f32[8,4096], index: 0, kind: input, shape index: {}]
  %s1 = inlined_call_operand.hbm [shape: f32[104,10], index: 1, kind: input, shape index: {}]
  %s2 = inlined_call_operand.hbm [shape: f32[64,3], index: 2, kind: input, shape index: {}]
  %s3 = inlined_call_operand.hbm [shape: f32[64,8], index: 3, kind: input, shape index: {}]
  %s4 = inlined_call_operand.hbm [shape: f32[32,64], index: 4, kind: input, shape index: {}]
  %s5 = inlined_call_operand.vmem [shape: f32[1,32], index: 5, kind: input, shape index: {}]
  %s6 = inlined_call_operand.hbm [shape: f32[1,4096], index: 6, kind: output, shape index: {}]
  %s7 = sld [smem:[#allocation0]]
  $region77: #{_lambda_.1} parent=0
    _
  %s9 = ssub.s32 1, %s7
  %s10 = scalar_select 0, %s9, %s7
  $region1: #{_lambda_.1} parent=0
    #allocation2 [shape = 'u8[131072]{0}', space=vmem, size = 0x20000, scoped, tag = 'input window, operand 0']
    #allocation3 [shape = 's32[2]{0}', space=sflag, size = 0x8, scoped, tag = 'scoped memory for _lambda_.1']
    #allocation4 [shape = 's32[2]{0}', space=sflag, size = 0x8, scoped, tag = 'scoped memory for _lambda_.1']
    #allocation5 [shape = 'u8[53248]{0}', space=vmem, size = 0xd000, scoped, tag = 'input window, operand 1, single buffered']
    #allocation6 [shape = 's32[1]{0}', space=sflag, size = 0x4, scoped, tag = 'scoped memory for _lambda_.1']
    #allocation7 [shape = 'u8[32768]{0}', space=vmem, size = 0x8000, scoped, tag = 'input window, operand 2, single buffered']
    #allocation8 [shape = 'u8[32768]{0}', space=vmem, size = 0x8000, scoped, tag = 'input window, operand 3, single buffered']
    #allocation9 [shape = 's32[1]{0}', space=sflag, size = 0x4, scoped, tag = 'scoped memory for _lambda_.1']
    #allocation10 [shape = 'u8[16384]{0}', space=vmem, size = 0x4000, scoped, tag = 'input window, operand 4, single buffered']
    #allocation11 [shape = 'u8[16384]{0}', space=vmem, size = 0x4000, scoped, tag = 'output window, operand 0']
    %11 = vsyncpa [#allocation3], 0
    %s12 = scalar_lea.sflag [#allocation3], 1
    %13 = vsyncpa %s12, 0
    %14 = vsyncpa [#allocation6], 0
    %15 = vsyncpa [#allocation9], 0
    %16 = vsyncpa [#allocation4], 0
    %s17 = scalar_lea.sflag [#allocation4], 1
    %18 = vsyncpa %s17, 0
    loop: start=0, step=1, limit=4
    $region2: #{_lambda_.1} parent=1 // loop_pre_header
      _
    $region3: #{_lambda_.1} parent=1 // loop_header
      %s20 = sphi 0, %s24
      %p21 = scmp.ge.s32.totalorder %s20, 4
      %s30 = sphi 0, %s32
      %s33 = sphi 0, %s30
      %s34 = sphi 0, %s33
      %s50 = sphi 0, %s34
      %s54 = sphi 0, %s54
      %s56 = sphi 0, %s54
      %s57 = sphi 0, %s56
      %s71 = sphi 0, %s57
      %s75 = sphi 0, %s75
      %s77 = sphi 0, %s75
      %s78 = sphi 0, %s77
      %s92 = sphi 0, %s78
      %s96 = sphi 0, %s96
      %s98 = sphi 0, %s96
      %s99 = sphi 0, %s98
      %s113 = sphi 0, %s99
      %s117 = sphi 0, %s117
      %s119 = sphi 0, %s117
      %s120 = sphi 0, %s119
      %s134 = sphi 0, %s120
      %s138 = sphi 0, %s138
      %s140 = sphi 0, %s138
      %s141 = sphi 0, %s140
      %s155 = sphi 0, %s141
      %s161 = sphi 0, %s163
      %s164 = sphi 0, %s161
      %s165 = sphi 0, %s164
      %s181 = sphi 0, %s165
    $region4: #{_lambda_.1} parent=1 // loop_header_branch
      %23 = sbr.rel (%p21) target = $region8
    $region5: #{_lambda_.1} parent=1 // loop_body
      %s25 = ssub.s32 %s20, 1
      %s26 = ssub.s32 %s20, 2
      %s27 = sadd.s32 %s20, 1
      %s28 = ssub.s32 %s20, %s27
      %p29 = scmp.eq.s32.totalorder %s28, 0
      %s31 = sadd.s32 %s30, 1
      %s32 = scalar_select %p29, %s30, %s31
      %p35 = pneg %p29
      %p36 = scmp.eq.s32.totalorder %s20, 1
      %p37 = por %p35, %p36
      %p38 = scmp.ne.s32.totalorder %s30, %s33
      %p39 = scmp.eq.s32.totalorder %s20, 0
      %p40 = por %p38, %p39
      %p41 = scmp.ne.s32.totalorder %s30, %s33
      %p42 = scmp.eq.s32.totalorder %s25, 1
      %p43 = por %p41, %p42
      %p44 = scmp.ne.s32.totalorder %s33, %s34
      %p45 = scmp.eq.s32.totalorder %s25, 0
      %p46 = por %p44, %p45
      %p47 = scmp.ne.s32.totalorder %s33, %s34
      %p48 = scmp.eq.s32.totalorder %s26, 1
      %p49 = por %p47, %p48
      %p51 = scmp.ne.s32.totalorder %s34, %s50
      %p52 = scmp.eq.s32.totalorder %s26, 0
      %p53 = por %p51, %p52
      %s55 = sadd.s32 %s54, 1
      %p58 = scmp.eq.s32.totalorder %s20, 1
      %p59 = scmp.ne.s32.totalorder %s54, %s56
      %p60 = scmp.eq.s32.totalorder %s20, 0
      %p61 = por %p59, %p60
      %p62 = scmp.ne.s32.totalorder %s54, %s56
      %p63 = scmp.eq.s32.totalorder %s25, 1
      %p64 = por %p62, %p63
      %p65 = scmp.ne.s32.totalorder %s56, %s57
      %p66 = scmp.eq.s32.totalorder %s25, 0
      %p67 = por %p65, %p66
      %p68 = scmp.ne.s32.totalorder %s56, %s57
      %p69 = scmp.eq.s32.totalorder %s26, 1
      %p70 = por %p68, %p69
      %p72 = scmp.ne.s32.totalorder %s57, %s71
      %p73 = scmp.eq.s32.totalorder %s26, 0
      %p74 = por %p72, %p73
      %s76 = sadd.s32 %s75, 1
      %p79 = scmp.eq.s32.totalorder %s20, 1
      %p80 = scmp.ne.s32.totalorder %s75, %s77
      %p81 = scmp.eq.s32.totalorder %s20, 0
      %p82 = por %p80, %p81
      %p83 = scmp.ne.s32.totalorder %s75, %s77
      %p84 = scmp.eq.s32.totalorder %s25, 1
      %p85 = por %p83, %p84
      %p86 = scmp.ne.s32.totalorder %s77, %s78
      %p87 = scmp.eq.s32.totalorder %s25, 0
      %p88 = por %p86, %p87
      %p89 = scmp.ne.s32.totalorder %s77, %s78
      %p90 = scmp.eq.s32.totalorder %s26, 1
      %p91 = por %p89, %p90
      %p93 = scmp.ne.s32.totalorder %s78, %s92
      %p94 = scmp.eq.s32.totalorder %s26, 0
      %p95 = por %p93, %p94
      %s97 = sadd.s32 %s96, 1
      %p100 = scmp.eq.s32.totalorder %s20, 1
      %p101 = scmp.ne.s32.totalorder %s96, %s98
      %p102 = scmp.eq.s32.totalorder %s20, 0
      %p103 = por %p101, %p102
      %p104 = scmp.ne.s32.totalorder %s96, %s98
      %p105 = scmp.eq.s32.totalorder %s25, 1
      %p106 = por %p104, %p105
      %p107 = scmp.ne.s32.totalorder %s98, %s99
      %p108 = scmp.eq.s32.totalorder %s25, 0
      %p109 = por %p107, %p108
      %p110 = scmp.ne.s32.totalorder %s98, %s99
      %p111 = scmp.eq.s32.totalorder %s26, 1
      %p112 = por %p110, %p111
      %p114 = scmp.ne.s32.totalorder %s99, %s113
      %p115 = scmp.eq.s32.totalorder %s26, 0
      %p116 = por %p114, %p115
      %s118 = sadd.s32 %s117, 1
      %p121 = scmp.eq.s32.totalorder %s20, 1
      %p122 = scmp.ne.s32.totalorder %s117, %s119
      %p123 = scmp.eq.s32.totalorder %s20, 0
      %p124 = por %p122, %p123
      %p125 = scmp.ne.s32.totalorder %s117, %s119
      %p126 = scmp.eq.s32.totalorder %s25, 1
      %p127 = por %p125, %p126
      %p128 = scmp.ne.s32.totalorder %s119, %s120
      %p129 = scmp.eq.s32.totalorder %s25, 0
      %p130 = por %p128, %p129
      %p131 = scmp.ne.s32.totalorder %s119, %s120
      %p132 = scmp.eq.s32.totalorder %s26, 1
      %p133 = por %p131, %p132
      %p135 = scmp.ne.s32.totalorder %s120, %s134
      %p136 = scmp.eq.s32.totalorder %s26, 0
      %p137 = por %p135, %p136
      %s139 = sadd.s32 %s138, 1
      %p142 = scmp.eq.s32.totalorder %s20, 1
      %p143 = scmp.ne.s32.totalorder %s138, %s140
      %p144 = scmp.eq.s32.totalorder %s20, 0
      %p145 = por %p143, %p144
      %p146 = scmp.ne.s32.totalorder %s138, %s140
      %p147 = scmp.eq.s32.totalorder %s25, 1
      %p148 = por %p146, %p147
      %p149 = scmp.ne.s32.totalorder %s140, %s141
      %p150 = scmp.eq.s32.totalorder %s25, 0
      %p151 = por %p149, %p150
      %p152 = scmp.ne.s32.totalorder %s140, %s141
      %p153 = scmp.eq.s32.totalorder %s26, 1
      %p154 = por %p152, %p153
      %p156 = scmp.ne.s32.totalorder %s141, %s155
      %p157 = scmp.eq.s32.totalorder %s26, 0
      %p158 = por %p156, %p157
      %s159 = ssub.s32 %s20, %s27
      %p160 = scmp.eq.s32.totalorder %s159, 0
      %s162 = sadd.s32 %s161, 1
      %s163 = scalar_select %p160, %s161, %s162
      %p166 = pneg %p160
      %p167 = scmp.eq.s32.totalorder %s20, 1
      %p168 = por %p166, %p167
      %p169 = scmp.ne.s32.totalorder %s161, %s164
      %p170 = scmp.eq.s32.totalorder %s20, 0
      %p171 = por %p169, %p170
      %p172 = scmp.ne.s32.totalorder %s161, %s164
      %p173 = scmp.eq.s32.totalorder %s25, 1
      %p174 = por %p172, %p173
      %p175 = scmp.ne.s32.totalorder %s164, %s165
      %p176 = scmp.eq.s32.totalorder %s25, 0
      %p177 = por %p175, %p176
      %p178 = scmp.ne.s32.totalorder %s164, %s165
      %p179 = scmp.eq.s32.totalorder %s26, 1
      %p180 = por %p178, %p179
      %p182 = scmp.ne.s32.totalorder %s165, %s181
      %p183 = scmp.eq.s32.totalorder %s26, 0
      %p184 = por %p182, %p183
      %p185 = scmp.le.s32.totalorder 1, %s20
      %p186 = scmp.lt.s32.totalorder %s20, 3
      %p187 = pnand %p185, %p186
      %p188 = pneg %p187
      // Predicated region
      $region9: #{_lambda_.1} parent=5 // pred_check
        _
      $region10: #{_lambda_.1} parent=5 // pred_check_branch
        %190 = sbr.rel (%p187) target = $region12
      $region11: #{_lambda_.1} parent=5 // pred_region
        %s191 = ssub.s32 %s20, 1
        // Predicated region
        $region13: #{_lambda_.1} parent=11 // pred_check
          %p192 = pneg %p67
        $region14: #{_lambda_.1} parent=11 // pred_check_branch
          %194 = sbr.rel (%p192) target = $region16
        $region15: #{_lambda_.1} parent=11 // pred_region
          %196 = vsyncadd [#allocation6], 0
          %s197 = sshll.u32 %s1, 4
          %s198 = int_to_ptr.hbm [resolvable:$true] %s197
          %s199 = sshll.u32 [#allocation5], 4
          %s200 = int_to_ptr.vmem [resolvable:$true] %s199
          %205 = dma.hbm_to_vmem [thread:$0]  %s198, 1664, %s200, [#allocation6], 128, 128, 8
        $region16: #{_lambda_.1} parent=11 // pred_fallthru
          _
        // Predicated region
        $region17: #{_lambda_.1} parent=11 // pred_check
          %p206 = pneg %p88
        $region18: #{_lambda_.1} parent=11 // pred_check_branch
          %208 = sbr.rel (%p206) target = $region20
        $region19: #{_lambda_.1} parent=11 // pred_region
          %210 = vsyncadd [#allocation6], 0
          %s211 = sshll.u32 %s2, 4
          %s212 = int_to_ptr.hbm [resolvable:$true] %s211
          %s213 = sshll.u32 [#allocation7], 4
          %s214 = int_to_ptr.vmem [resolvable:$true] %s213
          %219 = dma.hbm_to_vmem [thread:$0]  %s212, 1024, %s214, [#allocation6], 128, 128, 8
        $region20: #{_lambda_.1} parent=11 // pred_fallthru
          _
        // Predicated region
        $region21: #{_lambda_.1} parent=11 // pred_check
          %p220 = pneg %p109
        $region22: #{_lambda_.1} parent=11 // pred_check_branch
          %222 = sbr.rel (%p220) target = $region24
        $region23: #{_lambda_.1} parent=11 // pred_region
          %224 = vsyncadd [#allocation9], 0
          %s225 = sshll.u32 %s3, 4
          %s226 = int_to_ptr.hbm [resolvable:$true] %s225
          %s227 = sshll.u32 [#allocation8], 4
          %s228 = int_to_ptr.vmem [resolvable:$true] %s227
          %233 = dma.hbm_to_vmem [thread:$0]  %s226, 1024, %s228, [#allocation9], 128, 128, 8
        $region24: #{_lambda_.1} parent=11 // pred_fallthru
          _
        // Predicated region
        $region25: #{_lambda_.1} parent=11 // pred_check
          %p234 = pneg %p130
        $region26: #{_lambda_.1} parent=11 // pred_check_branch
          %236 = sbr.rel (%p234) target = $region28
        $region27: #{_lambda_.1} parent=11 // pred_region
          %238 = vsyncadd [#allocation9], 0
          %s239 = sshll.u32 %s4, 4
          %s240 = int_to_ptr.hbm [resolvable:$true] %s239
          %s241 = sshll.u32 [#allocation10], 4
          %s242 = int_to_ptr.vmem [resolvable:$true] %s241
          %247 = dma.hbm_to_vmem [thread:$0]  %s240, 512, %s242, [#allocation9], 128, 128, 8
        $region28: #{_lambda_.1} parent=11 // pred_fallthru
          _
        // Predicated region
        $region29: #{_lambda_.1} parent=11 // pred_check
          %p248 = pneg %p151
        $region30: #{_lambda_.1} parent=11 // pred_check_branch
          %250 = sbr.rel (%p248) target = $region32
        $region31: #{_lambda_.1} parent=11 // pred_region
          _
        $region32: #{_lambda_.1} parent=11 // pred_fallthru
          _
      $region12: #{_lambda_.1} parent=5 // pred_fallthru
        _
      %p251 = scmp.lt.s32.totalorder %s20, 2
      // Predicated region
      $region33: #{_lambda_.1} parent=5 // pred_check
        %p252 = pneg %p251
      $region34: #{_lambda_.1} parent=5 // pred_check_branch
        %254 = sbr.rel (%p252) target = $region36
      $region35: #{_lambda_.1} parent=5 // pred_region
        // Predicated region
        $region37: #{_lambda_.1} parent=35 // pred_check
          %p255 = pneg %p40
        $region38: #{_lambda_.1} parent=35 // pred_check_branch
          %257 = sbr.rel (%p255) target = $region40
        $region39: #{_lambda_.1} parent=35 // pred_region
          %s258 = sand.u32 %s30, 1
          %s259 = scalar_lea.sflag [#allocation3], %s258
          %s260 = sand.u32 %s30, 1
          %s261 = smul.addr %s260, 128
          %s262 = scalar_lea.vmem [#allocation2], %s261
          %s263 = smul.u32 16, %s20
          %265 = vsyncadd %s259, 0
          %s266 = smul.addr %s263, 8
          %s267 = scalar_lea.hbm %s0, %s266
          %s269 = sshll.u32 %s267, 4
          %s270 = int_to_ptr.hbm [resolvable:$true] %s269
          %s271 = sshll.u32 %s262, 4
          %s272 = int_to_ptr.vmem [resolvable:$true] %s271
          %274 = dma.hbm_to_vmem [thread:$0]  %s270, 2048, %s272, %s259
        $region40: #{_lambda_.1} parent=35 // pred_fallthru
          _
      $region36: #{_lambda_.1} parent=5 // pred_fallthru
        _
      %p275 = scmp.le.s32.totalorder 1, %s20
      %p276 = scmp.lt.s32.totalorder %s20, 3
      %p277 = pnand %p275, %p276
      %p278 = pneg %p277
      // Predicated region
      $region41: #{_lambda_.1} parent=5 // pred_check
        _
      $region42: #{_lambda_.1} parent=5 // pred_check_branch
        %280 = sbr.rel (%p277) target = $region44
      $region43: #{_lambda_.1} parent=5 // pred_region
        %s281 = ssub.s32 %s20, 1
        %s282 = sand.u32 %s33, 1
        %s283 = scalar_lea.sflag [#allocation3], %s282
        %s284 = sand.u32 %s33, 1
        %s285 = smul.addr %s284, 128
        %s286 = scalar_lea.vmem [#allocation2], %s285
        // Predicated region
        $region45: #{_lambda_.1} parent=43 // pred_check
          %p287 = pneg %p46
        $region46: #{_lambda_.1} parent=43 // pred_check_branch
          %289 = sbr.rel (%p287) target = $region48
        $region47: #{_lambda_.1} parent=43 // pred_region
          %291 = dma.done %s283, 2048
        $region48: #{_lambda_.1} parent=43 // pred_fallthru
          _
        // Predicated region
        $region49: #{_lambda_.1} parent=43 // pred_check
          %p292 = pneg %p67
        $region50: #{_lambda_.1} parent=43 // pred_check_branch
          %294 = sbr.rel (%p292) target = $region52
        $region51: #{_lambda_.1} parent=43 // pred_region
          %296 = dma.done [#allocation6], 1664
        $region52: #{_lambda_.1} parent=43 // pred_fallthru
          _
        // Predicated region
        $region53: #{_lambda_.1} parent=43 // pred_check
          %p297 = pneg %p88
        $region54: #{_lambda_.1} parent=43 // pred_check_branch
          %299 = sbr.rel (%p297) target = $region56
        $region55: #{_lambda_.1} parent=43 // pred_region
          %301 = dma.done [#allocation6], 1024
        $region56: #{_lambda_.1} parent=43 // pred_fallthru
          _
        // Predicated region
        $region57: #{_lambda_.1} parent=43 // pred_check
          %p302 = pneg %p109
        $region58: #{_lambda_.1} parent=43 // pred_check_branch
          %304 = sbr.rel (%p302) target = $region60
        $region59: #{_lambda_.1} parent=43 // pred_region
          %306 = dma.done [#allocation9], 1024
        $region60: #{_lambda_.1} parent=43 // pred_fallthru
          _
        // Predicated region
        $region61: #{_lambda_.1} parent=43 // pred_check
          %p307 = pneg %p130
        $region62: #{_lambda_.1} parent=43 // pred_check_branch
          %309 = sbr.rel (%p307) target = $region64
        $region63: #{_lambda_.1} parent=43 // pred_region
          %311 = dma.done [#allocation9], 512
        $region64: #{_lambda_.1} parent=43 // pred_fallthru
          _
        %s312 = sand.u32 %s33, 1
        %s313 = scalar_lea.sflag [#allocation3], %s312
        %s314 = sand.u32 %s33, 1
        %s315 = smul.addr %s314, 128
        %s316 = scalar_lea.vmem [#allocation2], %s315
        %p317 = pneg %p46
        %p318 = pneg %p43
        %p319 = pneg %p67
        %p320 = pneg %p64
        %p321 = pneg %p88
        %p322 = pneg %p85
        %p323 = pneg %p109
        %p324 = pneg %p106
        %p325 = pneg %p130
        %p326 = pneg %p127
        %p327 = pneg %p151
        %p328 = pneg %p148
        %p329 = pneg %p177
        %p330 = pneg %p174
        %s331 = sand.u32 %s164, 1
        %s332 = scalar_lea.sflag [#allocation4], %s331
        %s333 = sand.u32 %s164, 1
        %s334 = smul.addr %s333, 16
        %s335 = scalar_lea.vmem [#allocation11], %s334
        %s336 = smul.u32 16, %s25
        %s337 = smul.u32 16, %s25
        %v338 = vld [vmem:[#allocation5] sm:$0xff]
        %v339 = vld [vmem:[#allocation5 + $0x8] sm:$0xff]
        %v340 = vld [vmem:[#allocation5 + $0x10] sm:$0xff]
        %v341 = vld [vmem:[#allocation5 + $0x18] sm:$0xff]
        %v342 = vld [vmem:[#allocation5 + $0x20] sm:$0xff]
        %v343 = vld [vmem:[#allocation5 + $0x28] sm:$0xff]
        %v344 = vld [vmem:[#allocation5 + $0x30] sm:$0xff]
        %v345 = vld [vmem:[#allocation5 + $0x38] sm:$0xff]
        %v346 = vld [vmem:[#allocation5 + $0x40] sm:$0xff]
        %v347 = vld [vmem:[#allocation5 + $0x48] sm:$0xff]
        %v348 = vld [vmem:[#allocation5 + $0x50] sm:$0xff]
        %v349 = vld [vmem:[#allocation5 + $0x58] sm:$0xff]
        %v350 = vld [vmem:[#allocation5 + $0x60] sm:$0xff]
        %v351 = vld [vmem:[#allocation7] sm:$0xff]
        %v352 = vld [vmem:[#allocation7 + $0x8] sm:$0xff]
        %v353 = vld [vmem:[#allocation7 + $0x10] sm:$0xff]
        %v354 = vld [vmem:[#allocation7 + $0x18] sm:$0xff]
        %v355 = vld [vmem:[#allocation7 + $0x20] sm:$0xff]
        %v356 = vld [vmem:[#allocation7 + $0x28] sm:$0xff]
        %v357 = vld [vmem:[#allocation7 + $0x30] sm:$0xff]
        %v358 = vld [vmem:[#allocation7 + $0x38] sm:$0xff]
        %v359 = vld [vmem:[%s286] sm:$0xff]
        %v360 = vld [vmem:[%s286 + $0x8] sm:$0xff]
        %v361 = vld [vmem:[%s286 + $0x10] sm:$0xff]
        %v362 = vld [vmem:[%s286 + $0x18] sm:$0xff]
        %v363 = vld [vmem:[%s286 + $0x20] sm:$0xff]
        %v364 = vld [vmem:[%s286 + $0x28] sm:$0xff]
        %v365 = vld [vmem:[%s286 + $0x30] sm:$0xff]
        %v366 = vld [vmem:[%s286 + $0x38] sm:$0xff]
        %v367 = vld [vmem:[%s286 + $0x40] sm:$0xff]
        %v368 = vld [vmem:[%s286 + $0x48] sm:$0xff]
        %v369 = vld [vmem:[%s286 + $0x50] sm:$0xff]
        %v370 = vld [vmem:[%s286 + $0x58] sm:$0xff]
        %v371 = vld [vmem:[%s286 + $0x60] sm:$0xff]
        %v372 = vld [vmem:[%s286 + $0x68] sm:$0xff]
        %v373 = vld [vmem:[%s286 + $0x70] sm:$0xff]
        %v374 = vld [vmem:[%s286 + $0x78] sm:$0xff]
        %v375 = vld [vmem:[#allocation8] sm:$0xff]
        %v376 = vld [vmem:[#allocation8 + $0x8] sm:$0xff]
        %v377 = vld [vmem:[#allocation8 + $0x10] sm:$0xff]
        %v378 = vld [vmem:[#allocation8 + $0x18] sm:$0xff]
        %v379 = vld [vmem:[#allocation8 + $0x20] sm:$0xff]
        %v380 = vld [vmem:[#allocation8 + $0x28] sm:$0xff]
        %v381 = vld [vmem:[#allocation8 + $0x30] sm:$0xff]
        %v382 = vld [vmem:[#allocation8 + $0x38] sm:$0xff]
        %384 = vset.pattern.permute.xlu0 5
        %385 = vperm.xlu0 %384, %v338
        %v386 = vpop.permute.xlu0 %385
        %v388 = vmul.f32 %v386, %v359
        %v389 = vmul.f32 %v386, %v360
        %v390 = vmul.f32 %v386, %v361
        %v391 = vmul.f32 %v386, %v362
        %v392 = vmul.f32 %v386, %v363
        %v393 = vmul.f32 %v386, %v364
        %v394 = vmul.f32 %v386, %v365
        %v395 = vmul.f32 %v386, %v366
        %v396 = vmul.f32 %v386, %v367
        %v397 = vmul.f32 %v386, %v368
        %v398 = vmul.f32 %v386, %v369
        %v399 = vmul.f32 %v386, %v370
        %v400 = vmul.f32 %v386, %v371
        %v401 = vmul.f32 %v386, %v372
        %v402 = vmul.f32 %v386, %v373
        %v403 = vmul.f32 %v386, %v374
        %404 = vset.pattern.permute.xlu0 4
        %405 = vperm.xlu0 %404, %v338
        %v406 = vpop.permute.xlu0 %405
        %v408 = vadd.f32 %v388, %v406
        %v409 = vadd.f32 %v389, %v406
        %v410 = vadd.f32 %v390, %v406
        %v411 = vadd.f32 %v391, %v406
        %v412 = vadd.f32 %v392, %v406
        %v413 = vadd.f32 %v393, %v406
        %v414 = vadd.f32 %v394, %v406
        %v415 = vadd.f32 %v395, %v406
        %v416 = vadd.f32 %v396, %v406
        %v417 = vadd.f32 %v397, %v406
        %v418 = vadd.f32 %v398, %v406
        %v419 = vadd.f32 %v399, %v406
        %v420 = vadd.f32 %v400, %v406
        %v421 = vadd.f32 %v401, %v406
        %v422 = vadd.f32 %v402, %v406
        %v423 = vadd.f32 %v403, %v406
        %v424 = vmul.f32 %v408, %v359
        %v425 = vmul.f32 %v409, %v360
        %v426 = vmul.f32 %v410, %v361
        %v427 = vmul.f32 %v411, %v362
        %v428 = vmul.f32 %v412, %v363
        %v429 = vmul.f32 %v413, %v364
        %v430 = vmul.f32 %v414, %v365
        %v431 = vmul.f32 %v415, %v366
        %v432 = vmul.f32 %v416, %v367
        %v433 = vmul.f32 %v417, %v368
        %v434 = vmul.f32 %v418, %v369
        %v435 = vmul.f32 %v419, %v370
        %v436 = vmul.f32 %v420, %v371
        %v437 = vmul.f32 %v421, %v372
        %v438 = vmul.f32 %v422, %v373
        %v439 = vmul.f32 %v423, %v374
        %440 = vset.pattern.permute.xlu0 3
        %441 = vperm.xlu0 %440, %v338
        %v442 = vpop.permute.xlu0 %441
        %v444 = vadd.f32 %v424, %v442
        %v445 = vadd.f32 %v425, %v442
        %v446 = vadd.f32 %v426, %v442
        %v447 = vadd.f32 %v427, %v442
        %v448 = vadd.f32 %v428, %v442
        %v449 = vadd.f32 %v429, %v442
        %v450 = vadd.f32 %v430, %v442
        %v451 = vadd.f32 %v431, %v442
        %v452 = vadd.f32 %v432, %v442
        %v453 = vadd.f32 %v433, %v442
        %v454 = vadd.f32 %v434, %v442
        %v455 = vadd.f32 %v435, %v442
        %v456 = vadd.f32 %v436, %v442
        %v457 = vadd.f32 %v437, %v442
        %v458 = vadd.f32 %v438, %v442
        %v459 = vadd.f32 %v439, %v442
        %v460 = vmul.f32 %v444, %v359
        %v461 = vmul.f32 %v445, %v360
        %v462 = vmul.f32 %v446, %v361
        %v463 = vmul.f32 %v447, %v362
        %v464 = vmul.f32 %v448, %v363
        %v465 = vmul.f32 %v449, %v364
        %v466 = vmul.f32 %v450, %v365
        %v467 = vmul.f32 %v451, %v366
        %v468 = vmul.f32 %v452, %v367
        %v469 = vmul.f32 %v453, %v368
        %v470 = vmul.f32 %v454, %v369
        %v471 = vmul.f32 %v455, %v370
        %v472 = vmul.f32 %v456, %v371
        %v473 = vmul.f32 %v457, %v372
        %v474 = vmul.f32 %v458, %v373
        %v475 = vmul.f32 %v459, %v374
        %476 = vset.pattern.permute.xlu0 2
        %477 = vperm.xlu0 %476, %v338
        %v478 = vpop.permute.xlu0 %477
        %v480 = vadd.f32 %v460, %v478
        %v481 = vadd.f32 %v461, %v478
        %v482 = vadd.f32 %v462, %v478
        %v483 = vadd.f32 %v463, %v478
        %v484 = vadd.f32 %v464, %v478
        %v485 = vadd.f32 %v465, %v478
        %v486 = vadd.f32 %v466, %v478
        %v487 = vadd.f32 %v467, %v478
        %v488 = vadd.f32 %v468, %v478
        %v489 = vadd.f32 %v469, %v478
        %v490 = vadd.f32 %v470, %v478
        %v491 = vadd.f32 %v471, %v478
        %v492 = vadd.f32 %v472, %v478
        %v493 = vadd.f32 %v473, %v478
        %v494 = vadd.f32 %v474, %v478
        %v495 = vadd.f32 %v475, %v478
        %v496 = vmul.f32 %v480, %v359
        %v497 = vmul.f32 %v481, %v360
        %v498 = vmul.f32 %v482, %v361
        %v499 = vmul.f32 %v483, %v362
        %v500 = vmul.f32 %v484, %v363
        %v501 = vmul.f32 %v485, %v364
        %v502 = vmul.f32 %v486, %v365
        %v503 = vmul.f32 %v487, %v366
        %v504 = vmul.f32 %v488, %v367
        %v505 = vmul.f32 %v489, %v368
        %v506 = vmul.f32 %v490, %v369
        %v507 = vmul.f32 %v491, %v370
        %v508 = vmul.f32 %v492, %v371
        %v509 = vmul.f32 %v493, %v372
        %v510 = vmul.f32 %v494, %v373
        %v511 = vmul.f32 %v495, %v374
        %512 = vset.pattern.permute.xlu0 1
        %513 = vperm.xlu0 %512, %v338
        %v514 = vpop.permute.xlu0 %513
        %v516 = vadd.f32 %v496, %v514
        %v517 = vadd.f32 %v497, %v514
        %v518 = vadd.f32 %v498, %v514
        %v519 = vadd.f32 %v499, %v514
        %v520 = vadd.f32 %v500, %v514
        %v521 = vadd.f32 %v501, %v514
        %v522 = vadd.f32 %v502, %v514
        %v523 = vadd.f32 %v503, %v514
        %v524 = vadd.f32 %v504, %v514
        %v525 = vadd.f32 %v505, %v514
        %v526 = vadd.f32 %v506, %v514
        %v527 = vadd.f32 %v507, %v514
        %v528 = vadd.f32 %v508, %v514
        %v529 = vadd.f32 %v509, %v514
        %v530 = vadd.f32 %v510, %v514
        %v531 = vadd.f32 %v511, %v514
        %v532 = vmul.f32 %v516, %v359
        %v533 = vmul.f32 %v517, %v360
        %v534 = vmul.f32 %v518, %v361
        %v535 = vmul.f32 %v519, %v362
        %v536 = vmul.f32 %v520, %v363
        %v537 = vmul.f32 %v521, %v364
        %v538 = vmul.f32 %v522, %v365
        %v539 = vmul.f32 %v523, %v366
        %v540 = vmul.f32 %v524, %v367
        %v541 = vmul.f32 %v525, %v368
        %v542 = vmul.f32 %v526, %v369
        %v543 = vmul.f32 %v527, %v370
        %v544 = vmul.f32 %v528, %v371
        %v545 = vmul.f32 %v529, %v372
        %v546 = vmul.f32 %v530, %v373
        %v547 = vmul.f32 %v531, %v374
        %548 = vset.pattern.permute.xlu0 0
        %549 = vperm.xlu0 %548, %v338
        %v550 = vpop.permute.xlu0 %549
        %v552 = vadd.f32 %v532, %v550
        %v553 = vadd.f32 %v533, %v550
        %v554 = vadd.f32 %v534, %v550
        %v555 = vadd.f32 %v535, %v550
        %v556 = vadd.f32 %v536, %v550
        %v557 = vadd.f32 %v537, %v550
        %v558 = vadd.f32 %v538, %v550
        %v559 = vadd.f32 %v539, %v550
        %v560 = vadd.f32 %v540, %v550
        %v561 = vadd.f32 %v541, %v550
        %v562 = vadd.f32 %v542, %v550
        %v563 = vadd.f32 %v543, %v550
        %v564 = vadd.f32 %v544, %v550
        %v565 = vadd.f32 %v545, %v550
        %v566 = vadd.f32 %v546, %v550
        %v567 = vadd.f32 %v547, %v550
        %568 = vset.pattern.permute.xlu0 9
        %569 = vperm.xlu0 %568, %v338
        %v570 = vpop.permute.xlu0 %569
        %v572 = vmul.f32 %v570, %v359
        %v573 = vmul.f32 %v570, %v360
        %v574 = vmul.f32 %v570, %v361
        %v575 = vmul.f32 %v570, %v362
        %v576 = vmul.f32 %v570, %v363
        %v577 = vmul.f32 %v570, %v364
        %v578 = vmul.f32 %v570, %v365
        %v579 = vmul.f32 %v570, %v366
        %v580 = vmul.f32 %v570, %v367
        %v581 = vmul.f32 %v570, %v368
        %v582 = vmul.f32 %v570, %v369
        %v583 = vmul.f32 %v570, %v370
        %v584 = vmul.f32 %v570, %v371
        %v585 = vmul.f32 %v570, %v372
        %v586 = vmul.f32 %v570, %v373
        %v587 = vmul.f32 %v570, %v374
        %588 = vset.pattern.permute.xlu0 8
        %589 = vperm.xlu0 %588, %v338
        %v590 = vpop.permute.xlu0 %589
        %v592 = vadd.f32 %v572, %v590
        %v593 = vadd.f32 %v573, %v590
        %v594 = vadd.f32 %v574, %v590
        %v595 = vadd.f32 %v575, %v590
        %v596 = vadd.f32 %v576, %v590
        %v597 = vadd.f32 %v577, %v590
        %v598 = vadd.f32 %v578, %v590
        %v599 = vadd.f32 %v579, %v590
        %v600 = vadd.f32 %v580, %v590
        %v601 = vadd.f32 %v581, %v590
        %v602 = vadd.f32 %v582, %v590
        %v603 = vadd.f32 %v583, %v590
        %v604 = vadd.f32 %v584, %v590
        %v605 = vadd.f32 %v585, %v590
        %v606 = vadd.f32 %v586, %v590
        %v607 = vadd.f32 %v587, %v590
        %v608 = vmul.f32 %v592, %v359
        %v609 = vmul.f32 %v593, %v360
        %v610 = vmul.f32 %v594, %v361
        %v611 = vmul.f32 %v595, %v362
        %v612 = vmul.f32 %v596, %v363
        %v613 = vmul.f32 %v597, %v364
        %v614 = vmul.f32 %v598, %v365
        %v615 = vmul.f32 %v599, %v366
        %v616 = vmul.f32 %v600, %v367
        %v617 = vmul.f32 %v601, %v368
        %v618 = vmul.f32 %v602, %v369
        %v619 = vmul.f32 %v603, %v370
        %v620 = vmul.f32 %v604, %v371
        %v621 = vmul.f32 %v605, %v372
        %v622 = vmul.f32 %v606, %v373
        %v623 = vmul.f32 %v607, %v374
        %624 = vset.pattern.permute.xlu0 7
        %625 = vperm.xlu0 %624, %v338
        %v626 = vpop.permute.xlu0 %625
        %v628 = vadd.f32 %v608, %v626
        %v629 = vadd.f32 %v609, %v626
        %v630 = vadd.f32 %v610, %v626
        %v631 = vadd.f32 %v611, %v626
        %v632 = vadd.f32 %v612, %v626
        %v633 = vadd.f32 %v613, %v626
        %v634 = vadd.f32 %v614, %v626
        %v635 = vadd.f32 %v615, %v626
        %v636 = vadd.f32 %v616, %v626
        %v637 = vadd.f32 %v617, %v626
        %v638 = vadd.f32 %v618, %v626
        %v639 = vadd.f32 %v619, %v626
        %v640 = vadd.f32 %v620, %v626
        %v641 = vadd.f32 %v621, %v626
        %v642 = vadd.f32 %v622, %v626
        %v643 = vadd.f32 %v623, %v626
        %v644 = vmul.f32 %v628, %v359
        %v645 = vmul.f32 %v629, %v360
        %v646 = vmul.f32 %v630, %v361
        %v647 = vmul.f32 %v631, %v362
        %v648 = vmul.f32 %v632, %v363
        %v649 = vmul.f32 %v633, %v364
        %v650 = vmul.f32 %v634, %v365
        %v651 = vmul.f32 %v635, %v366
        %v652 = vmul.f32 %v636, %v367
        %v653 = vmul.f32 %v637, %v368
        %v654 = vmul.f32 %v638, %v369
        %v655 = vmul.f32 %v639, %v370
        %v656 = vmul.f32 %v640, %v371
        %v657 = vmul.f32 %v641, %v372
        %v658 = vmul.f32 %v642, %v373
        %v659 = vmul.f32 %v643, %v374
        %660 = vset.pattern.permute.xlu0 6
        %661 = vperm.xlu0 %660, %v338
        %v662 = vpop.permute.xlu0 %661
        %v664 = vadd.f32 %v644, %v662
        %v665 = vadd.f32 %v645, %v662
        %v666 = vadd.f32 %v646, %v662
        %v667 = vadd.f32 %v647, %v662
        %v668 = vadd.f32 %v648, %v662
        %v669 = vadd.f32 %v649, %v662
        %v670 = vadd.f32 %v650, %v662
        %v671 = vadd.f32 %v651, %v662
        %v672 = vadd.f32 %v652, %v662
        %v673 = vadd.f32 %v653, %v662
        %v674 = vadd.f32 %v654, %v662
        %v675 = vadd.f32 %v655, %v662
        %v676 = vadd.f32 %v656, %v662
        %v677 = vadd.f32 %v657, %v662
        %v678 = vadd.f32 %v658, %v662
        %v679 = vadd.f32 %v659, %v662
        %v680 = vmul.f32 %v359, %v664
        %v681 = vmul.f32 %v360, %v665
        %v682 = vmul.f32 %v361, %v666
        %v683 = vmul.f32 %v362, %v667
        %v684 = vmul.f32 %v363, %v668
        %v685 = vmul.f32 %v364, %v669
        %v686 = vmul.f32 %v365, %v670
        %v687 = vmul.f32 %v366, %v671
        %v688 = vmul.f32 %v367, %v672
        %v689 = vmul.f32 %v368, %v673
        %v690 = vmul.f32 %v369, %v674
        %v691 = vmul.f32 %v370, %v675
        %v692 = vmul.f32 %v371, %v676
        %v693 = vmul.f32 %v372, %v677
        %v694 = vmul.f32 %v373, %v678
        %v695 = vmul.f32 %v374, %v679
        %v696 = vand.u32 2147483647, %v680
        %v697 = vand.u32 2147483647, %v681
        %v698 = vand.u32 2147483647, %v682
        %v699 = vand.u32 2147483647, %v683
        %v700 = vand.u32 2147483647, %v684
        %v701 = vand.u32 2147483647, %v685
        %v702 = vand.u32 2147483647, %v686
        %v703 = vand.u32 2147483647, %v687
        %v704 = vand.u32 2147483647, %v688
        %v705 = vand.u32 2147483647, %v689
        %v706 = vand.u32 2147483647, %v690
        %v707 = vand.u32 2147483647, %v691
        %v708 = vand.u32 2147483647, %v692
        %v709 = vand.u32 2147483647, %v693
        %v710 = vand.u32 2147483647, %v694
        %v711 = vand.u32 2147483647, %v695
        %v712 = vadd.f32 %v696, 1.0
        %v713 = vadd.f32 %v697, 1.0
        %v714 = vadd.f32 %v698, 1.0
        %v715 = vadd.f32 %v699, 1.0
        %v716 = vadd.f32 %v700, 1.0
        %v717 = vadd.f32 %v701, 1.0
        %v718 = vadd.f32 %v702, 1.0
        %v719 = vadd.f32 %v703, 1.0
        %v720 = vadd.f32 %v704, 1.0
        %v721 = vadd.f32 %v705, 1.0
        %v722 = vadd.f32 %v706, 1.0
        %v723 = vadd.f32 %v707, 1.0
        %v724 = vadd.f32 %v708, 1.0
        %v725 = vadd.f32 %v709, 1.0
        %v726 = vadd.f32 %v710, 1.0
        %v727 = vadd.f32 %v711, 1.0
        %v728 = vrcp.pop %v712
        %v729 = vmul.f32 %v712, %v728
        %v730 = vsub.f32 1.0, %v729
        %v731 = vmul.f32 %v728, %v730
        %v732 = vadd.f32 %v728, %v731
        %vm733 = vweird.f32 %v712
        %vm734 = vweird.f32 %v728
        %vm735 = vmor %vm733, %vm734
        %v736 = vsel %vm735, %v728, %v732
        %v737 = vand.u32 2147483647, %v712
        %vm738 = vcmp.eq.f32.partialorder %v737, 8.507059e+37
        %v739 = vand.u32 %v712, 2147483648
        %v740 = vor.u32 1.1754944e-38, %v739
        %v741 = vsel %vm738, %v740, %v736
        %v742 = vmul.f32 %v552, %v741
        %v743 = vrcp.pop %v713
        %v744 = vmul.f32 %v713, %v743
        %v745 = vsub.f32 1.0, %v744
        %v746 = vmul.f32 %v743, %v745
        %v747 = vadd.f32 %v743, %v746
        %vm748 = vweird.f32 %v713
        %vm749 = vweird.f32 %v743
        %vm750 = vmor %vm748, %vm749
        %v751 = vsel %vm750, %v743, %v747
        %v752 = vand.u32 2147483647, %v713
        %vm753 = vcmp.eq.f32.partialorder %v752, 8.507059e+37
        %v754 = vand.u32 %v713, 2147483648
        %v755 = vor.u32 1.1754944e-38, %v754
        %v756 = vsel %vm753, %v755, %v751
        %v757 = vmul.f32 %v553, %v756
        %v758 = vrcp.pop %v714
        %v759 = vmul.f32 %v714, %v758
        %v760 = vsub.f32 1.0, %v759
        %v761 = vmul.f32 %v758, %v760
        %v762 = vadd.f32 %v758, %v761
        %vm763 = vweird.f32 %v714
        %vm764 = vweird.f32 %v758
        %vm765 = vmor %vm763, %vm764
        %v766 = vsel %vm765, %v758, %v762
        %v767 = vand.u32 2147483647, %v714
        %vm768 = vcmp.eq.f32.partialorder %v767, 8.507059e+37
        %v769 = vand.u32 %v714, 2147483648
        %v770 = vor.u32 1.1754944e-38, %v769
        %v771 = vsel %vm768, %v770, %v766
        %v772 = vmul.f32 %v554, %v771
        %v773 = vrcp.pop %v715
        %v774 = vmul.f32 %v715, %v773
        %v775 = vsub.f32 1.0, %v774
        %v776 = vmul.f32 %v773, %v775
        %v777 = vadd.f32 %v773, %v776
        %vm778 = vweird.f32 %v715
        %vm779 = vweird.f32 %v773
        %vm780 = vmor %vm778, %vm779
        %v781 = vsel %vm780, %v773, %v777
        %v782 = vand.u32 2147483647, %v715
        %vm783 = vcmp.eq.f32.partialorder %v782, 8.507059e+37
        %v784 = vand.u32 %v715, 2147483648
        %v785 = vor.u32 1.1754944e-38, %v784
        %v786 = vsel %vm783, %v785, %v781
        %v787 = vmul.f32 %v555, %v786
        %v788 = vrcp.pop %v716
        %v789 = vmul.f32 %v716, %v788
        %v790 = vsub.f32 1.0, %v789
        %v791 = vmul.f32 %v788, %v790
        %v792 = vadd.f32 %v788, %v791
        %vm793 = vweird.f32 %v716
        %vm794 = vweird.f32 %v788
        %vm795 = vmor %vm793, %vm794
        %v796 = vsel %vm795, %v788, %v792
        %v797 = vand.u32 2147483647, %v716
        %vm798 = vcmp.eq.f32.partialorder %v797, 8.507059e+37
        %v799 = vand.u32 %v716, 2147483648
        %v800 = vor.u32 1.1754944e-38, %v799
        %v801 = vsel %vm798, %v800, %v796
        %v802 = vmul.f32 %v556, %v801
        %v803 = vrcp.pop %v717
        %v804 = vmul.f32 %v717, %v803
        %v805 = vsub.f32 1.0, %v804
        %v806 = vmul.f32 %v803, %v805
        %v807 = vadd.f32 %v803, %v806
        %vm808 = vweird.f32 %v717
        %vm809 = vweird.f32 %v803
        %vm810 = vmor %vm808, %vm809
        %v811 = vsel %vm810, %v803, %v807
        %v812 = vand.u32 2147483647, %v717
        %vm813 = vcmp.eq.f32.partialorder %v812, 8.507059e+37
        %v814 = vand.u32 %v717, 2147483648
        %v815 = vor.u32 1.1754944e-38, %v814
        %v816 = vsel %vm813, %v815, %v811
        %v817 = vmul.f32 %v557, %v816
        %v818 = vrcp.pop %v718
        %v819 = vmul.f32 %v718, %v818
        %v820 = vsub.f32 1.0, %v819
        %v821 = vmul.f32 %v818, %v820
        %v822 = vadd.f32 %v818, %v821
        %vm823 = vweird.f32 %v718
        %vm824 = vweird.f32 %v818
        %vm825 = vmor %vm823, %vm824
        %v826 = vsel %vm825, %v818, %v822
        %v827 = vand.u32 2147483647, %v718
        %vm828 = vcmp.eq.f32.partialorder %v827, 8.507059e+37
        %v829 = vand.u32 %v718, 2147483648
        %v830 = vor.u32 1.1754944e-38, %v829
        %v831 = vsel %vm828, %v830, %v826
        %v832 = vmul.f32 %v558, %v831
        %v833 = vrcp.pop %v719
        %v834 = vmul.f32 %v719, %v833
        %v835 = vsub.f32 1.0, %v834
        %v836 = vmul.f32 %v833, %v835
        %v837 = vadd.f32 %v833, %v836
        %vm838 = vweird.f32 %v719
        %vm839 = vweird.f32 %v833
        %vm840 = vmor %vm838, %vm839
        %v841 = vsel %vm840, %v833, %v837
        %v842 = vand.u32 2147483647, %v719
        %vm843 = vcmp.eq.f32.partialorder %v842, 8.507059e+37
        %v844 = vand.u32 %v719, 2147483648
        %v845 = vor.u32 1.1754944e-38, %v844
        %v846 = vsel %vm843, %v845, %v841
        %v847 = vmul.f32 %v559, %v846
        %v848 = vrcp.pop %v720
        %v849 = vmul.f32 %v720, %v848
        %v850 = vsub.f32 1.0, %v849
        %v851 = vmul.f32 %v848, %v850
        %v852 = vadd.f32 %v848, %v851
        %vm853 = vweird.f32 %v720
        %vm854 = vweird.f32 %v848
        %vm855 = vmor %vm853, %vm854
        %v856 = vsel %vm855, %v848, %v852
        %v857 = vand.u32 2147483647, %v720
        %vm858 = vcmp.eq.f32.partialorder %v857, 8.507059e+37
        %v859 = vand.u32 %v720, 2147483648
        %v860 = vor.u32 1.1754944e-38, %v859
        %v861 = vsel %vm858, %v860, %v856
        %v862 = vmul.f32 %v560, %v861
        %v863 = vrcp.pop %v721
        %v864 = vmul.f32 %v721, %v863
        %v865 = vsub.f32 1.0, %v864
        %v866 = vmul.f32 %v863, %v865
        %v867 = vadd.f32 %v863, %v866
        %vm868 = vweird.f32 %v721
        %vm869 = vweird.f32 %v863
        %vm870 = vmor %vm868, %vm869
        %v871 = vsel %vm870, %v863, %v867
        %v872 = vand.u32 2147483647, %v721
        %vm873 = vcmp.eq.f32.partialorder %v872, 8.507059e+37
        %v874 = vand.u32 %v721, 2147483648
        %v875 = vor.u32 1.1754944e-38, %v874
        %v876 = vsel %vm873, %v875, %v871
        %v877 = vmul.f32 %v561, %v876
        %v878 = vrcp.pop %v722
        %v879 = vmul.f32 %v722, %v878
        %v880 = vsub.f32 1.0, %v879
        %v881 = vmul.f32 %v878, %v880
        %v882 = vadd.f32 %v878, %v881
        %vm883 = vweird.f32 %v722
        %vm884 = vweird.f32 %v878
        %vm885 = vmor %vm883, %vm884
        %v886 = vsel %vm885, %v878, %v882
        %v887 = vand.u32 2147483647, %v722
        %vm888 = vcmp.eq.f32.partialorder %v887, 8.507059e+37
        %v889 = vand.u32 %v722, 2147483648
        %v890 = vor.u32 1.1754944e-38, %v889
        %v891 = vsel %vm888, %v890, %v886
        %v892 = vmul.f32 %v562, %v891
        %v893 = vrcp.pop %v723
        %v894 = vmul.f32 %v723, %v893
        %v895 = vsub.f32 1.0, %v894
        %v896 = vmul.f32 %v893, %v895
        %v897 = vadd.f32 %v893, %v896
        %vm898 = vweird.f32 %v723
        %vm899 = vweird.f32 %v893
        %vm900 = vmor %vm898, %vm899
        %v901 = vsel %vm900, %v893, %v897
        %v902 = vand.u32 2147483647, %v723
        %vm903 = vcmp.eq.f32.partialorder %v902, 8.507059e+37
        %v904 = vand.u32 %v723, 2147483648
        %v905 = vor.u32 1.1754944e-38, %v904
        %v906 = vsel %vm903, %v905, %v901
        %v907 = vmul.f32 %v563, %v906
        %v908 = vrcp.pop %v724
        %v909 = vmul.f32 %v724, %v908
        %v910 = vsub.f32 1.0, %v909
        %v911 = vmul.f32 %v908, %v910
        %v912 = vadd.f32 %v908, %v911
        %vm913 = vweird.f32 %v724
        %vm914 = vweird.f32 %v908
        %vm915 = vmor %vm913, %vm914
        %v916 = vsel %vm915, %v908, %v912
        %v917 = vand.u32 2147483647, %v724
        %vm918 = vcmp.eq.f32.partialorder %v917, 8.507059e+37
        %v919 = vand.u32 %v724, 2147483648
        %v920 = vor.u32 1.1754944e-38, %v919
        %v921 = vsel %vm918, %v920, %v916
        %v922 = vmul.f32 %v564, %v921
        %v923 = vrcp.pop %v725
        %v924 = vmul.f32 %v725, %v923
        %v925 = vsub.f32 1.0, %v924
        %v926 = vmul.f32 %v923, %v925
        %v927 = vadd.f32 %v923, %v926
        %vm928 = vweird.f32 %v725
        %vm929 = vweird.f32 %v923
        %vm930 = vmor %vm928, %vm929
        %v931 = vsel %vm930, %v923, %v927
        %v932 = vand.u32 2147483647, %v725
        %vm933 = vcmp.eq.f32.partialorder %v932, 8.507059e+37
        %v934 = vand.u32 %v725, 2147483648
        %v935 = vor.u32 1.1754944e-38, %v934
        %v936 = vsel %vm933, %v935, %v931
        %v937 = vmul.f32 %v565, %v936
        %v938 = vrcp.pop %v726
        %v939 = vmul.f32 %v726, %v938
        %v940 = vsub.f32 1.0, %v939
        %v941 = vmul.f32 %v938, %v940
        %v942 = vadd.f32 %v938, %v941
        %vm943 = vweird.f32 %v726
        %vm944 = vweird.f32 %v938
        %vm945 = vmor %vm943, %vm944
        %v946 = vsel %vm945, %v938, %v942
        %v947 = vand.u32 2147483647, %v726
        %vm948 = vcmp.eq.f32.partialorder %v947, 8.507059e+37
        %v949 = vand.u32 %v726, 2147483648
        %v950 = vor.u32 1.1754944e-38, %v949
        %v951 = vsel %vm948, %v950, %v946
        %v952 = vmul.f32 %v566, %v951
        %v953 = vrcp.pop %v727
        %v954 = vmul.f32 %v727, %v953
        %v955 = vsub.f32 1.0, %v954
        %v956 = vmul.f32 %v953, %v955
        %v957 = vadd.f32 %v953, %v956
        %vm958 = vweird.f32 %v727
        %vm959 = vweird.f32 %v953
        %vm960 = vmor %vm958, %vm959
        %v961 = vsel %vm960, %v953, %v957
        %v962 = vand.u32 2147483647, %v727
        %vm963 = vcmp.eq.f32.partialorder %v962, 8.507059e+37
        %v964 = vand.u32 %v727, 2147483648
        %v965 = vor.u32 1.1754944e-38, %v964
        %v966 = vsel %vm963, %v965, %v961
        %v967 = vmul.f32 %v567, %v966
        %969 = vset.pattern.permute.xlu0 0
        %970 = vperm.xlu0 %969, %v351
        %v971 = vpop.permute.xlu0 %970
        %974 = vset.pattern.permute.xlu0 0
        %975 = vperm.xlu0 %974, %v352
        %v976 = vpop.permute.xlu0 %975
        %979 = vset.pattern.permute.xlu0 0
        %980 = vperm.xlu0 %979, %v353
        %v981 = vpop.permute.xlu0 %980
        %984 = vset.pattern.permute.xlu0 0
        %985 = vperm.xlu0 %984, %v354
        %v986 = vpop.permute.xlu0 %985
        %989 = vset.pattern.permute.xlu0 0
        %990 = vperm.xlu0 %989, %v355
        %v991 = vpop.permute.xlu0 %990
        %994 = vset.pattern.permute.xlu0 0
        %995 = vperm.xlu0 %994, %v356
        %v996 = vpop.permute.xlu0 %995
        %999 = vset.pattern.permute.xlu0 0
        %1000 = vperm.xlu0 %999, %v357
        %v1001 = vpop.permute.xlu0 %1000
        %1004 = vset.pattern.permute.xlu0 0
        %1005 = vperm.xlu0 %1004, %v358
        %v1006 = vpop.permute.xlu0 %1005
        %vm1008 = vcmask 64512
        %v1010 = vsel %vm1008, %v375, 0
        %v1013 = vsel %vm1008, %v376, 0
        %v1016 = vsel %vm1008, %v377, 0
        %v1019 = vsel %vm1008, %v378, 0
        %v1022 = vsel %vm1008, %v379, 0
        %v1025 = vsel %vm1008, %v380, 0
        %v1028 = vsel %vm1008, %v381, 0
        %v1031 = vsel %vm1008, %v382, 0
        %1033 = vmatpush.msra.mxu0 0.0
        %1034 = vmatpush.msra.mxu0 0.0
        %1035 = vmatpush.msra.mxu0 0.0
        %1036 = vmatpush.msra.mxu0 0.0
        %1037 = vmatpush.msra.mxu0 0.0
        %1038 = vmatpush.msra.mxu0 0.0
        %1039 = vmatpush.msra.mxu0 0.0
        %1040 = vmatpush.msra.mxu0 0.0
        %1041 = vmatpush.msra.mxu0 0.0
        %1042 = vmatpush.msra.mxu0 0.0
        %1043 = vmatpush.msra.mxu0 0.0
        %1044 = vmatpush.msra.mxu0 0.0
        %1045 = vmatpush.msra.mxu0 0.0
        %1046 = vmatpush.msra.mxu0 0.0
        %1047 = vmatpush.msra.mxu0 0.0
        %1048 = vmatpush.msra.mxu0 %v742
        %1049 = vmatmul.f32.gmra.mxu0 %v1010
        %v1050 = vpop.f32.mrf.mxu0
        %v1051 = vadd.f32 %v971, %v1050
        %1052 = vmatmul.f32.gmra.mxu0 %v1013
        %v1053 = vpop.f32.mrf.mxu0
        %v1054 = vadd.f32 %v976, %v1053
        %1055 = vmatmul.f32.gmra.mxu0 %v1016
        %v1056 = vpop.f32.mrf.mxu0
        %v1057 = vadd.f32 %v981, %v1056
        %1058 = vmatmul.f32.gmra.mxu0 %v1019
        %v1059 = vpop.f32.mrf.mxu0
        %v1060 = vadd.f32 %v986, %v1059
        %1061 = vmatmul.f32.gmra.mxu0 %v1022
        %v1062 = vpop.f32.mrf.mxu0
        %v1063 = vadd.f32 %v991, %v1062
        %1064 = vmatmul.f32.gmra.mxu0 %v1025
        %v1065 = vpop.f32.mrf.mxu0
        %v1066 = vadd.f32 %v996, %v1065
        %1067 = vmatmul.f32.gmra.mxu0 %v1028
        %v1068 = vpop.f32.mrf.mxu0
        %v1069 = vadd.f32 %v1001, %v1068
        %1070 = vmatmul.f32.gmra.mxu0 %v1031
        %v1071 = vpop.f32.mrf.mxu0
        %v1072 = vadd.f32 %v1006, %v1071
        %1073 = vdwg.mxu0
        %1074 = vmatpush.msra.mxu0 0.0
        %1075 = vmatpush.msra.mxu0 0.0
        %1076 = vmatpush.msra.mxu0 0.0
        %1077 = vmatpush.msra.mxu0 0.0
        %1078 = vmatpush.msra.mxu0 0.0
        %1079 = vmatpush.msra.mxu0 0.0
        %1080 = vmatpush.msra.mxu0 0.0
        %1081 = vmatpush.msra.mxu0 0.0
        %1082 = vmatpush.msra.mxu0 0.0
        %1083 = vmatpush.msra.mxu0 0.0
        %1084 = vmatpush.msra.mxu0 0.0
        %1085 = vmatpush.msra.mxu0 0.0
        %1086 = vmatpush.msra.mxu0 0.0
        %1087 = vmatpush.msra.mxu0 0.0
        %1088 = vmatpush.msra.mxu0 0.0
        %1089 = vmatpush.msra.mxu0 %v757
        %1090 = vmatmul.f32.gmra.mxu0 %v1010
        %v1091 = vpop.f32.mrf.mxu0
        %v1092 = vadd.f32 %v971, %v1091
        %1093 = vmatmul.f32.gmra.mxu0 %v1013
        %v1094 = vpop.f32.mrf.mxu0
        %v1095 = vadd.f32 %v976, %v1094
        %1096 = vmatmul.f32.gmra.mxu0 %v1016
        %v1097 = vpop.f32.mrf.mxu0
        %v1098 = vadd.f32 %v981, %v1097
        %1099 = vmatmul.f32.gmra.mxu0 %v1019
        %v1100 = vpop.f32.mrf.mxu0
        %v1101 = vadd.f32 %v986, %v1100
        %1102 = vmatmul.f32.gmra.mxu0 %v1022
        %v1103 = vpop.f32.mrf.mxu0
        %v1104 = vadd.f32 %v991, %v1103
        %1105 = vmatmul.f32.gmra.mxu0 %v1025
        %v1106 = vpop.f32.mrf.mxu0
        %v1107 = vadd.f32 %v996, %v1106
        %1108 = vmatmul.f32.gmra.mxu0 %v1028
        %v1109 = vpop.f32.mrf.mxu0
        %v1110 = vadd.f32 %v1001, %v1109
        %1111 = vmatmul.f32.gmra.mxu0 %v1031
        %v1112 = vpop.f32.mrf.mxu0
        %v1113 = vadd.f32 %v1006, %v1112
        %1114 = vdwg.mxu0
        %1115 = vmatpush.msra.mxu0 0.0
        %1116 = vmatpush.msra.mxu0 0.0
        %1117 = vmatpush.msra.mxu0 0.0
        %1118 = vmatpush.msra.mxu0 0.0
        %1119 = vmatpush.msra.mxu0 0.0
        %1120 = vmatpush.msra.mxu0 0.0
        %1121 = vmatpush.msra.mxu0 0.0
        %1122 = vmatpush.msra.mxu0 0.0
        %1123 = vmatpush.msra.mxu0 0.0
        %1124 = vmatpush.msra.mxu0 0.0
        %1125 = vmatpush.msra.mxu0 0.0
        %1126 = vmatpush.msra.mxu0 0.0
        %1127 = vmatpush.msra.mxu0 0.0
        %1128 = vmatpush.msra.mxu0 0.0
        %1129 = vmatpush.msra.mxu0 0.0
        %1130 = vmatpush.msra.mxu0 %v772
        %1131 = vmatmul.f32.gmra.mxu0 %v1010
        %v1132 = vpop.f32.mrf.mxu0
        %v1133 = vadd.f32 %v971, %v1132
        %1134 = vmatmul.f32.gmra.mxu0 %v1013
        %v1135 = vpop.f32.mrf.mxu0
        %v1136 = vadd.f32 %v976, %v1135
        %1137 = vmatmul.f32.gmra.mxu0 %v1016
        %v1138 = vpop.f32.mrf.mxu0
        %v1139 = vadd.f32 %v981, %v1138
        %1140 = vmatmul.f32.gmra.mxu0 %v1019
        %v1141 = vpop.f32.mrf.mxu0
        %v1142 = vadd.f32 %v986, %v1141
        %1143 = vmatmul.f32.gmra.mxu0 %v1022
        %v1144 = vpop.f32.mrf.mxu0
        %v1145 = vadd.f32 %v991, %v1144
        %1146 = vmatmul.f32.gmra.mxu0 %v1025
        %v1147 = vpop.f32.mrf.mxu0
        %v1148 = vadd.f32 %v996, %v1147
        %1149 = vmatmul.f32.gmra.mxu0 %v1028
        %v1150 = vpop.f32.mrf.mxu0
        %v1151 = vadd.f32 %v1001, %v1150
        %1152 = vmatmul.f32.gmra.mxu0 %v1031
        %v1153 = vpop.f32.mrf.mxu0
        %v1154 = vadd.f32 %v1006, %v1153
        %1155 = vdwg.mxu0
        %1156 = vmatpush.msra.mxu0 0.0
        %1157 = vmatpush.msra.mxu0 0.0
        %1158 = vmatpush.msra.mxu0 0.0
        %1159 = vmatpush.msra.mxu0 0.0
        %1160 = vmatpush.msra.mxu0 0.0
        %1161 = vmatpush.msra.mxu0 0.0
        %1162 = vmatpush.msra.mxu0 0.0
        %1163 = vmatpush.msra.mxu0 0.0
        %1164 = vmatpush.msra.mxu0 0.0
        %1165 = vmatpush.msra.mxu0 0.0
        %1166 = vmatpush.msra.mxu0 0.0
        %1167 = vmatpush.msra.mxu0 0.0
        %1168 = vmatpush.msra.mxu0 0.0
        %1169 = vmatpush.msra.mxu0 0.0
        %1170 = vmatpush.msra.mxu0 0.0
        %1171 = vmatpush.msra.mxu0 %v787
        %1172 = vmatmul.f32.gmra.mxu0 %v1010
        %v1173 = vpop.f32.mrf.mxu0
        %v1174 = vadd.f32 %v971, %v1173
        %1175 = vmatmul.f32.gmra.mxu0 %v1013
        %v1176 = vpop.f32.mrf.mxu0
        %v1177 = vadd.f32 %v976, %v1176
        %1178 = vmatmul.f32.gmra.mxu0 %v1016
        %v1179 = vpop.f32.mrf.mxu0
        %v1180 = vadd.f32 %v981, %v1179
        %1181 = vmatmul.f32.gmra.mxu0 %v1019
        %v1182 = vpop.f32.mrf.mxu0
        %v1183 = vadd.f32 %v986, %v1182
        %1184 = vmatmul.f32.gmra.mxu0 %v1022
        %v1185 = vpop.f32.mrf.mxu0
        %v1186 = vadd.f32 %v991, %v1185
        %1187 = vmatmul.f32.gmra.mxu0 %v1025
        %v1188 = vpop.f32.mrf.mxu0
        %v1189 = vadd.f32 %v996, %v1188
        %1190 = vmatmul.f32.gmra.mxu0 %v1028
        %v1191 = vpop.f32.mrf.mxu0
        %v1192 = vadd.f32 %v1001, %v1191
        %1193 = vmatmul.f32.gmra.mxu0 %v1031
        %v1194 = vpop.f32.mrf.mxu0
        %v1195 = vadd.f32 %v1006, %v1194
        %1196 = vdwg.mxu0
        %1197 = vmatpush.msra.mxu0 0.0
        %1198 = vmatpush.msra.mxu0 0.0
        %1199 = vmatpush.msra.mxu0 0.0
        %1200 = vmatpush.msra.mxu0 0.0
        %1201 = vmatpush.msra.mxu0 0.0
        %1202 = vmatpush.msra.mxu0 0.0
        %1203 = vmatpush.msra.mxu0 0.0
        %1204 = vmatpush.msra.mxu0 0.0
        %1205 = vmatpush.msra.mxu0 0.0
        %1206 = vmatpush.msra.mxu0 0.0
        %1207 = vmatpush.msra.mxu0 0.0
        %1208 = vmatpush.msra.mxu0 0.0
        %1209 = vmatpush.msra.mxu0 0.0
        %1210 = vmatpush.msra.mxu0 0.0
        %1211 = vmatpush.msra.mxu0 0.0
        %1212 = vmatpush.msra.mxu0 %v802
        %1213 = vmatmul.f32.gmra.mxu0 %v1010
        %v1214 = vpop.f32.mrf.mxu0
        %v1215 = vadd.f32 %v971, %v1214
        %1216 = vmatmul.f32.gmra.mxu0 %v1013
        %v1217 = vpop.f32.mrf.mxu0
        %v1218 = vadd.f32 %v976, %v1217
        %1219 = vmatmul.f32.gmra.mxu0 %v1016
        %v1220 = vpop.f32.mrf.mxu0
        %v1221 = vadd.f32 %v981, %v1220
        %1222 = vmatmul.f32.gmra.mxu0 %v1019
        %v1223 = vpop.f32.mrf.mxu0
        %v1224 = vadd.f32 %v986, %v1223
        %1225 = vmatmul.f32.gmra.mxu0 %v1022
        %v1226 = vpop.f32.mrf.mxu0
        %v1227 = vadd.f32 %v991, %v1226
        %1228 = vmatmul.f32.gmra.mxu0 %v1025
        %v1229 = vpop.f32.mrf.mxu0
        %v1230 = vadd.f32 %v996, %v1229
        %1231 = vmatmul.f32.gmra.mxu0 %v1028
        %v1232 = vpop.f32.mrf.mxu0
        %v1233 = vadd.f32 %v1001, %v1232
        %1234 = vmatmul.f32.gmra.mxu0 %v1031
        %v1235 = vpop.f32.mrf.mxu0
        %v1236 = vadd.f32 %v1006, %v1235
        %1237 = vdwg.mxu0
        %1238 = vmatpush.msra.mxu0 0.0
        %1239 = vmatpush.msra.mxu0 0.0
        %1240 = vmatpush.msra.mxu0 0.0
        %1241 = vmatpush.msra.mxu0 0.0
        %1242 = vmatpush.msra.mxu0 0.0
        %1243 = vmatpush.msra.mxu0 0.0
        %1244 = vmatpush.msra.mxu0 0.0
        %1245 = vmatpush.msra.mxu0 0.0
        %1246 = vmatpush.msra.mxu0 0.0
        %1247 = vmatpush.msra.mxu0 0.0
        %1248 = vmatpush.msra.mxu0 0.0
        %1249 = vmatpush.msra.mxu0 0.0
        %1250 = vmatpush.msra.mxu0 0.0
        %1251 = vmatpush.msra.mxu0 0.0
        %1252 = vmatpush.msra.mxu0 0.0
        %1253 = vmatpush.msra.mxu0 %v817
        %1254 = vmatmul.f32.gmra.mxu0 %v1010
        %v1255 = vpop.f32.mrf.mxu0
        %v1256 = vadd.f32 %v971, %v1255
        %1257 = vmatmul.f32.gmra.mxu0 %v1013
        %v1258 = vpop.f32.mrf.mxu0
        %v1259 = vadd.f32 %v976, %v1258
        %1260 = vmatmul.f32.gmra.mxu0 %v1016
        %v1261 = vpop.f32.mrf.mxu0
        %v1262 = vadd.f32 %v981, %v1261
        %1263 = vmatmul.f32.gmra.mxu0 %v1019
        %v1264 = vpop.f32.mrf.mxu0
        %v1265 = vadd.f32 %v986, %v1264
        %1266 = vmatmul.f32.gmra.mxu0 %v1022
        %v1267 = vpop.f32.mrf.mxu0
        %v1268 = vadd.f32 %v991, %v1267
        %1269 = vmatmul.f32.gmra.mxu0 %v1025
        %v1270 = vpop.f32.mrf.mxu0
        %v1271 = vadd.f32 %v996, %v1270
        %1272 = vmatmul.f32.gmra.mxu0 %v1028
        %v1273 = vpop.f32.mrf.mxu0
        %v1274 = vadd.f32 %v1001, %v1273
        %1275 = vmatmul.f32.gmra.mxu0 %v1031
        %v1276 = vpop.f32.mrf.mxu0
        %v1277 = vadd.f32 %v1006, %v1276
        %1278 = vdwg.mxu0
        %1279 = vmatpush.msra.mxu0 0.0
        %1280 = vmatpush.msra.mxu0 0.0
        %1281 = vmatpush.msra.mxu0 0.0
        %1282 = vmatpush.msra.mxu0 0.0
        %1283 = vmatpush.msra.mxu0 0.0
        %1284 = vmatpush.msra.mxu0 0.0
        %1285 = vmatpush.msra.mxu0 0.0
        %1286 = vmatpush.msra.mxu0 0.0
        %1287 = vmatpush.msra.mxu0 0.0
        %1288 = vmatpush.msra.mxu0 0.0
        %1289 = vmatpush.msra.mxu0 0.0
        %1290 = vmatpush.msra.mxu0 0.0
        %1291 = vmatpush.msra.mxu0 0.0
        %1292 = vmatpush.msra.mxu0 0.0
        %1293 = vmatpush.msra.mxu0 0.0
        %1294 = vmatpush.msra.mxu0 %v832
        %1295 = vmatmul.f32.gmra.mxu0 %v1010
        %v1296 = vpop.f32.mrf.mxu0
        %v1297 = vadd.f32 %v971, %v1296
        %1298 = vmatmul.f32.gmra.mxu0 %v1013
        %v1299 = vpop.f32.mrf.mxu0
        %v1300 = vadd.f32 %v976, %v1299
        %1301 = vmatmul.f32.gmra.mxu0 %v1016
        %v1302 = vpop.f32.mrf.mxu0
        %v1303 = vadd.f32 %v981, %v1302
        %1304 = vmatmul.f32.gmra.mxu0 %v1019
        %v1305 = vpop.f32.mrf.mxu0
        %v1306 = vadd.f32 %v986, %v1305
        %1307 = vmatmul.f32.gmra.mxu0 %v1022
        %v1308 = vpop.f32.mrf.mxu0
        %v1309 = vadd.f32 %v991, %v1308
        %1310 = vmatmul.f32.gmra.mxu0 %v1025
        %v1311 = vpop.f32.mrf.mxu0
        %v1312 = vadd.f32 %v996, %v1311
        %1313 = vmatmul.f32.gmra.mxu0 %v1028
        %v1314 = vpop.f32.mrf.mxu0
        %v1315 = vadd.f32 %v1001, %v1314
        %1316 = vmatmul.f32.gmra.mxu0 %v1031
        %v1317 = vpop.f32.mrf.mxu0
        %v1318 = vadd.f32 %v1006, %v1317
        %1319 = vdwg.mxu0
        %1320 = vmatpush.msra.mxu0 0.0
        %1321 = vmatpush.msra.mxu0 0.0
        %1322 = vmatpush.msra.mxu0 0.0
        %1323 = vmatpush.msra.mxu0 0.0
        %1324 = vmatpush.msra.mxu0 0.0
        %1325 = vmatpush.msra.mxu0 0.0
        %1326 = vmatpush.msra.mxu0 0.0
        %1327 = vmatpush.msra.mxu0 0.0
        %1328 = vmatpush.msra.mxu0 0.0
        %1329 = vmatpush.msra.mxu0 0.0
        %1330 = vmatpush.msra.mxu0 0.0
        %1331 = vmatpush.msra.mxu0 0.0
        %1332 = vmatpush.msra.mxu0 0.0
        %1333 = vmatpush.msra.mxu0 0.0
        %1334 = vmatpush.msra.mxu0 0.0
        %1335 = vmatpush.msra.mxu0 %v847
        %1336 = vmatmul.f32.gmra.mxu0 %v1010
        %v1337 = vpop.f32.mrf.mxu0
        %v1338 = vadd.f32 %v971, %v1337
        %1339 = vmatmul.f32.gmra.mxu0 %v1013
        %v1340 = vpop.f32.mrf.mxu0
        %v1341 = vadd.f32 %v976, %v1340
        %1342 = vmatmul.f32.gmra.mxu0 %v1016
        %v1343 = vpop.f32.mrf.mxu0
        %v1344 = vadd.f32 %v981, %v1343
        %1345 = vmatmul.f32.gmra.mxu0 %v1019
        %v1346 = vpop.f32.mrf.mxu0
        %v1347 = vadd.f32 %v986, %v1346
        %1348 = vmatmul.f32.gmra.mxu0 %v1022
        %v1349 = vpop.f32.mrf.mxu0
        %v1350 = vadd.f32 %v991, %v1349
        %1351 = vmatmul.f32.gmra.mxu0 %v1025
        %v1352 = vpop.f32.mrf.mxu0
        %v1353 = vadd.f32 %v996, %v1352
        %1354 = vmatmul.f32.gmra.mxu0 %v1028
        %v1355 = vpop.f32.mrf.mxu0
        %v1356 = vadd.f32 %v1001, %v1355
        %1357 = vmatmul.f32.gmra.mxu0 %v1031
        %v1358 = vpop.f32.mrf.mxu0
        %v1359 = vadd.f32 %v1006, %v1358
        %1360 = vdwg.mxu0
        %1361 = vmatpush.msra.mxu0 0.0
        %1362 = vmatpush.msra.mxu0 0.0
        %1363 = vmatpush.msra.mxu0 0.0
        %1364 = vmatpush.msra.mxu0 0.0
        %1365 = vmatpush.msra.mxu0 0.0
        %1366 = vmatpush.msra.mxu0 0.0
        %1367 = vmatpush.msra.mxu0 0.0
        %1368 = vmatpush.msra.mxu0 0.0
        %1369 = vmatpush.msra.mxu0 0.0
        %1370 = vmatpush.msra.mxu0 0.0
        %1371 = vmatpush.msra.mxu0 0.0
        %1372 = vmatpush.msra.mxu0 0.0
        %1373 = vmatpush.msra.mxu0 0.0
        %1374 = vmatpush.msra.mxu0 0.0
        %1375 = vmatpush.msra.mxu0 0.0
        %1376 = vmatpush.msra.mxu0 %v862
        %1377 = vmatmul.f32.gmra.mxu0 %v1010
        %v1378 = vpop.f32.mrf.mxu0
        %v1379 = vadd.f32 %v971, %v1378
        %1380 = vmatmul.f32.gmra.mxu0 %v1013
        %v1381 = vpop.f32.mrf.mxu0
        %v1382 = vadd.f32 %v976, %v1381
        %1383 = vmatmul.f32.gmra.mxu0 %v1016
        %v1384 = vpop.f32.mrf.mxu0
        %v1385 = vadd.f32 %v981, %v1384
        %1386 = vmatmul.f32.gmra.mxu0 %v1019
        %v1387 = vpop.f32.mrf.mxu0
        %v1388 = vadd.f32 %v986, %v1387
        %1389 = vmatmul.f32.gmra.mxu0 %v1022
        %v1390 = vpop.f32.mrf.mxu0
        %v1391 = vadd.f32 %v991, %v1390
        %1392 = vmatmul.f32.gmra.mxu0 %v1025
        %v1393 = vpop.f32.mrf.mxu0
        %v1394 = vadd.f32 %v996, %v1393
        %1395 = vmatmul.f32.gmra.mxu0 %v1028
        %v1396 = vpop.f32.mrf.mxu0
        %v1397 = vadd.f32 %v1001, %v1396
        %1398 = vmatmul.f32.gmra.mxu0 %v1031
        %v1399 = vpop.f32.mrf.mxu0
        %v1400 = vadd.f32 %v1006, %v1399
        %1401 = vdwg.mxu0
        %1402 = vmatpush.msra.mxu0 0.0
        %1403 = vmatpush.msra.mxu0 0.0
        %1404 = vmatpush.msra.mxu0 0.0
        %1405 = vmatpush.msra.mxu0 0.0
        %1406 = vmatpush.msra.mxu0 0.0
        %1407 = vmatpush.msra.mxu0 0.0
        %1408 = vmatpush.msra.mxu0 0.0
        %1409 = vmatpush.msra.mxu0 0.0
        %1410 = vmatpush.msra.mxu0 0.0
        %1411 = vmatpush.msra.mxu0 0.0
        %1412 = vmatpush.msra.mxu0 0.0
        %1413 = vmatpush.msra.mxu0 0.0
        %1414 = vmatpush.msra.mxu0 0.0
        %1415 = vmatpush.msra.mxu0 0.0
        %1416 = vmatpush.msra.mxu0 0.0
        %1417 = vmatpush.msra.mxu0 %v877
        %1418 = vmatmul.f32.gmra.mxu0 %v1010
        %v1419 = vpop.f32.mrf.mxu0
        %v1420 = vadd.f32 %v971, %v1419
        %1421 = vmatmul.f32.gmra.mxu0 %v1013
        %v1422 = vpop.f32.mrf.mxu0
        %v1423 = vadd.f32 %v976, %v1422
        %1424 = vmatmul.f32.gmra.mxu0 %v1016
        %v1425 = vpop.f32.mrf.mxu0
        %v1426 = vadd.f32 %v981, %v1425
        %1427 = vmatmul.f32.gmra.mxu0 %v1019
        %v1428 = vpop.f32.mrf.mxu0
        %v1429 = vadd.f32 %v986, %v1428
        %1430 = vmatmul.f32.gmra.mxu0 %v1022
        %v1431 = vpop.f32.mrf.mxu0
        %v1432 = vadd.f32 %v991, %v1431
        %1433 = vmatmul.f32.gmra.mxu0 %v1025
        %v1434 = vpop.f32.mrf.mxu0
        %v1435 = vadd.f32 %v996, %v1434
        %1436 = vmatmul.f32.gmra.mxu0 %v1028
        %v1437 = vpop.f32.mrf.mxu0
        %v1438 = vadd.f32 %v1001, %v1437
        %1439 = vmatmul.f32.gmra.mxu0 %v1031
        %v1440 = vpop.f32.mrf.mxu0
        %v1441 = vadd.f32 %v1006, %v1440
        %1442 = vdwg.mxu0
        %1443 = vmatpush.msra.mxu0 0.0
        %1444 = vmatpush.msra.mxu0 0.0
        %1445 = vmatpush.msra.mxu0 0.0
        %1446 = vmatpush.msra.mxu0 0.0
        %1447 = vmatpush.msra.mxu0 0.0
        %1448 = vmatpush.msra.mxu0 0.0
        %1449 = vmatpush.msra.mxu0 0.0
        %1450 = vmatpush.msra.mxu0 0.0
        %1451 = vmatpush.msra.mxu0 0.0
        %1452 = vmatpush.msra.mxu0 0.0
        %1453 = vmatpush.msra.mxu0 0.0
        %1454 = vmatpush.msra.mxu0 0.0
        %1455 = vmatpush.msra.mxu0 0.0
        %1456 = vmatpush.msra.mxu0 0.0
        %1457 = vmatpush.msra.mxu0 0.0
        %1458 = vmatpush.msra.mxu0 %v892
        %1459 = vmatmul.f32.gmra.mxu0 %v1010
        %v1460 = vpop.f32.mrf.mxu0
        %v1461 = vadd.f32 %v971, %v1460
        %1462 = vmatmul.f32.gmra.mxu0 %v1013
        %v1463 = vpop.f32.mrf.mxu0
        %v1464 = vadd.f32 %v976, %v1463
        %1465 = vmatmul.f32.gmra.mxu0 %v1016
        %v1466 = vpop.f32.mrf.mxu0
        %v1467 = vadd.f32 %v981, %v1466
        %1468 = vmatmul.f32.gmra.mxu0 %v1019
        %v1469 = vpop.f32.mrf.mxu0
        %v1470 = vadd.f32 %v986, %v1469
        %1471 = vmatmul.f32.gmra.mxu0 %v1022
        %v1472 = vpop.f32.mrf.mxu0
        %v1473 = vadd.f32 %v991, %v1472
        %1474 = vmatmul.f32.gmra.mxu0 %v1025
        %v1475 = vpop.f32.mrf.mxu0
        %v1476 = vadd.f32 %v996, %v1475
        %1477 = vmatmul.f32.gmra.mxu0 %v1028
        %v1478 = vpop.f32.mrf.mxu0
        %v1479 = vadd.f32 %v1001, %v1478
        %1480 = vmatmul.f32.gmra.mxu0 %v1031
        %v1481 = vpop.f32.mrf.mxu0
        %v1482 = vadd.f32 %v1006, %v1481
        %1483 = vdwg.mxu0
        %1484 = vmatpush.msra.mxu0 0.0
        %1485 = vmatpush.msra.mxu0 0.0
        %1486 = vmatpush.msra.mxu0 0.0
        %1487 = vmatpush.msra.mxu0 0.0
        %1488 = vmatpush.msra.mxu0 0.0
        %1489 = vmatpush.msra.mxu0 0.0
        %1490 = vmatpush.msra.mxu0 0.0
        %1491 = vmatpush.msra.mxu0 0.0
        %1492 = vmatpush.msra.mxu0 0.0
        %1493 = vmatpush.msra.mxu0 0.0
        %1494 = vmatpush.msra.mxu0 0.0
        %1495 = vmatpush.msra.mxu0 0.0
        %1496 = vmatpush.msra.mxu0 0.0
        %1497 = vmatpush.msra.mxu0 0.0
        %1498 = vmatpush.msra.mxu0 0.0
        %1499 = vmatpush.msra.mxu0 %v907
        %1500 = vmatmul.f32.gmra.mxu0 %v1010
        %v1501 = vpop.f32.mrf.mxu0
        %v1502 = vadd.f32 %v971, %v1501
        %1503 = vmatmul.f32.gmra.mxu0 %v1013
        %v1504 = vpop.f32.mrf.mxu0
        %v1505 = vadd.f32 %v976, %v1504
        %1506 = vmatmul.f32.gmra.mxu0 %v1016
        %v1507 = vpop.f32.mrf.mxu0
        %v1508 = vadd.f32 %v981, %v1507
        %1509 = vmatmul.f32.gmra.mxu0 %v1019
        %v1510 = vpop.f32.mrf.mxu0
        %v1511 = vadd.f32 %v986, %v1510
        %1512 = vmatmul.f32.gmra.mxu0 %v1022
        %v1513 = vpop.f32.mrf.mxu0
        %v1514 = vadd.f32 %v991, %v1513
        %1515 = vmatmul.f32.gmra.mxu0 %v1025
        %v1516 = vpop.f32.mrf.mxu0
        %v1517 = vadd.f32 %v996, %v1516
        %1518 = vmatmul.f32.gmra.mxu0 %v1028
        %v1519 = vpop.f32.mrf.mxu0
        %v1520 = vadd.f32 %v1001, %v1519
        %1521 = vmatmul.f32.gmra.mxu0 %v1031
        %v1522 = vpop.f32.mrf.mxu0
        %v1523 = vadd.f32 %v1006, %v1522
        %1524 = vdwg.mxu0
        %1525 = vmatpush.msra.mxu0 0.0
        %1526 = vmatpush.msra.mxu0 0.0
        %1527 = vmatpush.msra.mxu0 0.0
        %1528 = vmatpush.msra.mxu0 0.0
        %1529 = vmatpush.msra.mxu0 0.0
        %1530 = vmatpush.msra.mxu0 0.0
        %1531 = vmatpush.msra.mxu0 0.0
        %1532 = vmatpush.msra.mxu0 0.0
        %1533 = vmatpush.msra.mxu0 0.0
        %1534 = vmatpush.msra.mxu0 0.0
        %1535 = vmatpush.msra.mxu0 0.0
        %1536 = vmatpush.msra.mxu0 0.0
        %1537 = vmatpush.msra.mxu0 0.0
        %1538 = vmatpush.msra.mxu0 0.0
        %1539 = vmatpush.msra.mxu0 0.0
        %1540 = vmatpush.msra.mxu0 %v922
        %1541 = vmatmul.f32.gmra.mxu0 %v1010
        %v1542 = vpop.f32.mrf.mxu0
        %v1543 = vadd.f32 %v971, %v1542
        %1544 = vmatmul.f32.gmra.mxu0 %v1013
        %v1545 = vpop.f32.mrf.mxu0
        %v1546 = vadd.f32 %v976, %v1545
        %1547 = vmatmul.f32.gmra.mxu0 %v1016
        %v1548 = vpop.f32.mrf.mxu0
        %v1549 = vadd.f32 %v981, %v1548
        %1550 = vmatmul.f32.gmra.mxu0 %v1019
        %v1551 = vpop.f32.mrf.mxu0
        %v1552 = vadd.f32 %v986, %v1551
        %1553 = vmatmul.f32.gmra.mxu0 %v1022
        %v1554 = vpop.f32.mrf.mxu0
        %v1555 = vadd.f32 %v991, %v1554
        %1556 = vmatmul.f32.gmra.mxu0 %v1025
        %v1557 = vpop.f32.mrf.mxu0
        %v1558 = vadd.f32 %v996, %v1557
        %1559 = vmatmul.f32.gmra.mxu0 %v1028
        %v1560 = vpop.f32.mrf.mxu0
        %v1561 = vadd.f32 %v1001, %v1560
        %1562 = vmatmul.f32.gmra.mxu0 %v1031
        %v1563 = vpop.f32.mrf.mxu0
        %v1564 = vadd.f32 %v1006, %v1563
        %1565 = vdwg.mxu0
        %1566 = vmatpush.msra.mxu0 0.0
        %1567 = vmatpush.msra.mxu0 0.0
        %1568 = vmatpush.msra.mxu0 0.0
        %1569 = vmatpush.msra.mxu0 0.0
        %1570 = vmatpush.msra.mxu0 0.0
        %1571 = vmatpush.msra.mxu0 0.0
        %1572 = vmatpush.msra.mxu0 0.0
        %1573 = vmatpush.msra.mxu0 0.0
        %1574 = vmatpush.msra.mxu0 0.0
        %1575 = vmatpush.msra.mxu0 0.0
        %1576 = vmatpush.msra.mxu0 0.0
        %1577 = vmatpush.msra.mxu0 0.0
        %1578 = vmatpush.msra.mxu0 0.0
        %1579 = vmatpush.msra.mxu0 0.0
        %1580 = vmatpush.msra.mxu0 0.0
        %1581 = vmatpush.msra.mxu0 %v937
        %1582 = vmatmul.f32.gmra.mxu0 %v1010
        %v1583 = vpop.f32.mrf.mxu0
        %v1584 = vadd.f32 %v971, %v1583
        %1585 = vmatmul.f32.gmra.mxu0 %v1013
        %v1586 = vpop.f32.mrf.mxu0
        %v1587 = vadd.f32 %v976, %v1586
        %1588 = vmatmul.f32.gmra.mxu0 %v1016
        %v1589 = vpop.f32.mrf.mxu0
        %v1590 = vadd.f32 %v981, %v1589
        %1591 = vmatmul.f32.gmra.mxu0 %v1019
        %v1592 = vpop.f32.mrf.mxu0
        %v1593 = vadd.f32 %v986, %v1592
        %1594 = vmatmul.f32.gmra.mxu0 %v1022
        %v1595 = vpop.f32.mrf.mxu0
        %v1596 = vadd.f32 %v991, %v1595
        %1597 = vmatmul.f32.gmra.mxu0 %v1025
        %v1598 = vpop.f32.mrf.mxu0
        %v1599 = vadd.f32 %v996, %v1598
        %1600 = vmatmul.f32.gmra.mxu0 %v1028
        %v1601 = vpop.f32.mrf.mxu0
        %v1602 = vadd.f32 %v1001, %v1601
        %1603 = vmatmul.f32.gmra.mxu0 %v1031
        %v1604 = vpop.f32.mrf.mxu0
        %v1605 = vadd.f32 %v1006, %v1604
        %1606 = vdwg.mxu0
        %1607 = vmatpush.msra.mxu0 0.0
        %1608 = vmatpush.msra.mxu0 0.0
        %1609 = vmatpush.msra.mxu0 0.0
        %1610 = vmatpush.msra.mxu0 0.0
        %1611 = vmatpush.msra.mxu0 0.0
        %1612 = vmatpush.msra.mxu0 0.0
        %1613 = vmatpush.msra.mxu0 0.0
        %1614 = vmatpush.msra.mxu0 0.0
        %1615 = vmatpush.msra.mxu0 0.0
        %1616 = vmatpush.msra.mxu0 0.0
        %1617 = vmatpush.msra.mxu0 0.0
        %1618 = vmatpush.msra.mxu0 0.0
        %1619 = vmatpush.msra.mxu0 0.0
        %1620 = vmatpush.msra.mxu0 0.0
        %1621 = vmatpush.msra.mxu0 0.0
        %1622 = vmatpush.msra.mxu0 %v952
        %1623 = vmatmul.f32.gmra.mxu0 %v1010
        %v1624 = vpop.f32.mrf.mxu0
        %v1625 = vadd.f32 %v971, %v1624
        %1626 = vmatmul.f32.gmra.mxu0 %v1013
        %v1627 = vpop.f32.mrf.mxu0
        %v1628 = vadd.f32 %v976, %v1627
        %1629 = vmatmul.f32.gmra.mxu0 %v1016
        %v1630 = vpop.f32.mrf.mxu0
        %v1631 = vadd.f32 %v981, %v1630
        %1632 = vmatmul.f32.gmra.mxu0 %v1019
        %v1633 = vpop.f32.mrf.mxu0
        %v1634 = vadd.f32 %v986, %v1633
        %1635 = vmatmul.f32.gmra.mxu0 %v1022
        %v1636 = vpop.f32.mrf.mxu0
        %v1637 = vadd.f32 %v991, %v1636
        %1638 = vmatmul.f32.gmra.mxu0 %v1025
        %v1639 = vpop.f32.mrf.mxu0
        %v1640 = vadd.f32 %v996, %v1639
        %1641 = vmatmul.f32.gmra.mxu0 %v1028
        %v1642 = vpop.f32.mrf.mxu0
        %v1643 = vadd.f32 %v1001, %v1642
        %1644 = vmatmul.f32.gmra.mxu0 %v1031
        %v1645 = vpop.f32.mrf.mxu0
        %v1646 = vadd.f32 %v1006, %v1645
        %1647 = vdwg.mxu0
        %1648 = vmatpush.msra.mxu0 0.0
        %1649 = vmatpush.msra.mxu0 0.0
        %1650 = vmatpush.msra.mxu0 0.0
        %1651 = vmatpush.msra.mxu0 0.0
        %1652 = vmatpush.msra.mxu0 0.0
        %1653 = vmatpush.msra.mxu0 0.0
        %1654 = vmatpush.msra.mxu0 0.0
        %1655 = vmatpush.msra.mxu0 0.0
        %1656 = vmatpush.msra.mxu0 0.0
        %1657 = vmatpush.msra.mxu0 0.0
        %1658 = vmatpush.msra.mxu0 0.0
        %1659 = vmatpush.msra.mxu0 0.0
        %1660 = vmatpush.msra.mxu0 0.0
        %1661 = vmatpush.msra.mxu0 0.0
        %1662 = vmatpush.msra.mxu0 0.0
        %1663 = vmatpush.msra.mxu0 %v967
        %1664 = vmatmul.f32.gmra.mxu0 %v1010
        %v1665 = vpop.f32.mrf.mxu0
        %v1666 = vadd.f32 %v971, %v1665
        %1667 = vmatmul.f32.gmra.mxu0 %v1013
        %v1668 = vpop.f32.mrf.mxu0
        %v1669 = vadd.f32 %v976, %v1668
        %1670 = vmatmul.f32.gmra.mxu0 %v1016
        %v1671 = vpop.f32.mrf.mxu0
        %v1672 = vadd.f32 %v981, %v1671
        %1673 = vmatmul.f32.gmra.mxu0 %v1019
        %v1674 = vpop.f32.mrf.mxu0
        %v1675 = vadd.f32 %v986, %v1674
        %1676 = vmatmul.f32.gmra.mxu0 %v1022
        %v1677 = vpop.f32.mrf.mxu0
        %v1678 = vadd.f32 %v991, %v1677
        %1679 = vmatmul.f32.gmra.mxu0 %v1025
        %v1680 = vpop.f32.mrf.mxu0
        %v1681 = vadd.f32 %v996, %v1680
        %1682 = vmatmul.f32.gmra.mxu0 %v1028
        %v1683 = vpop.f32.mrf.mxu0
        %v1684 = vadd.f32 %v1001, %v1683
        %1685 = vmatmul.f32.gmra.mxu0 %v1031
        %v1686 = vpop.f32.mrf.mxu0
        %v1687 = vadd.f32 %v1006, %v1686
        %1688 = vdwg.mxu0
        %v1689 = vmax.f32 %v1051, 0.0
        %v1690 = vmax.f32 %v1092, 0.0
        %v1691 = vmax.f32 %v1133, 0.0
        %v1692 = vmax.f32 %v1174, 0.0
        %v1693 = vmax.f32 %v1215, 0.0
        %v1694 = vmax.f32 %v1256, 0.0
        %v1695 = vmax.f32 %v1297, 0.0
        %v1696 = vmax.f32 %v1338, 0.0
        %v1697 = vmax.f32 %v1379, 0.0
        %v1698 = vmax.f32 %v1420, 0.0
        %v1699 = vmax.f32 %v1461, 0.0
        %v1700 = vmax.f32 %v1502, 0.0
        %v1701 = vmax.f32 %v1543, 0.0
        %v1702 = vmax.f32 %v1584, 0.0
        %v1703 = vmax.f32 %v1625, 0.0
        %v1704 = vmax.f32 %v1666, 0.0
        %v1705 = vmax.f32 %v1054, 0.0
        %v1706 = vmax.f32 %v1095, 0.0
        %v1707 = vmax.f32 %v1136, 0.0
        %v1708 = vmax.f32 %v1177, 0.0
        %v1709 = vmax.f32 %v1218, 0.0
        %v1710 = vmax.f32 %v1259, 0.0
        %v1711 = vmax.f32 %v1300, 0.0
        %v1712 = vmax.f32 %v1341, 0.0
        %v1713 = vmax.f32 %v1382, 0.0
        %v1714 = vmax.f32 %v1423, 0.0
        %v1715 = vmax.f32 %v1464, 0.0
        %v1716 = vmax.f32 %v1505, 0.0
        %v1717 = vmax.f32 %v1546, 0.0
        %v1718 = vmax.f32 %v1587, 0.0
        %v1719 = vmax.f32 %v1628, 0.0
        %v1720 = vmax.f32 %v1669, 0.0
        %v1721 = vmax.f32 %v1057, 0.0
        %v1722 = vmax.f32 %v1098, 0.0
        %v1723 = vmax.f32 %v1139, 0.0
        %v1724 = vmax.f32 %v1180, 0.0
        %v1725 = vmax.f32 %v1221, 0.0
        %v1726 = vmax.f32 %v1262, 0.0
        %v1727 = vmax.f32 %v1303, 0.0
        %v1728 = vmax.f32 %v1344, 0.0
        %v1729 = vmax.f32 %v1385, 0.0
        %v1730 = vmax.f32 %v1426, 0.0
        %v1731 = vmax.f32 %v1467, 0.0
        %v1732 = vmax.f32 %v1508, 0.0
        %v1733 = vmax.f32 %v1549, 0.0
        %v1734 = vmax.f32 %v1590, 0.0
        %v1735 = vmax.f32 %v1631, 0.0
        %v1736 = vmax.f32 %v1672, 0.0
        %v1737 = vmax.f32 %v1060, 0.0
        %v1738 = vmax.f32 %v1101, 0.0
        %v1739 = vmax.f32 %v1142, 0.0
        %v1740 = vmax.f32 %v1183, 0.0
        %v1741 = vmax.f32 %v1224, 0.0
        %v1742 = vmax.f32 %v1265, 0.0
        %v1743 = vmax.f32 %v1306, 0.0
        %v1744 = vmax.f32 %v1347, 0.0
        %v1745 = vmax.f32 %v1388, 0.0
        %v1746 = vmax.f32 %v1429, 0.0
        %v1747 = vmax.f32 %v1470, 0.0
        %v1748 = vmax.f32 %v1511, 0.0
        %v1749 = vmax.f32 %v1552, 0.0
        %v1750 = vmax.f32 %v1593, 0.0
        %v1751 = vmax.f32 %v1634, 0.0
        %v1752 = vmax.f32 %v1675, 0.0
        %v1753 = vmax.f32 %v1063, 0.0
        %v1754 = vmax.f32 %v1104, 0.0
        %v1755 = vmax.f32 %v1145, 0.0
        %v1756 = vmax.f32 %v1186, 0.0
        %v1757 = vmax.f32 %v1227, 0.0
        %v1758 = vmax.f32 %v1268, 0.0
        %v1759 = vmax.f32 %v1309, 0.0
        %v1760 = vmax.f32 %v1350, 0.0
        %v1761 = vmax.f32 %v1391, 0.0
        %v1762 = vmax.f32 %v1432, 0.0
        %v1763 = vmax.f32 %v1473, 0.0
        %v1764 = vmax.f32 %v1514, 0.0
        %v1765 = vmax.f32 %v1555, 0.0
        %v1766 = vmax.f32 %v1596, 0.0
        %v1767 = vmax.f32 %v1637, 0.0
        %v1768 = vmax.f32 %v1678, 0.0
        %v1769 = vmax.f32 %v1066, 0.0
        %v1770 = vmax.f32 %v1107, 0.0
        %v1771 = vmax.f32 %v1148, 0.0
        %v1772 = vmax.f32 %v1189, 0.0
        %v1773 = vmax.f32 %v1230, 0.0
        %v1774 = vmax.f32 %v1271, 0.0
        %v1775 = vmax.f32 %v1312, 0.0
        %v1776 = vmax.f32 %v1353, 0.0
        %v1777 = vmax.f32 %v1394, 0.0
        %v1778 = vmax.f32 %v1435, 0.0
        %v1779 = vmax.f32 %v1476, 0.0
        %v1780 = vmax.f32 %v1517, 0.0
        %v1781 = vmax.f32 %v1558, 0.0
        %v1782 = vmax.f32 %v1599, 0.0
        %v1783 = vmax.f32 %v1640, 0.0
        %v1784 = vmax.f32 %v1681, 0.0
        %v1785 = vmax.f32 %v1069, 0.0
        %v1786 = vmax.f32 %v1110, 0.0
        %v1787 = vmax.f32 %v1151, 0.0
        %v1788 = vmax.f32 %v1192, 0.0
        %v1789 = vmax.f32 %v1233, 0.0
        %v1790 = vmax.f32 %v1274, 0.0
        %v1791 = vmax.f32 %v1315, 0.0
        %v1792 = vmax.f32 %v1356, 0.0
        %v1793 = vmax.f32 %v1397, 0.0
        %v1794 = vmax.f32 %v1438, 0.0
        %v1795 = vmax.f32 %v1479, 0.0
        %v1796 = vmax.f32 %v1520, 0.0
        %v1797 = vmax.f32 %v1561, 0.0
        %v1798 = vmax.f32 %v1602, 0.0
        %v1799 = vmax.f32 %v1643, 0.0
        %v1800 = vmax.f32 %v1684, 0.0
        %v1801 = vmax.f32 %v1072, 0.0
        %v1802 = vmax.f32 %v1113, 0.0
        %v1803 = vmax.f32 %v1154, 0.0
        %v1804 = vmax.f32 %v1195, 0.0
        %v1805 = vmax.f32 %v1236, 0.0
        %v1806 = vmax.f32 %v1277, 0.0
        %v1807 = vmax.f32 %v1318, 0.0
        %v1808 = vmax.f32 %v1359, 0.0
        %v1809 = vmax.f32 %v1400, 0.0
        %v1810 = vmax.f32 %v1441, 0.0
        %v1811 = vmax.f32 %v1482, 0.0
        %v1812 = vmax.f32 %v1523, 0.0
        %v1813 = vmax.f32 %v1564, 0.0
        %v1814 = vmax.f32 %v1605, 0.0
        %v1815 = vmax.f32 %v1646, 0.0
        %v1816 = vmax.f32 %v1687, 0.0
        %v1817 = vld [vmem:[#allocation10] sm:$0xff]
        %v1818 = vld [vmem:[#allocation10 + $0x8] sm:$0xff]
        %v1819 = vld [vmem:[#allocation10 + $0x10] sm:$0xff]
        %v1820 = vld [vmem:[#allocation10 + $0x18] sm:$0xff]
        %1822 = vset.pattern.permute.xlu0 5
        %1823 = vperm.xlu0 %1822, %v339
        %v1824 = vpop.permute.xlu0 %1823
        %1827 = vset.pattern.permute.xlu0 5
        %1828 = vperm.xlu0 %1827, %v340
        %v1829 = vpop.permute.xlu0 %1828
        %1832 = vset.pattern.permute.xlu0 5
        %1833 = vperm.xlu0 %1832, %v341
        %v1834 = vpop.permute.xlu0 %1833
        %1837 = vset.pattern.permute.xlu0 5
        %1838 = vperm.xlu0 %1837, %v342
        %v1839 = vpop.permute.xlu0 %1838
        %1842 = vset.pattern.permute.xlu0 5
        %1843 = vperm.xlu0 %1842, %v343
        %v1844 = vpop.permute.xlu0 %1843
        %1847 = vset.pattern.permute.xlu0 5
        %1848 = vperm.xlu0 %1847, %v344
        %v1849 = vpop.permute.xlu0 %1848
        %1852 = vset.pattern.permute.xlu0 5
        %1853 = vperm.xlu0 %1852, %v345
        %v1854 = vpop.permute.xlu0 %1853
        %1857 = vset.pattern.permute.xlu0 5
        %1858 = vperm.xlu0 %1857, %v346
        %v1859 = vpop.permute.xlu0 %1858
        %v1861 = vmul.f32 %v1824, %v1689
        %v1862 = vmul.f32 %v1824, %v1690
        %v1863 = vmul.f32 %v1824, %v1691
        %v1864 = vmul.f32 %v1824, %v1692
        %v1865 = vmul.f32 %v1824, %v1693
        %v1866 = vmul.f32 %v1824, %v1694
        %v1867 = vmul.f32 %v1824, %v1695
        %v1868 = vmul.f32 %v1824, %v1696
        %v1869 = vmul.f32 %v1824, %v1697
        %v1870 = vmul.f32 %v1824, %v1698
        %v1871 = vmul.f32 %v1824, %v1699
        %v1872 = vmul.f32 %v1824, %v1700
        %v1873 = vmul.f32 %v1824, %v1701
        %v1874 = vmul.f32 %v1824, %v1702
        %v1875 = vmul.f32 %v1824, %v1703
        %v1876 = vmul.f32 %v1824, %v1704
        %v1877 = vmul.f32 %v1829, %v1705
        %v1878 = vmul.f32 %v1829, %v1706
        %v1879 = vmul.f32 %v1829, %v1707
        %v1880 = vmul.f32 %v1829, %v1708
        %v1881 = vmul.f32 %v1829, %v1709
        %v1882 = vmul.f32 %v1829, %v1710
        %v1883 = vmul.f32 %v1829, %v1711
        %v1884 = vmul.f32 %v1829, %v1712
        %v1885 = vmul.f32 %v1829, %v1713
        %v1886 = vmul.f32 %v1829, %v1714
        %v1887 = vmul.f32 %v1829, %v1715
        %v1888 = vmul.f32 %v1829, %v1716
        %v1889 = vmul.f32 %v1829, %v1717
        %v1890 = vmul.f32 %v1829, %v1718
        %v1891 = vmul.f32 %v1829, %v1719
        %v1892 = vmul.f32 %v1829, %v1720
        %v1893 = vmul.f32 %v1834, %v1721
        %v1894 = vmul.f32 %v1834, %v1722
        %v1895 = vmul.f32 %v1834, %v1723
        %v1896 = vmul.f32 %v1834, %v1724
        %v1897 = vmul.f32 %v1834, %v1725
        %v1898 = vmul.f32 %v1834, %v1726
        %v1899 = vmul.f32 %v1834, %v1727
        %v1900 = vmul.f32 %v1834, %v1728
        %v1901 = vmul.f32 %v1834, %v1729
        %v1902 = vmul.f32 %v1834, %v1730
        %v1903 = vmul.f32 %v1834, %v1731
        %v1904 = vmul.f32 %v1834, %v1732
        %v1905 = vmul.f32 %v1834, %v1733
        %v1906 = vmul.f32 %v1834, %v1734
        %v1907 = vmul.f32 %v1834, %v1735
        %v1908 = vmul.f32 %v1834, %v1736
        %v1909 = vmul.f32 %v1839, %v1737
        %v1910 = vmul.f32 %v1839, %v1738
        %v1911 = vmul.f32 %v1839, %v1739
        %v1912 = vmul.f32 %v1839, %v1740
        %v1913 = vmul.f32 %v1839, %v1741
        %v1914 = vmul.f32 %v1839, %v1742
        %v1915 = vmul.f32 %v1839, %v1743
        %v1916 = vmul.f32 %v1839, %v1744
        %v1917 = vmul.f32 %v1839, %v1745
        %v1918 = vmul.f32 %v1839, %v1746
        %v1919 = vmul.f32 %v1839, %v1747
        %v1920 = vmul.f32 %v1839, %v1748
        %v1921 = vmul.f32 %v1839, %v1749
        %v1922 = vmul.f32 %v1839, %v1750
        %v1923 = vmul.f32 %v1839, %v1751
        %v1924 = vmul.f32 %v1839, %v1752
        %v1925 = vmul.f32 %v1844, %v1753
        %v1926 = vmul.f32 %v1844, %v1754
        %v1927 = vmul.f32 %v1844, %v1755
        %v1928 = vmul.f32 %v1844, %v1756
        %v1929 = vmul.f32 %v1844, %v1757
        %v1930 = vmul.f32 %v1844, %v1758
        %v1931 = vmul.f32 %v1844, %v1759
        %v1932 = vmul.f32 %v1844, %v1760
        %v1933 = vmul.f32 %v1844, %v1761
        %v1934 = vmul.f32 %v1844, %v1762
        %v1935 = vmul.f32 %v1844, %v1763
        %v1936 = vmul.f32 %v1844, %v1764
        %v1937 = vmul.f32 %v1844, %v1765
        %v1938 = vmul.f32 %v1844, %v1766
        %v1939 = vmul.f32 %v1844, %v1767
        %v1940 = vmul.f32 %v1844, %v1768
        %v1941 = vmul.f32 %v1849, %v1769
        %v1942 = vmul.f32 %v1849, %v1770
        %v1943 = vmul.f32 %v1849, %v1771
        %v1944 = vmul.f32 %v1849, %v1772
        %v1945 = vmul.f32 %v1849, %v1773
        %v1946 = vmul.f32 %v1849, %v1774
        %v1947 = vmul.f32 %v1849, %v1775
        %v1948 = vmul.f32 %v1849, %v1776
        %v1949 = vmul.f32 %v1849, %v1777
        %v1950 = vmul.f32 %v1849, %v1778
        %v1951 = vmul.f32 %v1849, %v1779
        %v1952 = vmul.f32 %v1849, %v1780
        %v1953 = vmul.f32 %v1849, %v1781
        %v1954 = vmul.f32 %v1849, %v1782
        %v1955 = vmul.f32 %v1849, %v1783
        %v1956 = vmul.f32 %v1849, %v1784
        %v1957 = vmul.f32 %v1854, %v1785
        %v1958 = vmul.f32 %v1854, %v1786
        %v1959 = vmul.f32 %v1854, %v1787
        %v1960 = vmul.f32 %v1854, %v1788
        %v1961 = vmul.f32 %v1854, %v1789
        %v1962 = vmul.f32 %v1854, %v1790
        %v1963 = vmul.f32 %v1854, %v1791
        %v1964 = vmul.f32 %v1854, %v1792
        %v1965 = vmul.f32 %v1854, %v1793
        %v1966 = vmul.f32 %v1854, %v1794
        %v1967 = vmul.f32 %v1854, %v1795
        %v1968 = vmul.f32 %v1854, %v1796
        %v1969 = vmul.f32 %v1854, %v1797
        %v1970 = vmul.f32 %v1854, %v1798
        %v1971 = vmul.f32 %v1854, %v1799
        %v1972 = vmul.f32 %v1854, %v1800
        %v1973 = vmul.f32 %v1859, %v1801
        %v1974 = vmul.f32 %v1859, %v1802
        %v1975 = vmul.f32 %v1859, %v1803
        %v1976 = vmul.f32 %v1859, %v1804
        %v1977 = vmul.f32 %v1859, %v1805
        %v1978 = vmul.f32 %v1859, %v1806
        %v1979 = vmul.f32 %v1859, %v1807
        %v1980 = vmul.f32 %v1859, %v1808
        %v1981 = vmul.f32 %v1859, %v1809
        %v1982 = vmul.f32 %v1859, %v1810
        %v1983 = vmul.f32 %v1859, %v1811
        %v1984 = vmul.f32 %v1859, %v1812
        %v1985 = vmul.f32 %v1859, %v1813
        %v1986 = vmul.f32 %v1859, %v1814
        %v1987 = vmul.f32 %v1859, %v1815
        %v1988 = vmul.f32 %v1859, %v1816
        %1989 = vset.pattern.permute.xlu0 4
        %1990 = vperm.xlu0 %1989, %v339
        %v1991 = vpop.permute.xlu0 %1990
        %1993 = vset.pattern.permute.xlu0 4
        %1994 = vperm.xlu0 %1993, %v340
        %v1995 = vpop.permute.xlu0 %1994
        %1997 = vset.pattern.permute.xlu0 4
        %1998 = vperm.xlu0 %1997, %v341
        %v1999 = vpop.permute.xlu0 %1998
        %2001 = vset.pattern.permute.xlu0 4
        %2002 = vperm.xlu0 %2001, %v342
        %v2003 = vpop.permute.xlu0 %2002
        %2005 = vset.pattern.permute.xlu0 4
        %2006 = vperm.xlu0 %2005, %v343
        %v2007 = vpop.permute.xlu0 %2006
        %2009 = vset.pattern.permute.xlu0 4
        %2010 = vperm.xlu0 %2009, %v344
        %v2011 = vpop.permute.xlu0 %2010
        %2013 = vset.pattern.permute.xlu0 4
        %2014 = vperm.xlu0 %2013, %v345
        %v2015 = vpop.permute.xlu0 %2014
        %2017 = vset.pattern.permute.xlu0 4
        %2018 = vperm.xlu0 %2017, %v346
        %v2019 = vpop.permute.xlu0 %2018
        %v2021 = vadd.f32 %v1861, %v1991
        %v2022 = vadd.f32 %v1862, %v1991
        %v2023 = vadd.f32 %v1863, %v1991
        %v2024 = vadd.f32 %v1864, %v1991
        %v2025 = vadd.f32 %v1865, %v1991
        %v2026 = vadd.f32 %v1866, %v1991
        %v2027 = vadd.f32 %v1867, %v1991
        %v2028 = vadd.f32 %v1868, %v1991
        %v2029 = vadd.f32 %v1869, %v1991
        %v2030 = vadd.f32 %v1870, %v1991
        %v2031 = vadd.f32 %v1871, %v1991
        %v2032 = vadd.f32 %v1872, %v1991
        %v2033 = vadd.f32 %v1873, %v1991
        %v2034 = vadd.f32 %v1874, %v1991
        %v2035 = vadd.f32 %v1875, %v1991
        %v2036 = vadd.f32 %v1876, %v1991
        %v2037 = vadd.f32 %v1877, %v1995
        %v2038 = vadd.f32 %v1878, %v1995
        %v2039 = vadd.f32 %v1879, %v1995
        %v2040 = vadd.f32 %v1880, %v1995
        %v2041 = vadd.f32 %v1881, %v1995
        %v2042 = vadd.f32 %v1882, %v1995
        %v2043 = vadd.f32 %v1883, %v1995
        %v2044 = vadd.f32 %v1884, %v1995
        %v2045 = vadd.f32 %v1885, %v1995
        %v2046 = vadd.f32 %v1886, %v1995
        %v2047 = vadd.f32 %v1887, %v1995
        %v2048 = vadd.f32 %v1888, %v1995
        %v2049 = vadd.f32 %v1889, %v1995
        %v2050 = vadd.f32 %v1890, %v1995
        %v2051 = vadd.f32 %v1891, %v1995
        %v2052 = vadd.f32 %v1892, %v1995
        %v2053 = vadd.f32 %v1893, %v1999
        %v2054 = vadd.f32 %v1894, %v1999
        %v2055 = vadd.f32 %v1895, %v1999
        %v2056 = vadd.f32 %v1896, %v1999
        %v2057 = vadd.f32 %v1897, %v1999
        %v2058 = vadd.f32 %v1898, %v1999
        %v2059 = vadd.f32 %v1899, %v1999
        %v2060 = vadd.f32 %v1900, %v1999
        %v2061 = vadd.f32 %v1901, %v1999
        %v2062 = vadd.f32 %v1902, %v1999
        %v2063 = vadd.f32 %v1903, %v1999
        %v2064 = vadd.f32 %v1904, %v1999
        %v2065 = vadd.f32 %v1905, %v1999
        %v2066 = vadd.f32 %v1906, %v1999
        %v2067 = vadd.f32 %v1907, %v1999
        %v2068 = vadd.f32 %v1908, %v1999
        %v2069 = vadd.f32 %v1909, %v2003
        %v2070 = vadd.f32 %v1910, %v2003
        %v2071 = vadd.f32 %v1911, %v2003
        %v2072 = vadd.f32 %v1912, %v2003
        %v2073 = vadd.f32 %v1913, %v2003
        %v2074 = vadd.f32 %v1914, %v2003
        %v2075 = vadd.f32 %v1915, %v2003
        %v2076 = vadd.f32 %v1916, %v2003
        %v2077 = vadd.f32 %v1917, %v2003
        %v2078 = vadd.f32 %v1918, %v2003
        %v2079 = vadd.f32 %v1919, %v2003
        %v2080 = vadd.f32 %v1920, %v2003
        %v2081 = vadd.f32 %v1921, %v2003
        %v2082 = vadd.f32 %v1922, %v2003
        %v2083 = vadd.f32 %v1923, %v2003
        %v2084 = vadd.f32 %v1924, %v2003
        %v2085 = vadd.f32 %v1925, %v2007
        %v2086 = vadd.f32 %v1926, %v2007
        %v2087 = vadd.f32 %v1927, %v2007
        %v2088 = vadd.f32 %v1928, %v2007
        %v2089 = vadd.f32 %v1929, %v2007
        %v2090 = vadd.f32 %v1930, %v2007
        %v2091 = vadd.f32 %v1931, %v2007
        %v2092 = vadd.f32 %v1932, %v2007
        %v2093 = vadd.f32 %v1933, %v2007
        %v2094 = vadd.f32 %v1934, %v2007
        %v2095 = vadd.f32 %v1935, %v2007
        %v2096 = vadd.f32 %v1936, %v2007
        %v2097 = vadd.f32 %v1937, %v2007
        %v2098 = vadd.f32 %v1938, %v2007
        %v2099 = vadd.f32 %v1939, %v2007
        %v2100 = vadd.f32 %v1940, %v2007
        %v2101 = vadd.f32 %v1941, %v2011
        %v2102 = vadd.f32 %v1942, %v2011
        %v2103 = vadd.f32 %v1943, %v2011
        %v2104 = vadd.f32 %v1944, %v2011
        %v2105 = vadd.f32 %v1945, %v2011
        %v2106 = vadd.f32 %v1946, %v2011
        %v2107 = vadd.f32 %v1947, %v2011
        %v2108 = vadd.f32 %v1948, %v2011
        %v2109 = vadd.f32 %v1949, %v2011
        %v2110 = vadd.f32 %v1950, %v2011
        %v2111 = vadd.f32 %v1951, %v2011
        %v2112 = vadd.f32 %v1952, %v2011
        %v2113 = vadd.f32 %v1953, %v2011
        %v2114 = vadd.f32 %v1954, %v2011
        %v2115 = vadd.f32 %v1955, %v2011
        %v2116 = vadd.f32 %v1956, %v2011
        %v2117 = vadd.f32 %v1957, %v2015
        %v2118 = vadd.f32 %v1958, %v2015
        %v2119 = vadd.f32 %v1959, %v2015
        %v2120 = vadd.f32 %v1960, %v2015
        %v2121 = vadd.f32 %v1961, %v2015
        %v2122 = vadd.f32 %v1962, %v2015
        %v2123 = vadd.f32 %v1963, %v2015
        %v2124 = vadd.f32 %v1964, %v2015
        %v2125 = vadd.f32 %v1965, %v2015
        %v2126 = vadd.f32 %v1966, %v2015
        %v2127 = vadd.f32 %v1967, %v2015
        %v2128 = vadd.f32 %v1968, %v2015
        %v2129 = vadd.f32 %v1969, %v2015
        %v2130 = vadd.f32 %v1970, %v2015
        %v2131 = vadd.f32 %v1971, %v2015
        %v2132 = vadd.f32 %v1972, %v2015
        %v2133 = vadd.f32 %v1973, %v2019
        %v2134 = vadd.f32 %v1974, %v2019
        %v2135 = vadd.f32 %v1975, %v2019
        %v2136 = vadd.f32 %v1976, %v2019
        %v2137 = vadd.f32 %v1977, %v2019
        %v2138 = vadd.f32 %v1978, %v2019
        %v2139 = vadd.f32 %v1979, %v2019
        %v2140 = vadd.f32 %v1980, %v2019
        %v2141 = vadd.f32 %v1981, %v2019
        %v2142 = vadd.f32 %v1982, %v2019
        %v2143 = vadd.f32 %v1983, %v2019
        %v2144 = vadd.f32 %v1984, %v2019
        %v2145 = vadd.f32 %v1985, %v2019
        %v2146 = vadd.f32 %v1986, %v2019
        %v2147 = vadd.f32 %v1987, %v2019
        %v2148 = vadd.f32 %v1988, %v2019
        %v2149 = vmul.f32 %v2021, %v1689
        %v2150 = vmul.f32 %v2022, %v1690
        %v2151 = vmul.f32 %v2023, %v1691
        %v2152 = vmul.f32 %v2024, %v1692
        %v2153 = vmul.f32 %v2025, %v1693
        %v2154 = vmul.f32 %v2026, %v1694
        %v2155 = vmul.f32 %v2027, %v1695
        %v2156 = vmul.f32 %v2028, %v1696
        %v2157 = vmul.f32 %v2029, %v1697
        %v2158 = vmul.f32 %v2030, %v1698
        %v2159 = vmul.f32 %v2031, %v1699
        %v2160 = vmul.f32 %v2032, %v1700
        %v2161 = vmul.f32 %v2033, %v1701
        %v2162 = vmul.f32 %v2034, %v1702
        %v2163 = vmul.f32 %v2035, %v1703
        %v2164 = vmul.f32 %v2036, %v1704
        %v2165 = vmul.f32 %v2037, %v1705
        %v2166 = vmul.f32 %v2038, %v1706
        %v2167 = vmul.f32 %v2039, %v1707
        %v2168 = vmul.f32 %v2040, %v1708
        %v2169 = vmul.f32 %v2041, %v1709
        %v2170 = vmul.f32 %v2042, %v1710
        %v2171 = vmul.f32 %v2043, %v1711
        %v2172 = vmul.f32 %v2044, %v1712
        %v2173 = vmul.f32 %v2045, %v1713
        %v2174 = vmul.f32 %v2046, %v1714
        %v2175 = vmul.f32 %v2047, %v1715
        %v2176 = vmul.f32 %v2048, %v1716
        %v2177 = vmul.f32 %v2049, %v1717
        %v2178 = vmul.f32 %v2050, %v1718
        %v2179 = vmul.f32 %v2051, %v1719
        %v2180 = vmul.f32 %v2052, %v1720
        %v2181 = vmul.f32 %v2053, %v1721
        %v2182 = vmul.f32 %v2054, %v1722
        %v2183 = vmul.f32 %v2055, %v1723
        %v2184 = vmul.f32 %v2056, %v1724
        %v2185 = vmul.f32 %v2057, %v1725
        %v2186 = vmul.f32 %v2058, %v1726
        %v2187 = vmul.f32 %v2059, %v1727
        %v2188 = vmul.f32 %v2060, %v1728
        %v2189 = vmul.f32 %v2061, %v1729
        %v2190 = vmul.f32 %v2062, %v1730
        %v2191 = vmul.f32 %v2063, %v1731
        %v2192 = vmul.f32 %v2064, %v1732
        %v2193 = vmul.f32 %v2065, %v1733
        %v2194 = vmul.f32 %v2066, %v1734
        %v2195 = vmul.f32 %v2067, %v1735
        %v2196 = vmul.f32 %v2068, %v1736
        %v2197 = vmul.f32 %v2069, %v1737
        %v2198 = vmul.f32 %v2070, %v1738
        %v2199 = vmul.f32 %v2071, %v1739
        %v2200 = vmul.f32 %v2072, %v1740
        %v2201 = vmul.f32 %v2073, %v1741
        %v2202 = vmul.f32 %v2074, %v1742
        %v2203 = vmul.f32 %v2075, %v1743
        %v2204 = vmul.f32 %v2076, %v1744
        %v2205 = vmul.f32 %v2077, %v1745
        %v2206 = vmul.f32 %v2078, %v1746
        %v2207 = vmul.f32 %v2079, %v1747
        %v2208 = vmul.f32 %v2080, %v1748
        %v2209 = vmul.f32 %v2081, %v1749
        %v2210 = vmul.f32 %v2082, %v1750
        %v2211 = vmul.f32 %v2083, %v1751
        %v2212 = vmul.f32 %v2084, %v1752
        %v2213 = vmul.f32 %v2085, %v1753
        %v2214 = vmul.f32 %v2086, %v1754
        %v2215 = vmul.f32 %v2087, %v1755
        %v2216 = vmul.f32 %v2088, %v1756
        %v2217 = vmul.f32 %v2089, %v1757
        %v2218 = vmul.f32 %v2090, %v1758
        %v2219 = vmul.f32 %v2091, %v1759
        %v2220 = vmul.f32 %v2092, %v1760
        %v2221 = vmul.f32 %v2093, %v1761
        %v2222 = vmul.f32 %v2094, %v1762
        %v2223 = vmul.f32 %v2095, %v1763
        %v2224 = vmul.f32 %v2096, %v1764
        %v2225 = vmul.f32 %v2097, %v1765
        %v2226 = vmul.f32 %v2098, %v1766
        %v2227 = vmul.f32 %v2099, %v1767
        %v2228 = vmul.f32 %v2100, %v1768
        %v2229 = vmul.f32 %v2101, %v1769
        %v2230 = vmul.f32 %v2102, %v1770
        %v2231 = vmul.f32 %v2103, %v1771
        %v2232 = vmul.f32 %v2104, %v1772
        %v2233 = vmul.f32 %v2105, %v1773
        %v2234 = vmul.f32 %v2106, %v1774
        %v2235 = vmul.f32 %v2107, %v1775
        %v2236 = vmul.f32 %v2108, %v1776
        %v2237 = vmul.f32 %v2109, %v1777
        %v2238 = vmul.f32 %v2110, %v1778
        %v2239 = vmul.f32 %v2111, %v1779
        %v2240 = vmul.f32 %v2112, %v1780
        %v2241 = vmul.f32 %v2113, %v1781
        %v2242 = vmul.f32 %v2114, %v1782
        %v2243 = vmul.f32 %v2115, %v1783
        %v2244 = vmul.f32 %v2116, %v1784
        %v2245 = vmul.f32 %v2117, %v1785
        %v2246 = vmul.f32 %v2118, %v1786
        %v2247 = vmul.f32 %v2119, %v1787
        %v2248 = vmul.f32 %v2120, %v1788
        %v2249 = vmul.f32 %v2121, %v1789
        %v2250 = vmul.f32 %v2122, %v1790
        %v2251 = vmul.f32 %v2123, %v1791
        %v2252 = vmul.f32 %v2124, %v1792
        %v2253 = vmul.f32 %v2125, %v1793
        %v2254 = vmul.f32 %v2126, %v1794
        %v2255 = vmul.f32 %v2127, %v1795
        %v2256 = vmul.f32 %v2128, %v1796
        %v2257 = vmul.f32 %v2129, %v1797
        %v2258 = vmul.f32 %v2130, %v1798
        %v2259 = vmul.f32 %v2131, %v1799
        %v2260 = vmul.f32 %v2132, %v1800
        %v2261 = vmul.f32 %v2133, %v1801
        %v2262 = vmul.f32 %v2134, %v1802
        %v2263 = vmul.f32 %v2135, %v1803
        %v2264 = vmul.f32 %v2136, %v1804
        %v2265 = vmul.f32 %v2137, %v1805
        %v2266 = vmul.f32 %v2138, %v1806
        %v2267 = vmul.f32 %v2139, %v1807
        %v2268 = vmul.f32 %v2140, %v1808
        %v2269 = vmul.f32 %v2141, %v1809
        %v2270 = vmul.f32 %v2142, %v1810
        %v2271 = vmul.f32 %v2143, %v1811
        %v2272 = vmul.f32 %v2144, %v1812
        %v2273 = vmul.f32 %v2145, %v1813
        %v2274 = vmul.f32 %v2146, %v1814
        %v2275 = vmul.f32 %v2147, %v1815
        %v2276 = vmul.f32 %v2148, %v1816
        %2277 = vset.pattern.permute.xlu0 3
        %2278 = vperm.xlu0 %2277, %v339
        %v2279 = vpop.permute.xlu0 %2278
        %2281 = vset.pattern.permute.xlu0 3
        %2282 = vperm.xlu0 %2281, %v340
        %v2283 = vpop.permute.xlu0 %2282
        %2285 = vset.pattern.permute.xlu0 3
        %2286 = vperm.xlu0 %2285, %v341
        %v2287 = vpop.permute.xlu0 %2286
        %2289 = vset.pattern.permute.xlu0 3
        %2290 = vperm.xlu0 %2289, %v342
        %v2291 = vpop.permute.xlu0 %2290
        %2293 = vset.pattern.permute.xlu0 3
        %2294 = vperm.xlu0 %2293, %v343
        %v2295 = vpop.permute.xlu0 %2294
        %2297 = vset.pattern.permute.xlu0 3
        %2298 = vperm.xlu0 %2297, %v344
        %v2299 = vpop.permute.xlu0 %2298
        %2301 = vset.pattern.permute.xlu0 3
        %2302 = vperm.xlu0 %2301, %v345
        %v2303 = vpop.permute.xlu0 %2302
        %2305 = vset.pattern.permute.xlu0 3
        %2306 = vperm.xlu0 %2305, %v346
        %v2307 = vpop.permute.xlu0 %2306
        %v2309 = vadd.f32 %v2149, %v2279
        %v2310 = vadd.f32 %v2150, %v2279
        %v2311 = vadd.f32 %v2151, %v2279
        %v2312 = vadd.f32 %v2152, %v2279
        %v2313 = vadd.f32 %v2153, %v2279
        %v2314 = vadd.f32 %v2154, %v2279
        %v2315 = vadd.f32 %v2155, %v2279
        %v2316 = vadd.f32 %v2156, %v2279
        %v2317 = vadd.f32 %v2157, %v2279
        %v2318 = vadd.f32 %v2158, %v2279
        %v2319 = vadd.f32 %v2159, %v2279
        %v2320 = vadd.f32 %v2160, %v2279
        %v2321 = vadd.f32 %v2161, %v2279
        %v2322 = vadd.f32 %v2162, %v2279
        %v2323 = vadd.f32 %v2163, %v2279
        %v2324 = vadd.f32 %v2164, %v2279
        %v2325 = vadd.f32 %v2165, %v2283
        %v2326 = vadd.f32 %v2166, %v2283
        %v2327 = vadd.f32 %v2167, %v2283
        %v2328 = vadd.f32 %v2168, %v2283
        %v2329 = vadd.f32 %v2169, %v2283
        %v2330 = vadd.f32 %v2170, %v2283
        %v2331 = vadd.f32 %v2171, %v2283
        %v2332 = vadd.f32 %v2172, %v2283
        %v2333 = vadd.f32 %v2173, %v2283
        %v2334 = vadd.f32 %v2174, %v2283
        %v2335 = vadd.f32 %v2175, %v2283
        %v2336 = vadd.f32 %v2176, %v2283
        %v2337 = vadd.f32 %v2177, %v2283
        %v2338 = vadd.f32 %v2178, %v2283
        %v2339 = vadd.f32 %v2179, %v2283
        %v2340 = vadd.f32 %v2180, %v2283
        %v2341 = vadd.f32 %v2181, %v2287
        %v2342 = vadd.f32 %v2182, %v2287
        %v2343 = vadd.f32 %v2183, %v2287
        %v2344 = vadd.f32 %v2184, %v2287
        %v2345 = vadd.f32 %v2185, %v2287
        %v2346 = vadd.f32 %v2186, %v2287
        %v2347 = vadd.f32 %v2187, %v2287
        %v2348 = vadd.f32 %v2188, %v2287
        %v2349 = vadd.f32 %v2189, %v2287
        %v2350 = vadd.f32 %v2190, %v2287
        %v2351 = vadd.f32 %v2191, %v2287
        %v2352 = vadd.f32 %v2192, %v2287
        %v2353 = vadd.f32 %v2193, %v2287
        %v2354 = vadd.f32 %v2194, %v2287
        %v2355 = vadd.f32 %v2195, %v2287
        %v2356 = vadd.f32 %v2196, %v2287
        %v2357 = vadd.f32 %v2197, %v2291
        %v2358 = vadd.f32 %v2198, %v2291
        %v2359 = vadd.f32 %v2199, %v2291
        %v2360 = vadd.f32 %v2200, %v2291
        %v2361 = vadd.f32 %v2201, %v2291
        %v2362 = vadd.f32 %v2202, %v2291
        %v2363 = vadd.f32 %v2203, %v2291
        %v2364 = vadd.f32 %v2204, %v2291
        %v2365 = vadd.f32 %v2205, %v2291
        %v2366 = vadd.f32 %v2206, %v2291
        %v2367 = vadd.f32 %v2207, %v2291
        %v2368 = vadd.f32 %v2208, %v2291
        %v2369 = vadd.f32 %v2209, %v2291
        %v2370 = vadd.f32 %v2210, %v2291
        %v2371 = vadd.f32 %v2211, %v2291
        %v2372 = vadd.f32 %v2212, %v2291
        %v2373 = vadd.f32 %v2213, %v2295
        %v2374 = vadd.f32 %v2214, %v2295
        %v2375 = vadd.f32 %v2215, %v2295
        %v2376 = vadd.f32 %v2216, %v2295
        %v2377 = vadd.f32 %v2217, %v2295
        %v2378 = vadd.f32 %v2218, %v2295
        %v2379 = vadd.f32 %v2219, %v2295
        %v2380 = vadd.f32 %v2220, %v2295
        %v2381 = vadd.f32 %v2221, %v2295
        %v2382 = vadd.f32 %v2222, %v2295
        %v2383 = vadd.f32 %v2223, %v2295
        %v2384 = vadd.f32 %v2224, %v2295
        %v2385 = vadd.f32 %v2225, %v2295
        %v2386 = vadd.f32 %v2226, %v2295
        %v2387 = vadd.f32 %v2227, %v2295
        %v2388 = vadd.f32 %v2228, %v2295
        %v2389 = vadd.f32 %v2229, %v2299
        %v2390 = vadd.f32 %v2230, %v2299
        %v2391 = vadd.f32 %v2231, %v2299
        %v2392 = vadd.f32 %v2232, %v2299
        %v2393 = vadd.f32 %v2233, %v2299
        %v2394 = vadd.f32 %v2234, %v2299
        %v2395 = vadd.f32 %v2235, %v2299
        %v2396 = vadd.f32 %v2236, %v2299
        %v2397 = vadd.f32 %v2237, %v2299
        %v2398 = vadd.f32 %v2238, %v2299
        %v2399 = vadd.f32 %v2239, %v2299
        %v2400 = vadd.f32 %v2240, %v2299
        %v2401 = vadd.f32 %v2241, %v2299
        %v2402 = vadd.f32 %v2242, %v2299
        %v2403 = vadd.f32 %v2243, %v2299
        %v2404 = vadd.f32 %v2244, %v2299
        %v2405 = vadd.f32 %v2245, %v2303
        %v2406 = vadd.f32 %v2246, %v2303
        %v2407 = vadd.f32 %v2247, %v2303
        %v2408 = vadd.f32 %v2248, %v2303
        %v2409 = vadd.f32 %v2249, %v2303
        %v2410 = vadd.f32 %v2250, %v2303
        %v2411 = vadd.f32 %v2251, %v2303
        %v2412 = vadd.f32 %v2252, %v2303
        %v2413 = vadd.f32 %v2253, %v2303
        %v2414 = vadd.f32 %v2254, %v2303
        %v2415 = vadd.f32 %v2255, %v2303
        %v2416 = vadd.f32 %v2256, %v2303
        %v2417 = vadd.f32 %v2257, %v2303
        %v2418 = vadd.f32 %v2258, %v2303
        %v2419 = vadd.f32 %v2259, %v2303
        %v2420 = vadd.f32 %v2260, %v2303
        %v2421 = vadd.f32 %v2261, %v2307
        %v2422 = vadd.f32 %v2262, %v2307
        %v2423 = vadd.f32 %v2263, %v2307
        %v2424 = vadd.f32 %v2264, %v2307
        %v2425 = vadd.f32 %v2265, %v2307
        %v2426 = vadd.f32 %v2266, %v2307
        %v2427 = vadd.f32 %v2267, %v2307
        %v2428 = vadd.f32 %v2268, %v2307
        %v2429 = vadd.f32 %v2269, %v2307
        %v2430 = vadd.f32 %v2270, %v2307
        %v2431 = vadd.f32 %v2271, %v2307
        %v2432 = vadd.f32 %v2272, %v2307
        %v2433 = vadd.f32 %v2273, %v2307
        %v2434 = vadd.f32 %v2274, %v2307
        %v2435 = vadd.f32 %v2275, %v2307
        %v2436 = vadd.f32 %v2276, %v2307
        %v2437 = vmul.f32 %v2309, %v1689
        %v2438 = vmul.f32 %v2310, %v1690
        %v2439 = vmul.f32 %v2311, %v1691
        %v2440 = vmul.f32 %v2312, %v1692
        %v2441 = vmul.f32 %v2313, %v1693
        %v2442 = vmul.f32 %v2314, %v1694
        %v2443 = vmul.f32 %v2315, %v1695
        %v2444 = vmul.f32 %v2316, %v1696
        %v2445 = vmul.f32 %v2317, %v1697
        %v2446 = vmul.f32 %v2318, %v1698
        %v2447 = vmul.f32 %v2319, %v1699
        %v2448 = vmul.f32 %v2320, %v1700
        %v2449 = vmul.f32 %v2321, %v1701
        %v2450 = vmul.f32 %v2322, %v1702
        %v2451 = vmul.f32 %v2323, %v1703
        %v2452 = vmul.f32 %v2324, %v1704
        %v2453 = vmul.f32 %v2325, %v1705
        %v2454 = vmul.f32 %v2326, %v1706
        %v2455 = vmul.f32 %v2327, %v1707
        %v2456 = vmul.f32 %v2328, %v1708
        %v2457 = vmul.f32 %v2329, %v1709
        %v2458 = vmul.f32 %v2330, %v1710
        %v2459 = vmul.f32 %v2331, %v1711
        %v2460 = vmul.f32 %v2332, %v1712
        %v2461 = vmul.f32 %v2333, %v1713
        %v2462 = vmul.f32 %v2334, %v1714
        %v2463 = vmul.f32 %v2335, %v1715
        %v2464 = vmul.f32 %v2336, %v1716
        %v2465 = vmul.f32 %v2337, %v1717
        %v2466 = vmul.f32 %v2338, %v1718
        %v2467 = vmul.f32 %v2339, %v1719
        %v2468 = vmul.f32 %v2340, %v1720
        %v2469 = vmul.f32 %v2341, %v1721
        %v2470 = vmul.f32 %v2342, %v1722
        %v2471 = vmul.f32 %v2343, %v1723
        %v2472 = vmul.f32 %v2344, %v1724
        %v2473 = vmul.f32 %v2345, %v1725
        %v2474 = vmul.f32 %v2346, %v1726
        %v2475 = vmul.f32 %v2347, %v1727
        %v2476 = vmul.f32 %v2348, %v1728
        %v2477 = vmul.f32 %v2349, %v1729
        %v2478 = vmul.f32 %v2350, %v1730
        %v2479 = vmul.f32 %v2351, %v1731
        %v2480 = vmul.f32 %v2352, %v1732
        %v2481 = vmul.f32 %v2353, %v1733
        %v2482 = vmul.f32 %v2354, %v1734
        %v2483 = vmul.f32 %v2355, %v1735
        %v2484 = vmul.f32 %v2356, %v1736
        %v2485 = vmul.f32 %v2357, %v1737
        %v2486 = vmul.f32 %v2358, %v1738
        %v2487 = vmul.f32 %v2359, %v1739
        %v2488 = vmul.f32 %v2360, %v1740
        %v2489 = vmul.f32 %v2361, %v1741
        %v2490 = vmul.f32 %v2362, %v1742
        %v2491 = vmul.f32 %v2363, %v1743
        %v2492 = vmul.f32 %v2364, %v1744
        %v2493 = vmul.f32 %v2365, %v1745
        %v2494 = vmul.f32 %v2366, %v1746
        %v2495 = vmul.f32 %v2367, %v1747
        %v2496 = vmul.f32 %v2368, %v1748
        %v2497 = vmul.f32 %v2369, %v1749
        %v2498 = vmul.f32 %v2370, %v1750
        %v2499 = vmul.f32 %v2371, %v1751
        %v2500 = vmul.f32 %v2372, %v1752
        %v2501 = vmul.f32 %v2373, %v1753
        %v2502 = vmul.f32 %v2374, %v1754
        %v2503 = vmul.f32 %v2375, %v1755
        %v2504 = vmul.f32 %v2376, %v1756
        %v2505 = vmul.f32 %v2377, %v1757
        %v2506 = vmul.f32 %v2378, %v1758
        %v2507 = vmul.f32 %v2379, %v1759
        %v2508 = vmul.f32 %v2380, %v1760
        %v2509 = vmul.f32 %v2381, %v1761
        %v2510 = vmul.f32 %v2382, %v1762
        %v2511 = vmul.f32 %v2383, %v1763
        %v2512 = vmul.f32 %v2384, %v1764
        %v2513 = vmul.f32 %v2385, %v1765
        %v2514 = vmul.f32 %v2386, %v1766
        %v2515 = vmul.f32 %v2387, %v1767
        %v2516 = vmul.f32 %v2388, %v1768
        %v2517 = vmul.f32 %v2389, %v1769
        %v2518 = vmul.f32 %v2390, %v1770
        %v2519 = vmul.f32 %v2391, %v1771
        %v2520 = vmul.f32 %v2392, %v1772
        %v2521 = vmul.f32 %v2393, %v1773
        %v2522 = vmul.f32 %v2394, %v1774
        %v2523 = vmul.f32 %v2395, %v1775
        %v2524 = vmul.f32 %v2396, %v1776
        %v2525 = vmul.f32 %v2397, %v1777
        %v2526 = vmul.f32 %v2398, %v1778
        %v2527 = vmul.f32 %v2399, %v1779
        %v2528 = vmul.f32 %v2400, %v1780
        %v2529 = vmul.f32 %v2401, %v1781
        %v2530 = vmul.f32 %v2402, %v1782
        %v2531 = vmul.f32 %v2403, %v1783
        %v2532 = vmul.f32 %v2404, %v1784
        %v2533 = vmul.f32 %v2405, %v1785
        %v2534 = vmul.f32 %v2406, %v1786
        %v2535 = vmul.f32 %v2407, %v1787
        %v2536 = vmul.f32 %v2408, %v1788
        %v2537 = vmul.f32 %v2409, %v1789
        %v2538 = vmul.f32 %v2410, %v1790
        %v2539 = vmul.f32 %v2411, %v1791
        %v2540 = vmul.f32 %v2412, %v1792
        %v2541 = vmul.f32 %v2413, %v1793
        %v2542 = vmul.f32 %v2414, %v1794
        %v2543 = vmul.f32 %v2415, %v1795
        %v2544 = vmul.f32 %v2416, %v1796
        %v2545 = vmul.f32 %v2417, %v1797
        %v2546 = vmul.f32 %v2418, %v1798
        %v2547 = vmul.f32 %v2419, %v1799
        %v2548 = vmul.f32 %v2420, %v1800
        %v2549 = vmul.f32 %v2421, %v1801
        %v2550 = vmul.f32 %v2422, %v1802
        %v2551 = vmul.f32 %v2423, %v1803
        %v2552 = vmul.f32 %v2424, %v1804
        %v2553 = vmul.f32 %v2425, %v1805
        %v2554 = vmul.f32 %v2426, %v1806
        %v2555 = vmul.f32 %v2427, %v1807
        %v2556 = vmul.f32 %v2428, %v1808
        %v2557 = vmul.f32 %v2429, %v1809
        %v2558 = vmul.f32 %v2430, %v1810
        %v2559 = vmul.f32 %v2431, %v1811
        %v2560 = vmul.f32 %v2432, %v1812
        %v2561 = vmul.f32 %v2433, %v1813
        %v2562 = vmul.f32 %v2434, %v1814
        %v2563 = vmul.f32 %v2435, %v1815
        %v2564 = vmul.f32 %v2436, %v1816
        %2565 = vset.pattern.permute.xlu0 2
        %2566 = vperm.xlu0 %2565, %v339
        %v2567 = vpop.permute.xlu0 %2566
        %2569 = vset.pattern.permute.xlu0 2
        %2570 = vperm.xlu0 %2569, %v340
        %v2571 = vpop.permute.xlu0 %2570
        %2573 = vset.pattern.permute.xlu0 2
        %2574 = vperm.xlu0 %2573, %v341
        %v2575 = vpop.permute.xlu0 %2574
        %2577 = vset.pattern.permute.xlu0 2
        %2578 = vperm.xlu0 %2577, %v342
        %v2579 = vpop.permute.xlu0 %2578
        %2581 = vset.pattern.permute.xlu0 2
        %2582 = vperm.xlu0 %2581, %v343
        %v2583 = vpop.permute.xlu0 %2582
        %2585 = vset.pattern.permute.xlu0 2
        %2586 = vperm.xlu0 %2585, %v344
        %v2587 = vpop.permute.xlu0 %2586
        %2589 = vset.pattern.permute.xlu0 2
        %2590 = vperm.xlu0 %2589, %v345
        %v2591 = vpop.permute.xlu0 %2590
        %2593 = vset.pattern.permute.xlu0 2
        %2594 = vperm.xlu0 %2593, %v346
        %v2595 = vpop.permute.xlu0 %2594
        %v2597 = vadd.f32 %v2437, %v2567
        %v2598 = vadd.f32 %v2438, %v2567
        %v2599 = vadd.f32 %v2439, %v2567
        %v2600 = vadd.f32 %v2440, %v2567
        %v2601 = vadd.f32 %v2441, %v2567
        %v2602 = vadd.f32 %v2442, %v2567
        %v2603 = vadd.f32 %v2443, %v2567
        %v2604 = vadd.f32 %v2444, %v2567
        %v2605 = vadd.f32 %v2445, %v2567
        %v2606 = vadd.f32 %v2446, %v2567
        %v2607 = vadd.f32 %v2447, %v2567
        %v2608 = vadd.f32 %v2448, %v2567
        %v2609 = vadd.f32 %v2449, %v2567
        %v2610 = vadd.f32 %v2450, %v2567
        %v2611 = vadd.f32 %v2451, %v2567
        %v2612 = vadd.f32 %v2452, %v2567
        %v2613 = vadd.f32 %v2453, %v2571
        %v2614 = vadd.f32 %v2454, %v2571
        %v2615 = vadd.f32 %v2455, %v2571
        %v2616 = vadd.f32 %v2456, %v2571
        %v2617 = vadd.f32 %v2457, %v2571
        %v2618 = vadd.f32 %v2458, %v2571
        %v2619 = vadd.f32 %v2459, %v2571
        %v2620 = vadd.f32 %v2460, %v2571
        %v2621 = vadd.f32 %v2461, %v2571
        %v2622 = vadd.f32 %v2462, %v2571
        %v2623 = vadd.f32 %v2463, %v2571
        %v2624 = vadd.f32 %v2464, %v2571
        %v2625 = vadd.f32 %v2465, %v2571
        %v2626 = vadd.f32 %v2466, %v2571
        %v2627 = vadd.f32 %v2467, %v2571
        %v2628 = vadd.f32 %v2468, %v2571
        %v2629 = vadd.f32 %v2469, %v2575
        %v2630 = vadd.f32 %v2470, %v2575
        %v2631 = vadd.f32 %v2471, %v2575
        %v2632 = vadd.f32 %v2472, %v2575
        %v2633 = vadd.f32 %v2473, %v2575
        %v2634 = vadd.f32 %v2474, %v2575
        %v2635 = vadd.f32 %v2475, %v2575
        %v2636 = vadd.f32 %v2476, %v2575
        %v2637 = vadd.f32 %v2477, %v2575
        %v2638 = vadd.f32 %v2478, %v2575
        %v2639 = vadd.f32 %v2479, %v2575
        %v2640 = vadd.f32 %v2480, %v2575
        %v2641 = vadd.f32 %v2481, %v2575
        %v2642 = vadd.f32 %v2482, %v2575
        %v2643 = vadd.f32 %v2483, %v2575
        %v2644 = vadd.f32 %v2484, %v2575
        %v2645 = vadd.f32 %v2485, %v2579
        %v2646 = vadd.f32 %v2486, %v2579
        %v2647 = vadd.f32 %v2487, %v2579
        %v2648 = vadd.f32 %v2488, %v2579
        %v2649 = vadd.f32 %v2489, %v2579
        %v2650 = vadd.f32 %v2490, %v2579
        %v2651 = vadd.f32 %v2491, %v2579
        %v2652 = vadd.f32 %v2492, %v2579
        %v2653 = vadd.f32 %v2493, %v2579
        %v2654 = vadd.f32 %v2494, %v2579
        %v2655 = vadd.f32 %v2495, %v2579
        %v2656 = vadd.f32 %v2496, %v2579
        %v2657 = vadd.f32 %v2497, %v2579
        %v2658 = vadd.f32 %v2498, %v2579
        %v2659 = vadd.f32 %v2499, %v2579
        %v2660 = vadd.f32 %v2500, %v2579
        %v2661 = vadd.f32 %v2501, %v2583
        %v2662 = vadd.f32 %v2502, %v2583
        %v2663 = vadd.f32 %v2503, %v2583
        %v2664 = vadd.f32 %v2504, %v2583
        %v2665 = vadd.f32 %v2505, %v2583
        %v2666 = vadd.f32 %v2506, %v2583
        %v2667 = vadd.f32 %v2507, %v2583
        %v2668 = vadd.f32 %v2508, %v2583
        %v2669 = vadd.f32 %v2509, %v2583
        %v2670 = vadd.f32 %v2510, %v2583
        %v2671 = vadd.f32 %v2511, %v2583
        %v2672 = vadd.f32 %v2512, %v2583
        %v2673 = vadd.f32 %v2513, %v2583
        %v2674 = vadd.f32 %v2514, %v2583
        %v2675 = vadd.f32 %v2515, %v2583
        %v2676 = vadd.f32 %v2516, %v2583
        %v2677 = vadd.f32 %v2517, %v2587
        %v2678 = vadd.f32 %v2518, %v2587
        %v2679 = vadd.f32 %v2519, %v2587
        %v2680 = vadd.f32 %v2520, %v2587
        %v2681 = vadd.f32 %v2521, %v2587
        %v2682 = vadd.f32 %v2522, %v2587
        %v2683 = vadd.f32 %v2523, %v2587
        %v2684 = vadd.f32 %v2524, %v2587
        %v2685 = vadd.f32 %v2525, %v2587
        %v2686 = vadd.f32 %v2526, %v2587
        %v2687 = vadd.f32 %v2527, %v2587
        %v2688 = vadd.f32 %v2528, %v2587
        %v2689 = vadd.f32 %v2529, %v2587
        %v2690 = vadd.f32 %v2530, %v2587
        %v2691 = vadd.f32 %v2531, %v2587
        %v2692 = vadd.f32 %v2532, %v2587
        %v2693 = vadd.f32 %v2533, %v2591
        %v2694 = vadd.f32 %v2534, %v2591
        %v2695 = vadd.f32 %v2535, %v2591
        %v2696 = vadd.f32 %v2536, %v2591
        %v2697 = vadd.f32 %v2537, %v2591
        %v2698 = vadd.f32 %v2538, %v2591
        %v2699 = vadd.f32 %v2539, %v2591
        %v2700 = vadd.f32 %v2540, %v2591
        %v2701 = vadd.f32 %v2541, %v2591
        %v2702 = vadd.f32 %v2542, %v2591
        %v2703 = vadd.f32 %v2543, %v2591
        %v2704 = vadd.f32 %v2544, %v2591
        %v2705 = vadd.f32 %v2545, %v2591
        %v2706 = vadd.f32 %v2546, %v2591
        %v2707 = vadd.f32 %v2547, %v2591
        %v2708 = vadd.f32 %v2548, %v2591
        %v2709 = vadd.f32 %v2549, %v2595
        %v2710 = vadd.f32 %v2550, %v2595
        %v2711 = vadd.f32 %v2551, %v2595
        %v2712 = vadd.f32 %v2552, %v2595
        %v2713 = vadd.f32 %v2553, %v2595
        %v2714 = vadd.f32 %v2554, %v2595
        %v2715 = vadd.f32 %v2555, %v2595
        %v2716 = vadd.f32 %v2556, %v2595
        %v2717 = vadd.f32 %v2557, %v2595
        %v2718 = vadd.f32 %v2558, %v2595
        %v2719 = vadd.f32 %v2559, %v2595
        %v2720 = vadd.f32 %v2560, %v2595
        %v2721 = vadd.f32 %v2561, %v2595
        %v2722 = vadd.f32 %v2562, %v2595
        %v2723 = vadd.f32 %v2563, %v2595
        %v2724 = vadd.f32 %v2564, %v2595
        %v2725 = vmul.f32 %v2597, %v1689
        %v2726 = vmul.f32 %v2598, %v1690
        %v2727 = vmul.f32 %v2599, %v1691
        %v2728 = vmul.f32 %v2600, %v1692
        %v2729 = vmul.f32 %v2601, %v1693
        %v2730 = vmul.f32 %v2602, %v1694
        %v2731 = vmul.f32 %v2603, %v1695
        %v2732 = vmul.f32 %v2604, %v1696
        %v2733 = vmul.f32 %v2605, %v1697
        %v2734 = vmul.f32 %v2606, %v1698
        %v2735 = vmul.f32 %v2607, %v1699
        %v2736 = vmul.f32 %v2608, %v1700
        %v2737 = vmul.f32 %v2609, %v1701
        %v2738 = vmul.f32 %v2610, %v1702
        %v2739 = vmul.f32 %v2611, %v1703
        %v2740 = vmul.f32 %v2612, %v1704
        %v2741 = vmul.f32 %v2613, %v1705
        %v2742 = vmul.f32 %v2614, %v1706
        %v2743 = vmul.f32 %v2615, %v1707
        %v2744 = vmul.f32 %v2616, %v1708
        %v2745 = vmul.f32 %v2617, %v1709
        %v2746 = vmul.f32 %v2618, %v1710
        %v2747 = vmul.f32 %v2619, %v1711
        %v2748 = vmul.f32 %v2620, %v1712
        %v2749 = vmul.f32 %v2621, %v1713
        %v2750 = vmul.f32 %v2622, %v1714
        %v2751 = vmul.f32 %v2623, %v1715
        %v2752 = vmul.f32 %v2624, %v1716
        %v2753 = vmul.f32 %v2625, %v1717
        %v2754 = vmul.f32 %v2626, %v1718
        %v2755 = vmul.f32 %v2627, %v1719
        %v2756 = vmul.f32 %v2628, %v1720
        %v2757 = vmul.f32 %v2629, %v1721
        %v2758 = vmul.f32 %v2630, %v1722
        %v2759 = vmul.f32 %v2631, %v1723
        %v2760 = vmul.f32 %v2632, %v1724
        %v2761 = vmul.f32 %v2633, %v1725
        %v2762 = vmul.f32 %v2634, %v1726
        %v2763 = vmul.f32 %v2635, %v1727
        %v2764 = vmul.f32 %v2636, %v1728
        %v2765 = vmul.f32 %v2637, %v1729
        %v2766 = vmul.f32 %v2638, %v1730
        %v2767 = vmul.f32 %v2639, %v1731
        %v2768 = vmul.f32 %v2640, %v1732
        %v2769 = vmul.f32 %v2641, %v1733
        %v2770 = vmul.f32 %v2642, %v1734
        %v2771 = vmul.f32 %v2643, %v1735
        %v2772 = vmul.f32 %v2644, %v1736
        %v2773 = vmul.f32 %v2645, %v1737
        %v2774 = vmul.f32 %v2646, %v1738
        %v2775 = vmul.f32 %v2647, %v1739
        %v2776 = vmul.f32 %v2648, %v1740
        %v2777 = vmul.f32 %v2649, %v1741
        %v2778 = vmul.f32 %v2650, %v1742
        %v2779 = vmul.f32 %v2651, %v1743
        %v2780 = vmul.f32 %v2652, %v1744
        %v2781 = vmul.f32 %v2653, %v1745
        %v2782 = vmul.f32 %v2654, %v1746
        %v2783 = vmul.f32 %v2655, %v1747
        %v2784 = vmul.f32 %v2656, %v1748
        %v2785 = vmul.f32 %v2657, %v1749
        %v2786 = vmul.f32 %v2658, %v1750
        %v2787 = vmul.f32 %v2659, %v1751
        %v2788 = vmul.f32 %v2660, %v1752
        %v2789 = vmul.f32 %v2661, %v1753
        %v2790 = vmul.f32 %v2662, %v1754
        %v2791 = vmul.f32 %v2663, %v1755
        %v2792 = vmul.f32 %v2664, %v1756
        %v2793 = vmul.f32 %v2665, %v1757
        %v2794 = vmul.f32 %v2666, %v1758
        %v2795 = vmul.f32 %v2667, %v1759
        %v2796 = vmul.f32 %v2668, %v1760
        %v2797 = vmul.f32 %v2669, %v1761
        %v2798 = vmul.f32 %v2670, %v1762
        %v2799 = vmul.f32 %v2671, %v1763
        %v2800 = vmul.f32 %v2672, %v1764
        %v2801 = vmul.f32 %v2673, %v1765
        %v2802 = vmul.f32 %v2674, %v1766
        %v2803 = vmul.f32 %v2675, %v1767
        %v2804 = vmul.f32 %v2676, %v1768
        %v2805 = vmul.f32 %v2677, %v1769
        %v2806 = vmul.f32 %v2678, %v1770
        %v2807 = vmul.f32 %v2679, %v1771
        %v2808 = vmul.f32 %v2680, %v1772
        %v2809 = vmul.f32 %v2681, %v1773
        %v2810 = vmul.f32 %v2682, %v1774
        %v2811 = vmul.f32 %v2683, %v1775
        %v2812 = vmul.f32 %v2684, %v1776
        %v2813 = vmul.f32 %v2685, %v1777
        %v2814 = vmul.f32 %v2686, %v1778
        %v2815 = vmul.f32 %v2687, %v1779
        %v2816 = vmul.f32 %v2688, %v1780
        %v2817 = vmul.f32 %v2689, %v1781
        %v2818 = vmul.f32 %v2690, %v1782
        %v2819 = vmul.f32 %v2691, %v1783
        %v2820 = vmul.f32 %v2692, %v1784
        %v2821 = vmul.f32 %v2693, %v1785
        %v2822 = vmul.f32 %v2694, %v1786
        %v2823 = vmul.f32 %v2695, %v1787
        %v2824 = vmul.f32 %v2696, %v1788
        %v2825 = vmul.f32 %v2697, %v1789
        %v2826 = vmul.f32 %v2698, %v1790
        %v2827 = vmul.f32 %v2699, %v1791
        %v2828 = vmul.f32 %v2700, %v1792
        %v2829 = vmul.f32 %v2701, %v1793
        %v2830 = vmul.f32 %v2702, %v1794
        %v2831 = vmul.f32 %v2703, %v1795
        %v2832 = vmul.f32 %v2704, %v1796
        %v2833 = vmul.f32 %v2705, %v1797
        %v2834 = vmul.f32 %v2706, %v1798
        %v2835 = vmul.f32 %v2707, %v1799
        %v2836 = vmul.f32 %v2708, %v1800
        %v2837 = vmul.f32 %v2709, %v1801
        %v2838 = vmul.f32 %v2710, %v1802
        %v2839 = vmul.f32 %v2711, %v1803
        %v2840 = vmul.f32 %v2712, %v1804
        %v2841 = vmul.f32 %v2713, %v1805
        %v2842 = vmul.f32 %v2714, %v1806
        %v2843 = vmul.f32 %v2715, %v1807
        %v2844 = vmul.f32 %v2716, %v1808
        %v2845 = vmul.f32 %v2717, %v1809
        %v2846 = vmul.f32 %v2718, %v1810
        %v2847 = vmul.f32 %v2719, %v1811
        %v2848 = vmul.f32 %v2720, %v1812
        %v2849 = vmul.f32 %v2721, %v1813
        %v2850 = vmul.f32 %v2722, %v1814
        %v2851 = vmul.f32 %v2723, %v1815
        %v2852 = vmul.f32 %v2724, %v1816
        %2853 = vset.pattern.permute.xlu0 1
        %2854 = vperm.xlu0 %2853, %v339
        %v2855 = vpop.permute.xlu0 %2854
        %2857 = vset.pattern.permute.xlu0 1
        %2858 = vperm.xlu0 %2857, %v340
        %v2859 = vpop.permute.xlu0 %2858
        %2861 = vset.pattern.permute.xlu0 1
        %2862 = vperm.xlu0 %2861, %v341
        %v2863 = vpop.permute.xlu0 %2862
        %2865 = vset.pattern.permute.xlu0 1
        %2866 = vperm.xlu0 %2865, %v342
        %v2867 = vpop.permute.xlu0 %2866
        %2869 = vset.pattern.permute.xlu0 1
        %2870 = vperm.xlu0 %2869, %v343
        %v2871 = vpop.permute.xlu0 %2870
        %2873 = vset.pattern.permute.xlu0 1
        %2874 = vperm.xlu0 %2873, %v344
        %v2875 = vpop.permute.xlu0 %2874
        %2877 = vset.pattern.permute.xlu0 1
        %2878 = vperm.xlu0 %2877, %v345
        %v2879 = vpop.permute.xlu0 %2878
        %2881 = vset.pattern.permute.xlu0 1
        %2882 = vperm.xlu0 %2881, %v346
        %v2883 = vpop.permute.xlu0 %2882
        %v2885 = vadd.f32 %v2725, %v2855
        %v2886 = vadd.f32 %v2726, %v2855
        %v2887 = vadd.f32 %v2727, %v2855
        %v2888 = vadd.f32 %v2728, %v2855
        %v2889 = vadd.f32 %v2729, %v2855
        %v2890 = vadd.f32 %v2730, %v2855
        %v2891 = vadd.f32 %v2731, %v2855
        %v2892 = vadd.f32 %v2732, %v2855
        %v2893 = vadd.f32 %v2733, %v2855
        %v2894 = vadd.f32 %v2734, %v2855
        %v2895 = vadd.f32 %v2735, %v2855
        %v2896 = vadd.f32 %v2736, %v2855
        %v2897 = vadd.f32 %v2737, %v2855
        %v2898 = vadd.f32 %v2738, %v2855
        %v2899 = vadd.f32 %v2739, %v2855
        %v2900 = vadd.f32 %v2740, %v2855
        %v2901 = vadd.f32 %v2741, %v2859
        %v2902 = vadd.f32 %v2742, %v2859
        %v2903 = vadd.f32 %v2743, %v2859
        %v2904 = vadd.f32 %v2744, %v2859
        %v2905 = vadd.f32 %v2745, %v2859
        %v2906 = vadd.f32 %v2746, %v2859
        %v2907 = vadd.f32 %v2747, %v2859
        %v2908 = vadd.f32 %v2748, %v2859
        %v2909 = vadd.f32 %v2749, %v2859
        %v2910 = vadd.f32 %v2750, %v2859
        %v2911 = vadd.f32 %v2751, %v2859
        %v2912 = vadd.f32 %v2752, %v2859
        %v2913 = vadd.f32 %v2753, %v2859
        %v2914 = vadd.f32 %v2754, %v2859
        %v2915 = vadd.f32 %v2755, %v2859
        %v2916 = vadd.f32 %v2756, %v2859
        %v2917 = vadd.f32 %v2757, %v2863
        %v2918 = vadd.f32 %v2758, %v2863
        %v2919 = vadd.f32 %v2759, %v2863
        %v2920 = vadd.f32 %v2760, %v2863
        %v2921 = vadd.f32 %v2761, %v2863
        %v2922 = vadd.f32 %v2762, %v2863
        %v2923 = vadd.f32 %v2763, %v2863
        %v2924 = vadd.f32 %v2764, %v2863
        %v2925 = vadd.f32 %v2765, %v2863
        %v2926 = vadd.f32 %v2766, %v2863
        %v2927 = vadd.f32 %v2767, %v2863
        %v2928 = vadd.f32 %v2768, %v2863
        %v2929 = vadd.f32 %v2769, %v2863
        %v2930 = vadd.f32 %v2770, %v2863
        %v2931 = vadd.f32 %v2771, %v2863
        %v2932 = vadd.f32 %v2772, %v2863
        %v2933 = vadd.f32 %v2773, %v2867
        %v2934 = vadd.f32 %v2774, %v2867
        %v2935 = vadd.f32 %v2775, %v2867
        %v2936 = vadd.f32 %v2776, %v2867
        %v2937 = vadd.f32 %v2777, %v2867
        %v2938 = vadd.f32 %v2778, %v2867
        %v2939 = vadd.f32 %v2779, %v2867
        %v2940 = vadd.f32 %v2780, %v2867
        %v2941 = vadd.f32 %v2781, %v2867
        %v2942 = vadd.f32 %v2782, %v2867
        %v2943 = vadd.f32 %v2783, %v2867
        %v2944 = vadd.f32 %v2784, %v2867
        %v2945 = vadd.f32 %v2785, %v2867
        %v2946 = vadd.f32 %v2786, %v2867
        %v2947 = vadd.f32 %v2787, %v2867
        %v2948 = vadd.f32 %v2788, %v2867
        %v2949 = vadd.f32 %v2789, %v2871
        %v2950 = vadd.f32 %v2790, %v2871
        %v2951 = vadd.f32 %v2791, %v2871
        %v2952 = vadd.f32 %v2792, %v2871
        %v2953 = vadd.f32 %v2793, %v2871
        %v2954 = vadd.f32 %v2794, %v2871
        %v2955 = vadd.f32 %v2795, %v2871
        %v2956 = vadd.f32 %v2796, %v2871
        %v2957 = vadd.f32 %v2797, %v2871
        %v2958 = vadd.f32 %v2798, %v2871
        %v2959 = vadd.f32 %v2799, %v2871
        %v2960 = vadd.f32 %v2800, %v2871
        %v2961 = vadd.f32 %v2801, %v2871
        %v2962 = vadd.f32 %v2802, %v2871
        %v2963 = vadd.f32 %v2803, %v2871
        %v2964 = vadd.f32 %v2804, %v2871
        %v2965 = vadd.f32 %v2805, %v2875
        %v2966 = vadd.f32 %v2806, %v2875
        %v2967 = vadd.f32 %v2807, %v2875
        %v2968 = vadd.f32 %v2808, %v2875
        %v2969 = vadd.f32 %v2809, %v2875
        %v2970 = vadd.f32 %v2810, %v2875
        %v2971 = vadd.f32 %v2811, %v2875
        %v2972 = vadd.f32 %v2812, %v2875
        %v2973 = vadd.f32 %v2813, %v2875
        %v2974 = vadd.f32 %v2814, %v2875
        %v2975 = vadd.f32 %v2815, %v2875
        %v2976 = vadd.f32 %v2816, %v2875
        %v2977 = vadd.f32 %v2817, %v2875
        %v2978 = vadd.f32 %v2818, %v2875
        %v2979 = vadd.f32 %v2819, %v2875
        %v2980 = vadd.f32 %v2820, %v2875
        %v2981 = vadd.f32 %v2821, %v2879
        %v2982 = vadd.f32 %v2822, %v2879
        %v2983 = vadd.f32 %v2823, %v2879
        %v2984 = vadd.f32 %v2824, %v2879
        %v2985 = vadd.f32 %v2825, %v2879
        %v2986 = vadd.f32 %v2826, %v2879
        %v2987 = vadd.f32 %v2827, %v2879
        %v2988 = vadd.f32 %v2828, %v2879
        %v2989 = vadd.f32 %v2829, %v2879
        %v2990 = vadd.f32 %v2830, %v2879
        %v2991 = vadd.f32 %v2831, %v2879
        %v2992 = vadd.f32 %v2832, %v2879
        %v2993 = vadd.f32 %v2833, %v2879
        %v2994 = vadd.f32 %v2834, %v2879
        %v2995 = vadd.f32 %v2835, %v2879
        %v2996 = vadd.f32 %v2836, %v2879
        %v2997 = vadd.f32 %v2837, %v2883
        %v2998 = vadd.f32 %v2838, %v2883
        %v2999 = vadd.f32 %v2839, %v2883
        %v3000 = vadd.f32 %v2840, %v2883
        %v3001 = vadd.f32 %v2841, %v2883
        %v3002 = vadd.f32 %v2842, %v2883
        %v3003 = vadd.f32 %v2843, %v2883
        %v3004 = vadd.f32 %v2844, %v2883
        %v3005 = vadd.f32 %v2845, %v2883
        %v3006 = vadd.f32 %v2846, %v2883
        %v3007 = vadd.f32 %v2847, %v2883
        %v3008 = vadd.f32 %v2848, %v2883
        %v3009 = vadd.f32 %v2849, %v2883
        %v3010 = vadd.f32 %v2850, %v2883
        %v3011 = vadd.f32 %v2851, %v2883
        %v3012 = vadd.f32 %v2852, %v2883
        %v3013 = vmul.f32 %v2885, %v1689
        %v3014 = vmul.f32 %v2886, %v1690
        %v3015 = vmul.f32 %v2887, %v1691
        %v3016 = vmul.f32 %v2888, %v1692
        %v3017 = vmul.f32 %v2889, %v1693
        %v3018 = vmul.f32 %v2890, %v1694
        %v3019 = vmul.f32 %v2891, %v1695
        %v3020 = vmul.f32 %v2892, %v1696
        %v3021 = vmul.f32 %v2893, %v1697
        %v3022 = vmul.f32 %v2894, %v1698
        %v3023 = vmul.f32 %v2895, %v1699
        %v3024 = vmul.f32 %v2896, %v1700
        %v3025 = vmul.f32 %v2897, %v1701
        %v3026 = vmul.f32 %v2898, %v1702
        %v3027 = vmul.f32 %v2899, %v1703
        %v3028 = vmul.f32 %v2900, %v1704
        %v3029 = vmul.f32 %v2901, %v1705
        %v3030 = vmul.f32 %v2902, %v1706
        %v3031 = vmul.f32 %v2903, %v1707
        %v3032 = vmul.f32 %v2904, %v1708
        %v3033 = vmul.f32 %v2905, %v1709
        %v3034 = vmul.f32 %v2906, %v1710
        %v3035 = vmul.f32 %v2907, %v1711
        %v3036 = vmul.f32 %v2908, %v1712
        %v3037 = vmul.f32 %v2909, %v1713
        %v3038 = vmul.f32 %v2910, %v1714
        %v3039 = vmul.f32 %v2911, %v1715
        %v3040 = vmul.f32 %v2912, %v1716
        %v3041 = vmul.f32 %v2913, %v1717
        %v3042 = vmul.f32 %v2914, %v1718
        %v3043 = vmul.f32 %v2915, %v1719
        %v3044 = vmul.f32 %v2916, %v1720
        %v3045 = vmul.f32 %v2917, %v1721
        %v3046 = vmul.f32 %v2918, %v1722
        %v3047 = vmul.f32 %v2919, %v1723
        %v3048 = vmul.f32 %v2920, %v1724
        %v3049 = vmul.f32 %v2921, %v1725
        %v3050 = vmul.f32 %v2922, %v1726
        %v3051 = vmul.f32 %v2923, %v1727
        %v3052 = vmul.f32 %v2924, %v1728
        %v3053 = vmul.f32 %v2925, %v1729
        %v3054 = vmul.f32 %v2926, %v1730
        %v3055 = vmul.f32 %v2927, %v1731
        %v3056 = vmul.f32 %v2928, %v1732
        %v3057 = vmul.f32 %v2929, %v1733
        %v3058 = vmul.f32 %v2930, %v1734
        %v3059 = vmul.f32 %v2931, %v1735
        %v3060 = vmul.f32 %v2932, %v1736
        %v3061 = vmul.f32 %v2933, %v1737
        %v3062 = vmul.f32 %v2934, %v1738
        %v3063 = vmul.f32 %v2935, %v1739
        %v3064 = vmul.f32 %v2936, %v1740
        %v3065 = vmul.f32 %v2937, %v1741
        %v3066 = vmul.f32 %v2938, %v1742
        %v3067 = vmul.f32 %v2939, %v1743
        %v3068 = vmul.f32 %v2940, %v1744
        %v3069 = vmul.f32 %v2941, %v1745
        %v3070 = vmul.f32 %v2942, %v1746
        %v3071 = vmul.f32 %v2943, %v1747
        %v3072 = vmul.f32 %v2944, %v1748
        %v3073 = vmul.f32 %v2945, %v1749
        %v3074 = vmul.f32 %v2946, %v1750
        %v3075 = vmul.f32 %v2947, %v1751
        %v3076 = vmul.f32 %v2948, %v1752
        %v3077 = vmul.f32 %v2949, %v1753
        %v3078 = vmul.f32 %v2950, %v1754
        %v3079 = vmul.f32 %v2951, %v1755
        %v3080 = vmul.f32 %v2952, %v1756
        %v3081 = vmul.f32 %v2953, %v1757
        %v3082 = vmul.f32 %v2954, %v1758
        %v3083 = vmul.f32 %v2955, %v1759
        %v3084 = vmul.f32 %v2956, %v1760
        %v3085 = vmul.f32 %v2957, %v1761
        %v3086 = vmul.f32 %v2958, %v1762
        %v3087 = vmul.f32 %v2959, %v1763
        %v3088 = vmul.f32 %v2960, %v1764
        %v3089 = vmul.f32 %v2961, %v1765
        %v3090 = vmul.f32 %v2962, %v1766
        %v3091 = vmul.f32 %v2963, %v1767
        %v3092 = vmul.f32 %v2964, %v1768
        %v3093 = vmul.f32 %v2965, %v1769
        %v3094 = vmul.f32 %v2966, %v1770
        %v3095 = vmul.f32 %v2967, %v1771
        %v3096 = vmul.f32 %v2968, %v1772
        %v3097 = vmul.f32 %v2969, %v1773
        %v3098 = vmul.f32 %v2970, %v1774
        %v3099 = vmul.f32 %v2971, %v1775
        %v3100 = vmul.f32 %v2972, %v1776
        %v3101 = vmul.f32 %v2973, %v1777
        %v3102 = vmul.f32 %v2974, %v1778
        %v3103 = vmul.f32 %v2975, %v1779
        %v3104 = vmul.f32 %v2976, %v1780
        %v3105 = vmul.f32 %v2977, %v1781
        %v3106 = vmul.f32 %v2978, %v1782
        %v3107 = vmul.f32 %v2979, %v1783
        %v3108 = vmul.f32 %v2980, %v1784
        %v3109 = vmul.f32 %v2981, %v1785
        %v3110 = vmul.f32 %v2982, %v1786
        %v3111 = vmul.f32 %v2983, %v1787
        %v3112 = vmul.f32 %v2984, %v1788
        %v3113 = vmul.f32 %v2985, %v1789
        %v3114 = vmul.f32 %v2986, %v1790
        %v3115 = vmul.f32 %v2987, %v1791
        %v3116 = vmul.f32 %v2988, %v1792
        %v3117 = vmul.f32 %v2989, %v1793
        %v3118 = vmul.f32 %v2990, %v1794
        %v3119 = vmul.f32 %v2991, %v1795
        %v3120 = vmul.f32 %v2992, %v1796
        %v3121 = vmul.f32 %v2993, %v1797
        %v3122 = vmul.f32 %v2994, %v1798
        %v3123 = vmul.f32 %v2995, %v1799
        %v3124 = vmul.f32 %v2996, %v1800
        %v3125 = vmul.f32 %v2997, %v1801
        %v3126 = vmul.f32 %v2998, %v1802
        %v3127 = vmul.f32 %v2999, %v1803
        %v3128 = vmul.f32 %v3000, %v1804
        %v3129 = vmul.f32 %v3001, %v1805
        %v3130 = vmul.f32 %v3002, %v1806
        %v3131 = vmul.f32 %v3003, %v1807
        %v3132 = vmul.f32 %v3004, %v1808
        %v3133 = vmul.f32 %v3005, %v1809
        %v3134 = vmul.f32 %v3006, %v1810
        %v3135 = vmul.f32 %v3007, %v1811
        %v3136 = vmul.f32 %v3008, %v1812
        %v3137 = vmul.f32 %v3009, %v1813
        %v3138 = vmul.f32 %v3010, %v1814
        %v3139 = vmul.f32 %v3011, %v1815
        %v3140 = vmul.f32 %v3012, %v1816
        %3141 = vset.pattern.permute.xlu0 0
        %3142 = vperm.xlu0 %3141, %v339
        %v3143 = vpop.permute.xlu0 %3142
        %3145 = vset.pattern.permute.xlu0 0
        %3146 = vperm.xlu0 %3145, %v340
        %v3147 = vpop.permute.xlu0 %3146
        %3149 = vset.pattern.permute.xlu0 0
        %3150 = vperm.xlu0 %3149, %v341
        %v3151 = vpop.permute.xlu0 %3150
        %3153 = vset.pattern.permute.xlu0 0
        %3154 = vperm.xlu0 %3153, %v342
        %v3155 = vpop.permute.xlu0 %3154
        %3157 = vset.pattern.permute.xlu0 0
        %3158 = vperm.xlu0 %3157, %v343
        %v3159 = vpop.permute.xlu0 %3158
        %3161 = vset.pattern.permute.xlu0 0
        %3162 = vperm.xlu0 %3161, %v344
        %v3163 = vpop.permute.xlu0 %3162
        %3165 = vset.pattern.permute.xlu0 0
        %3166 = vperm.xlu0 %3165, %v345
        %v3167 = vpop.permute.xlu0 %3166
        %3169 = vset.pattern.permute.xlu0 0
        %3170 = vperm.xlu0 %3169, %v346
        %v3171 = vpop.permute.xlu0 %3170
        %v3173 = vadd.f32 %v3013, %v3143
        %v3174 = vadd.f32 %v3014, %v3143
        %v3175 = vadd.f32 %v3015, %v3143
        %v3176 = vadd.f32 %v3016, %v3143
        %v3177 = vadd.f32 %v3017, %v3143
        %v3178 = vadd.f32 %v3018, %v3143
        %v3179 = vadd.f32 %v3019, %v3143
        %v3180 = vadd.f32 %v3020, %v3143
        %v3181 = vadd.f32 %v3021, %v3143
        %v3182 = vadd.f32 %v3022, %v3143
        %v3183 = vadd.f32 %v3023, %v3143
        %v3184 = vadd.f32 %v3024, %v3143
        %v3185 = vadd.f32 %v3025, %v3143
        %v3186 = vadd.f32 %v3026, %v3143
        %v3187 = vadd.f32 %v3027, %v3143
        %v3188 = vadd.f32 %v3028, %v3143
        %v3189 = vadd.f32 %v3029, %v3147
        %v3190 = vadd.f32 %v3030, %v3147
        %v3191 = vadd.f32 %v3031, %v3147
        %v3192 = vadd.f32 %v3032, %v3147
        %v3193 = vadd.f32 %v3033, %v3147
        %v3194 = vadd.f32 %v3034, %v3147
        %v3195 = vadd.f32 %v3035, %v3147
        %v3196 = vadd.f32 %v3036, %v3147
        %v3197 = vadd.f32 %v3037, %v3147
        %v3198 = vadd.f32 %v3038, %v3147
        %v3199 = vadd.f32 %v3039, %v3147
        %v3200 = vadd.f32 %v3040, %v3147
        %v3201 = vadd.f32 %v3041, %v3147
        %v3202 = vadd.f32 %v3042, %v3147
        %v3203 = vadd.f32 %v3043, %v3147
        %v3204 = vadd.f32 %v3044, %v3147
        %v3205 = vadd.f32 %v3045, %v3151
        %v3206 = vadd.f32 %v3046, %v3151
        %v3207 = vadd.f32 %v3047, %v3151
        %v3208 = vadd.f32 %v3048, %v3151
        %v3209 = vadd.f32 %v3049, %v3151
        %v3210 = vadd.f32 %v3050, %v3151
        %v3211 = vadd.f32 %v3051, %v3151
        %v3212 = vadd.f32 %v3052, %v3151
        %v3213 = vadd.f32 %v3053, %v3151
        %v3214 = vadd.f32 %v3054, %v3151
        %v3215 = vadd.f32 %v3055, %v3151
        %v3216 = vadd.f32 %v3056, %v3151
        %v3217 = vadd.f32 %v3057, %v3151
        %v3218 = vadd.f32 %v3058, %v3151
        %v3219 = vadd.f32 %v3059, %v3151
        %v3220 = vadd.f32 %v3060, %v3151
        %v3221 = vadd.f32 %v3061, %v3155
        %v3222 = vadd.f32 %v3062, %v3155
        %v3223 = vadd.f32 %v3063, %v3155
        %v3224 = vadd.f32 %v3064, %v3155
        %v3225 = vadd.f32 %v3065, %v3155
        %v3226 = vadd.f32 %v3066, %v3155
        %v3227 = vadd.f32 %v3067, %v3155
        %v3228 = vadd.f32 %v3068, %v3155
        %v3229 = vadd.f32 %v3069, %v3155
        %v3230 = vadd.f32 %v3070, %v3155
        %v3231 = vadd.f32 %v3071, %v3155
        %v3232 = vadd.f32 %v3072, %v3155
        %v3233 = vadd.f32 %v3073, %v3155
        %v3234 = vadd.f32 %v3074, %v3155
        %v3235 = vadd.f32 %v3075, %v3155
        %v3236 = vadd.f32 %v3076, %v3155
        %v3237 = vadd.f32 %v3077, %v3159
        %v3238 = vadd.f32 %v3078, %v3159
        %v3239 = vadd.f32 %v3079, %v3159
        %v3240 = vadd.f32 %v3080, %v3159
        %v3241 = vadd.f32 %v3081, %v3159
        %v3242 = vadd.f32 %v3082, %v3159
        %v3243 = vadd.f32 %v3083, %v3159
        %v3244 = vadd.f32 %v3084, %v3159
        %v3245 = vadd.f32 %v3085, %v3159
        %v3246 = vadd.f32 %v3086, %v3159
        %v3247 = vadd.f32 %v3087, %v3159
        %v3248 = vadd.f32 %v3088, %v3159
        %v3249 = vadd.f32 %v3089, %v3159
        %v3250 = vadd.f32 %v3090, %v3159
        %v3251 = vadd.f32 %v3091, %v3159
        %v3252 = vadd.f32 %v3092, %v3159
        %v3253 = vadd.f32 %v3093, %v3163
        %v3254 = vadd.f32 %v3094, %v3163
        %v3255 = vadd.f32 %v3095, %v3163
        %v3256 = vadd.f32 %v3096, %v3163
        %v3257 = vadd.f32 %v3097, %v3163
        %v3258 = vadd.f32 %v3098, %v3163
        %v3259 = vadd.f32 %v3099, %v3163
        %v3260 = vadd.f32 %v3100, %v3163
        %v3261 = vadd.f32 %v3101, %v3163
        %v3262 = vadd.f32 %v3102, %v3163
        %v3263 = vadd.f32 %v3103, %v3163
        %v3264 = vadd.f32 %v3104, %v3163
        %v3265 = vadd.f32 %v3105, %v3163
        %v3266 = vadd.f32 %v3106, %v3163
        %v3267 = vadd.f32 %v3107, %v3163
        %v3268 = vadd.f32 %v3108, %v3163
        %v3269 = vadd.f32 %v3109, %v3167
        %v3270 = vadd.f32 %v3110, %v3167
        %v3271 = vadd.f32 %v3111, %v3167
        %v3272 = vadd.f32 %v3112, %v3167
        %v3273 = vadd.f32 %v3113, %v3167
        %v3274 = vadd.f32 %v3114, %v3167
        %v3275 = vadd.f32 %v3115, %v3167
        %v3276 = vadd.f32 %v3116, %v3167
        %v3277 = vadd.f32 %v3117, %v3167
        %v3278 = vadd.f32 %v3118, %v3167
        %v3279 = vadd.f32 %v3119, %v3167
        %v3280 = vadd.f32 %v3120, %v3167
        %v3281 = vadd.f32 %v3121, %v3167
        %v3282 = vadd.f32 %v3122, %v3167
        %v3283 = vadd.f32 %v3123, %v3167
        %v3284 = vadd.f32 %v3124, %v3167
        %v3285 = vadd.f32 %v3125, %v3171
        %v3286 = vadd.f32 %v3126, %v3171
        %v3287 = vadd.f32 %v3127, %v3171
        %v3288 = vadd.f32 %v3128, %v3171
        %v3289 = vadd.f32 %v3129, %v3171
        %v3290 = vadd.f32 %v3130, %v3171
        %v3291 = vadd.f32 %v3131, %v3171
        %v3292 = vadd.f32 %v3132, %v3171
        %v3293 = vadd.f32 %v3133, %v3171
        %v3294 = vadd.f32 %v3134, %v3171
        %v3295 = vadd.f32 %v3135, %v3171
        %v3296 = vadd.f32 %v3136, %v3171
        %v3297 = vadd.f32 %v3137, %v3171
        %v3298 = vadd.f32 %v3138, %v3171
        %v3299 = vadd.f32 %v3139, %v3171
        %v3300 = vadd.f32 %v3140, %v3171
        %3301 = vset.pattern.permute.xlu0 9
        %3302 = vperm.xlu0 %3301, %v339
        %v3303 = vpop.permute.xlu0 %3302
        %3305 = vset.pattern.permute.xlu0 9
        %3306 = vperm.xlu0 %3305, %v340
        %v3307 = vpop.permute.xlu0 %3306
        %3309 = vset.pattern.permute.xlu0 9
        %3310 = vperm.xlu0 %3309, %v341
        %v3311 = vpop.permute.xlu0 %3310
        %3313 = vset.pattern.permute.xlu0 9
        %3314 = vperm.xlu0 %3313, %v342
        %v3315 = vpop.permute.xlu0 %3314
        %3317 = vset.pattern.permute.xlu0 9
        %3318 = vperm.xlu0 %3317, %v343
        %v3319 = vpop.permute.xlu0 %3318
        %3321 = vset.pattern.permute.xlu0 9
        %3322 = vperm.xlu0 %3321, %v344
        %v3323 = vpop.permute.xlu0 %3322
        %3325 = vset.pattern.permute.xlu0 9
        %3326 = vperm.xlu0 %3325, %v345
        %v3327 = vpop.permute.xlu0 %3326
        %3329 = vset.pattern.permute.xlu0 9
        %3330 = vperm.xlu0 %3329, %v346
        %v3331 = vpop.permute.xlu0 %3330
        %v3333 = vmul.f32 %v3303, %v1689
        %v3334 = vmul.f32 %v3303, %v1690
        %v3335 = vmul.f32 %v3303, %v1691
        %v3336 = vmul.f32 %v3303, %v1692
        %v3337 = vmul.f32 %v3303, %v1693
        %v3338 = vmul.f32 %v3303, %v1694
        %v3339 = vmul.f32 %v3303, %v1695
        %v3340 = vmul.f32 %v3303, %v1696
        %v3341 = vmul.f32 %v3303, %v1697
        %v3342 = vmul.f32 %v3303, %v1698
        %v3343 = vmul.f32 %v3303, %v1699
        %v3344 = vmul.f32 %v3303, %v1700
        %v3345 = vmul.f32 %v3303, %v1701
        %v3346 = vmul.f32 %v3303, %v1702
        %v3347 = vmul.f32 %v3303, %v1703
        %v3348 = vmul.f32 %v3303, %v1704
        %v3349 = vmul.f32 %v3307, %v1705
        %v3350 = vmul.f32 %v3307, %v1706
        %v3351 = vmul.f32 %v3307, %v1707
        %v3352 = vmul.f32 %v3307, %v1708
        %v3353 = vmul.f32 %v3307, %v1709
        %v3354 = vmul.f32 %v3307, %v1710
        %v3355 = vmul.f32 %v3307, %v1711
        %v3356 = vmul.f32 %v3307, %v1712
        %v3357 = vmul.f32 %v3307, %v1713
        %v3358 = vmul.f32 %v3307, %v1714
        %v3359 = vmul.f32 %v3307, %v1715
        %v3360 = vmul.f32 %v3307, %v1716
        %v3361 = vmul.f32 %v3307, %v1717
        %v3362 = vmul.f32 %v3307, %v1718
        %v3363 = vmul.f32 %v3307, %v1719
        %v3364 = vmul.f32 %v3307, %v1720
        %v3365 = vmul.f32 %v3311, %v1721
        %v3366 = vmul.f32 %v3311, %v1722
        %v3367 = vmul.f32 %v3311, %v1723
        %v3368 = vmul.f32 %v3311, %v1724
        %v3369 = vmul.f32 %v3311, %v1725
        %v3370 = vmul.f32 %v3311, %v1726
        %v3371 = vmul.f32 %v3311, %v1727
        %v3372 = vmul.f32 %v3311, %v1728
        %v3373 = vmul.f32 %v3311, %v1729
        %v3374 = vmul.f32 %v3311, %v1730
        %v3375 = vmul.f32 %v3311, %v1731
        %v3376 = vmul.f32 %v3311, %v1732
        %v3377 = vmul.f32 %v3311, %v1733
        %v3378 = vmul.f32 %v3311, %v1734
        %v3379 = vmul.f32 %v3311, %v1735
        %v3380 = vmul.f32 %v3311, %v1736
        %v3381 = vmul.f32 %v3315, %v1737
        %v3382 = vmul.f32 %v3315, %v1738
        %v3383 = vmul.f32 %v3315, %v1739
        %v3384 = vmul.f32 %v3315, %v1740
        %v3385 = vmul.f32 %v3315, %v1741
        %v3386 = vmul.f32 %v3315, %v1742
        %v3387 = vmul.f32 %v3315, %v1743
        %v3388 = vmul.f32 %v3315, %v1744
        %v3389 = vmul.f32 %v3315, %v1745
        %v3390 = vmul.f32 %v3315, %v1746
        %v3391 = vmul.f32 %v3315, %v1747
        %v3392 = vmul.f32 %v3315, %v1748
        %v3393 = vmul.f32 %v3315, %v1749
        %v3394 = vmul.f32 %v3315, %v1750
        %v3395 = vmul.f32 %v3315, %v1751
        %v3396 = vmul.f32 %v3315, %v1752
        %v3397 = vmul.f32 %v3319, %v1753
        %v3398 = vmul.f32 %v3319, %v1754
        %v3399 = vmul.f32 %v3319, %v1755
        %v3400 = vmul.f32 %v3319, %v1756
        %v3401 = vmul.f32 %v3319, %v1757
        %v3402 = vmul.f32 %v3319, %v1758
        %v3403 = vmul.f32 %v3319, %v1759
        %v3404 = vmul.f32 %v3319, %v1760
        %v3405 = vmul.f32 %v3319, %v1761
        %v3406 = vmul.f32 %v3319, %v1762
        %v3407 = vmul.f32 %v3319, %v1763
        %v3408 = vmul.f32 %v3319, %v1764
        %v3409 = vmul.f32 %v3319, %v1765
        %v3410 = vmul.f32 %v3319, %v1766
        %v3411 = vmul.f32 %v3319, %v1767
        %v3412 = vmul.f32 %v3319, %v1768
        %v3413 = vmul.f32 %v3323, %v1769
        %v3414 = vmul.f32 %v3323, %v1770
        %v3415 = vmul.f32 %v3323, %v1771
        %v3416 = vmul.f32 %v3323, %v1772
        %v3417 = vmul.f32 %v3323, %v1773
        %v3418 = vmul.f32 %v3323, %v1774
        %v3419 = vmul.f32 %v3323, %v1775
        %v3420 = vmul.f32 %v3323, %v1776
        %v3421 = vmul.f32 %v3323, %v1777
        %v3422 = vmul.f32 %v3323, %v1778
        %v3423 = vmul.f32 %v3323, %v1779
        %v3424 = vmul.f32 %v3323, %v1780
        %v3425 = vmul.f32 %v3323, %v1781
        %v3426 = vmul.f32 %v3323, %v1782
        %v3427 = vmul.f32 %v3323, %v1783
        %v3428 = vmul.f32 %v3323, %v1784
        %v3429 = vmul.f32 %v3327, %v1785
        %v3430 = vmul.f32 %v3327, %v1786
        %v3431 = vmul.f32 %v3327, %v1787
        %v3432 = vmul.f32 %v3327, %v1788
        %v3433 = vmul.f32 %v3327, %v1789
        %v3434 = vmul.f32 %v3327, %v1790
        %v3435 = vmul.f32 %v3327, %v1791
        %v3436 = vmul.f32 %v3327, %v1792
        %v3437 = vmul.f32 %v3327, %v1793
        %v3438 = vmul.f32 %v3327, %v1794
        %v3439 = vmul.f32 %v3327, %v1795
        %v3440 = vmul.f32 %v3327, %v1796
        %v3441 = vmul.f32 %v3327, %v1797
        %v3442 = vmul.f32 %v3327, %v1798
        %v3443 = vmul.f32 %v3327, %v1799
        %v3444 = vmul.f32 %v3327, %v1800
        %v3445 = vmul.f32 %v3331, %v1801
        %v3446 = vmul.f32 %v3331, %v1802
        %v3447 = vmul.f32 %v3331, %v1803
        %v3448 = vmul.f32 %v3331, %v1804
        %v3449 = vmul.f32 %v3331, %v1805
        %v3450 = vmul.f32 %v3331, %v1806
        %v3451 = vmul.f32 %v3331, %v1807
        %v3452 = vmul.f32 %v3331, %v1808
        %v3453 = vmul.f32 %v3331, %v1809
        %v3454 = vmul.f32 %v3331, %v1810
        %v3455 = vmul.f32 %v3331, %v1811
        %v3456 = vmul.f32 %v3331, %v1812
        %v3457 = vmul.f32 %v3331, %v1813
        %v3458 = vmul.f32 %v3331, %v1814
        %v3459 = vmul.f32 %v3331, %v1815
        %v3460 = vmul.f32 %v3331, %v1816
        %3461 = vset.pattern.permute.xlu0 8
        %3462 = vperm.xlu0 %3461, %v339
        %v3463 = vpop.permute.xlu0 %3462
        %3465 = vset.pattern.permute.xlu0 8
        %3466 = vperm.xlu0 %3465, %v340
        %v3467 = vpop.permute.xlu0 %3466
        %3469 = vset.pattern.permute.xlu0 8
        %3470 = vperm.xlu0 %3469, %v341
        %v3471 = vpop.permute.xlu0 %3470
        %3473 = vset.pattern.permute.xlu0 8
        %3474 = vperm.xlu0 %3473, %v342
        %v3475 = vpop.permute.xlu0 %3474
        %3477 = vset.pattern.permute.xlu0 8
        %3478 = vperm.xlu0 %3477, %v343
        %v3479 = vpop.permute.xlu0 %3478
        %3481 = vset.pattern.permute.xlu0 8
        %3482 = vperm.xlu0 %3481, %v344
        %v3483 = vpop.permute.xlu0 %3482
        %3485 = vset.pattern.permute.xlu0 8
        %3486 = vperm.xlu0 %3485, %v345
        %v3487 = vpop.permute.xlu0 %3486
        %3489 = vset.pattern.permute.xlu0 8
        %3490 = vperm.xlu0 %3489, %v346
        %v3491 = vpop.permute.xlu0 %3490
        %v3493 = vadd.f32 %v3333, %v3463
        %v3494 = vadd.f32 %v3334, %v3463
        %v3495 = vadd.f32 %v3335, %v3463
        %v3496 = vadd.f32 %v3336, %v3463
        %v3497 = vadd.f32 %v3337, %v3463
        %v3498 = vadd.f32 %v3338, %v3463
        %v3499 = vadd.f32 %v3339, %v3463
        %v3500 = vadd.f32 %v3340, %v3463
        %v3501 = vadd.f32 %v3341, %v3463
        %v3502 = vadd.f32 %v3342, %v3463
        %v3503 = vadd.f32 %v3343, %v3463
        %v3504 = vadd.f32 %v3344, %v3463
        %v3505 = vadd.f32 %v3345, %v3463
        %v3506 = vadd.f32 %v3346, %v3463
        %v3507 = vadd.f32 %v3347, %v3463
        %v3508 = vadd.f32 %v3348, %v3463
        %v3509 = vadd.f32 %v3349, %v3467
        %v3510 = vadd.f32 %v3350, %v3467
        %v3511 = vadd.f32 %v3351, %v3467
        %v3512 = vadd.f32 %v3352, %v3467
        %v3513 = vadd.f32 %v3353, %v3467
        %v3514 = vadd.f32 %v3354, %v3467
        %v3515 = vadd.f32 %v3355, %v3467
        %v3516 = vadd.f32 %v3356, %v3467
        %v3517 = vadd.f32 %v3357, %v3467
        %v3518 = vadd.f32 %v3358, %v3467
        %v3519 = vadd.f32 %v3359, %v3467
        %v3520 = vadd.f32 %v3360, %v3467
        %v3521 = vadd.f32 %v3361, %v3467
        %v3522 = vadd.f32 %v3362, %v3467
        %v3523 = vadd.f32 %v3363, %v3467
        %v3524 = vadd.f32 %v3364, %v3467
        %v3525 = vadd.f32 %v3365, %v3471
        %v3526 = vadd.f32 %v3366, %v3471
        %v3527 = vadd.f32 %v3367, %v3471
        %v3528 = vadd.f32 %v3368, %v3471
        %v3529 = vadd.f32 %v3369, %v3471
        %v3530 = vadd.f32 %v3370, %v3471
        %v3531 = vadd.f32 %v3371, %v3471
        %v3532 = vadd.f32 %v3372, %v3471
        %v3533 = vadd.f32 %v3373, %v3471
        %v3534 = vadd.f32 %v3374, %v3471
        %v3535 = vadd.f32 %v3375, %v3471
        %v3536 = vadd.f32 %v3376, %v3471
        %v3537 = vadd.f32 %v3377, %v3471
        %v3538 = vadd.f32 %v3378, %v3471
        %v3539 = vadd.f32 %v3379, %v3471
        %v3540 = vadd.f32 %v3380, %v3471
        %v3541 = vadd.f32 %v3381, %v3475
        %v3542 = vadd.f32 %v3382, %v3475
        %v3543 = vadd.f32 %v3383, %v3475
        %v3544 = vadd.f32 %v3384, %v3475
        %v3545 = vadd.f32 %v3385, %v3475
        %v3546 = vadd.f32 %v3386, %v3475
        %v3547 = vadd.f32 %v3387, %v3475
        %v3548 = vadd.f32 %v3388, %v3475
        %v3549 = vadd.f32 %v3389, %v3475
        %v3550 = vadd.f32 %v3390, %v3475
        %v3551 = vadd.f32 %v3391, %v3475
        %v3552 = vadd.f32 %v3392, %v3475
        %v3553 = vadd.f32 %v3393, %v3475
        %v3554 = vadd.f32 %v3394, %v3475
        %v3555 = vadd.f32 %v3395, %v3475
        %v3556 = vadd.f32 %v3396, %v3475
        %v3557 = vadd.f32 %v3397, %v3479
        %v3558 = vadd.f32 %v3398, %v3479
        %v3559 = vadd.f32 %v3399, %v3479
        %v3560 = vadd.f32 %v3400, %v3479
        %v3561 = vadd.f32 %v3401, %v3479
        %v3562 = vadd.f32 %v3402, %v3479
        %v3563 = vadd.f32 %v3403, %v3479
        %v3564 = vadd.f32 %v3404, %v3479
        %v3565 = vadd.f32 %v3405, %v3479
        %v3566 = vadd.f32 %v3406, %v3479
        %v3567 = vadd.f32 %v3407, %v3479
        %v3568 = vadd.f32 %v3408, %v3479
        %v3569 = vadd.f32 %v3409, %v3479
        %v3570 = vadd.f32 %v3410, %v3479
        %v3571 = vadd.f32 %v3411, %v3479
        %v3572 = vadd.f32 %v3412, %v3479
        %v3573 = vadd.f32 %v3413, %v3483
        %v3574 = vadd.f32 %v3414, %v3483
        %v3575 = vadd.f32 %v3415, %v3483
        %v3576 = vadd.f32 %v3416, %v3483
        %v3577 = vadd.f32 %v3417, %v3483
        %v3578 = vadd.f32 %v3418, %v3483
        %v3579 = vadd.f32 %v3419, %v3483
        %v3580 = vadd.f32 %v3420, %v3483
        %v3581 = vadd.f32 %v3421, %v3483
        %v3582 = vadd.f32 %v3422, %v3483
        %v3583 = vadd.f32 %v3423, %v3483
        %v3584 = vadd.f32 %v3424, %v3483
        %v3585 = vadd.f32 %v3425, %v3483
        %v3586 = vadd.f32 %v3426, %v3483
        %v3587 = vadd.f32 %v3427, %v3483
        %v3588 = vadd.f32 %v3428, %v3483
        %v3589 = vadd.f32 %v3429, %v3487
        %v3590 = vadd.f32 %v3430, %v3487
        %v3591 = vadd.f32 %v3431, %v3487
        %v3592 = vadd.f32 %v3432, %v3487
        %v3593 = vadd.f32 %v3433, %v3487
        %v3594 = vadd.f32 %v3434, %v3487
        %v3595 = vadd.f32 %v3435, %v3487
        %v3596 = vadd.f32 %v3436, %v3487
        %v3597 = vadd.f32 %v3437, %v3487
        %v3598 = vadd.f32 %v3438, %v3487
        %v3599 = vadd.f32 %v3439, %v3487
        %v3600 = vadd.f32 %v3440, %v3487
        %v3601 = vadd.f32 %v3441, %v3487
        %v3602 = vadd.f32 %v3442, %v3487
        %v3603 = vadd.f32 %v3443, %v3487
        %v3604 = vadd.f32 %v3444, %v3487
        %v3605 = vadd.f32 %v3445, %v3491
        %v3606 = vadd.f32 %v3446, %v3491
        %v3607 = vadd.f32 %v3447, %v3491
        %v3608 = vadd.f32 %v3448, %v3491
        %v3609 = vadd.f32 %v3449, %v3491
        %v3610 = vadd.f32 %v3450, %v3491
        %v3611 = vadd.f32 %v3451, %v3491
        %v3612 = vadd.f32 %v3452, %v3491
        %v3613 = vadd.f32 %v3453, %v3491
        %v3614 = vadd.f32 %v3454, %v3491
        %v3615 = vadd.f32 %v3455, %v3491
        %v3616 = vadd.f32 %v3456, %v3491
        %v3617 = vadd.f32 %v3457, %v3491
        %v3618 = vadd.f32 %v3458, %v3491
        %v3619 = vadd.f32 %v3459, %v3491
        %v3620 = vadd.f32 %v3460, %v3491
        %v3621 = vmul.f32 %v3493, %v1689
        %v3622 = vmul.f32 %v3494, %v1690
        %v3623 = vmul.f32 %v3495, %v1691
        %v3624 = vmul.f32 %v3496, %v1692
        %v3625 = vmul.f32 %v3497, %v1693
        %v3626 = vmul.f32 %v3498, %v1694
        %v3627 = vmul.f32 %v3499, %v1695
        %v3628 = vmul.f32 %v3500, %v1696
        %v3629 = vmul.f32 %v3501, %v1697
        %v3630 = vmul.f32 %v3502, %v1698
        %v3631 = vmul.f32 %v3503, %v1699
        %v3632 = vmul.f32 %v3504, %v1700
        %v3633 = vmul.f32 %v3505, %v1701
        %v3634 = vmul.f32 %v3506, %v1702
        %v3635 = vmul.f32 %v3507, %v1703
        %v3636 = vmul.f32 %v3508, %v1704
        %v3637 = vmul.f32 %v3509, %v1705
        %v3638 = vmul.f32 %v3510, %v1706
        %v3639 = vmul.f32 %v3511, %v1707
        %v3640 = vmul.f32 %v3512, %v1708
        %v3641 = vmul.f32 %v3513, %v1709
        %v3642 = vmul.f32 %v3514, %v1710
        %v3643 = vmul.f32 %v3515, %v1711
        %v3644 = vmul.f32 %v3516, %v1712
        %v3645 = vmul.f32 %v3517, %v1713
        %v3646 = vmul.f32 %v3518, %v1714
        %v3647 = vmul.f32 %v3519, %v1715
        %v3648 = vmul.f32 %v3520, %v1716
        %v3649 = vmul.f32 %v3521, %v1717
        %v3650 = vmul.f32 %v3522, %v1718
        %v3651 = vmul.f32 %v3523, %v1719
        %v3652 = vmul.f32 %v3524, %v1720
        %v3653 = vmul.f32 %v3525, %v1721
        %v3654 = vmul.f32 %v3526, %v1722
        %v3655 = vmul.f32 %v3527, %v1723
        %v3656 = vmul.f32 %v3528, %v1724
        %v3657 = vmul.f32 %v3529, %v1725
        %v3658 = vmul.f32 %v3530, %v1726
        %v3659 = vmul.f32 %v3531, %v1727
        %v3660 = vmul.f32 %v3532, %v1728
        %v3661 = vmul.f32 %v3533, %v1729
        %v3662 = vmul.f32 %v3534, %v1730
        %v3663 = vmul.f32 %v3535, %v1731
        %v3664 = vmul.f32 %v3536, %v1732
        %v3665 = vmul.f32 %v3537, %v1733
        %v3666 = vmul.f32 %v3538, %v1734
        %v3667 = vmul.f32 %v3539, %v1735
        %v3668 = vmul.f32 %v3540, %v1736
        %v3669 = vmul.f32 %v3541, %v1737
        %v3670 = vmul.f32 %v3542, %v1738
        %v3671 = vmul.f32 %v3543, %v1739
        %v3672 = vmul.f32 %v3544, %v1740
        %v3673 = vmul.f32 %v3545, %v1741
        %v3674 = vmul.f32 %v3546, %v1742
        %v3675 = vmul.f32 %v3547, %v1743
        %v3676 = vmul.f32 %v3548, %v1744
        %v3677 = vmul.f32 %v3549, %v1745
        %v3678 = vmul.f32 %v3550, %v1746
        %v3679 = vmul.f32 %v3551, %v1747
        %v3680 = vmul.f32 %v3552, %v1748
        %v3681 = vmul.f32 %v3553, %v1749
        %v3682 = vmul.f32 %v3554, %v1750
        %v3683 = vmul.f32 %v3555, %v1751
        %v3684 = vmul.f32 %v3556, %v1752
        %v3685 = vmul.f32 %v3557, %v1753
        %v3686 = vmul.f32 %v3558, %v1754
        %v3687 = vmul.f32 %v3559, %v1755
        %v3688 = vmul.f32 %v3560, %v1756
        %v3689 = vmul.f32 %v3561, %v1757
        %v3690 = vmul.f32 %v3562, %v1758
        %v3691 = vmul.f32 %v3563, %v1759
        %v3692 = vmul.f32 %v3564, %v1760
        %v3693 = vmul.f32 %v3565, %v1761
        %v3694 = vmul.f32 %v3566, %v1762
        %v3695 = vmul.f32 %v3567, %v1763
        %v3696 = vmul.f32 %v3568, %v1764
        %v3697 = vmul.f32 %v3569, %v1765
        %v3698 = vmul.f32 %v3570, %v1766
        %v3699 = vmul.f32 %v3571, %v1767
        %v3700 = vmul.f32 %v3572, %v1768
        %v3701 = vmul.f32 %v3573, %v1769
        %v3702 = vmul.f32 %v3574, %v1770
        %v3703 = vmul.f32 %v3575, %v1771
        %v3704 = vmul.f32 %v3576, %v1772
        %v3705 = vmul.f32 %v3577, %v1773
        %v3706 = vmul.f32 %v3578, %v1774
        %v3707 = vmul.f32 %v3579, %v1775
        %v3708 = vmul.f32 %v3580, %v1776
        %v3709 = vmul.f32 %v3581, %v1777
        %v3710 = vmul.f32 %v3582, %v1778
        %v3711 = vmul.f32 %v3583, %v1779
        %v3712 = vmul.f32 %v3584, %v1780
        %v3713 = vmul.f32 %v3585, %v1781
        %v3714 = vmul.f32 %v3586, %v1782
        %v3715 = vmul.f32 %v3587, %v1783
        %v3716 = vmul.f32 %v3588, %v1784
        %v3717 = vmul.f32 %v3589, %v1785
        %v3718 = vmul.f32 %v3590, %v1786
        %v3719 = vmul.f32 %v3591, %v1787
        %v3720 = vmul.f32 %v3592, %v1788
        %v3721 = vmul.f32 %v3593, %v1789
        %v3722 = vmul.f32 %v3594, %v1790
        %v3723 = vmul.f32 %v3595, %v1791
        %v3724 = vmul.f32 %v3596, %v1792
        %v3725 = vmul.f32 %v3597, %v1793
        %v3726 = vmul.f32 %v3598, %v1794
        %v3727 = vmul.f32 %v3599, %v1795
        %v3728 = vmul.f32 %v3600, %v1796
        %v3729 = vmul.f32 %v3601, %v1797
        %v3730 = vmul.f32 %v3602, %v1798
        %v3731 = vmul.f32 %v3603, %v1799
        %v3732 = vmul.f32 %v3604, %v1800
        %v3733 = vmul.f32 %v3605, %v1801
        %v3734 = vmul.f32 %v3606, %v1802
        %v3735 = vmul.f32 %v3607, %v1803
        %v3736 = vmul.f32 %v3608, %v1804
        %v3737 = vmul.f32 %v3609, %v1805
        %v3738 = vmul.f32 %v3610, %v1806
        %v3739 = vmul.f32 %v3611, %v1807
        %v3740 = vmul.f32 %v3612, %v1808
        %v3741 = vmul.f32 %v3613, %v1809
        %v3742 = vmul.f32 %v3614, %v1810
        %v3743 = vmul.f32 %v3615, %v1811
        %v3744 = vmul.f32 %v3616, %v1812
        %v3745 = vmul.f32 %v3617, %v1813
        %v3746 = vmul.f32 %v3618, %v1814
        %v3747 = vmul.f32 %v3619, %v1815
        %v3748 = vmul.f32 %v3620, %v1816
        %3749 = vset.pattern.permute.xlu0 7
        %3750 = vperm.xlu0 %3749, %v339
        %v3751 = vpop.permute.xlu0 %3750
        %3753 = vset.pattern.permute.xlu0 7
        %3754 = vperm.xlu0 %3753, %v340
        %v3755 = vpop.permute.xlu0 %3754
        %3757 = vset.pattern.permute.xlu0 7
        %3758 = vperm.xlu0 %3757, %v341
        %v3759 = vpop.permute.xlu0 %3758
        %3761 = vset.pattern.permute.xlu0 7
        %3762 = vperm.xlu0 %3761, %v342
        %v3763 = vpop.permute.xlu0 %3762
        %3765 = vset.pattern.permute.xlu0 7
        %3766 = vperm.xlu0 %3765, %v343
        %v3767 = vpop.permute.xlu0 %3766
        %3769 = vset.pattern.permute.xlu0 7
        %3770 = vperm.xlu0 %3769, %v344
        %v3771 = vpop.permute.xlu0 %3770
        %3773 = vset.pattern.permute.xlu0 7
        %3774 = vperm.xlu0 %3773, %v345
        %v3775 = vpop.permute.xlu0 %3774
        %3777 = vset.pattern.permute.xlu0 7
        %3778 = vperm.xlu0 %3777, %v346
        %v3779 = vpop.permute.xlu0 %3778
        %v3781 = vadd.f32 %v3621, %v3751
        %v3782 = vadd.f32 %v3622, %v3751
        %v3783 = vadd.f32 %v3623, %v3751
        %v3784 = vadd.f32 %v3624, %v3751
        %v3785 = vadd.f32 %v3625, %v3751
        %v3786 = vadd.f32 %v3626, %v3751
        %v3787 = vadd.f32 %v3627, %v3751
        %v3788 = vadd.f32 %v3628, %v3751
        %v3789 = vadd.f32 %v3629, %v3751
        %v3790 = vadd.f32 %v3630, %v3751
        %v3791 = vadd.f32 %v3631, %v3751
        %v3792 = vadd.f32 %v3632, %v3751
        %v3793 = vadd.f32 %v3633, %v3751
        %v3794 = vadd.f32 %v3634, %v3751
        %v3795 = vadd.f32 %v3635, %v3751
        %v3796 = vadd.f32 %v3636, %v3751
        %v3797 = vadd.f32 %v3637, %v3755
        %v3798 = vadd.f32 %v3638, %v3755
        %v3799 = vadd.f32 %v3639, %v3755
        %v3800 = vadd.f32 %v3640, %v3755
        %v3801 = vadd.f32 %v3641, %v3755
        %v3802 = vadd.f32 %v3642, %v3755
        %v3803 = vadd.f32 %v3643, %v3755
        %v3804 = vadd.f32 %v3644, %v3755
        %v3805 = vadd.f32 %v3645, %v3755
        %v3806 = vadd.f32 %v3646, %v3755
        %v3807 = vadd.f32 %v3647, %v3755
        %v3808 = vadd.f32 %v3648, %v3755
        %v3809 = vadd.f32 %v3649, %v3755
        %v3810 = vadd.f32 %v3650, %v3755
        %v3811 = vadd.f32 %v3651, %v3755
        %v3812 = vadd.f32 %v3652, %v3755
        %v3813 = vadd.f32 %v3653, %v3759
        %v3814 = vadd.f32 %v3654, %v3759
        %v3815 = vadd.f32 %v3655, %v3759
        %v3816 = vadd.f32 %v3656, %v3759
        %v3817 = vadd.f32 %v3657, %v3759
        %v3818 = vadd.f32 %v3658, %v3759
        %v3819 = vadd.f32 %v3659, %v3759
        %v3820 = vadd.f32 %v3660, %v3759
        %v3821 = vadd.f32 %v3661, %v3759
        %v3822 = vadd.f32 %v3662, %v3759
        %v3823 = vadd.f32 %v3663, %v3759
        %v3824 = vadd.f32 %v3664, %v3759
        %v3825 = vadd.f32 %v3665, %v3759
        %v3826 = vadd.f32 %v3666, %v3759
        %v3827 = vadd.f32 %v3667, %v3759
        %v3828 = vadd.f32 %v3668, %v3759
        %v3829 = vadd.f32 %v3669, %v3763
        %v3830 = vadd.f32 %v3670, %v3763
        %v3831 = vadd.f32 %v3671, %v3763
        %v3832 = vadd.f32 %v3672, %v3763
        %v3833 = vadd.f32 %v3673, %v3763
        %v3834 = vadd.f32 %v3674, %v3763
        %v3835 = vadd.f32 %v3675, %v3763
        %v3836 = vadd.f32 %v3676, %v3763
        %v3837 = vadd.f32 %v3677, %v3763
        %v3838 = vadd.f32 %v3678, %v3763
        %v3839 = vadd.f32 %v3679, %v3763
        %v3840 = vadd.f32 %v3680, %v3763
        %v3841 = vadd.f32 %v3681, %v3763
        %v3842 = vadd.f32 %v3682, %v3763
        %v3843 = vadd.f32 %v3683, %v3763
        %v3844 = vadd.f32 %v3684, %v3763
        %v3845 = vadd.f32 %v3685, %v3767
        %v3846 = vadd.f32 %v3686, %v3767
        %v3847 = vadd.f32 %v3687, %v3767
        %v3848 = vadd.f32 %v3688, %v3767
        %v3849 = vadd.f32 %v3689, %v3767
        %v3850 = vadd.f32 %v3690, %v3767
        %v3851 = vadd.f32 %v3691, %v3767
        %v3852 = vadd.f32 %v3692, %v3767
        %v3853 = vadd.f32 %v3693, %v3767
        %v3854 = vadd.f32 %v3694, %v3767
        %v3855 = vadd.f32 %v3695, %v3767
        %v3856 = vadd.f32 %v3696, %v3767
        %v3857 = vadd.f32 %v3697, %v3767
        %v3858 = vadd.f32 %v3698, %v3767
        %v3859 = vadd.f32 %v3699, %v3767
        %v3860 = vadd.f32 %v3700, %v3767
        %v3861 = vadd.f32 %v3701, %v3771
        %v3862 = vadd.f32 %v3702, %v3771
        %v3863 = vadd.f32 %v3703, %v3771
        %v3864 = vadd.f32 %v3704, %v3771
        %v3865 = vadd.f32 %v3705, %v3771
        %v3866 = vadd.f32 %v3706, %v3771
        %v3867 = vadd.f32 %v3707, %v3771
        %v3868 = vadd.f32 %v3708, %v3771
        %v3869 = vadd.f32 %v3709, %v3771
        %v3870 = vadd.f32 %v3710, %v3771
        %v3871 = vadd.f32 %v3711, %v3771
        %v3872 = vadd.f32 %v3712, %v3771
        %v3873 = vadd.f32 %v3713, %v3771
        %v3874 = vadd.f32 %v3714, %v3771
        %v3875 = vadd.f32 %v3715, %v3771
        %v3876 = vadd.f32 %v3716, %v3771
        %v3877 = vadd.f32 %v3717, %v3775
        %v3878 = vadd.f32 %v3718, %v3775
        %v3879 = vadd.f32 %v3719, %v3775
        %v3880 = vadd.f32 %v3720, %v3775
        %v3881 = vadd.f32 %v3721, %v3775
        %v3882 = vadd.f32 %v3722, %v3775
        %v3883 = vadd.f32 %v3723, %v3775
        %v3884 = vadd.f32 %v3724, %v3775
        %v3885 = vadd.f32 %v3725, %v3775
        %v3886 = vadd.f32 %v3726, %v3775
        %v3887 = vadd.f32 %v3727, %v3775
        %v3888 = vadd.f32 %v3728, %v3775
        %v3889 = vadd.f32 %v3729, %v3775
        %v3890 = vadd.f32 %v3730, %v3775
        %v3891 = vadd.f32 %v3731, %v3775
        %v3892 = vadd.f32 %v3732, %v3775
        %v3893 = vadd.f32 %v3733, %v3779
        %v3894 = vadd.f32 %v3734, %v3779
        %v3895 = vadd.f32 %v3735, %v3779
        %v3896 = vadd.f32 %v3736, %v3779
        %v3897 = vadd.f32 %v3737, %v3779
        %v3898 = vadd.f32 %v3738, %v3779
        %v3899 = vadd.f32 %v3739, %v3779
        %v3900 = vadd.f32 %v3740, %v3779
        %v3901 = vadd.f32 %v3741, %v3779
        %v3902 = vadd.f32 %v3742, %v3779
        %v3903 = vadd.f32 %v3743, %v3779
        %v3904 = vadd.f32 %v3744, %v3779
        %v3905 = vadd.f32 %v3745, %v3779
        %v3906 = vadd.f32 %v3746, %v3779
        %v3907 = vadd.f32 %v3747, %v3779
        %v3908 = vadd.f32 %v3748, %v3779
        %v3909 = vmul.f32 %v3781, %v1689
        %v3910 = vmul.f32 %v3782, %v1690
        %v3911 = vmul.f32 %v3783, %v1691
        %v3912 = vmul.f32 %v3784, %v1692
        %v3913 = vmul.f32 %v3785, %v1693
        %v3914 = vmul.f32 %v3786, %v1694
        %v3915 = vmul.f32 %v3787, %v1695
        %v3916 = vmul.f32 %v3788, %v1696
        %v3917 = vmul.f32 %v3789, %v1697
        %v3918 = vmul.f32 %v3790, %v1698
        %v3919 = vmul.f32 %v3791, %v1699
        %v3920 = vmul.f32 %v3792, %v1700
        %v3921 = vmul.f32 %v3793, %v1701
        %v3922 = vmul.f32 %v3794, %v1702
        %v3923 = vmul.f32 %v3795, %v1703
        %v3924 = vmul.f32 %v3796, %v1704
        %v3925 = vmul.f32 %v3797, %v1705
        %v3926 = vmul.f32 %v3798, %v1706
        %v3927 = vmul.f32 %v3799, %v1707
        %v3928 = vmul.f32 %v3800, %v1708
        %v3929 = vmul.f32 %v3801, %v1709
        %v3930 = vmul.f32 %v3802, %v1710
        %v3931 = vmul.f32 %v3803, %v1711
        %v3932 = vmul.f32 %v3804, %v1712
        %v3933 = vmul.f32 %v3805, %v1713
        %v3934 = vmul.f32 %v3806, %v1714
        %v3935 = vmul.f32 %v3807, %v1715
        %v3936 = vmul.f32 %v3808, %v1716
        %v3937 = vmul.f32 %v3809, %v1717
        %v3938 = vmul.f32 %v3810, %v1718
        %v3939 = vmul.f32 %v3811, %v1719
        %v3940 = vmul.f32 %v3812, %v1720
        %v3941 = vmul.f32 %v3813, %v1721
        %v3942 = vmul.f32 %v3814, %v1722
        %v3943 = vmul.f32 %v3815, %v1723
        %v3944 = vmul.f32 %v3816, %v1724
        %v3945 = vmul.f32 %v3817, %v1725
        %v3946 = vmul.f32 %v3818, %v1726
        %v3947 = vmul.f32 %v3819, %v1727
        %v3948 = vmul.f32 %v3820, %v1728
        %v3949 = vmul.f32 %v3821, %v1729
        %v3950 = vmul.f32 %v3822, %v1730
        %v3951 = vmul.f32 %v3823, %v1731
        %v3952 = vmul.f32 %v3824, %v1732
        %v3953 = vmul.f32 %v3825, %v1733
        %v3954 = vmul.f32 %v3826, %v1734
        %v3955 = vmul.f32 %v3827, %v1735
        %v3956 = vmul.f32 %v3828, %v1736
        %v3957 = vmul.f32 %v3829, %v1737
        %v3958 = vmul.f32 %v3830, %v1738
        %v3959 = vmul.f32 %v3831, %v1739
        %v3960 = vmul.f32 %v3832, %v1740
        %v3961 = vmul.f32 %v3833, %v1741
        %v3962 = vmul.f32 %v3834, %v1742
        %v3963 = vmul.f32 %v3835, %v1743
        %v3964 = vmul.f32 %v3836, %v1744
        %v3965 = vmul.f32 %v3837, %v1745
        %v3966 = vmul.f32 %v3838, %v1746
        %v3967 = vmul.f32 %v3839, %v1747
        %v3968 = vmul.f32 %v3840, %v1748
        %v3969 = vmul.f32 %v3841, %v1749
        %v3970 = vmul.f32 %v3842, %v1750
        %v3971 = vmul.f32 %v3843, %v1751
        %v3972 = vmul.f32 %v3844, %v1752
        %v3973 = vmul.f32 %v3845, %v1753
        %v3974 = vmul.f32 %v3846, %v1754
        %v3975 = vmul.f32 %v3847, %v1755
        %v3976 = vmul.f32 %v3848, %v1756
        %v3977 = vmul.f32 %v3849, %v1757
        %v3978 = vmul.f32 %v3850, %v1758
        %v3979 = vmul.f32 %v3851, %v1759
        %v3980 = vmul.f32 %v3852, %v1760
        %v3981 = vmul.f32 %v3853, %v1761
        %v3982 = vmul.f32 %v3854, %v1762
        %v3983 = vmul.f32 %v3855, %v1763
        %v3984 = vmul.f32 %v3856, %v1764
        %v3985 = vmul.f32 %v3857, %v1765
        %v3986 = vmul.f32 %v3858, %v1766
        %v3987 = vmul.f32 %v3859, %v1767
        %v3988 = vmul.f32 %v3860, %v1768
        %v3989 = vmul.f32 %v3861, %v1769
        %v3990 = vmul.f32 %v3862, %v1770
        %v3991 = vmul.f32 %v3863, %v1771
        %v3992 = vmul.f32 %v3864, %v1772
        %v3993 = vmul.f32 %v3865, %v1773
        %v3994 = vmul.f32 %v3866, %v1774
        %v3995 = vmul.f32 %v3867, %v1775
        %v3996 = vmul.f32 %v3868, %v1776
        %v3997 = vmul.f32 %v3869, %v1777
        %v3998 = vmul.f32 %v3870, %v1778
        %v3999 = vmul.f32 %v3871, %v1779
        %v4000 = vmul.f32 %v3872, %v1780
        %v4001 = vmul.f32 %v3873, %v1781
        %v4002 = vmul.f32 %v3874, %v1782
        %v4003 = vmul.f32 %v3875, %v1783
        %v4004 = vmul.f32 %v3876, %v1784
        %v4005 = vmul.f32 %v3877, %v1785
        %v4006 = vmul.f32 %v3878, %v1786
        %v4007 = vmul.f32 %v3879, %v1787
        %v4008 = vmul.f32 %v3880, %v1788
        %v4009 = vmul.f32 %v3881, %v1789
        %v4010 = vmul.f32 %v3882, %v1790
        %v4011 = vmul.f32 %v3883, %v1791
        %v4012 = vmul.f32 %v3884, %v1792
        %v4013 = vmul.f32 %v3885, %v1793
        %v4014 = vmul.f32 %v3886, %v1794
        %v4015 = vmul.f32 %v3887, %v1795
        %v4016 = vmul.f32 %v3888, %v1796
        %v4017 = vmul.f32 %v3889, %v1797
        %v4018 = vmul.f32 %v3890, %v1798
        %v4019 = vmul.f32 %v3891, %v1799
        %v4020 = vmul.f32 %v3892, %v1800
        %v4021 = vmul.f32 %v3893, %v1801
        %v4022 = vmul.f32 %v3894, %v1802
        %v4023 = vmul.f32 %v3895, %v1803
        %v4024 = vmul.f32 %v3896, %v1804
        %v4025 = vmul.f32 %v3897, %v1805
        %v4026 = vmul.f32 %v3898, %v1806
        %v4027 = vmul.f32 %v3899, %v1807
        %v4028 = vmul.f32 %v3900, %v1808
        %v4029 = vmul.f32 %v3901, %v1809
        %v4030 = vmul.f32 %v3902, %v1810
        %v4031 = vmul.f32 %v3903, %v1811
        %v4032 = vmul.f32 %v3904, %v1812
        %v4033 = vmul.f32 %v3905, %v1813
        %v4034 = vmul.f32 %v3906, %v1814
        %v4035 = vmul.f32 %v3907, %v1815
        %v4036 = vmul.f32 %v3908, %v1816
        %4037 = vset.pattern.permute.xlu0 6
        %4038 = vperm.xlu0 %4037, %v339
        %v4039 = vpop.permute.xlu0 %4038
        %4041 = vset.pattern.permute.xlu0 6
        %4042 = vperm.xlu0 %4041, %v340
        %v4043 = vpop.permute.xlu0 %4042
        %4045 = vset.pattern.permute.xlu0 6
        %4046 = vperm.xlu0 %4045, %v341
        %v4047 = vpop.permute.xlu0 %4046
        %4049 = vset.pattern.permute.xlu0 6
        %4050 = vperm.xlu0 %4049, %v342
        %v4051 = vpop.permute.xlu0 %4050
        %4053 = vset.pattern.permute.xlu0 6
        %4054 = vperm.xlu0 %4053, %v343
        %v4055 = vpop.permute.xlu0 %4054
        %4057 = vset.pattern.permute.xlu0 6
        %4058 = vperm.xlu0 %4057, %v344
        %v4059 = vpop.permute.xlu0 %4058
        %4061 = vset.pattern.permute.xlu0 6
        %4062 = vperm.xlu0 %4061, %v345
        %v4063 = vpop.permute.xlu0 %4062
        %4065 = vset.pattern.permute.xlu0 6
        %4066 = vperm.xlu0 %4065, %v346
        %v4067 = vpop.permute.xlu0 %4066
        %v4069 = vadd.f32 %v3909, %v4039
        %v4070 = vadd.f32 %v3910, %v4039
        %v4071 = vadd.f32 %v3911, %v4039
        %v4072 = vadd.f32 %v3912, %v4039
        %v4073 = vadd.f32 %v3913, %v4039
        %v4074 = vadd.f32 %v3914, %v4039
        %v4075 = vadd.f32 %v3915, %v4039
        %v4076 = vadd.f32 %v3916, %v4039
        %v4077 = vadd.f32 %v3917, %v4039
        %v4078 = vadd.f32 %v3918, %v4039
        %v4079 = vadd.f32 %v3919, %v4039
        %v4080 = vadd.f32 %v3920, %v4039
        %v4081 = vadd.f32 %v3921, %v4039
        %v4082 = vadd.f32 %v3922, %v4039
        %v4083 = vadd.f32 %v3923, %v4039
        %v4084 = vadd.f32 %v3924, %v4039
        %v4085 = vadd.f32 %v3925, %v4043
        %v4086 = vadd.f32 %v3926, %v4043
        %v4087 = vadd.f32 %v3927, %v4043
        %v4088 = vadd.f32 %v3928, %v4043
        %v4089 = vadd.f32 %v3929, %v4043
        %v4090 = vadd.f32 %v3930, %v4043
        %v4091 = vadd.f32 %v3931, %v4043
        %v4092 = vadd.f32 %v3932, %v4043
        %v4093 = vadd.f32 %v3933, %v4043
        %v4094 = vadd.f32 %v3934, %v4043
        %v4095 = vadd.f32 %v3935, %v4043
        %v4096 = vadd.f32 %v3936, %v4043
        %v4097 = vadd.f32 %v3937, %v4043
        %v4098 = vadd.f32 %v3938, %v4043
        %v4099 = vadd.f32 %v3939, %v4043
        %v4100 = vadd.f32 %v3940, %v4043
        %v4101 = vadd.f32 %v3941, %v4047
        %v4102 = vadd.f32 %v3942, %v4047
        %v4103 = vadd.f32 %v3943, %v4047
        %v4104 = vadd.f32 %v3944, %v4047
        %v4105 = vadd.f32 %v3945, %v4047
        %v4106 = vadd.f32 %v3946, %v4047
        %v4107 = vadd.f32 %v3947, %v4047
        %v4108 = vadd.f32 %v3948, %v4047
        %v4109 = vadd.f32 %v3949, %v4047
        %v4110 = vadd.f32 %v3950, %v4047
        %v4111 = vadd.f32 %v3951, %v4047
        %v4112 = vadd.f32 %v3952, %v4047
        %v4113 = vadd.f32 %v3953, %v4047
        %v4114 = vadd.f32 %v3954, %v4047
        %v4115 = vadd.f32 %v3955, %v4047
        %v4116 = vadd.f32 %v3956, %v4047
        %v4117 = vadd.f32 %v3957, %v4051
        %v4118 = vadd.f32 %v3958, %v4051
        %v4119 = vadd.f32 %v3959, %v4051
        %v4120 = vadd.f32 %v3960, %v4051
        %v4121 = vadd.f32 %v3961, %v4051
        %v4122 = vadd.f32 %v3962, %v4051
        %v4123 = vadd.f32 %v3963, %v4051
        %v4124 = vadd.f32 %v3964, %v4051
        %v4125 = vadd.f32 %v3965, %v4051
        %v4126 = vadd.f32 %v3966, %v4051
        %v4127 = vadd.f32 %v3967, %v4051
        %v4128 = vadd.f32 %v3968, %v4051
        %v4129 = vadd.f32 %v3969, %v4051
        %v4130 = vadd.f32 %v3970, %v4051
        %v4131 = vadd.f32 %v3971, %v4051
        %v4132 = vadd.f32 %v3972, %v4051
        %v4133 = vadd.f32 %v3973, %v4055
        %v4134 = vadd.f32 %v3974, %v4055
        %v4135 = vadd.f32 %v3975, %v4055
        %v4136 = vadd.f32 %v3976, %v4055
        %v4137 = vadd.f32 %v3977, %v4055
        %v4138 = vadd.f32 %v3978, %v4055
        %v4139 = vadd.f32 %v3979, %v4055
        %v4140 = vadd.f32 %v3980, %v4055
        %v4141 = vadd.f32 %v3981, %v4055
        %v4142 = vadd.f32 %v3982, %v4055
        %v4143 = vadd.f32 %v3983, %v4055
        %v4144 = vadd.f32 %v3984, %v4055
        %v4145 = vadd.f32 %v3985, %v4055
        %v4146 = vadd.f32 %v3986, %v4055
        %v4147 = vadd.f32 %v3987, %v4055
        %v4148 = vadd.f32 %v3988, %v4055
        %v4149 = vadd.f32 %v3989, %v4059
        %v4150 = vadd.f32 %v3990, %v4059
        %v4151 = vadd.f32 %v3991, %v4059
        %v4152 = vadd.f32 %v3992, %v4059
        %v4153 = vadd.f32 %v3993, %v4059
        %v4154 = vadd.f32 %v3994, %v4059
        %v4155 = vadd.f32 %v3995, %v4059
        %v4156 = vadd.f32 %v3996, %v4059
        %v4157 = vadd.f32 %v3997, %v4059
        %v4158 = vadd.f32 %v3998, %v4059
        %v4159 = vadd.f32 %v3999, %v4059
        %v4160 = vadd.f32 %v4000, %v4059
        %v4161 = vadd.f32 %v4001, %v4059
        %v4162 = vadd.f32 %v4002, %v4059
        %v4163 = vadd.f32 %v4003, %v4059
        %v4164 = vadd.f32 %v4004, %v4059
        %v4165 = vadd.f32 %v4005, %v4063
        %v4166 = vadd.f32 %v4006, %v4063
        %v4167 = vadd.f32 %v4007, %v4063
        %v4168 = vadd.f32 %v4008, %v4063
        %v4169 = vadd.f32 %v4009, %v4063
        %v4170 = vadd.f32 %v4010, %v4063
        %v4171 = vadd.f32 %v4011, %v4063
        %v4172 = vadd.f32 %v4012, %v4063
        %v4173 = vadd.f32 %v4013, %v4063
        %v4174 = vadd.f32 %v4014, %v4063
        %v4175 = vadd.f32 %v4015, %v4063
        %v4176 = vadd.f32 %v4016, %v4063
        %v4177 = vadd.f32 %v4017, %v4063
        %v4178 = vadd.f32 %v4018, %v4063
        %v4179 = vadd.f32 %v4019, %v4063
        %v4180 = vadd.f32 %v4020, %v4063
        %v4181 = vadd.f32 %v4021, %v4067
        %v4182 = vadd.f32 %v4022, %v4067
        %v4183 = vadd.f32 %v4023, %v4067
        %v4184 = vadd.f32 %v4024, %v4067
        %v4185 = vadd.f32 %v4025, %v4067
        %v4186 = vadd.f32 %v4026, %v4067
        %v4187 = vadd.f32 %v4027, %v4067
        %v4188 = vadd.f32 %v4028, %v4067
        %v4189 = vadd.f32 %v4029, %v4067
        %v4190 = vadd.f32 %v4030, %v4067
        %v4191 = vadd.f32 %v4031, %v4067
        %v4192 = vadd.f32 %v4032, %v4067
        %v4193 = vadd.f32 %v4033, %v4067
        %v4194 = vadd.f32 %v4034, %v4067
        %v4195 = vadd.f32 %v4035, %v4067
        %v4196 = vadd.f32 %v4036, %v4067
        %v4197 = vmul.f32 %v1689, %v4069
        %v4198 = vmul.f32 %v1690, %v4070
        %v4199 = vmul.f32 %v1691, %v4071
        %v4200 = vmul.f32 %v1692, %v4072
        %v4201 = vmul.f32 %v1693, %v4073
        %v4202 = vmul.f32 %v1694, %v4074
        %v4203 = vmul.f32 %v1695, %v4075
        %v4204 = vmul.f32 %v1696, %v4076
        %v4205 = vmul.f32 %v1697, %v4077
        %v4206 = vmul.f32 %v1698, %v4078
        %v4207 = vmul.f32 %v1699, %v4079
        %v4208 = vmul.f32 %v1700, %v4080
        %v4209 = vmul.f32 %v1701, %v4081
        %v4210 = vmul.f32 %v1702, %v4082
        %v4211 = vmul.f32 %v1703, %v4083
        %v4212 = vmul.f32 %v1704, %v4084
        %v4213 = vmul.f32 %v1705, %v4085
        %v4214 = vmul.f32 %v1706, %v4086
        %v4215 = vmul.f32 %v1707, %v4087
        %v4216 = vmul.f32 %v1708, %v4088
        %v4217 = vmul.f32 %v1709, %v4089
        %v4218 = vmul.f32 %v1710, %v4090
        %v4219 = vmul.f32 %v1711, %v4091
        %v4220 = vmul.f32 %v1712, %v4092
        %v4221 = vmul.f32 %v1713, %v4093
        %v4222 = vmul.f32 %v1714, %v4094
        %v4223 = vmul.f32 %v1715, %v4095
        %v4224 = vmul.f32 %v1716, %v4096
        %v4225 = vmul.f32 %v1717, %v4097
        %v4226 = vmul.f32 %v1718, %v4098
        %v4227 = vmul.f32 %v1719, %v4099
        %v4228 = vmul.f32 %v1720, %v4100
        %v4229 = vmul.f32 %v1721, %v4101
        %v4230 = vmul.f32 %v1722, %v4102
        %v4231 = vmul.f32 %v1723, %v4103
        %v4232 = vmul.f32 %v1724, %v4104
        %v4233 = vmul.f32 %v1725, %v4105
        %v4234 = vmul.f32 %v1726, %v4106
        %v4235 = vmul.f32 %v1727, %v4107
        %v4236 = vmul.f32 %v1728, %v4108
        %v4237 = vmul.f32 %v1729, %v4109
        %v4238 = vmul.f32 %v1730, %v4110
        %v4239 = vmul.f32 %v1731, %v4111
        %v4240 = vmul.f32 %v1732, %v4112
        %v4241 = vmul.f32 %v1733, %v4113
        %v4242 = vmul.f32 %v1734, %v4114
        %v4243 = vmul.f32 %v1735, %v4115
        %v4244 = vmul.f32 %v1736, %v4116
        %v4245 = vmul.f32 %v1737, %v4117
        %v4246 = vmul.f32 %v1738, %v4118
        %v4247 = vmul.f32 %v1739, %v4119
        %v4248 = vmul.f32 %v1740, %v4120
        %v4249 = vmul.f32 %v1741, %v4121
        %v4250 = vmul.f32 %v1742, %v4122
        %v4251 = vmul.f32 %v1743, %v4123
        %v4252 = vmul.f32 %v1744, %v4124
        %v4253 = vmul.f32 %v1745, %v4125
        %v4254 = vmul.f32 %v1746, %v4126
        %v4255 = vmul.f32 %v1747, %v4127
        %v4256 = vmul.f32 %v1748, %v4128
        %v4257 = vmul.f32 %v1749, %v4129
        %v4258 = vmul.f32 %v1750, %v4130
        %v4259 = vmul.f32 %v1751, %v4131
        %v4260 = vmul.f32 %v1752, %v4132
        %v4261 = vmul.f32 %v1753, %v4133
        %v4262 = vmul.f32 %v1754, %v4134
        %v4263 = vmul.f32 %v1755, %v4135
        %v4264 = vmul.f32 %v1756, %v4136
        %v4265 = vmul.f32 %v1757, %v4137
        %v4266 = vmul.f32 %v1758, %v4138
        %v4267 = vmul.f32 %v1759, %v4139
        %v4268 = vmul.f32 %v1760, %v4140
        %v4269 = vmul.f32 %v1761, %v4141
        %v4270 = vmul.f32 %v1762, %v4142
        %v4271 = vmul.f32 %v1763, %v4143
        %v4272 = vmul.f32 %v1764, %v4144
        %v4273 = vmul.f32 %v1765, %v4145
        %v4274 = vmul.f32 %v1766, %v4146
        %v4275 = vmul.f32 %v1767, %v4147
        %v4276 = vmul.f32 %v1768, %v4148
        %v4277 = vmul.f32 %v1769, %v4149
        %v4278 = vmul.f32 %v1770, %v4150
        %v4279 = vmul.f32 %v1771, %v4151
        %v4280 = vmul.f32 %v1772, %v4152
        %v4281 = vmul.f32 %v1773, %v4153
        %v4282 = vmul.f32 %v1774, %v4154
        %v4283 = vmul.f32 %v1775, %v4155
        %v4284 = vmul.f32 %v1776, %v4156
        %v4285 = vmul.f32 %v1777, %v4157
        %v4286 = vmul.f32 %v1778, %v4158
        %v4287 = vmul.f32 %v1779, %v4159
        %v4288 = vmul.f32 %v1780, %v4160
        %v4289 = vmul.f32 %v1781, %v4161
        %v4290 = vmul.f32 %v1782, %v4162
        %v4291 = vmul.f32 %v1783, %v4163
        %v4292 = vmul.f32 %v1784, %v4164
        %v4293 = vmul.f32 %v1785, %v4165
        %v4294 = vmul.f32 %v1786, %v4166
        %v4295 = vmul.f32 %v1787, %v4167
        %v4296 = vmul.f32 %v1788, %v4168
        %v4297 = vmul.f32 %v1789, %v4169
        %v4298 = vmul.f32 %v1790, %v4170
        %v4299 = vmul.f32 %v1791, %v4171
        %v4300 = vmul.f32 %v1792, %v4172
        %v4301 = vmul.f32 %v1793, %v4173
        %v4302 = vmul.f32 %v1794, %v4174
        %v4303 = vmul.f32 %v1795, %v4175
        %v4304 = vmul.f32 %v1796, %v4176
        %v4305 = vmul.f32 %v1797, %v4177
        %v4306 = vmul.f32 %v1798, %v4178
        %v4307 = vmul.f32 %v1799, %v4179
        %v4308 = vmul.f32 %v1800, %v4180
        %v4309 = vmul.f32 %v1801, %v4181
        %v4310 = vmul.f32 %v1802, %v4182
        %v4311 = vmul.f32 %v1803, %v4183
        %v4312 = vmul.f32 %v1804, %v4184
        %v4313 = vmul.f32 %v1805, %v4185
        %v4314 = vmul.f32 %v1806, %v4186
        %v4315 = vmul.f32 %v1807, %v4187
        %v4316 = vmul.f32 %v1808, %v4188
        %v4317 = vmul.f32 %v1809, %v4189
        %v4318 = vmul.f32 %v1810, %v4190
        %v4319 = vmul.f32 %v1811, %v4191
        %v4320 = vmul.f32 %v1812, %v4192
        %v4321 = vmul.f32 %v1813, %v4193
        %v4322 = vmul.f32 %v1814, %v4194
        %v4323 = vmul.f32 %v1815, %v4195
        %v4324 = vmul.f32 %v1816, %v4196
        %v4325 = vand.u32 2147483647, %v4197
        %v4326 = vand.u32 2147483647, %v4198
        %v4327 = vand.u32 2147483647, %v4199
        %v4328 = vand.u32 2147483647, %v4200
        %v4329 = vand.u32 2147483647, %v4201
        %v4330 = vand.u32 2147483647, %v4202
        %v4331 = vand.u32 2147483647, %v4203
        %v4332 = vand.u32 2147483647, %v4204
        %v4333 = vand.u32 2147483647, %v4205
        %v4334 = vand.u32 2147483647, %v4206
        %v4335 = vand.u32 2147483647, %v4207
        %v4336 = vand.u32 2147483647, %v4208
        %v4337 = vand.u32 2147483647, %v4209
        %v4338 = vand.u32 2147483647, %v4210
        %v4339 = vand.u32 2147483647, %v4211
        %v4340 = vand.u32 2147483647, %v4212
        %v4341 = vand.u32 2147483647, %v4213
        %v4342 = vand.u32 2147483647, %v4214
        %v4343 = vand.u32 2147483647, %v4215
        %v4344 = vand.u32 2147483647, %v4216
        %v4345 = vand.u32 2147483647, %v4217
        %v4346 = vand.u32 2147483647, %v4218
        %v4347 = vand.u32 2147483647, %v4219
        %v4348 = vand.u32 2147483647, %v4220
        %v4349 = vand.u32 2147483647, %v4221
        %v4350 = vand.u32 2147483647, %v4222
        %v4351 = vand.u32 2147483647, %v4223
        %v4352 = vand.u32 2147483647, %v4224
        %v4353 = vand.u32 2147483647, %v4225
        %v4354 = vand.u32 2147483647, %v4226
        %v4355 = vand.u32 2147483647, %v4227
        %v4356 = vand.u32 2147483647, %v4228
        %v4357 = vand.u32 2147483647, %v4229
        %v4358 = vand.u32 2147483647, %v4230
        %v4359 = vand.u32 2147483647, %v4231
        %v4360 = vand.u32 2147483647, %v4232
        %v4361 = vand.u32 2147483647, %v4233
        %v4362 = vand.u32 2147483647, %v4234
        %v4363 = vand.u32 2147483647, %v4235
        %v4364 = vand.u32 2147483647, %v4236
        %v4365 = vand.u32 2147483647, %v4237
        %v4366 = vand.u32 2147483647, %v4238
        %v4367 = vand.u32 2147483647, %v4239
        %v4368 = vand.u32 2147483647, %v4240
        %v4369 = vand.u32 2147483647, %v4241
        %v4370 = vand.u32 2147483647, %v4242
        %v4371 = vand.u32 2147483647, %v4243
        %v4372 = vand.u32 2147483647, %v4244
        %v4373 = vand.u32 2147483647, %v4245
        %v4374 = vand.u32 2147483647, %v4246
        %v4375 = vand.u32 2147483647, %v4247
        %v4376 = vand.u32 2147483647, %v4248
        %v4377 = vand.u32 2147483647, %v4249
        %v4378 = vand.u32 2147483647, %v4250
        %v4379 = vand.u32 2147483647, %v4251
        %v4380 = vand.u32 2147483647, %v4252
        %v4381 = vand.u32 2147483647, %v4253
        %v4382 = vand.u32 2147483647, %v4254
        %v4383 = vand.u32 2147483647, %v4255
        %v4384 = vand.u32 2147483647, %v4256
        %v4385 = vand.u32 2147483647, %v4257
        %v4386 = vand.u32 2147483647, %v4258
        %v4387 = vand.u32 2147483647, %v4259
        %v4388 = vand.u32 2147483647, %v4260
        %v4389 = vand.u32 2147483647, %v4261
        %v4390 = vand.u32 2147483647, %v4262
        %v4391 = vand.u32 2147483647, %v4263
        %v4392 = vand.u32 2147483647, %v4264
        %v4393 = vand.u32 2147483647, %v4265
        %v4394 = vand.u32 2147483647, %v4266
        %v4395 = vand.u32 2147483647, %v4267
        %v4396 = vand.u32 2147483647, %v4268
        %v4397 = vand.u32 2147483647, %v4269
        %v4398 = vand.u32 2147483647, %v4270
        %v4399 = vand.u32 2147483647, %v4271
        %v4400 = vand.u32 2147483647, %v4272
        %v4401 = vand.u32 2147483647, %v4273
        %v4402 = vand.u32 2147483647, %v4274
        %v4403 = vand.u32 2147483647, %v4275
        %v4404 = vand.u32 2147483647, %v4276
        %v4405 = vand.u32 2147483647, %v4277
        %v4406 = vand.u32 2147483647, %v4278
        %v4407 = vand.u32 2147483647, %v4279
        %v4408 = vand.u32 2147483647, %v4280
        %v4409 = vand.u32 2147483647, %v4281
        %v4410 = vand.u32 2147483647, %v4282
        %v4411 = vand.u32 2147483647, %v4283
        %v4412 = vand.u32 2147483647, %v4284
        %v4413 = vand.u32 2147483647, %v4285
        %v4414 = vand.u32 2147483647, %v4286
        %v4415 = vand.u32 2147483647, %v4287
        %v4416 = vand.u32 2147483647, %v4288
        %v4417 = vand.u32 2147483647, %v4289
        %v4418 = vand.u32 2147483647, %v4290
        %v4419 = vand.u32 2147483647, %v4291
        %v4420 = vand.u32 2147483647, %v4292
        %v4421 = vand.u32 2147483647, %v4293
        %v4422 = vand.u32 2147483647, %v4294
        %v4423 = vand.u32 2147483647, %v4295
        %v4424 = vand.u32 2147483647, %v4296
        %v4425 = vand.u32 2147483647, %v4297
        %v4426 = vand.u32 2147483647, %v4298
        %v4427 = vand.u32 2147483647, %v4299
        %v4428 = vand.u32 2147483647, %v4300
        %v4429 = vand.u32 2147483647, %v4301
        %v4430 = vand.u32 2147483647, %v4302
        %v4431 = vand.u32 2147483647, %v4303
        %v4432 = vand.u32 2147483647, %v4304
        %v4433 = vand.u32 2147483647, %v4305
        %v4434 = vand.u32 2147483647, %v4306
        %v4435 = vand.u32 2147483647, %v4307
        %v4436 = vand.u32 2147483647, %v4308
        %v4437 = vand.u32 2147483647, %v4309
        %v4438 = vand.u32 2147483647, %v4310
        %v4439 = vand.u32 2147483647, %v4311
        %v4440 = vand.u32 2147483647, %v4312
        %v4441 = vand.u32 2147483647, %v4313
        %v4442 = vand.u32 2147483647, %v4314
        %v4443 = vand.u32 2147483647, %v4315
        %v4444 = vand.u32 2147483647, %v4316
        %v4445 = vand.u32 2147483647, %v4317
        %v4446 = vand.u32 2147483647, %v4318
        %v4447 = vand.u32 2147483647, %v4319
        %v4448 = vand.u32 2147483647, %v4320
        %v4449 = vand.u32 2147483647, %v4321
        %v4450 = vand.u32 2147483647, %v4322
        %v4451 = vand.u32 2147483647, %v4323
        %v4452 = vand.u32 2147483647, %v4324
        %v4453 = vadd.f32 %v4325, 1.0
        %v4454 = vadd.f32 %v4326, 1.0
        %v4455 = vadd.f32 %v4327, 1.0
        %v4456 = vadd.f32 %v4328, 1.0
        %v4457 = vadd.f32 %v4329, 1.0
        %v4458 = vadd.f32 %v4330, 1.0
        %v4459 = vadd.f32 %v4331, 1.0
        %v4460 = vadd.f32 %v4332, 1.0
        %v4461 = vadd.f32 %v4333, 1.0
        %v4462 = vadd.f32 %v4334, 1.0
        %v4463 = vadd.f32 %v4335, 1.0
        %v4464 = vadd.f32 %v4336, 1.0
        %v4465 = vadd.f32 %v4337, 1.0
        %v4466 = vadd.f32 %v4338, 1.0
        %v4467 = vadd.f32 %v4339, 1.0
        %v4468 = vadd.f32 %v4340, 1.0
        %v4469 = vadd.f32 %v4341, 1.0
        %v4470 = vadd.f32 %v4342, 1.0
        %v4471 = vadd.f32 %v4343, 1.0
        %v4472 = vadd.f32 %v4344, 1.0
        %v4473 = vadd.f32 %v4345, 1.0
        %v4474 = vadd.f32 %v4346, 1.0
        %v4475 = vadd.f32 %v4347, 1.0
        %v4476 = vadd.f32 %v4348, 1.0
        %v4477 = vadd.f32 %v4349, 1.0
        %v4478 = vadd.f32 %v4350, 1.0
        %v4479 = vadd.f32 %v4351, 1.0
        %v4480 = vadd.f32 %v4352, 1.0
        %v4481 = vadd.f32 %v4353, 1.0
        %v4482 = vadd.f32 %v4354, 1.0
        %v4483 = vadd.f32 %v4355, 1.0
        %v4484 = vadd.f32 %v4356, 1.0
        %v4485 = vadd.f32 %v4357, 1.0
        %v4486 = vadd.f32 %v4358, 1.0
        %v4487 = vadd.f32 %v4359, 1.0
        %v4488 = vadd.f32 %v4360, 1.0
        %v4489 = vadd.f32 %v4361, 1.0
        %v4490 = vadd.f32 %v4362, 1.0
        %v4491 = vadd.f32 %v4363, 1.0
        %v4492 = vadd.f32 %v4364, 1.0
        %v4493 = vadd.f32 %v4365, 1.0
        %v4494 = vadd.f32 %v4366, 1.0
        %v4495 = vadd.f32 %v4367, 1.0
        %v4496 = vadd.f32 %v4368, 1.0
        %v4497 = vadd.f32 %v4369, 1.0
        %v4498 = vadd.f32 %v4370, 1.0
        %v4499 = vadd.f32 %v4371, 1.0
        %v4500 = vadd.f32 %v4372, 1.0
        %v4501 = vadd.f32 %v4373, 1.0
        %v4502 = vadd.f32 %v4374, 1.0
        %v4503 = vadd.f32 %v4375, 1.0
        %v4504 = vadd.f32 %v4376, 1.0
        %v4505 = vadd.f32 %v4377, 1.0
        %v4506 = vadd.f32 %v4378, 1.0
        %v4507 = vadd.f32 %v4379, 1.0
        %v4508 = vadd.f32 %v4380, 1.0
        %v4509 = vadd.f32 %v4381, 1.0
        %v4510 = vadd.f32 %v4382, 1.0
        %v4511 = vadd.f32 %v4383, 1.0
        %v4512 = vadd.f32 %v4384, 1.0
        %v4513 = vadd.f32 %v4385, 1.0
        %v4514 = vadd.f32 %v4386, 1.0
        %v4515 = vadd.f32 %v4387, 1.0
        %v4516 = vadd.f32 %v4388, 1.0
        %v4517 = vadd.f32 %v4389, 1.0
        %v4518 = vadd.f32 %v4390, 1.0
        %v4519 = vadd.f32 %v4391, 1.0
        %v4520 = vadd.f32 %v4392, 1.0
        %v4521 = vadd.f32 %v4393, 1.0
        %v4522 = vadd.f32 %v4394, 1.0
        %v4523 = vadd.f32 %v4395, 1.0
        %v4524 = vadd.f32 %v4396, 1.0
        %v4525 = vadd.f32 %v4397, 1.0
        %v4526 = vadd.f32 %v4398, 1.0
        %v4527 = vadd.f32 %v4399, 1.0
        %v4528 = vadd.f32 %v4400, 1.0
        %v4529 = vadd.f32 %v4401, 1.0
        %v4530 = vadd.f32 %v4402, 1.0
        %v4531 = vadd.f32 %v4403, 1.0
        %v4532 = vadd.f32 %v4404, 1.0
        %v4533 = vadd.f32 %v4405, 1.0
        %v4534 = vadd.f32 %v4406, 1.0
        %v4535 = vadd.f32 %v4407, 1.0
        %v4536 = vadd.f32 %v4408, 1.0
        %v4537 = vadd.f32 %v4409, 1.0
        %v4538 = vadd.f32 %v4410, 1.0
        %v4539 = vadd.f32 %v4411, 1.0
        %v4540 = vadd.f32 %v4412, 1.0
        %v4541 = vadd.f32 %v4413, 1.0
        %v4542 = vadd.f32 %v4414, 1.0
        %v4543 = vadd.f32 %v4415, 1.0
        %v4544 = vadd.f32 %v4416, 1.0
        %v4545 = vadd.f32 %v4417, 1.0
        %v4546 = vadd.f32 %v4418, 1.0
        %v4547 = vadd.f32 %v4419, 1.0
        %v4548 = vadd.f32 %v4420, 1.0
        %v4549 = vadd.f32 %v4421, 1.0
        %v4550 = vadd.f32 %v4422, 1.0
        %v4551 = vadd.f32 %v4423, 1.0
        %v4552 = vadd.f32 %v4424, 1.0
        %v4553 = vadd.f32 %v4425, 1.0
        %v4554 = vadd.f32 %v4426, 1.0
        %v4555 = vadd.f32 %v4427, 1.0
        %v4556 = vadd.f32 %v4428, 1.0
        %v4557 = vadd.f32 %v4429, 1.0
        %v4558 = vadd.f32 %v4430, 1.0
        %v4559 = vadd.f32 %v4431, 1.0
        %v4560 = vadd.f32 %v4432, 1.0
        %v4561 = vadd.f32 %v4433, 1.0
        %v4562 = vadd.f32 %v4434, 1.0
        %v4563 = vadd.f32 %v4435, 1.0
        %v4564 = vadd.f32 %v4436, 1.0
        %v4565 = vadd.f32 %v4437, 1.0
        %v4566 = vadd.f32 %v4438, 1.0
        %v4567 = vadd.f32 %v4439, 1.0
        %v4568 = vadd.f32 %v4440, 1.0
        %v4569 = vadd.f32 %v4441, 1.0
        %v4570 = vadd.f32 %v4442, 1.0
        %v4571 = vadd.f32 %v4443, 1.0
        %v4572 = vadd.f32 %v4444, 1.0
        %v4573 = vadd.f32 %v4445, 1.0
        %v4574 = vadd.f32 %v4446, 1.0
        %v4575 = vadd.f32 %v4447, 1.0
        %v4576 = vadd.f32 %v4448, 1.0
        %v4577 = vadd.f32 %v4449, 1.0
        %v4578 = vadd.f32 %v4450, 1.0
        %v4579 = vadd.f32 %v4451, 1.0
        %v4580 = vadd.f32 %v4452, 1.0
        %v4581 = vrcp.pop %v4453
        %v4582 = vmul.f32 %v4453, %v4581
        %v4583 = vsub.f32 1.0, %v4582
        %v4584 = vmul.f32 %v4581, %v4583
        %v4585 = vadd.f32 %v4581, %v4584
        %vm4586 = vweird.f32 %v4453
        %vm4587 = vweird.f32 %v4581
        %vm4588 = vmor %vm4586, %vm4587
        %v4589 = vsel %vm4588, %v4581, %v4585
        %v4590 = vand.u32 2147483647, %v4453
        %vm4591 = vcmp.eq.f32.partialorder %v4590, 8.507059e+37
        %v4592 = vand.u32 %v4453, 2147483648
        %v4593 = vor.u32 1.1754944e-38, %v4592
        %v4594 = vsel %vm4591, %v4593, %v4589
        %v4595 = vmul.f32 %v3173, %v4594
        %v4596 = vrcp.pop %v4454
        %v4597 = vmul.f32 %v4454, %v4596
        %v4598 = vsub.f32 1.0, %v4597
        %v4599 = vmul.f32 %v4596, %v4598
        %v4600 = vadd.f32 %v4596, %v4599
        %vm4601 = vweird.f32 %v4454
        %vm4602 = vweird.f32 %v4596
        %vm4603 = vmor %vm4601, %vm4602
        %v4604 = vsel %vm4603, %v4596, %v4600
        %v4605 = vand.u32 2147483647, %v4454
        %vm4606 = vcmp.eq.f32.partialorder %v4605, 8.507059e+37
        %v4607 = vand.u32 %v4454, 2147483648
        %v4608 = vor.u32 1.1754944e-38, %v4607
        %v4609 = vsel %vm4606, %v4608, %v4604
        %v4610 = vmul.f32 %v3174, %v4609
        %v4611 = vrcp.pop %v4455
        %v4612 = vmul.f32 %v4455, %v4611
        %v4613 = vsub.f32 1.0, %v4612
        %v4614 = vmul.f32 %v4611, %v4613
        %v4615 = vadd.f32 %v4611, %v4614
        %vm4616 = vweird.f32 %v4455
        %vm4617 = vweird.f32 %v4611
        %vm4618 = vmor %vm4616, %vm4617
        %v4619 = vsel %vm4618, %v4611, %v4615
        %v4620 = vand.u32 2147483647, %v4455
        %vm4621 = vcmp.eq.f32.partialorder %v4620, 8.507059e+37
        %v4622 = vand.u32 %v4455, 2147483648
        %v4623 = vor.u32 1.1754944e-38, %v4622
        %v4624 = vsel %vm4621, %v4623, %v4619
        %v4625 = vmul.f32 %v3175, %v4624
        %v4626 = vrcp.pop %v4456
        %v4627 = vmul.f32 %v4456, %v4626
        %v4628 = vsub.f32 1.0, %v4627
        %v4629 = vmul.f32 %v4626, %v4628
        %v4630 = vadd.f32 %v4626, %v4629
        %vm4631 = vweird.f32 %v4456
        %vm4632 = vweird.f32 %v4626
        %vm4633 = vmor %vm4631, %vm4632
        %v4634 = vsel %vm4633, %v4626, %v4630
        %v4635 = vand.u32 2147483647, %v4456
        %vm4636 = vcmp.eq.f32.partialorder %v4635, 8.507059e+37
        %v4637 = vand.u32 %v4456, 2147483648
        %v4638 = vor.u32 1.1754944e-38, %v4637
        %v4639 = vsel %vm4636, %v4638, %v4634
        %v4640 = vmul.f32 %v3176, %v4639
        %v4641 = vrcp.pop %v4457
        %v4642 = vmul.f32 %v4457, %v4641
        %v4643 = vsub.f32 1.0, %v4642
        %v4644 = vmul.f32 %v4641, %v4643
        %v4645 = vadd.f32 %v4641, %v4644
        %vm4646 = vweird.f32 %v4457
        %vm4647 = vweird.f32 %v4641
        %vm4648 = vmor %vm4646, %vm4647
        %v4649 = vsel %vm4648, %v4641, %v4645
        %v4650 = vand.u32 2147483647, %v4457
        %vm4651 = vcmp.eq.f32.partialorder %v4650, 8.507059e+37
        %v4652 = vand.u32 %v4457, 2147483648
        %v4653 = vor.u32 1.1754944e-38, %v4652
        %v4654 = vsel %vm4651, %v4653, %v4649
        %v4655 = vmul.f32 %v3177, %v4654
        %v4656 = vrcp.pop %v4458
        %v4657 = vmul.f32 %v4458, %v4656
        %v4658 = vsub.f32 1.0, %v4657
        %v4659 = vmul.f32 %v4656, %v4658
        %v4660 = vadd.f32 %v4656, %v4659
        %vm4661 = vweird.f32 %v4458
        %vm4662 = vweird.f32 %v4656
        %vm4663 = vmor %vm4661, %vm4662
        %v4664 = vsel %vm4663, %v4656, %v4660
        %v4665 = vand.u32 2147483647, %v4458
        %vm4666 = vcmp.eq.f32.partialorder %v4665, 8.507059e+37
        %v4667 = vand.u32 %v4458, 2147483648
        %v4668 = vor.u32 1.1754944e-38, %v4667
        %v4669 = vsel %vm4666, %v4668, %v4664
        %v4670 = vmul.f32 %v3178, %v4669
        %v4671 = vrcp.pop %v4459
        %v4672 = vmul.f32 %v4459, %v4671
        %v4673 = vsub.f32 1.0, %v4672
        %v4674 = vmul.f32 %v4671, %v4673
        %v4675 = vadd.f32 %v4671, %v4674
        %vm4676 = vweird.f32 %v4459
        %vm4677 = vweird.f32 %v4671
        %vm4678 = vmor %vm4676, %vm4677
        %v4679 = vsel %vm4678, %v4671, %v4675
        %v4680 = vand.u32 2147483647, %v4459
        %vm4681 = vcmp.eq.f32.partialorder %v4680, 8.507059e+37
        %v4682 = vand.u32 %v4459, 2147483648
        %v4683 = vor.u32 1.1754944e-38, %v4682
        %v4684 = vsel %vm4681, %v4683, %v4679
        %v4685 = vmul.f32 %v3179, %v4684
        %v4686 = vrcp.pop %v4460
        %v4687 = vmul.f32 %v4460, %v4686
        %v4688 = vsub.f32 1.0, %v4687
        %v4689 = vmul.f32 %v4686, %v4688
        %v4690 = vadd.f32 %v4686, %v4689
        %vm4691 = vweird.f32 %v4460
        %vm4692 = vweird.f32 %v4686
        %vm4693 = vmor %vm4691, %vm4692
        %v4694 = vsel %vm4693, %v4686, %v4690
        %v4695 = vand.u32 2147483647, %v4460
        %vm4696 = vcmp.eq.f32.partialorder %v4695, 8.507059e+37
        %v4697 = vand.u32 %v4460, 2147483648
        %v4698 = vor.u32 1.1754944e-38, %v4697
        %v4699 = vsel %vm4696, %v4698, %v4694
        %v4700 = vmul.f32 %v3180, %v4699
        %v4701 = vrcp.pop %v4461
        %v4702 = vmul.f32 %v4461, %v4701
        %v4703 = vsub.f32 1.0, %v4702
        %v4704 = vmul.f32 %v4701, %v4703
        %v4705 = vadd.f32 %v4701, %v4704
        %vm4706 = vweird.f32 %v4461
        %vm4707 = vweird.f32 %v4701
        %vm4708 = vmor %vm4706, %vm4707
        %v4709 = vsel %vm4708, %v4701, %v4705
        %v4710 = vand.u32 2147483647, %v4461
        %vm4711 = vcmp.eq.f32.partialorder %v4710, 8.507059e+37
        %v4712 = vand.u32 %v4461, 2147483648
        %v4713 = vor.u32 1.1754944e-38, %v4712
        %v4714 = vsel %vm4711, %v4713, %v4709
        %v4715 = vmul.f32 %v3181, %v4714
        %v4716 = vrcp.pop %v4462
        %v4717 = vmul.f32 %v4462, %v4716
        %v4718 = vsub.f32 1.0, %v4717
        %v4719 = vmul.f32 %v4716, %v4718
        %v4720 = vadd.f32 %v4716, %v4719
        %vm4721 = vweird.f32 %v4462
        %vm4722 = vweird.f32 %v4716
        %vm4723 = vmor %vm4721, %vm4722
        %v4724 = vsel %vm4723, %v4716, %v4720
        %v4725 = vand.u32 2147483647, %v4462
        %vm4726 = vcmp.eq.f32.partialorder %v4725, 8.507059e+37
        %v4727 = vand.u32 %v4462, 2147483648
        %v4728 = vor.u32 1.1754944e-38, %v4727
        %v4729 = vsel %vm4726, %v4728, %v4724
        %v4730 = vmul.f32 %v3182, %v4729
        %v4731 = vrcp.pop %v4463
        %v4732 = vmul.f32 %v4463, %v4731
        %v4733 = vsub.f32 1.0, %v4732
        %v4734 = vmul.f32 %v4731, %v4733
        %v4735 = vadd.f32 %v4731, %v4734
        %vm4736 = vweird.f32 %v4463
        %vm4737 = vweird.f32 %v4731
        %vm4738 = vmor %vm4736, %vm4737
        %v4739 = vsel %vm4738, %v4731, %v4735
        %v4740 = vand.u32 2147483647, %v4463
        %vm4741 = vcmp.eq.f32.partialorder %v4740, 8.507059e+37
        %v4742 = vand.u32 %v4463, 2147483648
        %v4743 = vor.u32 1.1754944e-38, %v4742
        %v4744 = vsel %vm4741, %v4743, %v4739
        %v4745 = vmul.f32 %v3183, %v4744
        %v4746 = vrcp.pop %v4464
        %v4747 = vmul.f32 %v4464, %v4746
        %v4748 = vsub.f32 1.0, %v4747
        %v4749 = vmul.f32 %v4746, %v4748
        %v4750 = vadd.f32 %v4746, %v4749
        %vm4751 = vweird.f32 %v4464
        %vm4752 = vweird.f32 %v4746
        %vm4753 = vmor %vm4751, %vm4752
        %v4754 = vsel %vm4753, %v4746, %v4750
        %v4755 = vand.u32 2147483647, %v4464
        %vm4756 = vcmp.eq.f32.partialorder %v4755, 8.507059e+37
        %v4757 = vand.u32 %v4464, 2147483648
        %v4758 = vor.u32 1.1754944e-38, %v4757
        %v4759 = vsel %vm4756, %v4758, %v4754
        %v4760 = vmul.f32 %v3184, %v4759
        %v4761 = vrcp.pop %v4465
        %v4762 = vmul.f32 %v4465, %v4761
        %v4763 = vsub.f32 1.0, %v4762
        %v4764 = vmul.f32 %v4761, %v4763
        %v4765 = vadd.f32 %v4761, %v4764
        %vm4766 = vweird.f32 %v4465
        %vm4767 = vweird.f32 %v4761
        %vm4768 = vmor %vm4766, %vm4767
        %v4769 = vsel %vm4768, %v4761, %v4765
        %v4770 = vand.u32 2147483647, %v4465
        %vm4771 = vcmp.eq.f32.partialorder %v4770, 8.507059e+37
        %v4772 = vand.u32 %v4465, 2147483648
        %v4773 = vor.u32 1.1754944e-38, %v4772
        %v4774 = vsel %vm4771, %v4773, %v4769
        %v4775 = vmul.f32 %v3185, %v4774
        %v4776 = vrcp.pop %v4466
        %v4777 = vmul.f32 %v4466, %v4776
        %v4778 = vsub.f32 1.0, %v4777
        %v4779 = vmul.f32 %v4776, %v4778
        %v4780 = vadd.f32 %v4776, %v4779
        %vm4781 = vweird.f32 %v4466
        %vm4782 = vweird.f32 %v4776
        %vm4783 = vmor %vm4781, %vm4782
        %v4784 = vsel %vm4783, %v4776, %v4780
        %v4785 = vand.u32 2147483647, %v4466
        %vm4786 = vcmp.eq.f32.partialorder %v4785, 8.507059e+37
        %v4787 = vand.u32 %v4466, 2147483648
        %v4788 = vor.u32 1.1754944e-38, %v4787
        %v4789 = vsel %vm4786, %v4788, %v4784
        %v4790 = vmul.f32 %v3186, %v4789
        %v4791 = vrcp.pop %v4467
        %v4792 = vmul.f32 %v4467, %v4791
        %v4793 = vsub.f32 1.0, %v4792
        %v4794 = vmul.f32 %v4791, %v4793
        %v4795 = vadd.f32 %v4791, %v4794
        %vm4796 = vweird.f32 %v4467
        %vm4797 = vweird.f32 %v4791
        %vm4798 = vmor %vm4796, %vm4797
        %v4799 = vsel %vm4798, %v4791, %v4795
        %v4800 = vand.u32 2147483647, %v4467
        %vm4801 = vcmp.eq.f32.partialorder %v4800, 8.507059e+37
        %v4802 = vand.u32 %v4467, 2147483648
        %v4803 = vor.u32 1.1754944e-38, %v4802
        %v4804 = vsel %vm4801, %v4803, %v4799
        %v4805 = vmul.f32 %v3187, %v4804
        %v4806 = vrcp.pop %v4468
        %v4807 = vmul.f32 %v4468, %v4806
        %v4808 = vsub.f32 1.0, %v4807
        %v4809 = vmul.f32 %v4806, %v4808
        %v4810 = vadd.f32 %v4806, %v4809
        %vm4811 = vweird.f32 %v4468
        %vm4812 = vweird.f32 %v4806
        %vm4813 = vmor %vm4811, %vm4812
        %v4814 = vsel %vm4813, %v4806, %v4810
        %v4815 = vand.u32 2147483647, %v4468
        %vm4816 = vcmp.eq.f32.partialorder %v4815, 8.507059e+37
        %v4817 = vand.u32 %v4468, 2147483648
        %v4818 = vor.u32 1.1754944e-38, %v4817
        %v4819 = vsel %vm4816, %v4818, %v4814
        %v4820 = vmul.f32 %v3188, %v4819
        %v4821 = vrcp.pop %v4469
        %v4822 = vmul.f32 %v4469, %v4821
        %v4823 = vsub.f32 1.0, %v4822
        %v4824 = vmul.f32 %v4821, %v4823
        %v4825 = vadd.f32 %v4821, %v4824
        %vm4826 = vweird.f32 %v4469
        %vm4827 = vweird.f32 %v4821
        %vm4828 = vmor %vm4826, %vm4827
        %v4829 = vsel %vm4828, %v4821, %v4825
        %v4830 = vand.u32 2147483647, %v4469
        %vm4831 = vcmp.eq.f32.partialorder %v4830, 8.507059e+37
        %v4832 = vand.u32 %v4469, 2147483648
        %v4833 = vor.u32 1.1754944e-38, %v4832
        %v4834 = vsel %vm4831, %v4833, %v4829
        %v4835 = vmul.f32 %v3189, %v4834
        %v4836 = vrcp.pop %v4470
        %v4837 = vmul.f32 %v4470, %v4836
        %v4838 = vsub.f32 1.0, %v4837
        %v4839 = vmul.f32 %v4836, %v4838
        %v4840 = vadd.f32 %v4836, %v4839
        %vm4841 = vweird.f32 %v4470
        %vm4842 = vweird.f32 %v4836
        %vm4843 = vmor %vm4841, %vm4842
        %v4844 = vsel %vm4843, %v4836, %v4840
        %v4845 = vand.u32 2147483647, %v4470
        %vm4846 = vcmp.eq.f32.partialorder %v4845, 8.507059e+37
        %v4847 = vand.u32 %v4470, 2147483648
        %v4848 = vor.u32 1.1754944e-38, %v4847
        %v4849 = vsel %vm4846, %v4848, %v4844
        %v4850 = vmul.f32 %v3190, %v4849
        %v4851 = vrcp.pop %v4471
        %v4852 = vmul.f32 %v4471, %v4851
        %v4853 = vsub.f32 1.0, %v4852
        %v4854 = vmul.f32 %v4851, %v4853
        %v4855 = vadd.f32 %v4851, %v4854
        %vm4856 = vweird.f32 %v4471
        %vm4857 = vweird.f32 %v4851
        %vm4858 = vmor %vm4856, %vm4857
        %v4859 = vsel %vm4858, %v4851, %v4855
        %v4860 = vand.u32 2147483647, %v4471
        %vm4861 = vcmp.eq.f32.partialorder %v4860, 8.507059e+37
        %v4862 = vand.u32 %v4471, 2147483648
        %v4863 = vor.u32 1.1754944e-38, %v4862
        %v4864 = vsel %vm4861, %v4863, %v4859
        %v4865 = vmul.f32 %v3191, %v4864
        %v4866 = vrcp.pop %v4472
        %v4867 = vmul.f32 %v4472, %v4866
        %v4868 = vsub.f32 1.0, %v4867
        %v4869 = vmul.f32 %v4866, %v4868
        %v4870 = vadd.f32 %v4866, %v4869
        %vm4871 = vweird.f32 %v4472
        %vm4872 = vweird.f32 %v4866
        %vm4873 = vmor %vm4871, %vm4872
        %v4874 = vsel %vm4873, %v4866, %v4870
        %v4875 = vand.u32 2147483647, %v4472
        %vm4876 = vcmp.eq.f32.partialorder %v4875, 8.507059e+37
        %v4877 = vand.u32 %v4472, 2147483648
        %v4878 = vor.u32 1.1754944e-38, %v4877
        %v4879 = vsel %vm4876, %v4878, %v4874
        %v4880 = vmul.f32 %v3192, %v4879
        %v4881 = vrcp.pop %v4473
        %v4882 = vmul.f32 %v4473, %v4881
        %v4883 = vsub.f32 1.0, %v4882
        %v4884 = vmul.f32 %v4881, %v4883
        %v4885 = vadd.f32 %v4881, %v4884
        %vm4886 = vweird.f32 %v4473
        %vm4887 = vweird.f32 %v4881
        %vm4888 = vmor %vm4886, %vm4887
        %v4889 = vsel %vm4888, %v4881, %v4885
        %v4890 = vand.u32 2147483647, %v4473
        %vm4891 = vcmp.eq.f32.partialorder %v4890, 8.507059e+37
        %v4892 = vand.u32 %v4473, 2147483648
        %v4893 = vor.u32 1.1754944e-38, %v4892
        %v4894 = vsel %vm4891, %v4893, %v4889
        %v4895 = vmul.f32 %v3193, %v4894
        %v4896 = vrcp.pop %v4474
        %v4897 = vmul.f32 %v4474, %v4896
        %v4898 = vsub.f32 1.0, %v4897
        %v4899 = vmul.f32 %v4896, %v4898
        %v4900 = vadd.f32 %v4896, %v4899
        %vm4901 = vweird.f32 %v4474
        %vm4902 = vweird.f32 %v4896
        %vm4903 = vmor %vm4901, %vm4902
        %v4904 = vsel %vm4903, %v4896, %v4900
        %v4905 = vand.u32 2147483647, %v4474
        %vm4906 = vcmp.eq.f32.partialorder %v4905, 8.507059e+37
        %v4907 = vand.u32 %v4474, 2147483648
        %v4908 = vor.u32 1.1754944e-38, %v4907
        %v4909 = vsel %vm4906, %v4908, %v4904
        %v4910 = vmul.f32 %v3194, %v4909
        %v4911 = vrcp.pop %v4475
        %v4912 = vmul.f32 %v4475, %v4911
        %v4913 = vsub.f32 1.0, %v4912
        %v4914 = vmul.f32 %v4911, %v4913
        %v4915 = vadd.f32 %v4911, %v4914
        %vm4916 = vweird.f32 %v4475
        %vm4917 = vweird.f32 %v4911
        %vm4918 = vmor %vm4916, %vm4917
        %v4919 = vsel %vm4918, %v4911, %v4915
        %v4920 = vand.u32 2147483647, %v4475
        %vm4921 = vcmp.eq.f32.partialorder %v4920, 8.507059e+37
        %v4922 = vand.u32 %v4475, 2147483648
        %v4923 = vor.u32 1.1754944e-38, %v4922
        %v4924 = vsel %vm4921, %v4923, %v4919
        %v4925 = vmul.f32 %v3195, %v4924
        %v4926 = vrcp.pop %v4476
        %v4927 = vmul.f32 %v4476, %v4926
        %v4928 = vsub.f32 1.0, %v4927
        %v4929 = vmul.f32 %v4926, %v4928
        %v4930 = vadd.f32 %v4926, %v4929
        %vm4931 = vweird.f32 %v4476
        %vm4932 = vweird.f32 %v4926
        %vm4933 = vmor %vm4931, %vm4932
        %v4934 = vsel %vm4933, %v4926, %v4930
        %v4935 = vand.u32 2147483647, %v4476
        %vm4936 = vcmp.eq.f32.partialorder %v4935, 8.507059e+37
        %v4937 = vand.u32 %v4476, 2147483648
        %v4938 = vor.u32 1.1754944e-38, %v4937
        %v4939 = vsel %vm4936, %v4938, %v4934
        %v4940 = vmul.f32 %v3196, %v4939
        %v4941 = vrcp.pop %v4477
        %v4942 = vmul.f32 %v4477, %v4941
        %v4943 = vsub.f32 1.0, %v4942
        %v4944 = vmul.f32 %v4941, %v4943
        %v4945 = vadd.f32 %v4941, %v4944
        %vm4946 = vweird.f32 %v4477
        %vm4947 = vweird.f32 %v4941
        %vm4948 = vmor %vm4946, %vm4947
        %v4949 = vsel %vm4948, %v4941, %v4945
        %v4950 = vand.u32 2147483647, %v4477
        %vm4951 = vcmp.eq.f32.partialorder %v4950, 8.507059e+37
        %v4952 = vand.u32 %v4477, 2147483648
        %v4953 = vor.u32 1.1754944e-38, %v4952
        %v4954 = vsel %vm4951, %v4953, %v4949
        %v4955 = vmul.f32 %v3197, %v4954
        %v4956 = vrcp.pop %v4478
        %v4957 = vmul.f32 %v4478, %v4956
        %v4958 = vsub.f32 1.0, %v4957
        %v4959 = vmul.f32 %v4956, %v4958
        %v4960 = vadd.f32 %v4956, %v4959
        %vm4961 = vweird.f32 %v4478
        %vm4962 = vweird.f32 %v4956
        %vm4963 = vmor %vm4961, %vm4962
        %v4964 = vsel %vm4963, %v4956, %v4960
        %v4965 = vand.u32 2147483647, %v4478
        %vm4966 = vcmp.eq.f32.partialorder %v4965, 8.507059e+37
        %v4967 = vand.u32 %v4478, 2147483648
        %v4968 = vor.u32 1.1754944e-38, %v4967
        %v4969 = vsel %vm4966, %v4968, %v4964
        %v4970 = vmul.f32 %v3198, %v4969
        %v4971 = vrcp.pop %v4479
        %v4972 = vmul.f32 %v4479, %v4971
        %v4973 = vsub.f32 1.0, %v4972
        %v4974 = vmul.f32 %v4971, %v4973
        %v4975 = vadd.f32 %v4971, %v4974
        %vm4976 = vweird.f32 %v4479
        %vm4977 = vweird.f32 %v4971
        %vm4978 = vmor %vm4976, %vm4977
        %v4979 = vsel %vm4978, %v4971, %v4975
        %v4980 = vand.u32 2147483647, %v4479
        %vm4981 = vcmp.eq.f32.partialorder %v4980, 8.507059e+37
        %v4982 = vand.u32 %v4479, 2147483648
        %v4983 = vor.u32 1.1754944e-38, %v4982
        %v4984 = vsel %vm4981, %v4983, %v4979
        %v4985 = vmul.f32 %v3199, %v4984
        %v4986 = vrcp.pop %v4480
        %v4987 = vmul.f32 %v4480, %v4986
        %v4988 = vsub.f32 1.0, %v4987
        %v4989 = vmul.f32 %v4986, %v4988
        %v4990 = vadd.f32 %v4986, %v4989
        %vm4991 = vweird.f32 %v4480
        %vm4992 = vweird.f32 %v4986
        %vm4993 = vmor %vm4991, %vm4992
        %v4994 = vsel %vm4993, %v4986, %v4990
        %v4995 = vand.u32 2147483647, %v4480
        %vm4996 = vcmp.eq.f32.partialorder %v4995, 8.507059e+37
        %v4997 = vand.u32 %v4480, 2147483648
        %v4998 = vor.u32 1.1754944e-38, %v4997
        %v4999 = vsel %vm4996, %v4998, %v4994
        %v5000 = vmul.f32 %v3200, %v4999
        %v5001 = vrcp.pop %v4481
        %v5002 = vmul.f32 %v4481, %v5001
        %v5003 = vsub.f32 1.0, %v5002
        %v5004 = vmul.f32 %v5001, %v5003
        %v5005 = vadd.f32 %v5001, %v5004
        %vm5006 = vweird.f32 %v4481
        %vm5007 = vweird.f32 %v5001
        %vm5008 = vmor %vm5006, %vm5007
        %v5009 = vsel %vm5008, %v5001, %v5005
        %v5010 = vand.u32 2147483647, %v4481
        %vm5011 = vcmp.eq.f32.partialorder %v5010, 8.507059e+37
        %v5012 = vand.u32 %v4481, 2147483648
        %v5013 = vor.u32 1.1754944e-38, %v5012
        %v5014 = vsel %vm5011, %v5013, %v5009
        %v5015 = vmul.f32 %v3201, %v5014
        %v5016 = vrcp.pop %v4482
        %v5017 = vmul.f32 %v4482, %v5016
        %v5018 = vsub.f32 1.0, %v5017
        %v5019 = vmul.f32 %v5016, %v5018
        %v5020 = vadd.f32 %v5016, %v5019
        %vm5021 = vweird.f32 %v4482
        %vm5022 = vweird.f32 %v5016
        %vm5023 = vmor %vm5021, %vm5022
        %v5024 = vsel %vm5023, %v5016, %v5020
        %v5025 = vand.u32 2147483647, %v4482
        %vm5026 = vcmp.eq.f32.partialorder %v5025, 8.507059e+37
        %v5027 = vand.u32 %v4482, 2147483648
        %v5028 = vor.u32 1.1754944e-38, %v5027
        %v5029 = vsel %vm5026, %v5028, %v5024
        %v5030 = vmul.f32 %v3202, %v5029
        %v5031 = vrcp.pop %v4483
        %v5032 = vmul.f32 %v4483, %v5031
        %v5033 = vsub.f32 1.0, %v5032
        %v5034 = vmul.f32 %v5031, %v5033
        %v5035 = vadd.f32 %v5031, %v5034
        %vm5036 = vweird.f32 %v4483
        %vm5037 = vweird.f32 %v5031
        %vm5038 = vmor %vm5036, %vm5037
        %v5039 = vsel %vm5038, %v5031, %v5035
        %v5040 = vand.u32 2147483647, %v4483
        %vm5041 = vcmp.eq.f32.partialorder %v5040, 8.507059e+37
        %v5042 = vand.u32 %v4483, 2147483648
        %v5043 = vor.u32 1.1754944e-38, %v5042
        %v5044 = vsel %vm5041, %v5043, %v5039
        %v5045 = vmul.f32 %v3203, %v5044
        %v5046 = vrcp.pop %v4484
        %v5047 = vmul.f32 %v4484, %v5046
        %v5048 = vsub.f32 1.0, %v5047
        %v5049 = vmul.f32 %v5046, %v5048
        %v5050 = vadd.f32 %v5046, %v5049
        %vm5051 = vweird.f32 %v4484
        %vm5052 = vweird.f32 %v5046
        %vm5053 = vmor %vm5051, %vm5052
        %v5054 = vsel %vm5053, %v5046, %v5050
        %v5055 = vand.u32 2147483647, %v4484
        %vm5056 = vcmp.eq.f32.partialorder %v5055, 8.507059e+37
        %v5057 = vand.u32 %v4484, 2147483648
        %v5058 = vor.u32 1.1754944e-38, %v5057
        %v5059 = vsel %vm5056, %v5058, %v5054
        %v5060 = vmul.f32 %v3204, %v5059
        %v5061 = vrcp.pop %v4485
        %v5062 = vmul.f32 %v4485, %v5061
        %v5063 = vsub.f32 1.0, %v5062
        %v5064 = vmul.f32 %v5061, %v5063
        %v5065 = vadd.f32 %v5061, %v5064
        %vm5066 = vweird.f32 %v4485
        %vm5067 = vweird.f32 %v5061
        %vm5068 = vmor %vm5066, %vm5067
        %v5069 = vsel %vm5068, %v5061, %v5065
        %v5070 = vand.u32 2147483647, %v4485
        %vm5071 = vcmp.eq.f32.partialorder %v5070, 8.507059e+37
        %v5072 = vand.u32 %v4485, 2147483648
        %v5073 = vor.u32 1.1754944e-38, %v5072
        %v5074 = vsel %vm5071, %v5073, %v5069
        %v5075 = vmul.f32 %v3205, %v5074
        %v5076 = vrcp.pop %v4486
        %v5077 = vmul.f32 %v4486, %v5076
        %v5078 = vsub.f32 1.0, %v5077
        %v5079 = vmul.f32 %v5076, %v5078
        %v5080 = vadd.f32 %v5076, %v5079
        %vm5081 = vweird.f32 %v4486
        %vm5082 = vweird.f32 %v5076
        %vm5083 = vmor %vm5081, %vm5082
        %v5084 = vsel %vm5083, %v5076, %v5080
        %v5085 = vand.u32 2147483647, %v4486
        %vm5086 = vcmp.eq.f32.partialorder %v5085, 8.507059e+37
        %v5087 = vand.u32 %v4486, 2147483648
        %v5088 = vor.u32 1.1754944e-38, %v5087
        %v5089 = vsel %vm5086, %v5088, %v5084
        %v5090 = vmul.f32 %v3206, %v5089
        %v5091 = vrcp.pop %v4487
        %v5092 = vmul.f32 %v4487, %v5091
        %v5093 = vsub.f32 1.0, %v5092
        %v5094 = vmul.f32 %v5091, %v5093
        %v5095 = vadd.f32 %v5091, %v5094
        %vm5096 = vweird.f32 %v4487
        %vm5097 = vweird.f32 %v5091
        %vm5098 = vmor %vm5096, %vm5097
        %v5099 = vsel %vm5098, %v5091, %v5095
        %v5100 = vand.u32 2147483647, %v4487
        %vm5101 = vcmp.eq.f32.partialorder %v5100, 8.507059e+37
        %v5102 = vand.u32 %v4487, 2147483648
        %v5103 = vor.u32 1.1754944e-38, %v5102
        %v5104 = vsel %vm5101, %v5103, %v5099
        %v5105 = vmul.f32 %v3207, %v5104
        %v5106 = vrcp.pop %v4488
        %v5107 = vmul.f32 %v4488, %v5106
        %v5108 = vsub.f32 1.0, %v5107
        %v5109 = vmul.f32 %v5106, %v5108
        %v5110 = vadd.f32 %v5106, %v5109
        %vm5111 = vweird.f32 %v4488
        %vm5112 = vweird.f32 %v5106
        %vm5113 = vmor %vm5111, %vm5112
        %v5114 = vsel %vm5113, %v5106, %v5110
        %v5115 = vand.u32 2147483647, %v4488
        %vm5116 = vcmp.eq.f32.partialorder %v5115, 8.507059e+37
        %v5117 = vand.u32 %v4488, 2147483648
        %v5118 = vor.u32 1.1754944e-38, %v5117
        %v5119 = vsel %vm5116, %v5118, %v5114
        %v5120 = vmul.f32 %v3208, %v5119
        %v5121 = vrcp.pop %v4489
        %v5122 = vmul.f32 %v4489, %v5121
        %v5123 = vsub.f32 1.0, %v5122
        %v5124 = vmul.f32 %v5121, %v5123
        %v5125 = vadd.f32 %v5121, %v5124
        %vm5126 = vweird.f32 %v4489
        %vm5127 = vweird.f32 %v5121
        %vm5128 = vmor %vm5126, %vm5127
        %v5129 = vsel %vm5128, %v5121, %v5125
        %v5130 = vand.u32 2147483647, %v4489
        %vm5131 = vcmp.eq.f32.partialorder %v5130, 8.507059e+37
        %v5132 = vand.u32 %v4489, 2147483648
        %v5133 = vor.u32 1.1754944e-38, %v5132
        %v5134 = vsel %vm5131, %v5133, %v5129
        %v5135 = vmul.f32 %v3209, %v5134
        %v5136 = vrcp.pop %v4490
        %v5137 = vmul.f32 %v4490, %v5136
        %v5138 = vsub.f32 1.0, %v5137
        %v5139 = vmul.f32 %v5136, %v5138
        %v5140 = vadd.f32 %v5136, %v5139
        %vm5141 = vweird.f32 %v4490
        %vm5142 = vweird.f32 %v5136
        %vm5143 = vmor %vm5141, %vm5142
        %v5144 = vsel %vm5143, %v5136, %v5140
        %v5145 = vand.u32 2147483647, %v4490
        %vm5146 = vcmp.eq.f32.partialorder %v5145, 8.507059e+37
        %v5147 = vand.u32 %v4490, 2147483648
        %v5148 = vor.u32 1.1754944e-38, %v5147
        %v5149 = vsel %vm5146, %v5148, %v5144
        %v5150 = vmul.f32 %v3210, %v5149
        %v5151 = vrcp.pop %v4491
        %v5152 = vmul.f32 %v4491, %v5151
        %v5153 = vsub.f32 1.0, %v5152
        %v5154 = vmul.f32 %v5151, %v5153
        %v5155 = vadd.f32 %v5151, %v5154
        %vm5156 = vweird.f32 %v4491
        %vm5157 = vweird.f32 %v5151
        %vm5158 = vmor %vm5156, %vm5157
        %v5159 = vsel %vm5158, %v5151, %v5155
        %v5160 = vand.u32 2147483647, %v4491
        %vm5161 = vcmp.eq.f32.partialorder %v5160, 8.507059e+37
        %v5162 = vand.u32 %v4491, 2147483648
        %v5163 = vor.u32 1.1754944e-38, %v5162
        %v5164 = vsel %vm5161, %v5163, %v5159
        %v5165 = vmul.f32 %v3211, %v5164
        %v5166 = vrcp.pop %v4492
        %v5167 = vmul.f32 %v4492, %v5166
        %v5168 = vsub.f32 1.0, %v5167
        %v5169 = vmul.f32 %v5166, %v5168
        %v5170 = vadd.f32 %v5166, %v5169
        %vm5171 = vweird.f32 %v4492
        %vm5172 = vweird.f32 %v5166
        %vm5173 = vmor %vm5171, %vm5172
        %v5174 = vsel %vm5173, %v5166, %v5170
        %v5175 = vand.u32 2147483647, %v4492
        %vm5176 = vcmp.eq.f32.partialorder %v5175, 8.507059e+37
        %v5177 = vand.u32 %v4492, 2147483648
        %v5178 = vor.u32 1.1754944e-38, %v5177
        %v5179 = vsel %vm5176, %v5178, %v5174
        %v5180 = vmul.f32 %v3212, %v5179
        %v5181 = vrcp.pop %v4493
        %v5182 = vmul.f32 %v4493, %v5181
        %v5183 = vsub.f32 1.0, %v5182
        %v5184 = vmul.f32 %v5181, %v5183
        %v5185 = vadd.f32 %v5181, %v5184
        %vm5186 = vweird.f32 %v4493
        %vm5187 = vweird.f32 %v5181
        %vm5188 = vmor %vm5186, %vm5187
        %v5189 = vsel %vm5188, %v5181, %v5185
        %v5190 = vand.u32 2147483647, %v4493
        %vm5191 = vcmp.eq.f32.partialorder %v5190, 8.507059e+37
        %v5192 = vand.u32 %v4493, 2147483648
        %v5193 = vor.u32 1.1754944e-38, %v5192
        %v5194 = vsel %vm5191, %v5193, %v5189
        %v5195 = vmul.f32 %v3213, %v5194
        %v5196 = vrcp.pop %v4494
        %v5197 = vmul.f32 %v4494, %v5196
        %v5198 = vsub.f32 1.0, %v5197
        %v5199 = vmul.f32 %v5196, %v5198
        %v5200 = vadd.f32 %v5196, %v5199
        %vm5201 = vweird.f32 %v4494
        %vm5202 = vweird.f32 %v5196
        %vm5203 = vmor %vm5201, %vm5202
        %v5204 = vsel %vm5203, %v5196, %v5200
        %v5205 = vand.u32 2147483647, %v4494
        %vm5206 = vcmp.eq.f32.partialorder %v5205, 8.507059e+37
        %v5207 = vand.u32 %v4494, 2147483648
        %v5208 = vor.u32 1.1754944e-38, %v5207
        %v5209 = vsel %vm5206, %v5208, %v5204
        %v5210 = vmul.f32 %v3214, %v5209
        %v5211 = vrcp.pop %v4495
        %v5212 = vmul.f32 %v4495, %v5211
        %v5213 = vsub.f32 1.0, %v5212
        %v5214 = vmul.f32 %v5211, %v5213
        %v5215 = vadd.f32 %v5211, %v5214
        %vm5216 = vweird.f32 %v4495
        %vm5217 = vweird.f32 %v5211
        %vm5218 = vmor %vm5216, %vm5217
        %v5219 = vsel %vm5218, %v5211, %v5215
        %v5220 = vand.u32 2147483647, %v4495
        %vm5221 = vcmp.eq.f32.partialorder %v5220, 8.507059e+37
        %v5222 = vand.u32 %v4495, 2147483648
        %v5223 = vor.u32 1.1754944e-38, %v5222
        %v5224 = vsel %vm5221, %v5223, %v5219
        %v5225 = vmul.f32 %v3215, %v5224
        %v5226 = vrcp.pop %v4496
        %v5227 = vmul.f32 %v4496, %v5226
        %v5228 = vsub.f32 1.0, %v5227
        %v5229 = vmul.f32 %v5226, %v5228
        %v5230 = vadd.f32 %v5226, %v5229
        %vm5231 = vweird.f32 %v4496
        %vm5232 = vweird.f32 %v5226
        %vm5233 = vmor %vm5231, %vm5232
        %v5234 = vsel %vm5233, %v5226, %v5230
        %v5235 = vand.u32 2147483647, %v4496
        %vm5236 = vcmp.eq.f32.partialorder %v5235, 8.507059e+37
        %v5237 = vand.u32 %v4496, 2147483648
        %v5238 = vor.u32 1.1754944e-38, %v5237
        %v5239 = vsel %vm5236, %v5238, %v5234
        %v5240 = vmul.f32 %v3216, %v5239
        %v5241 = vrcp.pop %v4497
        %v5242 = vmul.f32 %v4497, %v5241
        %v5243 = vsub.f32 1.0, %v5242
        %v5244 = vmul.f32 %v5241, %v5243
        %v5245 = vadd.f32 %v5241, %v5244
        %vm5246 = vweird.f32 %v4497
        %vm5247 = vweird.f32 %v5241
        %vm5248 = vmor %vm5246, %vm5247
        %v5249 = vsel %vm5248, %v5241, %v5245
        %v5250 = vand.u32 2147483647, %v4497
        %vm5251 = vcmp.eq.f32.partialorder %v5250, 8.507059e+37
        %v5252 = vand.u32 %v4497, 2147483648
        %v5253 = vor.u32 1.1754944e-38, %v5252
        %v5254 = vsel %vm5251, %v5253, %v5249
        %v5255 = vmul.f32 %v3217, %v5254
        %v5256 = vrcp.pop %v4498
        %v5257 = vmul.f32 %v4498, %v5256
        %v5258 = vsub.f32 1.0, %v5257
        %v5259 = vmul.f32 %v5256, %v5258
        %v5260 = vadd.f32 %v5256, %v5259
        %vm5261 = vweird.f32 %v4498
        %vm5262 = vweird.f32 %v5256
        %vm5263 = vmor %vm5261, %vm5262
        %v5264 = vsel %vm5263, %v5256, %v5260
        %v5265 = vand.u32 2147483647, %v4498
        %vm5266 = vcmp.eq.f32.partialorder %v5265, 8.507059e+37
        %v5267 = vand.u32 %v4498, 2147483648
        %v5268 = vor.u32 1.1754944e-38, %v5267
        %v5269 = vsel %vm5266, %v5268, %v5264
        %v5270 = vmul.f32 %v3218, %v5269
        %v5271 = vrcp.pop %v4499
        %v5272 = vmul.f32 %v4499, %v5271
        %v5273 = vsub.f32 1.0, %v5272
        %v5274 = vmul.f32 %v5271, %v5273
        %v5275 = vadd.f32 %v5271, %v5274
        %vm5276 = vweird.f32 %v4499
        %vm5277 = vweird.f32 %v5271
        %vm5278 = vmor %vm5276, %vm5277
        %v5279 = vsel %vm5278, %v5271, %v5275
        %v5280 = vand.u32 2147483647, %v4499
        %vm5281 = vcmp.eq.f32.partialorder %v5280, 8.507059e+37
        %v5282 = vand.u32 %v4499, 2147483648
        %v5283 = vor.u32 1.1754944e-38, %v5282
        %v5284 = vsel %vm5281, %v5283, %v5279
        %v5285 = vmul.f32 %v3219, %v5284
        %v5286 = vrcp.pop %v4500
        %v5287 = vmul.f32 %v4500, %v5286
        %v5288 = vsub.f32 1.0, %v5287
        %v5289 = vmul.f32 %v5286, %v5288
        %v5290 = vadd.f32 %v5286, %v5289
        %vm5291 = vweird.f32 %v4500
        %vm5292 = vweird.f32 %v5286
        %vm5293 = vmor %vm5291, %vm5292
        %v5294 = vsel %vm5293, %v5286, %v5290
        %v5295 = vand.u32 2147483647, %v4500
        %vm5296 = vcmp.eq.f32.partialorder %v5295, 8.507059e+37
        %v5297 = vand.u32 %v4500, 2147483648
        %v5298 = vor.u32 1.1754944e-38, %v5297
        %v5299 = vsel %vm5296, %v5298, %v5294
        %v5300 = vmul.f32 %v3220, %v5299
        %v5301 = vrcp.pop %v4501
        %v5302 = vmul.f32 %v4501, %v5301
        %v5303 = vsub.f32 1.0, %v5302
        %v5304 = vmul.f32 %v5301, %v5303
        %v5305 = vadd.f32 %v5301, %v5304
        %vm5306 = vweird.f32 %v4501
        %vm5307 = vweird.f32 %v5301
        %vm5308 = vmor %vm5306, %vm5307
        %v5309 = vsel %vm5308, %v5301, %v5305
        %v5310 = vand.u32 2147483647, %v4501
        %vm5311 = vcmp.eq.f32.partialorder %v5310, 8.507059e+37
        %v5312 = vand.u32 %v4501, 2147483648
        %v5313 = vor.u32 1.1754944e-38, %v5312
        %v5314 = vsel %vm5311, %v5313, %v5309
        %v5315 = vmul.f32 %v3221, %v5314
        %v5316 = vrcp.pop %v4502
        %v5317 = vmul.f32 %v4502, %v5316
        %v5318 = vsub.f32 1.0, %v5317
        %v5319 = vmul.f32 %v5316, %v5318
        %v5320 = vadd.f32 %v5316, %v5319
        %vm5321 = vweird.f32 %v4502
        %vm5322 = vweird.f32 %v5316
        %vm5323 = vmor %vm5321, %vm5322
        %v5324 = vsel %vm5323, %v5316, %v5320
        %v5325 = vand.u32 2147483647, %v4502
        %vm5326 = vcmp.eq.f32.partialorder %v5325, 8.507059e+37
        %v5327 = vand.u32 %v4502, 2147483648
        %v5328 = vor.u32 1.1754944e-38, %v5327
        %v5329 = vsel %vm5326, %v5328, %v5324
        %v5330 = vmul.f32 %v3222, %v5329
        %v5331 = vrcp.pop %v4503
        %v5332 = vmul.f32 %v4503, %v5331
        %v5333 = vsub.f32 1.0, %v5332
        %v5334 = vmul.f32 %v5331, %v5333
        %v5335 = vadd.f32 %v5331, %v5334
        %vm5336 = vweird.f32 %v4503
        %vm5337 = vweird.f32 %v5331
        %vm5338 = vmor %vm5336, %vm5337
        %v5339 = vsel %vm5338, %v5331, %v5335
        %v5340 = vand.u32 2147483647, %v4503
        %vm5341 = vcmp.eq.f32.partialorder %v5340, 8.507059e+37
        %v5342 = vand.u32 %v4503, 2147483648
        %v5343 = vor.u32 1.1754944e-38, %v5342
        %v5344 = vsel %vm5341, %v5343, %v5339
        %v5345 = vmul.f32 %v3223, %v5344
        %v5346 = vrcp.pop %v4504
        %v5347 = vmul.f32 %v4504, %v5346
        %v5348 = vsub.f32 1.0, %v5347
        %v5349 = vmul.f32 %v5346, %v5348
        %v5350 = vadd.f32 %v5346, %v5349
        %vm5351 = vweird.f32 %v4504
        %vm5352 = vweird.f32 %v5346
        %vm5353 = vmor %vm5351, %vm5352
        %v5354 = vsel %vm5353, %v5346, %v5350
        %v5355 = vand.u32 2147483647, %v4504
        %vm5356 = vcmp.eq.f32.partialorder %v5355, 8.507059e+37
        %v5357 = vand.u32 %v4504, 2147483648
        %v5358 = vor.u32 1.1754944e-38, %v5357
        %v5359 = vsel %vm5356, %v5358, %v5354
        %v5360 = vmul.f32 %v3224, %v5359
        %v5361 = vrcp.pop %v4505
        %v5362 = vmul.f32 %v4505, %v5361
        %v5363 = vsub.f32 1.0, %v5362
        %v5364 = vmul.f32 %v5361, %v5363
        %v5365 = vadd.f32 %v5361, %v5364
        %vm5366 = vweird.f32 %v4505
        %vm5367 = vweird.f32 %v5361
        %vm5368 = vmor %vm5366, %vm5367
        %v5369 = vsel %vm5368, %v5361, %v5365
        %v5370 = vand.u32 2147483647, %v4505
        %vm5371 = vcmp.eq.f32.partialorder %v5370, 8.507059e+37
        %v5372 = vand.u32 %v4505, 2147483648
        %v5373 = vor.u32 1.1754944e-38, %v5372
        %v5374 = vsel %vm5371, %v5373, %v5369
        %v5375 = vmul.f32 %v3225, %v5374
        %v5376 = vrcp.pop %v4506
        %v5377 = vmul.f32 %v4506, %v5376
        %v5378 = vsub.f32 1.0, %v5377
        %v5379 = vmul.f32 %v5376, %v5378
        %v5380 = vadd.f32 %v5376, %v5379
        %vm5381 = vweird.f32 %v4506
        %vm5382 = vweird.f32 %v5376
        %vm5383 = vmor %vm5381, %vm5382
        %v5384 = vsel %vm5383, %v5376, %v5380
        %v5385 = vand.u32 2147483647, %v4506
        %vm5386 = vcmp.eq.f32.partialorder %v5385, 8.507059e+37
        %v5387 = vand.u32 %v4506, 2147483648
        %v5388 = vor.u32 1.1754944e-38, %v5387
        %v5389 = vsel %vm5386, %v5388, %v5384
        %v5390 = vmul.f32 %v3226, %v5389
        %v5391 = vrcp.pop %v4507
        %v5392 = vmul.f32 %v4507, %v5391
        %v5393 = vsub.f32 1.0, %v5392
        %v5394 = vmul.f32 %v5391, %v5393
        %v5395 = vadd.f32 %v5391, %v5394
        %vm5396 = vweird.f32 %v4507
        %vm5397 = vweird.f32 %v5391
        %vm5398 = vmor %vm5396, %vm5397
        %v5399 = vsel %vm5398, %v5391, %v5395
        %v5400 = vand.u32 2147483647, %v4507
        %vm5401 = vcmp.eq.f32.partialorder %v5400, 8.507059e+37
        %v5402 = vand.u32 %v4507, 2147483648
        %v5403 = vor.u32 1.1754944e-38, %v5402
        %v5404 = vsel %vm5401, %v5403, %v5399
        %v5405 = vmul.f32 %v3227, %v5404
        %v5406 = vrcp.pop %v4508
        %v5407 = vmul.f32 %v4508, %v5406
        %v5408 = vsub.f32 1.0, %v5407
        %v5409 = vmul.f32 %v5406, %v5408
        %v5410 = vadd.f32 %v5406, %v5409
        %vm5411 = vweird.f32 %v4508
        %vm5412 = vweird.f32 %v5406
        %vm5413 = vmor %vm5411, %vm5412
        %v5414 = vsel %vm5413, %v5406, %v5410
        %v5415 = vand.u32 2147483647, %v4508
        %vm5416 = vcmp.eq.f32.partialorder %v5415, 8.507059e+37
        %v5417 = vand.u32 %v4508, 2147483648
        %v5418 = vor.u32 1.1754944e-38, %v5417
        %v5419 = vsel %vm5416, %v5418, %v5414
        %v5420 = vmul.f32 %v3228, %v5419
        %v5421 = vrcp.pop %v4509
        %v5422 = vmul.f32 %v4509, %v5421
        %v5423 = vsub.f32 1.0, %v5422
        %v5424 = vmul.f32 %v5421, %v5423
        %v5425 = vadd.f32 %v5421, %v5424
        %vm5426 = vweird.f32 %v4509
        %vm5427 = vweird.f32 %v5421
        %vm5428 = vmor %vm5426, %vm5427
        %v5429 = vsel %vm5428, %v5421, %v5425
        %v5430 = vand.u32 2147483647, %v4509
        %vm5431 = vcmp.eq.f32.partialorder %v5430, 8.507059e+37
        %v5432 = vand.u32 %v4509, 2147483648
        %v5433 = vor.u32 1.1754944e-38, %v5432
        %v5434 = vsel %vm5431, %v5433, %v5429
        %v5435 = vmul.f32 %v3229, %v5434
        %v5436 = vrcp.pop %v4510
        %v5437 = vmul.f32 %v4510, %v5436
        %v5438 = vsub.f32 1.0, %v5437
        %v5439 = vmul.f32 %v5436, %v5438
        %v5440 = vadd.f32 %v5436, %v5439
        %vm5441 = vweird.f32 %v4510
        %vm5442 = vweird.f32 %v5436
        %vm5443 = vmor %vm5441, %vm5442
        %v5444 = vsel %vm5443, %v5436, %v5440
        %v5445 = vand.u32 2147483647, %v4510
        %vm5446 = vcmp.eq.f32.partialorder %v5445, 8.507059e+37
        %v5447 = vand.u32 %v4510, 2147483648
        %v5448 = vor.u32 1.1754944e-38, %v5447
        %v5449 = vsel %vm5446, %v5448, %v5444
        %v5450 = vmul.f32 %v3230, %v5449
        %v5451 = vrcp.pop %v4511
        %v5452 = vmul.f32 %v4511, %v5451
        %v5453 = vsub.f32 1.0, %v5452
        %v5454 = vmul.f32 %v5451, %v5453
        %v5455 = vadd.f32 %v5451, %v5454
        %vm5456 = vweird.f32 %v4511
        %vm5457 = vweird.f32 %v5451
        %vm5458 = vmor %vm5456, %vm5457
        %v5459 = vsel %vm5458, %v5451, %v5455
        %v5460 = vand.u32 2147483647, %v4511
        %vm5461 = vcmp.eq.f32.partialorder %v5460, 8.507059e+37
        %v5462 = vand.u32 %v4511, 2147483648
        %v5463 = vor.u32 1.1754944e-38, %v5462
        %v5464 = vsel %vm5461, %v5463, %v5459
        %v5465 = vmul.f32 %v3231, %v5464
        %v5466 = vrcp.pop %v4512
        %v5467 = vmul.f32 %v4512, %v5466
        %v5468 = vsub.f32 1.0, %v5467
        %v5469 = vmul.f32 %v5466, %v5468
        %v5470 = vadd.f32 %v5466, %v5469
        %vm5471 = vweird.f32 %v4512
        %vm5472 = vweird.f32 %v5466
        %vm5473 = vmor %vm5471, %vm5472
        %v5474 = vsel %vm5473, %v5466, %v5470
        %v5475 = vand.u32 2147483647, %v4512
        %vm5476 = vcmp.eq.f32.partialorder %v5475, 8.507059e+37
        %v5477 = vand.u32 %v4512, 2147483648
        %v5478 = vor.u32 1.1754944e-38, %v5477
        %v5479 = vsel %vm5476, %v5478, %v5474
        %v5480 = vmul.f32 %v3232, %v5479
        %v5481 = vrcp.pop %v4513
        %v5482 = vmul.f32 %v4513, %v5481
        %v5483 = vsub.f32 1.0, %v5482
        %v5484 = vmul.f32 %v5481, %v5483
        %v5485 = vadd.f32 %v5481, %v5484
        %vm5486 = vweird.f32 %v4513
        %vm5487 = vweird.f32 %v5481
        %vm5488 = vmor %vm5486, %vm5487
        %v5489 = vsel %vm5488, %v5481, %v5485
        %v5490 = vand.u32 2147483647, %v4513
        %vm5491 = vcmp.eq.f32.partialorder %v5490, 8.507059e+37
        %v5492 = vand.u32 %v4513, 2147483648
        %v5493 = vor.u32 1.1754944e-38, %v5492
        %v5494 = vsel %vm5491, %v5493, %v5489
        %v5495 = vmul.f32 %v3233, %v5494
        %v5496 = vrcp.pop %v4514
        %v5497 = vmul.f32 %v4514, %v5496
        %v5498 = vsub.f32 1.0, %v5497
        %v5499 = vmul.f32 %v5496, %v5498
        %v5500 = vadd.f32 %v5496, %v5499
        %vm5501 = vweird.f32 %v4514
        %vm5502 = vweird.f32 %v5496
        %vm5503 = vmor %vm5501, %vm5502
        %v5504 = vsel %vm5503, %v5496, %v5500
        %v5505 = vand.u32 2147483647, %v4514
        %vm5506 = vcmp.eq.f32.partialorder %v5505, 8.507059e+37
        %v5507 = vand.u32 %v4514, 2147483648
        %v5508 = vor.u32 1.1754944e-38, %v5507
        %v5509 = vsel %vm5506, %v5508, %v5504
        %v5510 = vmul.f32 %v3234, %v5509
        %v5511 = vrcp.pop %v4515
        %v5512 = vmul.f32 %v4515, %v5511
        %v5513 = vsub.f32 1.0, %v5512
        %v5514 = vmul.f32 %v5511, %v5513
        %v5515 = vadd.f32 %v5511, %v5514
        %vm5516 = vweird.f32 %v4515
        %vm5517 = vweird.f32 %v5511
        %vm5518 = vmor %vm5516, %vm5517
        %v5519 = vsel %vm5518, %v5511, %v5515
        %v5520 = vand.u32 2147483647, %v4515
        %vm5521 = vcmp.eq.f32.partialorder %v5520, 8.507059e+37
        %v5522 = vand.u32 %v4515, 2147483648
        %v5523 = vor.u32 1.1754944e-38, %v5522
        %v5524 = vsel %vm5521, %v5523, %v5519
        %v5525 = vmul.f32 %v3235, %v5524
        %v5526 = vrcp.pop %v4516
        %v5527 = vmul.f32 %v4516, %v5526
        %v5528 = vsub.f32 1.0, %v5527
        %v5529 = vmul.f32 %v5526, %v5528
        %v5530 = vadd.f32 %v5526, %v5529
        %vm5531 = vweird.f32 %v4516
        %vm5532 = vweird.f32 %v5526
        %vm5533 = vmor %vm5531, %vm5532
        %v5534 = vsel %vm5533, %v5526, %v5530
        %v5535 = vand.u32 2147483647, %v4516
        %vm5536 = vcmp.eq.f32.partialorder %v5535, 8.507059e+37
        %v5537 = vand.u32 %v4516, 2147483648
        %v5538 = vor.u32 1.1754944e-38, %v5537
        %v5539 = vsel %vm5536, %v5538, %v5534
        %v5540 = vmul.f32 %v3236, %v5539
        %v5541 = vrcp.pop %v4517
        %v5542 = vmul.f32 %v4517, %v5541
        %v5543 = vsub.f32 1.0, %v5542
        %v5544 = vmul.f32 %v5541, %v5543
        %v5545 = vadd.f32 %v5541, %v5544
        %vm5546 = vweird.f32 %v4517
        %vm5547 = vweird.f32 %v5541
        %vm5548 = vmor %vm5546, %vm5547
        %v5549 = vsel %vm5548, %v5541, %v5545
        %v5550 = vand.u32 2147483647, %v4517
        %vm5551 = vcmp.eq.f32.partialorder %v5550, 8.507059e+37
        %v5552 = vand.u32 %v4517, 2147483648
        %v5553 = vor.u32 1.1754944e-38, %v5552
        %v5554 = vsel %vm5551, %v5553, %v5549
        %v5555 = vmul.f32 %v3237, %v5554
        %v5556 = vrcp.pop %v4518
        %v5557 = vmul.f32 %v4518, %v5556
        %v5558 = vsub.f32 1.0, %v5557
        %v5559 = vmul.f32 %v5556, %v5558
        %v5560 = vadd.f32 %v5556, %v5559
        %vm5561 = vweird.f32 %v4518
        %vm5562 = vweird.f32 %v5556
        %vm5563 = vmor %vm5561, %vm5562
        %v5564 = vsel %vm5563, %v5556, %v5560
        %v5565 = vand.u32 2147483647, %v4518
        %vm5566 = vcmp.eq.f32.partialorder %v5565, 8.507059e+37
        %v5567 = vand.u32 %v4518, 2147483648
        %v5568 = vor.u32 1.1754944e-38, %v5567
        %v5569 = vsel %vm5566, %v5568, %v5564
        %v5570 = vmul.f32 %v3238, %v5569
        %v5571 = vrcp.pop %v4519
        %v5572 = vmul.f32 %v4519, %v5571
        %v5573 = vsub.f32 1.0, %v5572
        %v5574 = vmul.f32 %v5571, %v5573
        %v5575 = vadd.f32 %v5571, %v5574
        %vm5576 = vweird.f32 %v4519
        %vm5577 = vweird.f32 %v5571
        %vm5578 = vmor %vm5576, %vm5577
        %v5579 = vsel %vm5578, %v5571, %v5575
        %v5580 = vand.u32 2147483647, %v4519
        %vm5581 = vcmp.eq.f32.partialorder %v5580, 8.507059e+37
        %v5582 = vand.u32 %v4519, 2147483648
        %v5583 = vor.u32 1.1754944e-38, %v5582
        %v5584 = vsel %vm5581, %v5583, %v5579
        %v5585 = vmul.f32 %v3239, %v5584
        %v5586 = vrcp.pop %v4520
        %v5587 = vmul.f32 %v4520, %v5586
        %v5588 = vsub.f32 1.0, %v5587
        %v5589 = vmul.f32 %v5586, %v5588
        %v5590 = vadd.f32 %v5586, %v5589
        %vm5591 = vweird.f32 %v4520
        %vm5592 = vweird.f32 %v5586
        %vm5593 = vmor %vm5591, %vm5592
        %v5594 = vsel %vm5593, %v5586, %v5590
        %v5595 = vand.u32 2147483647, %v4520
        %vm5596 = vcmp.eq.f32.partialorder %v5595, 8.507059e+37
        %v5597 = vand.u32 %v4520, 2147483648
        %v5598 = vor.u32 1.1754944e-38, %v5597
        %v5599 = vsel %vm5596, %v5598, %v5594
        %v5600 = vmul.f32 %v3240, %v5599
        %v5601 = vrcp.pop %v4521
        %v5602 = vmul.f32 %v4521, %v5601
        %v5603 = vsub.f32 1.0, %v5602
        %v5604 = vmul.f32 %v5601, %v5603
        %v5605 = vadd.f32 %v5601, %v5604
        %vm5606 = vweird.f32 %v4521
        %vm5607 = vweird.f32 %v5601
        %vm5608 = vmor %vm5606, %vm5607
        %v5609 = vsel %vm5608, %v5601, %v5605
        %v5610 = vand.u32 2147483647, %v4521
        %vm5611 = vcmp.eq.f32.partialorder %v5610, 8.507059e+37
        %v5612 = vand.u32 %v4521, 2147483648
        %v5613 = vor.u32 1.1754944e-38, %v5612
        %v5614 = vsel %vm5611, %v5613, %v5609
        %v5615 = vmul.f32 %v3241, %v5614
        %v5616 = vrcp.pop %v4522
        %v5617 = vmul.f32 %v4522, %v5616
        %v5618 = vsub.f32 1.0, %v5617
        %v5619 = vmul.f32 %v5616, %v5618
        %v5620 = vadd.f32 %v5616, %v5619
        %vm5621 = vweird.f32 %v4522
        %vm5622 = vweird.f32 %v5616
        %vm5623 = vmor %vm5621, %vm5622
        %v5624 = vsel %vm5623, %v5616, %v5620
        %v5625 = vand.u32 2147483647, %v4522
        %vm5626 = vcmp.eq.f32.partialorder %v5625, 8.507059e+37
        %v5627 = vand.u32 %v4522, 2147483648
        %v5628 = vor.u32 1.1754944e-38, %v5627
        %v5629 = vsel %vm5626, %v5628, %v5624
        %v5630 = vmul.f32 %v3242, %v5629
        %v5631 = vrcp.pop %v4523
        %v5632 = vmul.f32 %v4523, %v5631
        %v5633 = vsub.f32 1.0, %v5632
        %v5634 = vmul.f32 %v5631, %v5633
        %v5635 = vadd.f32 %v5631, %v5634
        %vm5636 = vweird.f32 %v4523
        %vm5637 = vweird.f32 %v5631
        %vm5638 = vmor %vm5636, %vm5637
        %v5639 = vsel %vm5638, %v5631, %v5635
        %v5640 = vand.u32 2147483647, %v4523
        %vm5641 = vcmp.eq.f32.partialorder %v5640, 8.507059e+37
        %v5642 = vand.u32 %v4523, 2147483648
        %v5643 = vor.u32 1.1754944e-38, %v5642
        %v5644 = vsel %vm5641, %v5643, %v5639
        %v5645 = vmul.f32 %v3243, %v5644
        %v5646 = vrcp.pop %v4524
        %v5647 = vmul.f32 %v4524, %v5646
        %v5648 = vsub.f32 1.0, %v5647
        %v5649 = vmul.f32 %v5646, %v5648
        %v5650 = vadd.f32 %v5646, %v5649
        %vm5651 = vweird.f32 %v4524
        %vm5652 = vweird.f32 %v5646
        %vm5653 = vmor %vm5651, %vm5652
        %v5654 = vsel %vm5653, %v5646, %v5650
        %v5655 = vand.u32 2147483647, %v4524
        %vm5656 = vcmp.eq.f32.partialorder %v5655, 8.507059e+37
        %v5657 = vand.u32 %v4524, 2147483648
        %v5658 = vor.u32 1.1754944e-38, %v5657
        %v5659 = vsel %vm5656, %v5658, %v5654
        %v5660 = vmul.f32 %v3244, %v5659
        %v5661 = vrcp.pop %v4525
        %v5662 = vmul.f32 %v4525, %v5661
        %v5663 = vsub.f32 1.0, %v5662
        %v5664 = vmul.f32 %v5661, %v5663
        %v5665 = vadd.f32 %v5661, %v5664
        %vm5666 = vweird.f32 %v4525
        %vm5667 = vweird.f32 %v5661
        %vm5668 = vmor %vm5666, %vm5667
        %v5669 = vsel %vm5668, %v5661, %v5665
        %v5670 = vand.u32 2147483647, %v4525
        %vm5671 = vcmp.eq.f32.partialorder %v5670, 8.507059e+37
        %v5672 = vand.u32 %v4525, 2147483648
        %v5673 = vor.u32 1.1754944e-38, %v5672
        %v5674 = vsel %vm5671, %v5673, %v5669
        %v5675 = vmul.f32 %v3245, %v5674
        %v5676 = vrcp.pop %v4526
        %v5677 = vmul.f32 %v4526, %v5676
        %v5678 = vsub.f32 1.0, %v5677
        %v5679 = vmul.f32 %v5676, %v5678
        %v5680 = vadd.f32 %v5676, %v5679
        %vm5681 = vweird.f32 %v4526
        %vm5682 = vweird.f32 %v5676
        %vm5683 = vmor %vm5681, %vm5682
        %v5684 = vsel %vm5683, %v5676, %v5680
        %v5685 = vand.u32 2147483647, %v4526
        %vm5686 = vcmp.eq.f32.partialorder %v5685, 8.507059e+37
        %v5687 = vand.u32 %v4526, 2147483648
        %v5688 = vor.u32 1.1754944e-38, %v5687
        %v5689 = vsel %vm5686, %v5688, %v5684
        %v5690 = vmul.f32 %v3246, %v5689
        %v5691 = vrcp.pop %v4527
        %v5692 = vmul.f32 %v4527, %v5691
        %v5693 = vsub.f32 1.0, %v5692
        %v5694 = vmul.f32 %v5691, %v5693
        %v5695 = vadd.f32 %v5691, %v5694
        %vm5696 = vweird.f32 %v4527
        %vm5697 = vweird.f32 %v5691
        %vm5698 = vmor %vm5696, %vm5697
        %v5699 = vsel %vm5698, %v5691, %v5695
        %v5700 = vand.u32 2147483647, %v4527
        %vm5701 = vcmp.eq.f32.partialorder %v5700, 8.507059e+37
        %v5702 = vand.u32 %v4527, 2147483648
        %v5703 = vor.u32 1.1754944e-38, %v5702
        %v5704 = vsel %vm5701, %v5703, %v5699
        %v5705 = vmul.f32 %v3247, %v5704
        %v5706 = vrcp.pop %v4528
        %v5707 = vmul.f32 %v4528, %v5706
        %v5708 = vsub.f32 1.0, %v5707
        %v5709 = vmul.f32 %v5706, %v5708
        %v5710 = vadd.f32 %v5706, %v5709
        %vm5711 = vweird.f32 %v4528
        %vm5712 = vweird.f32 %v5706
        %vm5713 = vmor %vm5711, %vm5712
        %v5714 = vsel %vm5713, %v5706, %v5710
        %v5715 = vand.u32 2147483647, %v4528
        %vm5716 = vcmp.eq.f32.partialorder %v5715, 8.507059e+37
        %v5717 = vand.u32 %v4528, 2147483648
        %v5718 = vor.u32 1.1754944e-38, %v5717
        %v5719 = vsel %vm5716, %v5718, %v5714
        %v5720 = vmul.f32 %v3248, %v5719
        %v5721 = vrcp.pop %v4529
        %v5722 = vmul.f32 %v4529, %v5721
        %v5723 = vsub.f32 1.0, %v5722
        %v5724 = vmul.f32 %v5721, %v5723
        %v5725 = vadd.f32 %v5721, %v5724
        %vm5726 = vweird.f32 %v4529
        %vm5727 = vweird.f32 %v5721
        %vm5728 = vmor %vm5726, %vm5727
        %v5729 = vsel %vm5728, %v5721, %v5725
        %v5730 = vand.u32 2147483647, %v4529
        %vm5731 = vcmp.eq.f32.partialorder %v5730, 8.507059e+37
        %v5732 = vand.u32 %v4529, 2147483648
        %v5733 = vor.u32 1.1754944e-38, %v5732
        %v5734 = vsel %vm5731, %v5733, %v5729
        %v5735 = vmul.f32 %v3249, %v5734
        %v5736 = vrcp.pop %v4530
        %v5737 = vmul.f32 %v4530, %v5736
        %v5738 = vsub.f32 1.0, %v5737
        %v5739 = vmul.f32 %v5736, %v5738
        %v5740 = vadd.f32 %v5736, %v5739
        %vm5741 = vweird.f32 %v4530
        %vm5742 = vweird.f32 %v5736
        %vm5743 = vmor %vm5741, %vm5742
        %v5744 = vsel %vm5743, %v5736, %v5740
        %v5745 = vand.u32 2147483647, %v4530
        %vm5746 = vcmp.eq.f32.partialorder %v5745, 8.507059e+37
        %v5747 = vand.u32 %v4530, 2147483648
        %v5748 = vor.u32 1.1754944e-38, %v5747
        %v5749 = vsel %vm5746, %v5748, %v5744
        %v5750 = vmul.f32 %v3250, %v5749
        %v5751 = vrcp.pop %v4531
        %v5752 = vmul.f32 %v4531, %v5751
        %v5753 = vsub.f32 1.0, %v5752
        %v5754 = vmul.f32 %v5751, %v5753
        %v5755 = vadd.f32 %v5751, %v5754
        %vm5756 = vweird.f32 %v4531
        %vm5757 = vweird.f32 %v5751
        %vm5758 = vmor %vm5756, %vm5757
        %v5759 = vsel %vm5758, %v5751, %v5755
        %v5760 = vand.u32 2147483647, %v4531
        %vm5761 = vcmp.eq.f32.partialorder %v5760, 8.507059e+37
        %v5762 = vand.u32 %v4531, 2147483648
        %v5763 = vor.u32 1.1754944e-38, %v5762
        %v5764 = vsel %vm5761, %v5763, %v5759
        %v5765 = vmul.f32 %v3251, %v5764
        %v5766 = vrcp.pop %v4532
        %v5767 = vmul.f32 %v4532, %v5766
        %v5768 = vsub.f32 1.0, %v5767
        %v5769 = vmul.f32 %v5766, %v5768
        %v5770 = vadd.f32 %v5766, %v5769
        %vm5771 = vweird.f32 %v4532
        %vm5772 = vweird.f32 %v5766
        %vm5773 = vmor %vm5771, %vm5772
        %v5774 = vsel %vm5773, %v5766, %v5770
        %v5775 = vand.u32 2147483647, %v4532
        %vm5776 = vcmp.eq.f32.partialorder %v5775, 8.507059e+37
        %v5777 = vand.u32 %v4532, 2147483648
        %v5778 = vor.u32 1.1754944e-38, %v5777
        %v5779 = vsel %vm5776, %v5778, %v5774
        %v5780 = vmul.f32 %v3252, %v5779
        %v5781 = vrcp.pop %v4533
        %v5782 = vmul.f32 %v4533, %v5781
        %v5783 = vsub.f32 1.0, %v5782
        %v5784 = vmul.f32 %v5781, %v5783
        %v5785 = vadd.f32 %v5781, %v5784
        %vm5786 = vweird.f32 %v4533
        %vm5787 = vweird.f32 %v5781
        %vm5788 = vmor %vm5786, %vm5787
        %v5789 = vsel %vm5788, %v5781, %v5785
        %v5790 = vand.u32 2147483647, %v4533
        %vm5791 = vcmp.eq.f32.partialorder %v5790, 8.507059e+37
        %v5792 = vand.u32 %v4533, 2147483648
        %v5793 = vor.u32 1.1754944e-38, %v5792
        %v5794 = vsel %vm5791, %v5793, %v5789
        %v5795 = vmul.f32 %v3253, %v5794
        %v5796 = vrcp.pop %v4534
        %v5797 = vmul.f32 %v4534, %v5796
        %v5798 = vsub.f32 1.0, %v5797
        %v5799 = vmul.f32 %v5796, %v5798
        %v5800 = vadd.f32 %v5796, %v5799
        %vm5801 = vweird.f32 %v4534
        %vm5802 = vweird.f32 %v5796
        %vm5803 = vmor %vm5801, %vm5802
        %v5804 = vsel %vm5803, %v5796, %v5800
        %v5805 = vand.u32 2147483647, %v4534
        %vm5806 = vcmp.eq.f32.partialorder %v5805, 8.507059e+37
        %v5807 = vand.u32 %v4534, 2147483648
        %v5808 = vor.u32 1.1754944e-38, %v5807
        %v5809 = vsel %vm5806, %v5808, %v5804
        %v5810 = vmul.f32 %v3254, %v5809
        %v5811 = vrcp.pop %v4535
        %v5812 = vmul.f32 %v4535, %v5811
        %v5813 = vsub.f32 1.0, %v5812
        %v5814 = vmul.f32 %v5811, %v5813
        %v5815 = vadd.f32 %v5811, %v5814
        %vm5816 = vweird.f32 %v4535
        %vm5817 = vweird.f32 %v5811
        %vm5818 = vmor %vm5816, %vm5817
        %v5819 = vsel %vm5818, %v5811, %v5815
        %v5820 = vand.u32 2147483647, %v4535
        %vm5821 = vcmp.eq.f32.partialorder %v5820, 8.507059e+37
        %v5822 = vand.u32 %v4535, 2147483648
        %v5823 = vor.u32 1.1754944e-38, %v5822
        %v5824 = vsel %vm5821, %v5823, %v5819
        %v5825 = vmul.f32 %v3255, %v5824
        %v5826 = vrcp.pop %v4536
        %v5827 = vmul.f32 %v4536, %v5826
        %v5828 = vsub.f32 1.0, %v5827
        %v5829 = vmul.f32 %v5826, %v5828
        %v5830 = vadd.f32 %v5826, %v5829
        %vm5831 = vweird.f32 %v4536
        %vm5832 = vweird.f32 %v5826
        %vm5833 = vmor %vm5831, %vm5832
        %v5834 = vsel %vm5833, %v5826, %v5830
        %v5835 = vand.u32 2147483647, %v4536
        %vm5836 = vcmp.eq.f32.partialorder %v5835, 8.507059e+37
        %v5837 = vand.u32 %v4536, 2147483648
        %v5838 = vor.u32 1.1754944e-38, %v5837
        %v5839 = vsel %vm5836, %v5838, %v5834
        %v5840 = vmul.f32 %v3256, %v5839
        %v5841 = vrcp.pop %v4537
        %v5842 = vmul.f32 %v4537, %v5841
        %v5843 = vsub.f32 1.0, %v5842
        %v5844 = vmul.f32 %v5841, %v5843
        %v5845 = vadd.f32 %v5841, %v5844
        %vm5846 = vweird.f32 %v4537
        %vm5847 = vweird.f32 %v5841
        %vm5848 = vmor %vm5846, %vm5847
        %v5849 = vsel %vm5848, %v5841, %v5845
        %v5850 = vand.u32 2147483647, %v4537
        %vm5851 = vcmp.eq.f32.partialorder %v5850, 8.507059e+37
        %v5852 = vand.u32 %v4537, 2147483648
        %v5853 = vor.u32 1.1754944e-38, %v5852
        %v5854 = vsel %vm5851, %v5853, %v5849
        %v5855 = vmul.f32 %v3257, %v5854
        %v5856 = vrcp.pop %v4538
        %v5857 = vmul.f32 %v4538, %v5856
        %v5858 = vsub.f32 1.0, %v5857
        %v5859 = vmul.f32 %v5856, %v5858
        %v5860 = vadd.f32 %v5856, %v5859
        %vm5861 = vweird.f32 %v4538
        %vm5862 = vweird.f32 %v5856
        %vm5863 = vmor %vm5861, %vm5862
        %v5864 = vsel %vm5863, %v5856, %v5860
        %v5865 = vand.u32 2147483647, %v4538
        %vm5866 = vcmp.eq.f32.partialorder %v5865, 8.507059e+37
        %v5867 = vand.u32 %v4538, 2147483648
        %v5868 = vor.u32 1.1754944e-38, %v5867
        %v5869 = vsel %vm5866, %v5868, %v5864
        %v5870 = vmul.f32 %v3258, %v5869
        %v5871 = vrcp.pop %v4539
        %v5872 = vmul.f32 %v4539, %v5871
        %v5873 = vsub.f32 1.0, %v5872
        %v5874 = vmul.f32 %v5871, %v5873
        %v5875 = vadd.f32 %v5871, %v5874
        %vm5876 = vweird.f32 %v4539
        %vm5877 = vweird.f32 %v5871
        %vm5878 = vmor %vm5876, %vm5877
        %v5879 = vsel %vm5878, %v5871, %v5875
        %v5880 = vand.u32 2147483647, %v4539
        %vm5881 = vcmp.eq.f32.partialorder %v5880, 8.507059e+37
        %v5882 = vand.u32 %v4539, 2147483648
        %v5883 = vor.u32 1.1754944e-38, %v5882
        %v5884 = vsel %vm5881, %v5883, %v5879
        %v5885 = vmul.f32 %v3259, %v5884
        %v5886 = vrcp.pop %v4540
        %v5887 = vmul.f32 %v4540, %v5886
        %v5888 = vsub.f32 1.0, %v5887
        %v5889 = vmul.f32 %v5886, %v5888
        %v5890 = vadd.f32 %v5886, %v5889
        %vm5891 = vweird.f32 %v4540
        %vm5892 = vweird.f32 %v5886
        %vm5893 = vmor %vm5891, %vm5892
        %v5894 = vsel %vm5893, %v5886, %v5890
        %v5895 = vand.u32 2147483647, %v4540
        %vm5896 = vcmp.eq.f32.partialorder %v5895, 8.507059e+37
        %v5897 = vand.u32 %v4540, 2147483648
        %v5898 = vor.u32 1.1754944e-38, %v5897
        %v5899 = vsel %vm5896, %v5898, %v5894
        %v5900 = vmul.f32 %v3260, %v5899
        %v5901 = vrcp.pop %v4541
        %v5902 = vmul.f32 %v4541, %v5901
        %v5903 = vsub.f32 1.0, %v5902
        %v5904 = vmul.f32 %v5901, %v5903
        %v5905 = vadd.f32 %v5901, %v5904
        %vm5906 = vweird.f32 %v4541
        %vm5907 = vweird.f32 %v5901
        %vm5908 = vmor %vm5906, %vm5907
        %v5909 = vsel %vm5908, %v5901, %v5905
        %v5910 = vand.u32 2147483647, %v4541
        %vm5911 = vcmp.eq.f32.partialorder %v5910, 8.507059e+37
        %v5912 = vand.u32 %v4541, 2147483648
        %v5913 = vor.u32 1.1754944e-38, %v5912
        %v5914 = vsel %vm5911, %v5913, %v5909
        %v5915 = vmul.f32 %v3261, %v5914
        %v5916 = vrcp.pop %v4542
        %v5917 = vmul.f32 %v4542, %v5916
        %v5918 = vsub.f32 1.0, %v5917
        %v5919 = vmul.f32 %v5916, %v5918
        %v5920 = vadd.f32 %v5916, %v5919
        %vm5921 = vweird.f32 %v4542
        %vm5922 = vweird.f32 %v5916
        %vm5923 = vmor %vm5921, %vm5922
        %v5924 = vsel %vm5923, %v5916, %v5920
        %v5925 = vand.u32 2147483647, %v4542
        %vm5926 = vcmp.eq.f32.partialorder %v5925, 8.507059e+37
        %v5927 = vand.u32 %v4542, 2147483648
        %v5928 = vor.u32 1.1754944e-38, %v5927
        %v5929 = vsel %vm5926, %v5928, %v5924
        %v5930 = vmul.f32 %v3262, %v5929
        %v5931 = vrcp.pop %v4543
        %v5932 = vmul.f32 %v4543, %v5931
        %v5933 = vsub.f32 1.0, %v5932
        %v5934 = vmul.f32 %v5931, %v5933
        %v5935 = vadd.f32 %v5931, %v5934
        %vm5936 = vweird.f32 %v4543
        %vm5937 = vweird.f32 %v5931
        %vm5938 = vmor %vm5936, %vm5937
        %v5939 = vsel %vm5938, %v5931, %v5935
        %v5940 = vand.u32 2147483647, %v4543
        %vm5941 = vcmp.eq.f32.partialorder %v5940, 8.507059e+37
        %v5942 = vand.u32 %v4543, 2147483648
        %v5943 = vor.u32 1.1754944e-38, %v5942
        %v5944 = vsel %vm5941, %v5943, %v5939
        %v5945 = vmul.f32 %v3263, %v5944
        %v5946 = vrcp.pop %v4544
        %v5947 = vmul.f32 %v4544, %v5946
        %v5948 = vsub.f32 1.0, %v5947
        %v5949 = vmul.f32 %v5946, %v5948
        %v5950 = vadd.f32 %v5946, %v5949
        %vm5951 = vweird.f32 %v4544
        %vm5952 = vweird.f32 %v5946
        %vm5953 = vmor %vm5951, %vm5952
        %v5954 = vsel %vm5953, %v5946, %v5950
        %v5955 = vand.u32 2147483647, %v4544
        %vm5956 = vcmp.eq.f32.partialorder %v5955, 8.507059e+37
        %v5957 = vand.u32 %v4544, 2147483648
        %v5958 = vor.u32 1.1754944e-38, %v5957
        %v5959 = vsel %vm5956, %v5958, %v5954
        %v5960 = vmul.f32 %v3264, %v5959
        %v5961 = vrcp.pop %v4545
        %v5962 = vmul.f32 %v4545, %v5961
        %v5963 = vsub.f32 1.0, %v5962
        %v5964 = vmul.f32 %v5961, %v5963
        %v5965 = vadd.f32 %v5961, %v5964
        %vm5966 = vweird.f32 %v4545
        %vm5967 = vweird.f32 %v5961
        %vm5968 = vmor %vm5966, %vm5967
        %v5969 = vsel %vm5968, %v5961, %v5965
        %v5970 = vand.u32 2147483647, %v4545
        %vm5971 = vcmp.eq.f32.partialorder %v5970, 8.507059e+37
        %v5972 = vand.u32 %v4545, 2147483648
        %v5973 = vor.u32 1.1754944e-38, %v5972
        %v5974 = vsel %vm5971, %v5973, %v5969
        %v5975 = vmul.f32 %v3265, %v5974
        %v5976 = vrcp.pop %v4546
        %v5977 = vmul.f32 %v4546, %v5976
        %v5978 = vsub.f32 1.0, %v5977
        %v5979 = vmul.f32 %v5976, %v5978
        %v5980 = vadd.f32 %v5976, %v5979
        %vm5981 = vweird.f32 %v4546
        %vm5982 = vweird.f32 %v5976
        %vm5983 = vmor %vm5981, %vm5982
        %v5984 = vsel %vm5983, %v5976, %v5980
        %v5985 = vand.u32 2147483647, %v4546
        %vm5986 = vcmp.eq.f32.partialorder %v5985, 8.507059e+37
        %v5987 = vand.u32 %v4546, 2147483648
        %v5988 = vor.u32 1.1754944e-38, %v5987
        %v5989 = vsel %vm5986, %v5988, %v5984
        %v5990 = vmul.f32 %v3266, %v5989
        %v5991 = vrcp.pop %v4547
        %v5992 = vmul.f32 %v4547, %v5991
        %v5993 = vsub.f32 1.0, %v5992
        %v5994 = vmul.f32 %v5991, %v5993
        %v5995 = vadd.f32 %v5991, %v5994
        %vm5996 = vweird.f32 %v4547
        %vm5997 = vweird.f32 %v5991
        %vm5998 = vmor %vm5996, %vm5997
        %v5999 = vsel %vm5998, %v5991, %v5995
        %v6000 = vand.u32 2147483647, %v4547
        %vm6001 = vcmp.eq.f32.partialorder %v6000, 8.507059e+37
        %v6002 = vand.u32 %v4547, 2147483648
        %v6003 = vor.u32 1.1754944e-38, %v6002
        %v6004 = vsel %vm6001, %v6003, %v5999
        %v6005 = vmul.f32 %v3267, %v6004
        %v6006 = vrcp.pop %v4548
        %v6007 = vmul.f32 %v4548, %v6006
        %v6008 = vsub.f32 1.0, %v6007
        %v6009 = vmul.f32 %v6006, %v6008
        %v6010 = vadd.f32 %v6006, %v6009
        %vm6011 = vweird.f32 %v4548
        %vm6012 = vweird.f32 %v6006
        %vm6013 = vmor %vm6011, %vm6012
        %v6014 = vsel %vm6013, %v6006, %v6010
        %v6015 = vand.u32 2147483647, %v4548
        %vm6016 = vcmp.eq.f32.partialorder %v6015, 8.507059e+37
        %v6017 = vand.u32 %v4548, 2147483648
        %v6018 = vor.u32 1.1754944e-38, %v6017
        %v6019 = vsel %vm6016, %v6018, %v6014
        %v6020 = vmul.f32 %v3268, %v6019
        %v6021 = vrcp.pop %v4549
        %v6022 = vmul.f32 %v4549, %v6021
        %v6023 = vsub.f32 1.0, %v6022
        %v6024 = vmul.f32 %v6021, %v6023
        %v6025 = vadd.f32 %v6021, %v6024
        %vm6026 = vweird.f32 %v4549
        %vm6027 = vweird.f32 %v6021
        %vm6028 = vmor %vm6026, %vm6027
        %v6029 = vsel %vm6028, %v6021, %v6025
        %v6030 = vand.u32 2147483647, %v4549
        %vm6031 = vcmp.eq.f32.partialorder %v6030, 8.507059e+37
        %v6032 = vand.u32 %v4549, 2147483648
        %v6033 = vor.u32 1.1754944e-38, %v6032
        %v6034 = vsel %vm6031, %v6033, %v6029
        %v6035 = vmul.f32 %v3269, %v6034
        %v6036 = vrcp.pop %v4550
        %v6037 = vmul.f32 %v4550, %v6036
        %v6038 = vsub.f32 1.0, %v6037
        %v6039 = vmul.f32 %v6036, %v6038
        %v6040 = vadd.f32 %v6036, %v6039
        %vm6041 = vweird.f32 %v4550
        %vm6042 = vweird.f32 %v6036
        %vm6043 = vmor %vm6041, %vm6042
        %v6044 = vsel %vm6043, %v6036, %v6040
        %v6045 = vand.u32 2147483647, %v4550
        %vm6046 = vcmp.eq.f32.partialorder %v6045, 8.507059e+37
        %v6047 = vand.u32 %v4550, 2147483648
        %v6048 = vor.u32 1.1754944e-38, %v6047
        %v6049 = vsel %vm6046, %v6048, %v6044
        %v6050 = vmul.f32 %v3270, %v6049
        %v6051 = vrcp.pop %v4551
        %v6052 = vmul.f32 %v4551, %v6051
        %v6053 = vsub.f32 1.0, %v6052
        %v6054 = vmul.f32 %v6051, %v6053
        %v6055 = vadd.f32 %v6051, %v6054
        %vm6056 = vweird.f32 %v4551
        %vm6057 = vweird.f32 %v6051
        %vm6058 = vmor %vm6056, %vm6057
        %v6059 = vsel %vm6058, %v6051, %v6055
        %v6060 = vand.u32 2147483647, %v4551
        %vm6061 = vcmp.eq.f32.partialorder %v6060, 8.507059e+37
        %v6062 = vand.u32 %v4551, 2147483648
        %v6063 = vor.u32 1.1754944e-38, %v6062
        %v6064 = vsel %vm6061, %v6063, %v6059
        %v6065 = vmul.f32 %v3271, %v6064
        %v6066 = vrcp.pop %v4552
        %v6067 = vmul.f32 %v4552, %v6066
        %v6068 = vsub.f32 1.0, %v6067
        %v6069 = vmul.f32 %v6066, %v6068
        %v6070 = vadd.f32 %v6066, %v6069
        %vm6071 = vweird.f32 %v4552
        %vm6072 = vweird.f32 %v6066
        %vm6073 = vmor %vm6071, %vm6072
        %v6074 = vsel %vm6073, %v6066, %v6070
        %v6075 = vand.u32 2147483647, %v4552
        %vm6076 = vcmp.eq.f32.partialorder %v6075, 8.507059e+37
        %v6077 = vand.u32 %v4552, 2147483648
        %v6078 = vor.u32 1.1754944e-38, %v6077
        %v6079 = vsel %vm6076, %v6078, %v6074
        %v6080 = vmul.f32 %v3272, %v6079
        %v6081 = vrcp.pop %v4553
        %v6082 = vmul.f32 %v4553, %v6081
        %v6083 = vsub.f32 1.0, %v6082
        %v6084 = vmul.f32 %v6081, %v6083
        %v6085 = vadd.f32 %v6081, %v6084
        %vm6086 = vweird.f32 %v4553
        %vm6087 = vweird.f32 %v6081
        %vm6088 = vmor %vm6086, %vm6087
        %v6089 = vsel %vm6088, %v6081, %v6085
        %v6090 = vand.u32 2147483647, %v4553
        %vm6091 = vcmp.eq.f32.partialorder %v6090, 8.507059e+37
        %v6092 = vand.u32 %v4553, 2147483648
        %v6093 = vor.u32 1.1754944e-38, %v6092
        %v6094 = vsel %vm6091, %v6093, %v6089
        %v6095 = vmul.f32 %v3273, %v6094
        %v6096 = vrcp.pop %v4554
        %v6097 = vmul.f32 %v4554, %v6096
        %v6098 = vsub.f32 1.0, %v6097
        %v6099 = vmul.f32 %v6096, %v6098
        %v6100 = vadd.f32 %v6096, %v6099
        %vm6101 = vweird.f32 %v4554
        %vm6102 = vweird.f32 %v6096
        %vm6103 = vmor %vm6101, %vm6102
        %v6104 = vsel %vm6103, %v6096, %v6100
        %v6105 = vand.u32 2147483647, %v4554
        %vm6106 = vcmp.eq.f32.partialorder %v6105, 8.507059e+37
        %v6107 = vand.u32 %v4554, 2147483648
        %v6108 = vor.u32 1.1754944e-38, %v6107
        %v6109 = vsel %vm6106, %v6108, %v6104
        %v6110 = vmul.f32 %v3274, %v6109
        %v6111 = vrcp.pop %v4555
        %v6112 = vmul.f32 %v4555, %v6111
        %v6113 = vsub.f32 1.0, %v6112
        %v6114 = vmul.f32 %v6111, %v6113
        %v6115 = vadd.f32 %v6111, %v6114
        %vm6116 = vweird.f32 %v4555
        %vm6117 = vweird.f32 %v6111
        %vm6118 = vmor %vm6116, %vm6117
        %v6119 = vsel %vm6118, %v6111, %v6115
        %v6120 = vand.u32 2147483647, %v4555
        %vm6121 = vcmp.eq.f32.partialorder %v6120, 8.507059e+37
        %v6122 = vand.u32 %v4555, 2147483648
        %v6123 = vor.u32 1.1754944e-38, %v6122
        %v6124 = vsel %vm6121, %v6123, %v6119
        %v6125 = vmul.f32 %v3275, %v6124
        %v6126 = vrcp.pop %v4556
        %v6127 = vmul.f32 %v4556, %v6126
        %v6128 = vsub.f32 1.0, %v6127
        %v6129 = vmul.f32 %v6126, %v6128
        %v6130 = vadd.f32 %v6126, %v6129
        %vm6131 = vweird.f32 %v4556
        %vm6132 = vweird.f32 %v6126
        %vm6133 = vmor %vm6131, %vm6132
        %v6134 = vsel %vm6133, %v6126, %v6130
        %v6135 = vand.u32 2147483647, %v4556
        %vm6136 = vcmp.eq.f32.partialorder %v6135, 8.507059e+37
        %v6137 = vand.u32 %v4556, 2147483648
        %v6138 = vor.u32 1.1754944e-38, %v6137
        %v6139 = vsel %vm6136, %v6138, %v6134
        %v6140 = vmul.f32 %v3276, %v6139
        %v6141 = vrcp.pop %v4557
        %v6142 = vmul.f32 %v4557, %v6141
        %v6143 = vsub.f32 1.0, %v6142
        %v6144 = vmul.f32 %v6141, %v6143
        %v6145 = vadd.f32 %v6141, %v6144
        %vm6146 = vweird.f32 %v4557
        %vm6147 = vweird.f32 %v6141
        %vm6148 = vmor %vm6146, %vm6147
        %v6149 = vsel %vm6148, %v6141, %v6145
        %v6150 = vand.u32 2147483647, %v4557
        %vm6151 = vcmp.eq.f32.partialorder %v6150, 8.507059e+37
        %v6152 = vand.u32 %v4557, 2147483648
        %v6153 = vor.u32 1.1754944e-38, %v6152
        %v6154 = vsel %vm6151, %v6153, %v6149
        %v6155 = vmul.f32 %v3277, %v6154
        %v6156 = vrcp.pop %v4558
        %v6157 = vmul.f32 %v4558, %v6156
        %v6158 = vsub.f32 1.0, %v6157
        %v6159 = vmul.f32 %v6156, %v6158
        %v6160 = vadd.f32 %v6156, %v6159
        %vm6161 = vweird.f32 %v4558
        %vm6162 = vweird.f32 %v6156
        %vm6163 = vmor %vm6161, %vm6162
        %v6164 = vsel %vm6163, %v6156, %v6160
        %v6165 = vand.u32 2147483647, %v4558
        %vm6166 = vcmp.eq.f32.partialorder %v6165, 8.507059e+37
        %v6167 = vand.u32 %v4558, 2147483648
        %v6168 = vor.u32 1.1754944e-38, %v6167
        %v6169 = vsel %vm6166, %v6168, %v6164
        %v6170 = vmul.f32 %v3278, %v6169
        %v6171 = vrcp.pop %v4559
        %v6172 = vmul.f32 %v4559, %v6171
        %v6173 = vsub.f32 1.0, %v6172
        %v6174 = vmul.f32 %v6171, %v6173
        %v6175 = vadd.f32 %v6171, %v6174
        %vm6176 = vweird.f32 %v4559
        %vm6177 = vweird.f32 %v6171
        %vm6178 = vmor %vm6176, %vm6177
        %v6179 = vsel %vm6178, %v6171, %v6175
        %v6180 = vand.u32 2147483647, %v4559
        %vm6181 = vcmp.eq.f32.partialorder %v6180, 8.507059e+37
        %v6182 = vand.u32 %v4559, 2147483648
        %v6183 = vor.u32 1.1754944e-38, %v6182
        %v6184 = vsel %vm6181, %v6183, %v6179
        %v6185 = vmul.f32 %v3279, %v6184
        %v6186 = vrcp.pop %v4560
        %v6187 = vmul.f32 %v4560, %v6186
        %v6188 = vsub.f32 1.0, %v6187
        %v6189 = vmul.f32 %v6186, %v6188
        %v6190 = vadd.f32 %v6186, %v6189
        %vm6191 = vweird.f32 %v4560
        %vm6192 = vweird.f32 %v6186
        %vm6193 = vmor %vm6191, %vm6192
        %v6194 = vsel %vm6193, %v6186, %v6190
        %v6195 = vand.u32 2147483647, %v4560
        %vm6196 = vcmp.eq.f32.partialorder %v6195, 8.507059e+37
        %v6197 = vand.u32 %v4560, 2147483648
        %v6198 = vor.u32 1.1754944e-38, %v6197
        %v6199 = vsel %vm6196, %v6198, %v6194
        %v6200 = vmul.f32 %v3280, %v6199
        %v6201 = vrcp.pop %v4561
        %v6202 = vmul.f32 %v4561, %v6201
        %v6203 = vsub.f32 1.0, %v6202
        %v6204 = vmul.f32 %v6201, %v6203
        %v6205 = vadd.f32 %v6201, %v6204
        %vm6206 = vweird.f32 %v4561
        %vm6207 = vweird.f32 %v6201
        %vm6208 = vmor %vm6206, %vm6207
        %v6209 = vsel %vm6208, %v6201, %v6205
        %v6210 = vand.u32 2147483647, %v4561
        %vm6211 = vcmp.eq.f32.partialorder %v6210, 8.507059e+37
        %v6212 = vand.u32 %v4561, 2147483648
        %v6213 = vor.u32 1.1754944e-38, %v6212
        %v6214 = vsel %vm6211, %v6213, %v6209
        %v6215 = vmul.f32 %v3281, %v6214
        %v6216 = vrcp.pop %v4562
        %v6217 = vmul.f32 %v4562, %v6216
        %v6218 = vsub.f32 1.0, %v6217
        %v6219 = vmul.f32 %v6216, %v6218
        %v6220 = vadd.f32 %v6216, %v6219
        %vm6221 = vweird.f32 %v4562
        %vm6222 = vweird.f32 %v6216
        %vm6223 = vmor %vm6221, %vm6222
        %v6224 = vsel %vm6223, %v6216, %v6220
        %v6225 = vand.u32 2147483647, %v4562
        %vm6226 = vcmp.eq.f32.partialorder %v6225, 8.507059e+37
        %v6227 = vand.u32 %v4562, 2147483648
        %v6228 = vor.u32 1.1754944e-38, %v6227
        %v6229 = vsel %vm6226, %v6228, %v6224
        %v6230 = vmul.f32 %v3282, %v6229
        %v6231 = vrcp.pop %v4563
        %v6232 = vmul.f32 %v4563, %v6231
        %v6233 = vsub.f32 1.0, %v6232
        %v6234 = vmul.f32 %v6231, %v6233
        %v6235 = vadd.f32 %v6231, %v6234
        %vm6236 = vweird.f32 %v4563
        %vm6237 = vweird.f32 %v6231
        %vm6238 = vmor %vm6236, %vm6237
        %v6239 = vsel %vm6238, %v6231, %v6235
        %v6240 = vand.u32 2147483647, %v4563
        %vm6241 = vcmp.eq.f32.partialorder %v6240, 8.507059e+37
        %v6242 = vand.u32 %v4563, 2147483648
        %v6243 = vor.u32 1.1754944e-38, %v6242
        %v6244 = vsel %vm6241, %v6243, %v6239
        %v6245 = vmul.f32 %v3283, %v6244
        %v6246 = vrcp.pop %v4564
        %v6247 = vmul.f32 %v4564, %v6246
        %v6248 = vsub.f32 1.0, %v6247
        %v6249 = vmul.f32 %v6246, %v6248
        %v6250 = vadd.f32 %v6246, %v6249
        %vm6251 = vweird.f32 %v4564
        %vm6252 = vweird.f32 %v6246
        %vm6253 = vmor %vm6251, %vm6252
        %v6254 = vsel %vm6253, %v6246, %v6250
        %v6255 = vand.u32 2147483647, %v4564
        %vm6256 = vcmp.eq.f32.partialorder %v6255, 8.507059e+37
        %v6257 = vand.u32 %v4564, 2147483648
        %v6258 = vor.u32 1.1754944e-38, %v6257
        %v6259 = vsel %vm6256, %v6258, %v6254
        %v6260 = vmul.f32 %v3284, %v6259
        %v6261 = vrcp.pop %v4565
        %v6262 = vmul.f32 %v4565, %v6261
        %v6263 = vsub.f32 1.0, %v6262
        %v6264 = vmul.f32 %v6261, %v6263
        %v6265 = vadd.f32 %v6261, %v6264
        %vm6266 = vweird.f32 %v4565
        %vm6267 = vweird.f32 %v6261
        %vm6268 = vmor %vm6266, %vm6267
        %v6269 = vsel %vm6268, %v6261, %v6265
        %v6270 = vand.u32 2147483647, %v4565
        %vm6271 = vcmp.eq.f32.partialorder %v6270, 8.507059e+37
        %v6272 = vand.u32 %v4565, 2147483648
        %v6273 = vor.u32 1.1754944e-38, %v6272
        %v6274 = vsel %vm6271, %v6273, %v6269
        %v6275 = vmul.f32 %v3285, %v6274
        %v6276 = vrcp.pop %v4566
        %v6277 = vmul.f32 %v4566, %v6276
        %v6278 = vsub.f32 1.0, %v6277
        %v6279 = vmul.f32 %v6276, %v6278
        %v6280 = vadd.f32 %v6276, %v6279
        %vm6281 = vweird.f32 %v4566
        %vm6282 = vweird.f32 %v6276
        %vm6283 = vmor %vm6281, %vm6282
        %v6284 = vsel %vm6283, %v6276, %v6280
        %v6285 = vand.u32 2147483647, %v4566
        %vm6286 = vcmp.eq.f32.partialorder %v6285, 8.507059e+37
        %v6287 = vand.u32 %v4566, 2147483648
        %v6288 = vor.u32 1.1754944e-38, %v6287
        %v6289 = vsel %vm6286, %v6288, %v6284
        %v6290 = vmul.f32 %v3286, %v6289
        %v6291 = vrcp.pop %v4567
        %v6292 = vmul.f32 %v4567, %v6291
        %v6293 = vsub.f32 1.0, %v6292
        %v6294 = vmul.f32 %v6291, %v6293
        %v6295 = vadd.f32 %v6291, %v6294
        %vm6296 = vweird.f32 %v4567
        %vm6297 = vweird.f32 %v6291
        %vm6298 = vmor %vm6296, %vm6297
        %v6299 = vsel %vm6298, %v6291, %v6295
        %v6300 = vand.u32 2147483647, %v4567
        %vm6301 = vcmp.eq.f32.partialorder %v6300, 8.507059e+37
        %v6302 = vand.u32 %v4567, 2147483648
        %v6303 = vor.u32 1.1754944e-38, %v6302
        %v6304 = vsel %vm6301, %v6303, %v6299
        %v6305 = vmul.f32 %v3287, %v6304
        %v6306 = vrcp.pop %v4568
        %v6307 = vmul.f32 %v4568, %v6306
        %v6308 = vsub.f32 1.0, %v6307
        %v6309 = vmul.f32 %v6306, %v6308
        %v6310 = vadd.f32 %v6306, %v6309
        %vm6311 = vweird.f32 %v4568
        %vm6312 = vweird.f32 %v6306
        %vm6313 = vmor %vm6311, %vm6312
        %v6314 = vsel %vm6313, %v6306, %v6310
        %v6315 = vand.u32 2147483647, %v4568
        %vm6316 = vcmp.eq.f32.partialorder %v6315, 8.507059e+37
        %v6317 = vand.u32 %v4568, 2147483648
        %v6318 = vor.u32 1.1754944e-38, %v6317
        %v6319 = vsel %vm6316, %v6318, %v6314
        %v6320 = vmul.f32 %v3288, %v6319
        %v6321 = vrcp.pop %v4569
        %v6322 = vmul.f32 %v4569, %v6321
        %v6323 = vsub.f32 1.0, %v6322
        %v6324 = vmul.f32 %v6321, %v6323
        %v6325 = vadd.f32 %v6321, %v6324
        %vm6326 = vweird.f32 %v4569
        %vm6327 = vweird.f32 %v6321
        %vm6328 = vmor %vm6326, %vm6327
        %v6329 = vsel %vm6328, %v6321, %v6325
        %v6330 = vand.u32 2147483647, %v4569
        %vm6331 = vcmp.eq.f32.partialorder %v6330, 8.507059e+37
        %v6332 = vand.u32 %v4569, 2147483648
        %v6333 = vor.u32 1.1754944e-38, %v6332
        %v6334 = vsel %vm6331, %v6333, %v6329
        %v6335 = vmul.f32 %v3289, %v6334
        %v6336 = vrcp.pop %v4570
        %v6337 = vmul.f32 %v4570, %v6336
        %v6338 = vsub.f32 1.0, %v6337
        %v6339 = vmul.f32 %v6336, %v6338
        %v6340 = vadd.f32 %v6336, %v6339
        %vm6341 = vweird.f32 %v4570
        %vm6342 = vweird.f32 %v6336
        %vm6343 = vmor %vm6341, %vm6342
        %v6344 = vsel %vm6343, %v6336, %v6340
        %v6345 = vand.u32 2147483647, %v4570
        %vm6346 = vcmp.eq.f32.partialorder %v6345, 8.507059e+37
        %v6347 = vand.u32 %v4570, 2147483648
        %v6348 = vor.u32 1.1754944e-38, %v6347
        %v6349 = vsel %vm6346, %v6348, %v6344
        %v6350 = vmul.f32 %v3290, %v6349
        %v6351 = vrcp.pop %v4571
        %v6352 = vmul.f32 %v4571, %v6351
        %v6353 = vsub.f32 1.0, %v6352
        %v6354 = vmul.f32 %v6351, %v6353
        %v6355 = vadd.f32 %v6351, %v6354
        %vm6356 = vweird.f32 %v4571
        %vm6357 = vweird.f32 %v6351
        %vm6358 = vmor %vm6356, %vm6357
        %v6359 = vsel %vm6358, %v6351, %v6355
        %v6360 = vand.u32 2147483647, %v4571
        %vm6361 = vcmp.eq.f32.partialorder %v6360, 8.507059e+37
        %v6362 = vand.u32 %v4571, 2147483648
        %v6363 = vor.u32 1.1754944e-38, %v6362
        %v6364 = vsel %vm6361, %v6363, %v6359
        %v6365 = vmul.f32 %v3291, %v6364
        %v6366 = vrcp.pop %v4572
        %v6367 = vmul.f32 %v4572, %v6366
        %v6368 = vsub.f32 1.0, %v6367
        %v6369 = vmul.f32 %v6366, %v6368
        %v6370 = vadd.f32 %v6366, %v6369
        %vm6371 = vweird.f32 %v4572
        %vm6372 = vweird.f32 %v6366
        %vm6373 = vmor %vm6371, %vm6372
        %v6374 = vsel %vm6373, %v6366, %v6370
        %v6375 = vand.u32 2147483647, %v4572
        %vm6376 = vcmp.eq.f32.partialorder %v6375, 8.507059e+37
        %v6377 = vand.u32 %v4572, 2147483648
        %v6378 = vor.u32 1.1754944e-38, %v6377
        %v6379 = vsel %vm6376, %v6378, %v6374
        %v6380 = vmul.f32 %v3292, %v6379
        %v6381 = vrcp.pop %v4573
        %v6382 = vmul.f32 %v4573, %v6381
        %v6383 = vsub.f32 1.0, %v6382
        %v6384 = vmul.f32 %v6381, %v6383
        %v6385 = vadd.f32 %v6381, %v6384
        %vm6386 = vweird.f32 %v4573
        %vm6387 = vweird.f32 %v6381
        %vm6388 = vmor %vm6386, %vm6387
        %v6389 = vsel %vm6388, %v6381, %v6385
        %v6390 = vand.u32 2147483647, %v4573
        %vm6391 = vcmp.eq.f32.partialorder %v6390, 8.507059e+37
        %v6392 = vand.u32 %v4573, 2147483648
        %v6393 = vor.u32 1.1754944e-38, %v6392
        %v6394 = vsel %vm6391, %v6393, %v6389
        %v6395 = vmul.f32 %v3293, %v6394
        %v6396 = vrcp.pop %v4574
        %v6397 = vmul.f32 %v4574, %v6396
        %v6398 = vsub.f32 1.0, %v6397
        %v6399 = vmul.f32 %v6396, %v6398
        %v6400 = vadd.f32 %v6396, %v6399
        %vm6401 = vweird.f32 %v4574
        %vm6402 = vweird.f32 %v6396
        %vm6403 = vmor %vm6401, %vm6402
        %v6404 = vsel %vm6403, %v6396, %v6400
        %v6405 = vand.u32 2147483647, %v4574
        %vm6406 = vcmp.eq.f32.partialorder %v6405, 8.507059e+37
        %v6407 = vand.u32 %v4574, 2147483648
        %v6408 = vor.u32 1.1754944e-38, %v6407
        %v6409 = vsel %vm6406, %v6408, %v6404
        %v6410 = vmul.f32 %v3294, %v6409
        %v6411 = vrcp.pop %v4575
        %v6412 = vmul.f32 %v4575, %v6411
        %v6413 = vsub.f32 1.0, %v6412
        %v6414 = vmul.f32 %v6411, %v6413
        %v6415 = vadd.f32 %v6411, %v6414
        %vm6416 = vweird.f32 %v4575
        %vm6417 = vweird.f32 %v6411
        %vm6418 = vmor %vm6416, %vm6417
        %v6419 = vsel %vm6418, %v6411, %v6415
        %v6420 = vand.u32 2147483647, %v4575
        %vm6421 = vcmp.eq.f32.partialorder %v6420, 8.507059e+37
        %v6422 = vand.u32 %v4575, 2147483648
        %v6423 = vor.u32 1.1754944e-38, %v6422
        %v6424 = vsel %vm6421, %v6423, %v6419
        %v6425 = vmul.f32 %v3295, %v6424
        %v6426 = vrcp.pop %v4576
        %v6427 = vmul.f32 %v4576, %v6426
        %v6428 = vsub.f32 1.0, %v6427
        %v6429 = vmul.f32 %v6426, %v6428
        %v6430 = vadd.f32 %v6426, %v6429
        %vm6431 = vweird.f32 %v4576
        %vm6432 = vweird.f32 %v6426
        %vm6433 = vmor %vm6431, %vm6432
        %v6434 = vsel %vm6433, %v6426, %v6430
        %v6435 = vand.u32 2147483647, %v4576
        %vm6436 = vcmp.eq.f32.partialorder %v6435, 8.507059e+37
        %v6437 = vand.u32 %v4576, 2147483648
        %v6438 = vor.u32 1.1754944e-38, %v6437
        %v6439 = vsel %vm6436, %v6438, %v6434
        %v6440 = vmul.f32 %v3296, %v6439
        %v6441 = vrcp.pop %v4577
        %v6442 = vmul.f32 %v4577, %v6441
        %v6443 = vsub.f32 1.0, %v6442
        %v6444 = vmul.f32 %v6441, %v6443
        %v6445 = vadd.f32 %v6441, %v6444
        %vm6446 = vweird.f32 %v4577
        %vm6447 = vweird.f32 %v6441
        %vm6448 = vmor %vm6446, %vm6447
        %v6449 = vsel %vm6448, %v6441, %v6445
        %v6450 = vand.u32 2147483647, %v4577
        %vm6451 = vcmp.eq.f32.partialorder %v6450, 8.507059e+37
        %v6452 = vand.u32 %v4577, 2147483648
        %v6453 = vor.u32 1.1754944e-38, %v6452
        %v6454 = vsel %vm6451, %v6453, %v6449
        %v6455 = vmul.f32 %v3297, %v6454
        %v6456 = vrcp.pop %v4578
        %v6457 = vmul.f32 %v4578, %v6456
        %v6458 = vsub.f32 1.0, %v6457
        %v6459 = vmul.f32 %v6456, %v6458
        %v6460 = vadd.f32 %v6456, %v6459
        %vm6461 = vweird.f32 %v4578
        %vm6462 = vweird.f32 %v6456
        %vm6463 = vmor %vm6461, %vm6462
        %v6464 = vsel %vm6463, %v6456, %v6460
        %v6465 = vand.u32 2147483647, %v4578
        %vm6466 = vcmp.eq.f32.partialorder %v6465, 8.507059e+37
        %v6467 = vand.u32 %v4578, 2147483648
        %v6468 = vor.u32 1.1754944e-38, %v6467
        %v6469 = vsel %vm6466, %v6468, %v6464
        %v6470 = vmul.f32 %v3298, %v6469
        %v6471 = vrcp.pop %v4579
        %v6472 = vmul.f32 %v4579, %v6471
        %v6473 = vsub.f32 1.0, %v6472
        %v6474 = vmul.f32 %v6471, %v6473
        %v6475 = vadd.f32 %v6471, %v6474
        %vm6476 = vweird.f32 %v4579
        %vm6477 = vweird.f32 %v6471
        %vm6478 = vmor %vm6476, %vm6477
        %v6479 = vsel %vm6478, %v6471, %v6475
        %v6480 = vand.u32 2147483647, %v4579
        %vm6481 = vcmp.eq.f32.partialorder %v6480, 8.507059e+37
        %v6482 = vand.u32 %v4579, 2147483648
        %v6483 = vor.u32 1.1754944e-38, %v6482
        %v6484 = vsel %vm6481, %v6483, %v6479
        %v6485 = vmul.f32 %v3299, %v6484
        %v6486 = vrcp.pop %v4580
        %v6487 = vmul.f32 %v4580, %v6486
        %v6488 = vsub.f32 1.0, %v6487
        %v6489 = vmul.f32 %v6486, %v6488
        %v6490 = vadd.f32 %v6486, %v6489
        %vm6491 = vweird.f32 %v4580
        %vm6492 = vweird.f32 %v6486
        %vm6493 = vmor %vm6491, %vm6492
        %v6494 = vsel %vm6493, %v6486, %v6490
        %v6495 = vand.u32 2147483647, %v4580
        %vm6496 = vcmp.eq.f32.partialorder %v6495, 8.507059e+37
        %v6497 = vand.u32 %v4580, 2147483648
        %v6498 = vor.u32 1.1754944e-38, %v6497
        %v6499 = vsel %vm6496, %v6498, %v6494
        %v6500 = vmul.f32 %v3300, %v6499
        %6501 = vset.pattern.permute.xlu0 1
        %6502 = vperm.xlu0 %6501, %v351
        %v6503 = vpop.permute.xlu0 %6502
        %6505 = vset.pattern.permute.xlu0 1
        %6506 = vperm.xlu0 %6505, %v352
        %v6507 = vpop.permute.xlu0 %6506
        %6509 = vset.pattern.permute.xlu0 1
        %6510 = vperm.xlu0 %6509, %v353
        %v6511 = vpop.permute.xlu0 %6510
        %6513 = vset.pattern.permute.xlu0 1
        %6514 = vperm.xlu0 %6513, %v354
        %v6515 = vpop.permute.xlu0 %6514
        %vm6517 = vcmask 523264
        %v6519 = vsel %vm6517, %v1817, 0
        %v6522 = vsel %vm6517, %v1818, 0
        %v6525 = vsel %vm6517, %v1819, 0
        %v6528 = vsel %vm6517, %v1820, 0
        %6530 = vmatpush.msra.mxu0 0.0
        %6531 = vmatpush.msra.mxu0 0.0
        %6532 = vmatpush.msra.mxu0 0.0
        %6533 = vmatpush.msra.mxu0 0.0
        %6534 = vmatpush.msra.mxu0 0.0
        %6535 = vmatpush.msra.mxu0 0.0
        %6536 = vmatpush.msra.mxu0 0.0
        %6537 = vmatpush.msra.mxu0 0.0
        %6538 = vmatpush.msra.mxu0 %v6275
        %6539 = vmatpush.msra.mxu0 %v6035
        %6540 = vmatpush.msra.mxu0 %v5795
        %6541 = vmatpush.msra.mxu0 %v5555
        %6542 = vmatpush.msra.mxu0 %v5315
        %6543 = vmatpush.msra.mxu0 %v5075
        %6544 = vmatpush.msra.mxu0 %v4835
        %6545 = vmatpush.msra.mxu0 %v4595
        %6546 = vmatmul.f32.gmra.mxu0 %v6519
        %v6547 = vpop.f32.mrf.mxu0
        %v6548 = vadd.f32 %v6503, %v6547
        %6549 = vmatmul.f32.gmra.mxu0 %v6522
        %v6550 = vpop.f32.mrf.mxu0
        %v6551 = vadd.f32 %v6507, %v6550
        %6552 = vmatmul.f32.gmra.mxu0 %v6525
        %v6553 = vpop.f32.mrf.mxu0
        %v6554 = vadd.f32 %v6511, %v6553
        %6555 = vmatmul.f32.gmra.mxu0 %v6528
        %v6556 = vpop.f32.mrf.mxu0
        %v6557 = vadd.f32 %v6515, %v6556
        %6558 = vdwg.mxu0
        %6559 = vmatpush.msra.mxu0 0.0
        %6560 = vmatpush.msra.mxu0 0.0
        %6561 = vmatpush.msra.mxu0 0.0
        %6562 = vmatpush.msra.mxu0 0.0
        %6563 = vmatpush.msra.mxu0 0.0
        %6564 = vmatpush.msra.mxu0 0.0
        %6565 = vmatpush.msra.mxu0 0.0
        %6566 = vmatpush.msra.mxu0 0.0
        %6567 = vmatpush.msra.mxu0 %v6290
        %6568 = vmatpush.msra.mxu0 %v6050
        %6569 = vmatpush.msra.mxu0 %v5810
        %6570 = vmatpush.msra.mxu0 %v5570
        %6571 = vmatpush.msra.mxu0 %v5330
        %6572 = vmatpush.msra.mxu0 %v5090
        %6573 = vmatpush.msra.mxu0 %v4850
        %6574 = vmatpush.msra.mxu0 %v4610
        %6575 = vmatmul.f32.gmra.mxu0 %v6519
        %v6576 = vpop.f32.mrf.mxu0
        %v6577 = vadd.f32 %v6503, %v6576
        %6578 = vmatmul.f32.gmra.mxu0 %v6522
        %v6579 = vpop.f32.mrf.mxu0
        %v6580 = vadd.f32 %v6507, %v6579
        %6581 = vmatmul.f32.gmra.mxu0 %v6525
        %v6582 = vpop.f32.mrf.mxu0
        %v6583 = vadd.f32 %v6511, %v6582
        %6584 = vmatmul.f32.gmra.mxu0 %v6528
        %v6585 = vpop.f32.mrf.mxu0
        %v6586 = vadd.f32 %v6515, %v6585
        %6587 = vdwg.mxu0
        %6588 = vmatpush.msra.mxu0 0.0
        %6589 = vmatpush.msra.mxu0 0.0
        %6590 = vmatpush.msra.mxu0 0.0
        %6591 = vmatpush.msra.mxu0 0.0
        %6592 = vmatpush.msra.mxu0 0.0
        %6593 = vmatpush.msra.mxu0 0.0
        %6594 = vmatpush.msra.mxu0 0.0
        %6595 = vmatpush.msra.mxu0 0.0
        %6596 = vmatpush.msra.mxu0 %v6305
        %6597 = vmatpush.msra.mxu0 %v6065
        %6598 = vmatpush.msra.mxu0 %v5825
        %6599 = vmatpush.msra.mxu0 %v5585
        %6600 = vmatpush.msra.mxu0 %v5345
        %6601 = vmatpush.msra.mxu0 %v5105
        %6602 = vmatpush.msra.mxu0 %v4865
        %6603 = vmatpush.msra.mxu0 %v4625
        %6604 = vmatmul.f32.gmra.mxu0 %v6519
        %v6605 = vpop.f32.mrf.mxu0
        %v6606 = vadd.f32 %v6503, %v6605
        %6607 = vmatmul.f32.gmra.mxu0 %v6522
        %v6608 = vpop.f32.mrf.mxu0
        %v6609 = vadd.f32 %v6507, %v6608
        %6610 = vmatmul.f32.gmra.mxu0 %v6525
        %v6611 = vpop.f32.mrf.mxu0
        %v6612 = vadd.f32 %v6511, %v6611
        %6613 = vmatmul.f32.gmra.mxu0 %v6528
        %v6614 = vpop.f32.mrf.mxu0
        %v6615 = vadd.f32 %v6515, %v6614
        %6616 = vdwg.mxu0
        %6617 = vmatpush.msra.mxu0 0.0
        %6618 = vmatpush.msra.mxu0 0.0
        %6619 = vmatpush.msra.mxu0 0.0
        %6620 = vmatpush.msra.mxu0 0.0
        %6621 = vmatpush.msra.mxu0 0.0
        %6622 = vmatpush.msra.mxu0 0.0
        %6623 = vmatpush.msra.mxu0 0.0
        %6624 = vmatpush.msra.mxu0 0.0
        %6625 = vmatpush.msra.mxu0 %v6320
        %6626 = vmatpush.msra.mxu0 %v6080
        %6627 = vmatpush.msra.mxu0 %v5840
        %6628 = vmatpush.msra.mxu0 %v5600
        %6629 = vmatpush.msra.mxu0 %v5360
        %6630 = vmatpush.msra.mxu0 %v5120
        %6631 = vmatpush.msra.mxu0 %v4880
        %6632 = vmatpush.msra.mxu0 %v4640
        %6633 = vmatmul.f32.gmra.mxu0 %v6519
        %v6634 = vpop.f32.mrf.mxu0
        %v6635 = vadd.f32 %v6503, %v6634
        %6636 = vmatmul.f32.gmra.mxu0 %v6522
        %v6637 = vpop.f32.mrf.mxu0
        %v6638 = vadd.f32 %v6507, %v6637
        %6639 = vmatmul.f32.gmra.mxu0 %v6525
        %v6640 = vpop.f32.mrf.mxu0
        %v6641 = vadd.f32 %v6511, %v6640
        %6642 = vmatmul.f32.gmra.mxu0 %v6528
        %v6643 = vpop.f32.mrf.mxu0
        %v6644 = vadd.f32 %v6515, %v6643
        %6645 = vdwg.mxu0
        %6646 = vmatpush.msra.mxu0 0.0
        %6647 = vmatpush.msra.mxu0 0.0
        %6648 = vmatpush.msra.mxu0 0.0
        %6649 = vmatpush.msra.mxu0 0.0
        %6650 = vmatpush.msra.mxu0 0.0
        %6651 = vmatpush.msra.mxu0 0.0
        %6652 = vmatpush.msra.mxu0 0.0
        %6653 = vmatpush.msra.mxu0 0.0
        %6654 = vmatpush.msra.mxu0 %v6335
        %6655 = vmatpush.msra.mxu0 %v6095
        %6656 = vmatpush.msra.mxu0 %v5855
        %6657 = vmatpush.msra.mxu0 %v5615
        %6658 = vmatpush.msra.mxu0 %v5375
        %6659 = vmatpush.msra.mxu0 %v5135
        %6660 = vmatpush.msra.mxu0 %v4895
        %6661 = vmatpush.msra.mxu0 %v4655
        %6662 = vmatmul.f32.gmra.mxu0 %v6519
        %v6663 = vpop.f32.mrf.mxu0
        %v6664 = vadd.f32 %v6503, %v6663
        %6665 = vmatmul.f32.gmra.mxu0 %v6522
        %v6666 = vpop.f32.mrf.mxu0
        %v6667 = vadd.f32 %v6507, %v6666
        %6668 = vmatmul.f32.gmra.mxu0 %v6525
        %v6669 = vpop.f32.mrf.mxu0
        %v6670 = vadd.f32 %v6511, %v6669
        %6671 = vmatmul.f32.gmra.mxu0 %v6528
        %v6672 = vpop.f32.mrf.mxu0
        %v6673 = vadd.f32 %v6515, %v6672
        %6674 = vdwg.mxu0
        %6675 = vmatpush.msra.mxu0 0.0
        %6676 = vmatpush.msra.mxu0 0.0
        %6677 = vmatpush.msra.mxu0 0.0
        %6678 = vmatpush.msra.mxu0 0.0
        %6679 = vmatpush.msra.mxu0 0.0
        %6680 = vmatpush.msra.mxu0 0.0
        %6681 = vmatpush.msra.mxu0 0.0
        %6682 = vmatpush.msra.mxu0 0.0
        %6683 = vmatpush.msra.mxu0 %v6350
        %6684 = vmatpush.msra.mxu0 %v6110
        %6685 = vmatpush.msra.mxu0 %v5870
        %6686 = vmatpush.msra.mxu0 %v5630
        %6687 = vmatpush.msra.mxu0 %v5390
        %6688 = vmatpush.msra.mxu0 %v5150
        %6689 = vmatpush.msra.mxu0 %v4910
        %6690 = vmatpush.msra.mxu0 %v4670
        %6691 = vmatmul.f32.gmra.mxu0 %v6519
        %v6692 = vpop.f32.mrf.mxu0
        %v6693 = vadd.f32 %v6503, %v6692
        %6694 = vmatmul.f32.gmra.mxu0 %v6522
        %v6695 = vpop.f32.mrf.mxu0
        %v6696 = vadd.f32 %v6507, %v6695
        %6697 = vmatmul.f32.gmra.mxu0 %v6525
        %v6698 = vpop.f32.mrf.mxu0
        %v6699 = vadd.f32 %v6511, %v6698
        %6700 = vmatmul.f32.gmra.mxu0 %v6528
        %v6701 = vpop.f32.mrf.mxu0
        %v6702 = vadd.f32 %v6515, %v6701
        %6703 = vdwg.mxu0
        %6704 = vmatpush.msra.mxu0 0.0
        %6705 = vmatpush.msra.mxu0 0.0
        %6706 = vmatpush.msra.mxu0 0.0
        %6707 = vmatpush.msra.mxu0 0.0
        %6708 = vmatpush.msra.mxu0 0.0
        %6709 = vmatpush.msra.mxu0 0.0
        %6710 = vmatpush.msra.mxu0 0.0
        %6711 = vmatpush.msra.mxu0 0.0
        %6712 = vmatpush.msra.mxu0 %v6365
        %6713 = vmatpush.msra.mxu0 %v6125
        %6714 = vmatpush.msra.mxu0 %v5885
        %6715 = vmatpush.msra.mxu0 %v5645
        %6716 = vmatpush.msra.mxu0 %v5405
        %6717 = vmatpush.msra.mxu0 %v5165
        %6718 = vmatpush.msra.mxu0 %v4925
        %6719 = vmatpush.msra.mxu0 %v4685
        %6720 = vmatmul.f32.gmra.mxu0 %v6519
        %v6721 = vpop.f32.mrf.mxu0
        %v6722 = vadd.f32 %v6503, %v6721
        %6723 = vmatmul.f32.gmra.mxu0 %v6522
        %v6724 = vpop.f32.mrf.mxu0
        %v6725 = vadd.f32 %v6507, %v6724
        %6726 = vmatmul.f32.gmra.mxu0 %v6525
        %v6727 = vpop.f32.mrf.mxu0
        %v6728 = vadd.f32 %v6511, %v6727
        %6729 = vmatmul.f32.gmra.mxu0 %v6528
        %v6730 = vpop.f32.mrf.mxu0
        %v6731 = vadd.f32 %v6515, %v6730
        %6732 = vdwg.mxu0
        %6733 = vmatpush.msra.mxu0 0.0
        %6734 = vmatpush.msra.mxu0 0.0
        %6735 = vmatpush.msra.mxu0 0.0
        %6736 = vmatpush.msra.mxu0 0.0
        %6737 = vmatpush.msra.mxu0 0.0
        %6738 = vmatpush.msra.mxu0 0.0
        %6739 = vmatpush.msra.mxu0 0.0
        %6740 = vmatpush.msra.mxu0 0.0
        %6741 = vmatpush.msra.mxu0 %v6380
        %6742 = vmatpush.msra.mxu0 %v6140
        %6743 = vmatpush.msra.mxu0 %v5900
        %6744 = vmatpush.msra.mxu0 %v5660
        %6745 = vmatpush.msra.mxu0 %v5420
        %6746 = vmatpush.msra.mxu0 %v5180
        %6747 = vmatpush.msra.mxu0 %v4940
        %6748 = vmatpush.msra.mxu0 %v4700
        %6749 = vmatmul.f32.gmra.mxu0 %v6519
        %v6750 = vpop.f32.mrf.mxu0
        %v6751 = vadd.f32 %v6503, %v6750
        %6752 = vmatmul.f32.gmra.mxu0 %v6522
        %v6753 = vpop.f32.mrf.mxu0
        %v6754 = vadd.f32 %v6507, %v6753
        %6755 = vmatmul.f32.gmra.mxu0 %v6525
        %v6756 = vpop.f32.mrf.mxu0
        %v6757 = vadd.f32 %v6511, %v6756
        %6758 = vmatmul.f32.gmra.mxu0 %v6528
        %v6759 = vpop.f32.mrf.mxu0
        %v6760 = vadd.f32 %v6515, %v6759
        %6761 = vdwg.mxu0
        %6762 = vmatpush.msra.mxu0 0.0
        %6763 = vmatpush.msra.mxu0 0.0
        %6764 = vmatpush.msra.mxu0 0.0
        %6765 = vmatpush.msra.mxu0 0.0
        %6766 = vmatpush.msra.mxu0 0.0
        %6767 = vmatpush.msra.mxu0 0.0
        %6768 = vmatpush.msra.mxu0 0.0
        %6769 = vmatpush.msra.mxu0 0.0
        %6770 = vmatpush.msra.mxu0 %v6395
        %6771 = vmatpush.msra.mxu0 %v6155
        %6772 = vmatpush.msra.mxu0 %v5915
        %6773 = vmatpush.msra.mxu0 %v5675
        %6774 = vmatpush.msra.mxu0 %v5435
        %6775 = vmatpush.msra.mxu0 %v5195
        %6776 = vmatpush.msra.mxu0 %v4955
        %6777 = vmatpush.msra.mxu0 %v4715
        %6778 = vmatmul.f32.gmra.mxu0 %v6519
        %v6779 = vpop.f32.mrf.mxu0
        %v6780 = vadd.f32 %v6503, %v6779
        %6781 = vmatmul.f32.gmra.mxu0 %v6522
        %v6782 = vpop.f32.mrf.mxu0
        %v6783 = vadd.f32 %v6507, %v6782
        %6784 = vmatmul.f32.gmra.mxu0 %v6525
        %v6785 = vpop.f32.mrf.mxu0
        %v6786 = vadd.f32 %v6511, %v6785
        %6787 = vmatmul.f32.gmra.mxu0 %v6528
        %v6788 = vpop.f32.mrf.mxu0
        %v6789 = vadd.f32 %v6515, %v6788
        %6790 = vdwg.mxu0
        %6791 = vmatpush.msra.mxu0 0.0
        %6792 = vmatpush.msra.mxu0 0.0
        %6793 = vmatpush.msra.mxu0 0.0
        %6794 = vmatpush.msra.mxu0 0.0
        %6795 = vmatpush.msra.mxu0 0.0
        %6796 = vmatpush.msra.mxu0 0.0
        %6797 = vmatpush.msra.mxu0 0.0
        %6798 = vmatpush.msra.mxu0 0.0
        %6799 = vmatpush.msra.mxu0 %v6410
        %6800 = vmatpush.msra.mxu0 %v6170
        %6801 = vmatpush.msra.mxu0 %v5930
        %6802 = vmatpush.msra.mxu0 %v5690
        %6803 = vmatpush.msra.mxu0 %v5450
        %6804 = vmatpush.msra.mxu0 %v5210
        %6805 = vmatpush.msra.mxu0 %v4970
        %6806 = vmatpush.msra.mxu0 %v4730
        %6807 = vmatmul.f32.gmra.mxu0 %v6519
        %v6808 = vpop.f32.mrf.mxu0
        %v6809 = vadd.f32 %v6503, %v6808
        %6810 = vmatmul.f32.gmra.mxu0 %v6522
        %v6811 = vpop.f32.mrf.mxu0
        %v6812 = vadd.f32 %v6507, %v6811
        %6813 = vmatmul.f32.gmra.mxu0 %v6525
        %v6814 = vpop.f32.mrf.mxu0
        %v6815 = vadd.f32 %v6511, %v6814
        %6816 = vmatmul.f32.gmra.mxu0 %v6528
        %v6817 = vpop.f32.mrf.mxu0
        %v6818 = vadd.f32 %v6515, %v6817
        %6819 = vdwg.mxu0
        %6820 = vmatpush.msra.mxu0 0.0
        %6821 = vmatpush.msra.mxu0 0.0
        %6822 = vmatpush.msra.mxu0 0.0
        %6823 = vmatpush.msra.mxu0 0.0
        %6824 = vmatpush.msra.mxu0 0.0
        %6825 = vmatpush.msra.mxu0 0.0
        %6826 = vmatpush.msra.mxu0 0.0
        %6827 = vmatpush.msra.mxu0 0.0
        %6828 = vmatpush.msra.mxu0 %v6425
        %6829 = vmatpush.msra.mxu0 %v6185
        %6830 = vmatpush.msra.mxu0 %v5945
        %6831 = vmatpush.msra.mxu0 %v5705
        %6832 = vmatpush.msra.mxu0 %v5465
        %6833 = vmatpush.msra.mxu0 %v5225
        %6834 = vmatpush.msra.mxu0 %v4985
        %6835 = vmatpush.msra.mxu0 %v4745
        %6836 = vmatmul.f32.gmra.mxu0 %v6519
        %v6837 = vpop.f32.mrf.mxu0
        %v6838 = vadd.f32 %v6503, %v6837
        %6839 = vmatmul.f32.gmra.mxu0 %v6522
        %v6840 = vpop.f32.mrf.mxu0
        %v6841 = vadd.f32 %v6507, %v6840
        %6842 = vmatmul.f32.gmra.mxu0 %v6525
        %v6843 = vpop.f32.mrf.mxu0
        %v6844 = vadd.f32 %v6511, %v6843
        %6845 = vmatmul.f32.gmra.mxu0 %v6528
        %v6846 = vpop.f32.mrf.mxu0
        %v6847 = vadd.f32 %v6515, %v6846
        %6848 = vdwg.mxu0
        %6849 = vmatpush.msra.mxu0 0.0
        %6850 = vmatpush.msra.mxu0 0.0
        %6851 = vmatpush.msra.mxu0 0.0
        %6852 = vmatpush.msra.mxu0 0.0
        %6853 = vmatpush.msra.mxu0 0.0
        %6854 = vmatpush.msra.mxu0 0.0
        %6855 = vmatpush.msra.mxu0 0.0
        %6856 = vmatpush.msra.mxu0 0.0
        %6857 = vmatpush.msra.mxu0 %v6440
        %6858 = vmatpush.msra.mxu0 %v6200
        %6859 = vmatpush.msra.mxu0 %v5960
        %6860 = vmatpush.msra.mxu0 %v5720
        %6861 = vmatpush.msra.mxu0 %v5480
        %6862 = vmatpush.msra.mxu0 %v5240
        %6863 = vmatpush.msra.mxu0 %v5000
        %6864 = vmatpush.msra.mxu0 %v4760
        %6865 = vmatmul.f32.gmra.mxu0 %v6519
        %v6866 = vpop.f32.mrf.mxu0
        %v6867 = vadd.f32 %v6503, %v6866
        %6868 = vmatmul.f32.gmra.mxu0 %v6522
        %v6869 = vpop.f32.mrf.mxu0
        %v6870 = vadd.f32 %v6507, %v6869
        %6871 = vmatmul.f32.gmra.mxu0 %v6525
        %v6872 = vpop.f32.mrf.mxu0
        %v6873 = vadd.f32 %v6511, %v6872
        %6874 = vmatmul.f32.gmra.mxu0 %v6528
        %v6875 = vpop.f32.mrf.mxu0
        %v6876 = vadd.f32 %v6515, %v6875
        %6877 = vdwg.mxu0
        %6878 = vmatpush.msra.mxu0 0.0
        %6879 = vmatpush.msra.mxu0 0.0
        %6880 = vmatpush.msra.mxu0 0.0
        %6881 = vmatpush.msra.mxu0 0.0
        %6882 = vmatpush.msra.mxu0 0.0
        %6883 = vmatpush.msra.mxu0 0.0
        %6884 = vmatpush.msra.mxu0 0.0
        %6885 = vmatpush.msra.mxu0 0.0
        %6886 = vmatpush.msra.mxu0 %v6455
        %6887 = vmatpush.msra.mxu0 %v6215
        %6888 = vmatpush.msra.mxu0 %v5975
        %6889 = vmatpush.msra.mxu0 %v5735
        %6890 = vmatpush.msra.mxu0 %v5495
        %6891 = vmatpush.msra.mxu0 %v5255
        %6892 = vmatpush.msra.mxu0 %v5015
        %6893 = vmatpush.msra.mxu0 %v4775
        %6894 = vmatmul.f32.gmra.mxu0 %v6519
        %v6895 = vpop.f32.mrf.mxu0
        %v6896 = vadd.f32 %v6503, %v6895
        %6897 = vmatmul.f32.gmra.mxu0 %v6522
        %v6898 = vpop.f32.mrf.mxu0
        %v6899 = vadd.f32 %v6507, %v6898
        %6900 = vmatmul.f32.gmra.mxu0 %v6525
        %v6901 = vpop.f32.mrf.mxu0
        %v6902 = vadd.f32 %v6511, %v6901
        %6903 = vmatmul.f32.gmra.mxu0 %v6528
        %v6904 = vpop.f32.mrf.mxu0
        %v6905 = vadd.f32 %v6515, %v6904
        %6906 = vdwg.mxu0
        %6907 = vmatpush.msra.mxu0 0.0
        %6908 = vmatpush.msra.mxu0 0.0
        %6909 = vmatpush.msra.mxu0 0.0
        %6910 = vmatpush.msra.mxu0 0.0
        %6911 = vmatpush.msra.mxu0 0.0
        %6912 = vmatpush.msra.mxu0 0.0
        %6913 = vmatpush.msra.mxu0 0.0
        %6914 = vmatpush.msra.mxu0 0.0
        %6915 = vmatpush.msra.mxu0 %v6470
        %6916 = vmatpush.msra.mxu0 %v6230
        %6917 = vmatpush.msra.mxu0 %v5990
        %6918 = vmatpush.msra.mxu0 %v5750
        %6919 = vmatpush.msra.mxu0 %v5510
        %6920 = vmatpush.msra.mxu0 %v5270
        %6921 = vmatpush.msra.mxu0 %v5030
        %6922 = vmatpush.msra.mxu0 %v4790
        %6923 = vmatmul.f32.gmra.mxu0 %v6519
        %v6924 = vpop.f32.mrf.mxu0
        %v6925 = vadd.f32 %v6503, %v6924
        %6926 = vmatmul.f32.gmra.mxu0 %v6522
        %v6927 = vpop.f32.mrf.mxu0
        %v6928 = vadd.f32 %v6507, %v6927
        %6929 = vmatmul.f32.gmra.mxu0 %v6525
        %v6930 = vpop.f32.mrf.mxu0
        %v6931 = vadd.f32 %v6511, %v6930
        %6932 = vmatmul.f32.gmra.mxu0 %v6528
        %v6933 = vpop.f32.mrf.mxu0
        %v6934 = vadd.f32 %v6515, %v6933
        %6935 = vdwg.mxu0
        %6936 = vmatpush.msra.mxu0 0.0
        %6937 = vmatpush.msra.mxu0 0.0
        %6938 = vmatpush.msra.mxu0 0.0
        %6939 = vmatpush.msra.mxu0 0.0
        %6940 = vmatpush.msra.mxu0 0.0
        %6941 = vmatpush.msra.mxu0 0.0
        %6942 = vmatpush.msra.mxu0 0.0
        %6943 = vmatpush.msra.mxu0 0.0
        %6944 = vmatpush.msra.mxu0 %v6485
        %6945 = vmatpush.msra.mxu0 %v6245
        %6946 = vmatpush.msra.mxu0 %v6005
        %6947 = vmatpush.msra.mxu0 %v5765
        %6948 = vmatpush.msra.mxu0 %v5525
        %6949 = vmatpush.msra.mxu0 %v5285
        %6950 = vmatpush.msra.mxu0 %v5045
        %6951 = vmatpush.msra.mxu0 %v4805
        %6952 = vmatmul.f32.gmra.mxu0 %v6519
        %v6953 = vpop.f32.mrf.mxu0
        %v6954 = vadd.f32 %v6503, %v6953
        %6955 = vmatmul.f32.gmra.mxu0 %v6522
        %v6956 = vpop.f32.mrf.mxu0
        %v6957 = vadd.f32 %v6507, %v6956
        %6958 = vmatmul.f32.gmra.mxu0 %v6525
        %v6959 = vpop.f32.mrf.mxu0
        %v6960 = vadd.f32 %v6511, %v6959
        %6961 = vmatmul.f32.gmra.mxu0 %v6528
        %v6962 = vpop.f32.mrf.mxu0
        %v6963 = vadd.f32 %v6515, %v6962
        %6964 = vdwg.mxu0
        %6965 = vmatpush.msra.mxu0 0.0
        %6966 = vmatpush.msra.mxu0 0.0
        %6967 = vmatpush.msra.mxu0 0.0
        %6968 = vmatpush.msra.mxu0 0.0
        %6969 = vmatpush.msra.mxu0 0.0
        %6970 = vmatpush.msra.mxu0 0.0
        %6971 = vmatpush.msra.mxu0 0.0
        %6972 = vmatpush.msra.mxu0 0.0
        %6973 = vmatpush.msra.mxu0 %v6500
        %6974 = vmatpush.msra.mxu0 %v6260
        %6975 = vmatpush.msra.mxu0 %v6020
        %6976 = vmatpush.msra.mxu0 %v5780
        %6977 = vmatpush.msra.mxu0 %v5540
        %6978 = vmatpush.msra.mxu0 %v5300
        %6979 = vmatpush.msra.mxu0 %v5060
        %6980 = vmatpush.msra.mxu0 %v4820
        %6981 = vmatmul.f32.gmra.mxu0 %v6519
        %v6982 = vpop.f32.mrf.mxu0
        %v6983 = vadd.f32 %v6503, %v6982
        %6984 = vmatmul.f32.gmra.mxu0 %v6522
        %v6985 = vpop.f32.mrf.mxu0
        %v6986 = vadd.f32 %v6507, %v6985
        %6987 = vmatmul.f32.gmra.mxu0 %v6525
        %v6988 = vpop.f32.mrf.mxu0
        %v6989 = vadd.f32 %v6511, %v6988
        %6990 = vmatmul.f32.gmra.mxu0 %v6528
        %v6991 = vpop.f32.mrf.mxu0
        %v6992 = vadd.f32 %v6515, %v6991
        %6993 = vdwg.mxu0
        %v6994 = vmax.f32 %v6548, 0.0
        %v6995 = vmax.f32 %v6577, 0.0
        %v6996 = vmax.f32 %v6606, 0.0
        %v6997 = vmax.f32 %v6635, 0.0
        %v6998 = vmax.f32 %v6664, 0.0
        %v6999 = vmax.f32 %v6693, 0.0
        %v7000 = vmax.f32 %v6722, 0.0
        %v7001 = vmax.f32 %v6751, 0.0
        %v7002 = vmax.f32 %v6780, 0.0
        %v7003 = vmax.f32 %v6809, 0.0
        %v7004 = vmax.f32 %v6838, 0.0
        %v7005 = vmax.f32 %v6867, 0.0
        %v7006 = vmax.f32 %v6896, 0.0
        %v7007 = vmax.f32 %v6925, 0.0
        %v7008 = vmax.f32 %v6954, 0.0
        %v7009 = vmax.f32 %v6983, 0.0
        %v7010 = vmax.f32 %v6551, 0.0
        %v7011 = vmax.f32 %v6580, 0.0
        %v7012 = vmax.f32 %v6609, 0.0
        %v7013 = vmax.f32 %v6638, 0.0
        %v7014 = vmax.f32 %v6667, 0.0
        %v7015 = vmax.f32 %v6696, 0.0
        %v7016 = vmax.f32 %v6725, 0.0
        %v7017 = vmax.f32 %v6754, 0.0
        %v7018 = vmax.f32 %v6783, 0.0
        %v7019 = vmax.f32 %v6812, 0.0
        %v7020 = vmax.f32 %v6841, 0.0
        %v7021 = vmax.f32 %v6870, 0.0
        %v7022 = vmax.f32 %v6899, 0.0
        %v7023 = vmax.f32 %v6928, 0.0
        %v7024 = vmax.f32 %v6957, 0.0
        %v7025 = vmax.f32 %v6986, 0.0
        %v7026 = vmax.f32 %v6554, 0.0
        %v7027 = vmax.f32 %v6583, 0.0
        %v7028 = vmax.f32 %v6612, 0.0
        %v7029 = vmax.f32 %v6641, 0.0
        %v7030 = vmax.f32 %v6670, 0.0
        %v7031 = vmax.f32 %v6699, 0.0
        %v7032 = vmax.f32 %v6728, 0.0
        %v7033 = vmax.f32 %v6757, 0.0
        %v7034 = vmax.f32 %v6786, 0.0
        %v7035 = vmax.f32 %v6815, 0.0
        %v7036 = vmax.f32 %v6844, 0.0
        %v7037 = vmax.f32 %v6873, 0.0
        %v7038 = vmax.f32 %v6902, 0.0
        %v7039 = vmax.f32 %v6931, 0.0
        %v7040 = vmax.f32 %v6960, 0.0
        %v7041 = vmax.f32 %v6989, 0.0
        %v7042 = vmax.f32 %v6557, 0.0
        %v7043 = vmax.f32 %v6586, 0.0
        %v7044 = vmax.f32 %v6615, 0.0
        %v7045 = vmax.f32 %v6644, 0.0
        %v7046 = vmax.f32 %v6673, 0.0
        %v7047 = vmax.f32 %v6702, 0.0
        %v7048 = vmax.f32 %v6731, 0.0
        %v7049 = vmax.f32 %v6760, 0.0
        %v7050 = vmax.f32 %v6789, 0.0
        %v7051 = vmax.f32 %v6818, 0.0
        %v7052 = vmax.f32 %v6847, 0.0
        %v7053 = vmax.f32 %v6876, 0.0
        %v7054 = vmax.f32 %v6905, 0.0
        %v7055 = vmax.f32 %v6934, 0.0
        %v7056 = vmax.f32 %v6963, 0.0
        %v7057 = vmax.f32 %v6992, 0.0
        %v7058 = vld [vmem:[%s5] sm:$0x1]
        %7060 = vset.pattern.permute.xlu0 5
        %7061 = vperm.xlu0 %7060, %v347
        %v7062 = vpop.permute.xlu0 %7061
        %7065 = vset.pattern.permute.xlu0 5
        %7066 = vperm.xlu0 %7065, %v348
        %v7067 = vpop.permute.xlu0 %7066
        %7070 = vset.pattern.permute.xlu0 5
        %7071 = vperm.xlu0 %7070, %v349
        %v7072 = vpop.permute.xlu0 %7071
        %7075 = vset.pattern.permute.xlu0 5
        %7076 = vperm.xlu0 %7075, %v350
        %v7077 = vpop.permute.xlu0 %7076
        %v7079 = vmul.f32 %v7062, %v6994
        %v7080 = vmul.f32 %v7062, %v6995
        %v7081 = vmul.f32 %v7062, %v6996
        %v7082 = vmul.f32 %v7062, %v6997
        %v7083 = vmul.f32 %v7062, %v6998
        %v7084 = vmul.f32 %v7062, %v6999
        %v7085 = vmul.f32 %v7062, %v7000
        %v7086 = vmul.f32 %v7062, %v7001
        %v7087 = vmul.f32 %v7062, %v7002
        %v7088 = vmul.f32 %v7062, %v7003
        %v7089 = vmul.f32 %v7062, %v7004
        %v7090 = vmul.f32 %v7062, %v7005
        %v7091 = vmul.f32 %v7062, %v7006
        %v7092 = vmul.f32 %v7062, %v7007
        %v7093 = vmul.f32 %v7062, %v7008
        %v7094 = vmul.f32 %v7062, %v7009
        %v7095 = vmul.f32 %v7067, %v7010
        %v7096 = vmul.f32 %v7067, %v7011
        %v7097 = vmul.f32 %v7067, %v7012
        %v7098 = vmul.f32 %v7067, %v7013
        %v7099 = vmul.f32 %v7067, %v7014
        %v7100 = vmul.f32 %v7067, %v7015
        %v7101 = vmul.f32 %v7067, %v7016
        %v7102 = vmul.f32 %v7067, %v7017
        %v7103 = vmul.f32 %v7067, %v7018
        %v7104 = vmul.f32 %v7067, %v7019
        %v7105 = vmul.f32 %v7067, %v7020
        %v7106 = vmul.f32 %v7067, %v7021
        %v7107 = vmul.f32 %v7067, %v7022
        %v7108 = vmul.f32 %v7067, %v7023
        %v7109 = vmul.f32 %v7067, %v7024
        %v7110 = vmul.f32 %v7067, %v7025
        %v7111 = vmul.f32 %v7072, %v7026
        %v7112 = vmul.f32 %v7072, %v7027
        %v7113 = vmul.f32 %v7072, %v7028
        %v7114 = vmul.f32 %v7072, %v7029
        %v7115 = vmul.f32 %v7072, %v7030
        %v7116 = vmul.f32 %v7072, %v7031
        %v7117 = vmul.f32 %v7072, %v7032
        %v7118 = vmul.f32 %v7072, %v7033
        %v7119 = vmul.f32 %v7072, %v7034
        %v7120 = vmul.f32 %v7072, %v7035
        %v7121 = vmul.f32 %v7072, %v7036
        %v7122 = vmul.f32 %v7072, %v7037
        %v7123 = vmul.f32 %v7072, %v7038
        %v7124 = vmul.f32 %v7072, %v7039
        %v7125 = vmul.f32 %v7072, %v7040
        %v7126 = vmul.f32 %v7072, %v7041
        %v7127 = vmul.f32 %v7077, %v7042
        %v7128 = vmul.f32 %v7077, %v7043
        %v7129 = vmul.f32 %v7077, %v7044
        %v7130 = vmul.f32 %v7077, %v7045
        %v7131 = vmul.f32 %v7077, %v7046
        %v7132 = vmul.f32 %v7077, %v7047
        %v7133 = vmul.f32 %v7077, %v7048
        %v7134 = vmul.f32 %v7077, %v7049
        %v7135 = vmul.f32 %v7077, %v7050
        %v7136 = vmul.f32 %v7077, %v7051
        %v7137 = vmul.f32 %v7077, %v7052
        %v7138 = vmul.f32 %v7077, %v7053
        %v7139 = vmul.f32 %v7077, %v7054
        %v7140 = vmul.f32 %v7077, %v7055
        %v7141 = vmul.f32 %v7077, %v7056
        %v7142 = vmul.f32 %v7077, %v7057
        %7143 = vset.pattern.permute.xlu0 4
        %7144 = vperm.xlu0 %7143, %v347
        %v7145 = vpop.permute.xlu0 %7144
        %7147 = vset.pattern.permute.xlu0 4
        %7148 = vperm.xlu0 %7147, %v348
        %v7149 = vpop.permute.xlu0 %7148
        %7151 = vset.pattern.permute.xlu0 4
        %7152 = vperm.xlu0 %7151, %v349
        %v7153 = vpop.permute.xlu0 %7152
        %7155 = vset.pattern.permute.xlu0 4
        %7156 = vperm.xlu0 %7155, %v350
        %v7157 = vpop.permute.xlu0 %7156
        %v7159 = vadd.f32 %v7079, %v7145
        %v7160 = vadd.f32 %v7080, %v7145
        %v7161 = vadd.f32 %v7081, %v7145
        %v7162 = vadd.f32 %v7082, %v7145
        %v7163 = vadd.f32 %v7083, %v7145
        %v7164 = vadd.f32 %v7084, %v7145
        %v7165 = vadd.f32 %v7085, %v7145
        %v7166 = vadd.f32 %v7086, %v7145
        %v7167 = vadd.f32 %v7087, %v7145
        %v7168 = vadd.f32 %v7088, %v7145
        %v7169 = vadd.f32 %v7089, %v7145
        %v7170 = vadd.f32 %v7090, %v7145
        %v7171 = vadd.f32 %v7091, %v7145
        %v7172 = vadd.f32 %v7092, %v7145
        %v7173 = vadd.f32 %v7093, %v7145
        %v7174 = vadd.f32 %v7094, %v7145
        %v7175 = vadd.f32 %v7095, %v7149
        %v7176 = vadd.f32 %v7096, %v7149
        %v7177 = vadd.f32 %v7097, %v7149
        %v7178 = vadd.f32 %v7098, %v7149
        %v7179 = vadd.f32 %v7099, %v7149
        %v7180 = vadd.f32 %v7100, %v7149
        %v7181 = vadd.f32 %v7101, %v7149
        %v7182 = vadd.f32 %v7102, %v7149
        %v7183 = vadd.f32 %v7103, %v7149
        %v7184 = vadd.f32 %v7104, %v7149
        %v7185 = vadd.f32 %v7105, %v7149
        %v7186 = vadd.f32 %v7106, %v7149
        %v7187 = vadd.f32 %v7107, %v7149
        %v7188 = vadd.f32 %v7108, %v7149
        %v7189 = vadd.f32 %v7109, %v7149
        %v7190 = vadd.f32 %v7110, %v7149
        %v7191 = vadd.f32 %v7111, %v7153
        %v7192 = vadd.f32 %v7112, %v7153
        %v7193 = vadd.f32 %v7113, %v7153
        %v7194 = vadd.f32 %v7114, %v7153
        %v7195 = vadd.f32 %v7115, %v7153
        %v7196 = vadd.f32 %v7116, %v7153
        %v7197 = vadd.f32 %v7117, %v7153
        %v7198 = vadd.f32 %v7118, %v7153
        %v7199 = vadd.f32 %v7119, %v7153
        %v7200 = vadd.f32 %v7120, %v7153
        %v7201 = vadd.f32 %v7121, %v7153
        %v7202 = vadd.f32 %v7122, %v7153
        %v7203 = vadd.f32 %v7123, %v7153
        %v7204 = vadd.f32 %v7124, %v7153
        %v7205 = vadd.f32 %v7125, %v7153
        %v7206 = vadd.f32 %v7126, %v7153
        %v7207 = vadd.f32 %v7127, %v7157
        %v7208 = vadd.f32 %v7128, %v7157
        %v7209 = vadd.f32 %v7129, %v7157
        %v7210 = vadd.f32 %v7130, %v7157
        %v7211 = vadd.f32 %v7131, %v7157
        %v7212 = vadd.f32 %v7132, %v7157
        %v7213 = vadd.f32 %v7133, %v7157
        %v7214 = vadd.f32 %v7134, %v7157
        %v7215 = vadd.f32 %v7135, %v7157
        %v7216 = vadd.f32 %v7136, %v7157
        %v7217 = vadd.f32 %v7137, %v7157
        %v7218 = vadd.f32 %v7138, %v7157
        %v7219 = vadd.f32 %v7139, %v7157
        %v7220 = vadd.f32 %v7140, %v7157
        %v7221 = vadd.f32 %v7141, %v7157
        %v7222 = vadd.f32 %v7142, %v7157
        %v7223 = vmul.f32 %v7159, %v6994
        %v7224 = vmul.f32 %v7160, %v6995
        %v7225 = vmul.f32 %v7161, %v6996
        %v7226 = vmul.f32 %v7162, %v6997
        %v7227 = vmul.f32 %v7163, %v6998
        %v7228 = vmul.f32 %v7164, %v6999
        %v7229 = vmul.f32 %v7165, %v7000
        %v7230 = vmul.f32 %v7166, %v7001
        %v7231 = vmul.f32 %v7167, %v7002
        %v7232 = vmul.f32 %v7168, %v7003
        %v7233 = vmul.f32 %v7169, %v7004
        %v7234 = vmul.f32 %v7170, %v7005
        %v7235 = vmul.f32 %v7171, %v7006
        %v7236 = vmul.f32 %v7172, %v7007
        %v7237 = vmul.f32 %v7173, %v7008
        %v7238 = vmul.f32 %v7174, %v7009
        %v7239 = vmul.f32 %v7175, %v7010
        %v7240 = vmul.f32 %v7176, %v7011
        %v7241 = vmul.f32 %v7177, %v7012
        %v7242 = vmul.f32 %v7178, %v7013
        %v7243 = vmul.f32 %v7179, %v7014
        %v7244 = vmul.f32 %v7180, %v7015
        %v7245 = vmul.f32 %v7181, %v7016
        %v7246 = vmul.f32 %v7182, %v7017
        %v7247 = vmul.f32 %v7183, %v7018
        %v7248 = vmul.f32 %v7184, %v7019
        %v7249 = vmul.f32 %v7185, %v7020
        %v7250 = vmul.f32 %v7186, %v7021
        %v7251 = vmul.f32 %v7187, %v7022
        %v7252 = vmul.f32 %v7188, %v7023
        %v7253 = vmul.f32 %v7189, %v7024
        %v7254 = vmul.f32 %v7190, %v7025
        %v7255 = vmul.f32 %v7191, %v7026
        %v7256 = vmul.f32 %v7192, %v7027
        %v7257 = vmul.f32 %v7193, %v7028
        %v7258 = vmul.f32 %v7194, %v7029
        %v7259 = vmul.f32 %v7195, %v7030
        %v7260 = vmul.f32 %v7196, %v7031
        %v7261 = vmul.f32 %v7197, %v7032
        %v7262 = vmul.f32 %v7198, %v7033
        %v7263 = vmul.f32 %v7199, %v7034
        %v7264 = vmul.f32 %v7200, %v7035
        %v7265 = vmul.f32 %v7201, %v7036
        %v7266 = vmul.f32 %v7202, %v7037
        %v7267 = vmul.f32 %v7203, %v7038
        %v7268 = vmul.f32 %v7204, %v7039
        %v7269 = vmul.f32 %v7205, %v7040
        %v7270 = vmul.f32 %v7206, %v7041
        %v7271 = vmul.f32 %v7207, %v7042
        %v7272 = vmul.f32 %v7208, %v7043
        %v7273 = vmul.f32 %v7209, %v7044
        %v7274 = vmul.f32 %v7210, %v7045
        %v7275 = vmul.f32 %v7211, %v7046
        %v7276 = vmul.f32 %v7212, %v7047
        %v7277 = vmul.f32 %v7213, %v7048
        %v7278 = vmul.f32 %v7214, %v7049
        %v7279 = vmul.f32 %v7215, %v7050
        %v7280 = vmul.f32 %v7216, %v7051
        %v7281 = vmul.f32 %v7217, %v7052
        %v7282 = vmul.f32 %v7218, %v7053
        %v7283 = vmul.f32 %v7219, %v7054
        %v7284 = vmul.f32 %v7220, %v7055
        %v7285 = vmul.f32 %v7221, %v7056
        %v7286 = vmul.f32 %v7222, %v7057
        %7287 = vset.pattern.permute.xlu0 3
        %7288 = vperm.xlu0 %7287, %v347
        %v7289 = vpop.permute.xlu0 %7288
        %7291 = vset.pattern.permute.xlu0 3
        %7292 = vperm.xlu0 %7291, %v348
        %v7293 = vpop.permute.xlu0 %7292
        %7295 = vset.pattern.permute.xlu0 3
        %7296 = vperm.xlu0 %7295, %v349
        %v7297 = vpop.permute.xlu0 %7296
        %7299 = vset.pattern.permute.xlu0 3
        %7300 = vperm.xlu0 %7299, %v350
        %v7301 = vpop.permute.xlu0 %7300
        %v7303 = vadd.f32 %v7223, %v7289
        %v7304 = vadd.f32 %v7224, %v7289
        %v7305 = vadd.f32 %v7225, %v7289
        %v7306 = vadd.f32 %v7226, %v7289
        %v7307 = vadd.f32 %v7227, %v7289
        %v7308 = vadd.f32 %v7228, %v7289
        %v7309 = vadd.f32 %v7229, %v7289
        %v7310 = vadd.f32 %v7230, %v7289
        %v7311 = vadd.f32 %v7231, %v7289
        %v7312 = vadd.f32 %v7232, %v7289
        %v7313 = vadd.f32 %v7233, %v7289
        %v7314 = vadd.f32 %v7234, %v7289
        %v7315 = vadd.f32 %v7235, %v7289
        %v7316 = vadd.f32 %v7236, %v7289
        %v7317 = vadd.f32 %v7237, %v7289
        %v7318 = vadd.f32 %v7238, %v7289
        %v7319 = vadd.f32 %v7239, %v7293
        %v7320 = vadd.f32 %v7240, %v7293
        %v7321 = vadd.f32 %v7241, %v7293
        %v7322 = vadd.f32 %v7242, %v7293
        %v7323 = vadd.f32 %v7243, %v7293
        %v7324 = vadd.f32 %v7244, %v7293
        %v7325 = vadd.f32 %v7245, %v7293
        %v7326 = vadd.f32 %v7246, %v7293
        %v7327 = vadd.f32 %v7247, %v7293
        %v7328 = vadd.f32 %v7248, %v7293
        %v7329 = vadd.f32 %v7249, %v7293
        %v7330 = vadd.f32 %v7250, %v7293
        %v7331 = vadd.f32 %v7251, %v7293
        %v7332 = vadd.f32 %v7252, %v7293
        %v7333 = vadd.f32 %v7253, %v7293
        %v7334 = vadd.f32 %v7254, %v7293
        %v7335 = vadd.f32 %v7255, %v7297
        %v7336 = vadd.f32 %v7256, %v7297
        %v7337 = vadd.f32 %v7257, %v7297
        %v7338 = vadd.f32 %v7258, %v7297
        %v7339 = vadd.f32 %v7259, %v7297
        %v7340 = vadd.f32 %v7260, %v7297
        %v7341 = vadd.f32 %v7261, %v7297
        %v7342 = vadd.f32 %v7262, %v7297
        %v7343 = vadd.f32 %v7263, %v7297
        %v7344 = vadd.f32 %v7264, %v7297
        %v7345 = vadd.f32 %v7265, %v7297
        %v7346 = vadd.f32 %v7266, %v7297
        %v7347 = vadd.f32 %v7267, %v7297
        %v7348 = vadd.f32 %v7268, %v7297
        %v7349 = vadd.f32 %v7269, %v7297
        %v7350 = vadd.f32 %v7270, %v7297
        %v7351 = vadd.f32 %v7271, %v7301
        %v7352 = vadd.f32 %v7272, %v7301
        %v7353 = vadd.f32 %v7273, %v7301
        %v7354 = vadd.f32 %v7274, %v7301
        %v7355 = vadd.f32 %v7275, %v7301
        %v7356 = vadd.f32 %v7276, %v7301
        %v7357 = vadd.f32 %v7277, %v7301
        %v7358 = vadd.f32 %v7278, %v7301
        %v7359 = vadd.f32 %v7279, %v7301
        %v7360 = vadd.f32 %v7280, %v7301
        %v7361 = vadd.f32 %v7281, %v7301
        %v7362 = vadd.f32 %v7282, %v7301
        %v7363 = vadd.f32 %v7283, %v7301
        %v7364 = vadd.f32 %v7284, %v7301
        %v7365 = vadd.f32 %v7285, %v7301
        %v7366 = vadd.f32 %v7286, %v7301
        %v7367 = vmul.f32 %v7303, %v6994
        %v7368 = vmul.f32 %v7304, %v6995
        %v7369 = vmul.f32 %v7305, %v6996
        %v7370 = vmul.f32 %v7306, %v6997
        %v7371 = vmul.f32 %v7307, %v6998
        %v7372 = vmul.f32 %v7308, %v6999
        %v7373 = vmul.f32 %v7309, %v7000
        %v7374 = vmul.f32 %v7310, %v7001
        %v7375 = vmul.f32 %v7311, %v7002
        %v7376 = vmul.f32 %v7312, %v7003
        %v7377 = vmul.f32 %v7313, %v7004
        %v7378 = vmul.f32 %v7314, %v7005
        %v7379 = vmul.f32 %v7315, %v7006
        %v7380 = vmul.f32 %v7316, %v7007
        %v7381 = vmul.f32 %v7317, %v7008
        %v7382 = vmul.f32 %v7318, %v7009
        %v7383 = vmul.f32 %v7319, %v7010
        %v7384 = vmul.f32 %v7320, %v7011
        %v7385 = vmul.f32 %v7321, %v7012
        %v7386 = vmul.f32 %v7322, %v7013
        %v7387 = vmul.f32 %v7323, %v7014
        %v7388 = vmul.f32 %v7324, %v7015
        %v7389 = vmul.f32 %v7325, %v7016
        %v7390 = vmul.f32 %v7326, %v7017
        %v7391 = vmul.f32 %v7327, %v7018
        %v7392 = vmul.f32 %v7328, %v7019
        %v7393 = vmul.f32 %v7329, %v7020
        %v7394 = vmul.f32 %v7330, %v7021
        %v7395 = vmul.f32 %v7331, %v7022
        %v7396 = vmul.f32 %v7332, %v7023
        %v7397 = vmul.f32 %v7333, %v7024
        %v7398 = vmul.f32 %v7334, %v7025
        %v7399 = vmul.f32 %v7335, %v7026
        %v7400 = vmul.f32 %v7336, %v7027
        %v7401 = vmul.f32 %v7337, %v7028
        %v7402 = vmul.f32 %v7338, %v7029
        %v7403 = vmul.f32 %v7339, %v7030
        %v7404 = vmul.f32 %v7340, %v7031
        %v7405 = vmul.f32 %v7341, %v7032
        %v7406 = vmul.f32 %v7342, %v7033
        %v7407 = vmul.f32 %v7343, %v7034
        %v7408 = vmul.f32 %v7344, %v7035
        %v7409 = vmul.f32 %v7345, %v7036
        %v7410 = vmul.f32 %v7346, %v7037
        %v7411 = vmul.f32 %v7347, %v7038
        %v7412 = vmul.f32 %v7348, %v7039
        %v7413 = vmul.f32 %v7349, %v7040
        %v7414 = vmul.f32 %v7350, %v7041
        %v7415 = vmul.f32 %v7351, %v7042
        %v7416 = vmul.f32 %v7352, %v7043
        %v7417 = vmul.f32 %v7353, %v7044
        %v7418 = vmul.f32 %v7354, %v7045
        %v7419 = vmul.f32 %v7355, %v7046
        %v7420 = vmul.f32 %v7356, %v7047
        %v7421 = vmul.f32 %v7357, %v7048
        %v7422 = vmul.f32 %v7358, %v7049
        %v7423 = vmul.f32 %v7359, %v7050
        %v7424 = vmul.f32 %v7360, %v7051
        %v7425 = vmul.f32 %v7361, %v7052
        %v7426 = vmul.f32 %v7362, %v7053
        %v7427 = vmul.f32 %v7363, %v7054
        %v7428 = vmul.f32 %v7364, %v7055
        %v7429 = vmul.f32 %v7365, %v7056
        %v7430 = vmul.f32 %v7366, %v7057
        %7431 = vset.pattern.permute.xlu0 2
        %7432 = vperm.xlu0 %7431, %v347
        %v7433 = vpop.permute.xlu0 %7432
        %7435 = vset.pattern.permute.xlu0 2
        %7436 = vperm.xlu0 %7435, %v348
        %v7437 = vpop.permute.xlu0 %7436
        %7439 = vset.pattern.permute.xlu0 2
        %7440 = vperm.xlu0 %7439, %v349
        %v7441 = vpop.permute.xlu0 %7440
        %7443 = vset.pattern.permute.xlu0 2
        %7444 = vperm.xlu0 %7443, %v350
        %v7445 = vpop.permute.xlu0 %7444
        %v7447 = vadd.f32 %v7367, %v7433
        %v7448 = vadd.f32 %v7368, %v7433
        %v7449 = vadd.f32 %v7369, %v7433
        %v7450 = vadd.f32 %v7370, %v7433
        %v7451 = vadd.f32 %v7371, %v7433
        %v7452 = vadd.f32 %v7372, %v7433
        %v7453 = vadd.f32 %v7373, %v7433
        %v7454 = vadd.f32 %v7374, %v7433
        %v7455 = vadd.f32 %v7375, %v7433
        %v7456 = vadd.f32 %v7376, %v7433
        %v7457 = vadd.f32 %v7377, %v7433
        %v7458 = vadd.f32 %v7378, %v7433
        %v7459 = vadd.f32 %v7379, %v7433
        %v7460 = vadd.f32 %v7380, %v7433
        %v7461 = vadd.f32 %v7381, %v7433
        %v7462 = vadd.f32 %v7382, %v7433
        %v7463 = vadd.f32 %v7383, %v7437
        %v7464 = vadd.f32 %v7384, %v7437
        %v7465 = vadd.f32 %v7385, %v7437
        %v7466 = vadd.f32 %v7386, %v7437
        %v7467 = vadd.f32 %v7387, %v7437
        %v7468 = vadd.f32 %v7388, %v7437
        %v7469 = vadd.f32 %v7389, %v7437
        %v7470 = vadd.f32 %v7390, %v7437
        %v7471 = vadd.f32 %v7391, %v7437
        %v7472 = vadd.f32 %v7392, %v7437
        %v7473 = vadd.f32 %v7393, %v7437
        %v7474 = vadd.f32 %v7394, %v7437
        %v7475 = vadd.f32 %v7395, %v7437
        %v7476 = vadd.f32 %v7396, %v7437
        %v7477 = vadd.f32 %v7397, %v7437
        %v7478 = vadd.f32 %v7398, %v7437
        %v7479 = vadd.f32 %v7399, %v7441
        %v7480 = vadd.f32 %v7400, %v7441
        %v7481 = vadd.f32 %v7401, %v7441
        %v7482 = vadd.f32 %v7402, %v7441
        %v7483 = vadd.f32 %v7403, %v7441
        %v7484 = vadd.f32 %v7404, %v7441
        %v7485 = vadd.f32 %v7405, %v7441
        %v7486 = vadd.f32 %v7406, %v7441
        %v7487 = vadd.f32 %v7407, %v7441
        %v7488 = vadd.f32 %v7408, %v7441
        %v7489 = vadd.f32 %v7409, %v7441
        %v7490 = vadd.f32 %v7410, %v7441
        %v7491 = vadd.f32 %v7411, %v7441
        %v7492 = vadd.f32 %v7412, %v7441
        %v7493 = vadd.f32 %v7413, %v7441
        %v7494 = vadd.f32 %v7414, %v7441
        %v7495 = vadd.f32 %v7415, %v7445
        %v7496 = vadd.f32 %v7416, %v7445
        %v7497 = vadd.f32 %v7417, %v7445
        %v7498 = vadd.f32 %v7418, %v7445
        %v7499 = vadd.f32 %v7419, %v7445
        %v7500 = vadd.f32 %v7420, %v7445
        %v7501 = vadd.f32 %v7421, %v7445
        %v7502 = vadd.f32 %v7422, %v7445
        %v7503 = vadd.f32 %v7423, %v7445
        %v7504 = vadd.f32 %v7424, %v7445
        %v7505 = vadd.f32 %v7425, %v7445
        %v7506 = vadd.f32 %v7426, %v7445
        %v7507 = vadd.f32 %v7427, %v7445
        %v7508 = vadd.f32 %v7428, %v7445
        %v7509 = vadd.f32 %v7429, %v7445
        %v7510 = vadd.f32 %v7430, %v7445
        %v7511 = vmul.f32 %v7447, %v6994
        %v7512 = vmul.f32 %v7448, %v6995
        %v7513 = vmul.f32 %v7449, %v6996
        %v7514 = vmul.f32 %v7450, %v6997
        %v7515 = vmul.f32 %v7451, %v6998
        %v7516 = vmul.f32 %v7452, %v6999
        %v7517 = vmul.f32 %v7453, %v7000
        %v7518 = vmul.f32 %v7454, %v7001
        %v7519 = vmul.f32 %v7455, %v7002
        %v7520 = vmul.f32 %v7456, %v7003
        %v7521 = vmul.f32 %v7457, %v7004
        %v7522 = vmul.f32 %v7458, %v7005
        %v7523 = vmul.f32 %v7459, %v7006
        %v7524 = vmul.f32 %v7460, %v7007
        %v7525 = vmul.f32 %v7461, %v7008
        %v7526 = vmul.f32 %v7462, %v7009
        %v7527 = vmul.f32 %v7463, %v7010
        %v7528 = vmul.f32 %v7464, %v7011
        %v7529 = vmul.f32 %v7465, %v7012
        %v7530 = vmul.f32 %v7466, %v7013
        %v7531 = vmul.f32 %v7467, %v7014
        %v7532 = vmul.f32 %v7468, %v7015
        %v7533 = vmul.f32 %v7469, %v7016
        %v7534 = vmul.f32 %v7470, %v7017
        %v7535 = vmul.f32 %v7471, %v7018
        %v7536 = vmul.f32 %v7472, %v7019
        %v7537 = vmul.f32 %v7473, %v7020
        %v7538 = vmul.f32 %v7474, %v7021
        %v7539 = vmul.f32 %v7475, %v7022
        %v7540 = vmul.f32 %v7476, %v7023
        %v7541 = vmul.f32 %v7477, %v7024
        %v7542 = vmul.f32 %v7478, %v7025
        %v7543 = vmul.f32 %v7479, %v7026
        %v7544 = vmul.f32 %v7480, %v7027
        %v7545 = vmul.f32 %v7481, %v7028
        %v7546 = vmul.f32 %v7482, %v7029
        %v7547 = vmul.f32 %v7483, %v7030
        %v7548 = vmul.f32 %v7484, %v7031
        %v7549 = vmul.f32 %v7485, %v7032
        %v7550 = vmul.f32 %v7486, %v7033
        %v7551 = vmul.f32 %v7487, %v7034
        %v7552 = vmul.f32 %v7488, %v7035
        %v7553 = vmul.f32 %v7489, %v7036
        %v7554 = vmul.f32 %v7490, %v7037
        %v7555 = vmul.f32 %v7491, %v7038
        %v7556 = vmul.f32 %v7492, %v7039
        %v7557 = vmul.f32 %v7493, %v7040
        %v7558 = vmul.f32 %v7494, %v7041
        %v7559 = vmul.f32 %v7495, %v7042
        %v7560 = vmul.f32 %v7496, %v7043
        %v7561 = vmul.f32 %v7497, %v7044
        %v7562 = vmul.f32 %v7498, %v7045
        %v7563 = vmul.f32 %v7499, %v7046
        %v7564 = vmul.f32 %v7500, %v7047
        %v7565 = vmul.f32 %v7501, %v7048
        %v7566 = vmul.f32 %v7502, %v7049
        %v7567 = vmul.f32 %v7503, %v7050
        %v7568 = vmul.f32 %v7504, %v7051
        %v7569 = vmul.f32 %v7505, %v7052
        %v7570 = vmul.f32 %v7506, %v7053
        %v7571 = vmul.f32 %v7507, %v7054
        %v7572 = vmul.f32 %v7508, %v7055
        %v7573 = vmul.f32 %v7509, %v7056
        %v7574 = vmul.f32 %v7510, %v7057
        %7575 = vset.pattern.permute.xlu0 1
        %7576 = vperm.xlu0 %7575, %v347
        %v7577 = vpop.permute.xlu0 %7576
        %7579 = vset.pattern.permute.xlu0 1
        %7580 = vperm.xlu0 %7579, %v348
        %v7581 = vpop.permute.xlu0 %7580
        %7583 = vset.pattern.permute.xlu0 1
        %7584 = vperm.xlu0 %7583, %v349
        %v7585 = vpop.permute.xlu0 %7584
        %7587 = vset.pattern.permute.xlu0 1
        %7588 = vperm.xlu0 %7587, %v350
        %v7589 = vpop.permute.xlu0 %7588
        %v7591 = vadd.f32 %v7511, %v7577
        %v7592 = vadd.f32 %v7512, %v7577
        %v7593 = vadd.f32 %v7513, %v7577
        %v7594 = vadd.f32 %v7514, %v7577
        %v7595 = vadd.f32 %v7515, %v7577
        %v7596 = vadd.f32 %v7516, %v7577
        %v7597 = vadd.f32 %v7517, %v7577
        %v7598 = vadd.f32 %v7518, %v7577
        %v7599 = vadd.f32 %v7519, %v7577
        %v7600 = vadd.f32 %v7520, %v7577
        %v7601 = vadd.f32 %v7521, %v7577
        %v7602 = vadd.f32 %v7522, %v7577
        %v7603 = vadd.f32 %v7523, %v7577
        %v7604 = vadd.f32 %v7524, %v7577
        %v7605 = vadd.f32 %v7525, %v7577
        %v7606 = vadd.f32 %v7526, %v7577
        %v7607 = vadd.f32 %v7527, %v7581
        %v7608 = vadd.f32 %v7528, %v7581
        %v7609 = vadd.f32 %v7529, %v7581
        %v7610 = vadd.f32 %v7530, %v7581
        %v7611 = vadd.f32 %v7531, %v7581
        %v7612 = vadd.f32 %v7532, %v7581
        %v7613 = vadd.f32 %v7533, %v7581
        %v7614 = vadd.f32 %v7534, %v7581
        %v7615 = vadd.f32 %v7535, %v7581
        %v7616 = vadd.f32 %v7536, %v7581
        %v7617 = vadd.f32 %v7537, %v7581
        %v7618 = vadd.f32 %v7538, %v7581
        %v7619 = vadd.f32 %v7539, %v7581
        %v7620 = vadd.f32 %v7540, %v7581
        %v7621 = vadd.f32 %v7541, %v7581
        %v7622 = vadd.f32 %v7542, %v7581
        %v7623 = vadd.f32 %v7543, %v7585
        %v7624 = vadd.f32 %v7544, %v7585
        %v7625 = vadd.f32 %v7545, %v7585
        %v7626 = vadd.f32 %v7546, %v7585
        %v7627 = vadd.f32 %v7547, %v7585
        %v7628 = vadd.f32 %v7548, %v7585
        %v7629 = vadd.f32 %v7549, %v7585
        %v7630 = vadd.f32 %v7550, %v7585
        %v7631 = vadd.f32 %v7551, %v7585
        %v7632 = vadd.f32 %v7552, %v7585
        %v7633 = vadd.f32 %v7553, %v7585
        %v7634 = vadd.f32 %v7554, %v7585
        %v7635 = vadd.f32 %v7555, %v7585
        %v7636 = vadd.f32 %v7556, %v7585
        %v7637 = vadd.f32 %v7557, %v7585
        %v7638 = vadd.f32 %v7558, %v7585
        %v7639 = vadd.f32 %v7559, %v7589
        %v7640 = vadd.f32 %v7560, %v7589
        %v7641 = vadd.f32 %v7561, %v7589
        %v7642 = vadd.f32 %v7562, %v7589
        %v7643 = vadd.f32 %v7563, %v7589
        %v7644 = vadd.f32 %v7564, %v7589
        %v7645 = vadd.f32 %v7565, %v7589
        %v7646 = vadd.f32 %v7566, %v7589
        %v7647 = vadd.f32 %v7567, %v7589
        %v7648 = vadd.f32 %v7568, %v7589
        %v7649 = vadd.f32 %v7569, %v7589
        %v7650 = vadd.f32 %v7570, %v7589
        %v7651 = vadd.f32 %v7571, %v7589
        %v7652 = vadd.f32 %v7572, %v7589
        %v7653 = vadd.f32 %v7573, %v7589
        %v7654 = vadd.f32 %v7574, %v7589
        %v7655 = vmul.f32 %v7591, %v6994
        %v7656 = vmul.f32 %v7592, %v6995
        %v7657 = vmul.f32 %v7593, %v6996
        %v7658 = vmul.f32 %v7594, %v6997
        %v7659 = vmul.f32 %v7595, %v6998
        %v7660 = vmul.f32 %v7596, %v6999
        %v7661 = vmul.f32 %v7597, %v7000
        %v7662 = vmul.f32 %v7598, %v7001
        %v7663 = vmul.f32 %v7599, %v7002
        %v7664 = vmul.f32 %v7600, %v7003
        %v7665 = vmul.f32 %v7601, %v7004
        %v7666 = vmul.f32 %v7602, %v7005
        %v7667 = vmul.f32 %v7603, %v7006
        %v7668 = vmul.f32 %v7604, %v7007
        %v7669 = vmul.f32 %v7605, %v7008
        %v7670 = vmul.f32 %v7606, %v7009
        %v7671 = vmul.f32 %v7607, %v7010
        %v7672 = vmul.f32 %v7608, %v7011
        %v7673 = vmul.f32 %v7609, %v7012
        %v7674 = vmul.f32 %v7610, %v7013
        %v7675 = vmul.f32 %v7611, %v7014
        %v7676 = vmul.f32 %v7612, %v7015
        %v7677 = vmul.f32 %v7613, %v7016
        %v7678 = vmul.f32 %v7614, %v7017
        %v7679 = vmul.f32 %v7615, %v7018
        %v7680 = vmul.f32 %v7616, %v7019
        %v7681 = vmul.f32 %v7617, %v7020
        %v7682 = vmul.f32 %v7618, %v7021
        %v7683 = vmul.f32 %v7619, %v7022
        %v7684 = vmul.f32 %v7620, %v7023
        %v7685 = vmul.f32 %v7621, %v7024
        %v7686 = vmul.f32 %v7622, %v7025
        %v7687 = vmul.f32 %v7623, %v7026
        %v7688 = vmul.f32 %v7624, %v7027
        %v7689 = vmul.f32 %v7625, %v7028
        %v7690 = vmul.f32 %v7626, %v7029
        %v7691 = vmul.f32 %v7627, %v7030
        %v7692 = vmul.f32 %v7628, %v7031
        %v7693 = vmul.f32 %v7629, %v7032
        %v7694 = vmul.f32 %v7630, %v7033
        %v7695 = vmul.f32 %v7631, %v7034
        %v7696 = vmul.f32 %v7632, %v7035
        %v7697 = vmul.f32 %v7633, %v7036
        %v7698 = vmul.f32 %v7634, %v7037
        %v7699 = vmul.f32 %v7635, %v7038
        %v7700 = vmul.f32 %v7636, %v7039
        %v7701 = vmul.f32 %v7637, %v7040
        %v7702 = vmul.f32 %v7638, %v7041
        %v7703 = vmul.f32 %v7639, %v7042
        %v7704 = vmul.f32 %v7640, %v7043
        %v7705 = vmul.f32 %v7641, %v7044
        %v7706 = vmul.f32 %v7642, %v7045
        %v7707 = vmul.f32 %v7643, %v7046
        %v7708 = vmul.f32 %v7644, %v7047
        %v7709 = vmul.f32 %v7645, %v7048
        %v7710 = vmul.f32 %v7646, %v7049
        %v7711 = vmul.f32 %v7647, %v7050
        %v7712 = vmul.f32 %v7648, %v7051
        %v7713 = vmul.f32 %v7649, %v7052
        %v7714 = vmul.f32 %v7650, %v7053
        %v7715 = vmul.f32 %v7651, %v7054
        %v7716 = vmul.f32 %v7652, %v7055
        %v7717 = vmul.f32 %v7653, %v7056
        %v7718 = vmul.f32 %v7654, %v7057
        %7719 = vset.pattern.permute.xlu0 0
        %7720 = vperm.xlu0 %7719, %v347
        %v7721 = vpop.permute.xlu0 %7720
        %7723 = vset.pattern.permute.xlu0 0
        %7724 = vperm.xlu0 %7723, %v348
        %v7725 = vpop.permute.xlu0 %7724
        %7727 = vset.pattern.permute.xlu0 0
        %7728 = vperm.xlu0 %7727, %v349
        %v7729 = vpop.permute.xlu0 %7728
        %7731 = vset.pattern.permute.xlu0 0
        %7732 = vperm.xlu0 %7731, %v350
        %v7733 = vpop.permute.xlu0 %7732
        %v7735 = vadd.f32 %v7655, %v7721
        %v7736 = vadd.f32 %v7656, %v7721
        %v7737 = vadd.f32 %v7657, %v7721
        %v7738 = vadd.f32 %v7658, %v7721
        %v7739 = vadd.f32 %v7659, %v7721
        %v7740 = vadd.f32 %v7660, %v7721
        %v7741 = vadd.f32 %v7661, %v7721
        %v7742 = vadd.f32 %v7662, %v7721
        %v7743 = vadd.f32 %v7663, %v7721
        %v7744 = vadd.f32 %v7664, %v7721
        %v7745 = vadd.f32 %v7665, %v7721
        %v7746 = vadd.f32 %v7666, %v7721
        %v7747 = vadd.f32 %v7667, %v7721
        %v7748 = vadd.f32 %v7668, %v7721
        %v7749 = vadd.f32 %v7669, %v7721
        %v7750 = vadd.f32 %v7670, %v7721
        %v7751 = vadd.f32 %v7671, %v7725
        %v7752 = vadd.f32 %v7672, %v7725
        %v7753 = vadd.f32 %v7673, %v7725
        %v7754 = vadd.f32 %v7674, %v7725
        %v7755 = vadd.f32 %v7675, %v7725
        %v7756 = vadd.f32 %v7676, %v7725
        %v7757 = vadd.f32 %v7677, %v7725
        %v7758 = vadd.f32 %v7678, %v7725
        %v7759 = vadd.f32 %v7679, %v7725
        %v7760 = vadd.f32 %v7680, %v7725
        %v7761 = vadd.f32 %v7681, %v7725
        %v7762 = vadd.f32 %v7682, %v7725
        %v7763 = vadd.f32 %v7683, %v7725
        %v7764 = vadd.f32 %v7684, %v7725
        %v7765 = vadd.f32 %v7685, %v7725
        %v7766 = vadd.f32 %v7686, %v7725
        %v7767 = vadd.f32 %v7687, %v7729
        %v7768 = vadd.f32 %v7688, %v7729
        %v7769 = vadd.f32 %v7689, %v7729
        %v7770 = vadd.f32 %v7690, %v7729
        %v7771 = vadd.f32 %v7691, %v7729
        %v7772 = vadd.f32 %v7692, %v7729
        %v7773 = vadd.f32 %v7693, %v7729
        %v7774 = vadd.f32 %v7694, %v7729
        %v7775 = vadd.f32 %v7695, %v7729
        %v7776 = vadd.f32 %v7696, %v7729
        %v7777 = vadd.f32 %v7697, %v7729
        %v7778 = vadd.f32 %v7698, %v7729
        %v7779 = vadd.f32 %v7699, %v7729
        %v7780 = vadd.f32 %v7700, %v7729
        %v7781 = vadd.f32 %v7701, %v7729
        %v7782 = vadd.f32 %v7702, %v7729
        %v7783 = vadd.f32 %v7703, %v7733
        %v7784 = vadd.f32 %v7704, %v7733
        %v7785 = vadd.f32 %v7705, %v7733
        %v7786 = vadd.f32 %v7706, %v7733
        %v7787 = vadd.f32 %v7707, %v7733
        %v7788 = vadd.f32 %v7708, %v7733
        %v7789 = vadd.f32 %v7709, %v7733
        %v7790 = vadd.f32 %v7710, %v7733
        %v7791 = vadd.f32 %v7711, %v7733
        %v7792 = vadd.f32 %v7712, %v7733
        %v7793 = vadd.f32 %v7713, %v7733
        %v7794 = vadd.f32 %v7714, %v7733
        %v7795 = vadd.f32 %v7715, %v7733
        %v7796 = vadd.f32 %v7716, %v7733
        %v7797 = vadd.f32 %v7717, %v7733
        %v7798 = vadd.f32 %v7718, %v7733
        %7799 = vset.pattern.permute.xlu0 9
        %7800 = vperm.xlu0 %7799, %v347
        %v7801 = vpop.permute.xlu0 %7800
        %7803 = vset.pattern.permute.xlu0 9
        %7804 = vperm.xlu0 %7803, %v348
        %v7805 = vpop.permute.xlu0 %7804
        %7807 = vset.pattern.permute.xlu0 9
        %7808 = vperm.xlu0 %7807, %v349
        %v7809 = vpop.permute.xlu0 %7808
        %7811 = vset.pattern.permute.xlu0 9
        %7812 = vperm.xlu0 %7811, %v350
        %v7813 = vpop.permute.xlu0 %7812
        %v7815 = vmul.f32 %v7801, %v6994
        %v7816 = vmul.f32 %v7801, %v6995
        %v7817 = vmul.f32 %v7801, %v6996
        %v7818 = vmul.f32 %v7801, %v6997
        %v7819 = vmul.f32 %v7801, %v6998
        %v7820 = vmul.f32 %v7801, %v6999
        %v7821 = vmul.f32 %v7801, %v7000
        %v7822 = vmul.f32 %v7801, %v7001
        %v7823 = vmul.f32 %v7801, %v7002
        %v7824 = vmul.f32 %v7801, %v7003
        %v7825 = vmul.f32 %v7801, %v7004
        %v7826 = vmul.f32 %v7801, %v7005
        %v7827 = vmul.f32 %v7801, %v7006
        %v7828 = vmul.f32 %v7801, %v7007
        %v7829 = vmul.f32 %v7801, %v7008
        %v7830 = vmul.f32 %v7801, %v7009
        %v7831 = vmul.f32 %v7805, %v7010
        %v7832 = vmul.f32 %v7805, %v7011
        %v7833 = vmul.f32 %v7805, %v7012
        %v7834 = vmul.f32 %v7805, %v7013
        %v7835 = vmul.f32 %v7805, %v7014
        %v7836 = vmul.f32 %v7805, %v7015
        %v7837 = vmul.f32 %v7805, %v7016
        %v7838 = vmul.f32 %v7805, %v7017
        %v7839 = vmul.f32 %v7805, %v7018
        %v7840 = vmul.f32 %v7805, %v7019
        %v7841 = vmul.f32 %v7805, %v7020
        %v7842 = vmul.f32 %v7805, %v7021
        %v7843 = vmul.f32 %v7805, %v7022
        %v7844 = vmul.f32 %v7805, %v7023
        %v7845 = vmul.f32 %v7805, %v7024
        %v7846 = vmul.f32 %v7805, %v7025
        %v7847 = vmul.f32 %v7809, %v7026
        %v7848 = vmul.f32 %v7809, %v7027
        %v7849 = vmul.f32 %v7809, %v7028
        %v7850 = vmul.f32 %v7809, %v7029
        %v7851 = vmul.f32 %v7809, %v7030
        %v7852 = vmul.f32 %v7809, %v7031
        %v7853 = vmul.f32 %v7809, %v7032
        %v7854 = vmul.f32 %v7809, %v7033
        %v7855 = vmul.f32 %v7809, %v7034
        %v7856 = vmul.f32 %v7809, %v7035
        %v7857 = vmul.f32 %v7809, %v7036
        %v7858 = vmul.f32 %v7809, %v7037
        %v7859 = vmul.f32 %v7809, %v7038
        %v7860 = vmul.f32 %v7809, %v7039
        %v7861 = vmul.f32 %v7809, %v7040
        %v7862 = vmul.f32 %v7809, %v7041
        %v7863 = vmul.f32 %v7813, %v7042
        %v7864 = vmul.f32 %v7813, %v7043
        %v7865 = vmul.f32 %v7813, %v7044
        %v7866 = vmul.f32 %v7813, %v7045
        %v7867 = vmul.f32 %v7813, %v7046
        %v7868 = vmul.f32 %v7813, %v7047
        %v7869 = vmul.f32 %v7813, %v7048
        %v7870 = vmul.f32 %v7813, %v7049
        %v7871 = vmul.f32 %v7813, %v7050
        %v7872 = vmul.f32 %v7813, %v7051
        %v7873 = vmul.f32 %v7813, %v7052
        %v7874 = vmul.f32 %v7813, %v7053
        %v7875 = vmul.f32 %v7813, %v7054
        %v7876 = vmul.f32 %v7813, %v7055
        %v7877 = vmul.f32 %v7813, %v7056
        %v7878 = vmul.f32 %v7813, %v7057
        %7879 = vset.pattern.permute.xlu0 8
        %7880 = vperm.xlu0 %7879, %v347
        %v7881 = vpop.permute.xlu0 %7880
        %7883 = vset.pattern.permute.xlu0 8
        %7884 = vperm.xlu0 %7883, %v348
        %v7885 = vpop.permute.xlu0 %7884
        %7887 = vset.pattern.permute.xlu0 8
        %7888 = vperm.xlu0 %7887, %v349
        %v7889 = vpop.permute.xlu0 %7888
        %7891 = vset.pattern.permute.xlu0 8
        %7892 = vperm.xlu0 %7891, %v350
        %v7893 = vpop.permute.xlu0 %7892
        %v7895 = vadd.f32 %v7815, %v7881
        %v7896 = vadd.f32 %v7816, %v7881
        %v7897 = vadd.f32 %v7817, %v7881
        %v7898 = vadd.f32 %v7818, %v7881
        %v7899 = vadd.f32 %v7819, %v7881
        %v7900 = vadd.f32 %v7820, %v7881
        %v7901 = vadd.f32 %v7821, %v7881
        %v7902 = vadd.f32 %v7822, %v7881
        %v7903 = vadd.f32 %v7823, %v7881
        %v7904 = vadd.f32 %v7824, %v7881
        %v7905 = vadd.f32 %v7825, %v7881
        %v7906 = vadd.f32 %v7826, %v7881
        %v7907 = vadd.f32 %v7827, %v7881
        %v7908 = vadd.f32 %v7828, %v7881
        %v7909 = vadd.f32 %v7829, %v7881
        %v7910 = vadd.f32 %v7830, %v7881
        %v7911 = vadd.f32 %v7831, %v7885
        %v7912 = vadd.f32 %v7832, %v7885
        %v7913 = vadd.f32 %v7833, %v7885
        %v7914 = vadd.f32 %v7834, %v7885
        %v7915 = vadd.f32 %v7835, %v7885
        %v7916 = vadd.f32 %v7836, %v7885
        %v7917 = vadd.f32 %v7837, %v7885
        %v7918 = vadd.f32 %v7838, %v7885
        %v7919 = vadd.f32 %v7839, %v7885
        %v7920 = vadd.f32 %v7840, %v7885
        %v7921 = vadd.f32 %v7841, %v7885
        %v7922 = vadd.f32 %v7842, %v7885
        %v7923 = vadd.f32 %v7843, %v7885
        %v7924 = vadd.f32 %v7844, %v7885
        %v7925 = vadd.f32 %v7845, %v7885
        %v7926 = vadd.f32 %v7846, %v7885
        %v7927 = vadd.f32 %v7847, %v7889
        %v7928 = vadd.f32 %v7848, %v7889
        %v7929 = vadd.f32 %v7849, %v7889
        %v7930 = vadd.f32 %v7850, %v7889
        %v7931 = vadd.f32 %v7851, %v7889
        %v7932 = vadd.f32 %v7852, %v7889
        %v7933 = vadd.f32 %v7853, %v7889
        %v7934 = vadd.f32 %v7854, %v7889
        %v7935 = vadd.f32 %v7855, %v7889
        %v7936 = vadd.f32 %v7856, %v7889
        %v7937 = vadd.f32 %v7857, %v7889
        %v7938 = vadd.f32 %v7858, %v7889
        %v7939 = vadd.f32 %v7859, %v7889
        %v7940 = vadd.f32 %v7860, %v7889
        %v7941 = vadd.f32 %v7861, %v7889
        %v7942 = vadd.f32 %v7862, %v7889
        %v7943 = vadd.f32 %v7863, %v7893
        %v7944 = vadd.f32 %v7864, %v7893
        %v7945 = vadd.f32 %v7865, %v7893
        %v7946 = vadd.f32 %v7866, %v7893
        %v7947 = vadd.f32 %v7867, %v7893
        %v7948 = vadd.f32 %v7868, %v7893
        %v7949 = vadd.f32 %v7869, %v7893
        %v7950 = vadd.f32 %v7870, %v7893
        %v7951 = vadd.f32 %v7871, %v7893
        %v7952 = vadd.f32 %v7872, %v7893
        %v7953 = vadd.f32 %v7873, %v7893
        %v7954 = vadd.f32 %v7874, %v7893
        %v7955 = vadd.f32 %v7875, %v7893
        %v7956 = vadd.f32 %v7876, %v7893
        %v7957 = vadd.f32 %v7877, %v7893
        %v7958 = vadd.f32 %v7878, %v7893
        %v7959 = vmul.f32 %v7895, %v6994
        %v7960 = vmul.f32 %v7896, %v6995
        %v7961 = vmul.f32 %v7897, %v6996
        %v7962 = vmul.f32 %v7898, %v6997
        %v7963 = vmul.f32 %v7899, %v6998
        %v7964 = vmul.f32 %v7900, %v6999
        %v7965 = vmul.f32 %v7901, %v7000
        %v7966 = vmul.f32 %v7902, %v7001
        %v7967 = vmul.f32 %v7903, %v7002
        %v7968 = vmul.f32 %v7904, %v7003
        %v7969 = vmul.f32 %v7905, %v7004
        %v7970 = vmul.f32 %v7906, %v7005
        %v7971 = vmul.f32 %v7907, %v7006
        %v7972 = vmul.f32 %v7908, %v7007
        %v7973 = vmul.f32 %v7909, %v7008
        %v7974 = vmul.f32 %v7910, %v7009
        %v7975 = vmul.f32 %v7911, %v7010
        %v7976 = vmul.f32 %v7912, %v7011
        %v7977 = vmul.f32 %v7913, %v7012
        %v7978 = vmul.f32 %v7914, %v7013
        %v7979 = vmul.f32 %v7915, %v7014
        %v7980 = vmul.f32 %v7916, %v7015
        %v7981 = vmul.f32 %v7917, %v7016
        %v7982 = vmul.f32 %v7918, %v7017
        %v7983 = vmul.f32 %v7919, %v7018
        %v7984 = vmul.f32 %v7920, %v7019
        %v7985 = vmul.f32 %v7921, %v7020
        %v7986 = vmul.f32 %v7922, %v7021
        %v7987 = vmul.f32 %v7923, %v7022
        %v7988 = vmul.f32 %v7924, %v7023
        %v7989 = vmul.f32 %v7925, %v7024
        %v7990 = vmul.f32 %v7926, %v7025
        %v7991 = vmul.f32 %v7927, %v7026
        %v7992 = vmul.f32 %v7928, %v7027
        %v7993 = vmul.f32 %v7929, %v7028
        %v7994 = vmul.f32 %v7930, %v7029
        %v7995 = vmul.f32 %v7931, %v7030
        %v7996 = vmul.f32 %v7932, %v7031
        %v7997 = vmul.f32 %v7933, %v7032
        %v7998 = vmul.f32 %v7934, %v7033
        %v7999 = vmul.f32 %v7935, %v7034
        %v8000 = vmul.f32 %v7936, %v7035
        %v8001 = vmul.f32 %v7937, %v7036
        %v8002 = vmul.f32 %v7938, %v7037
        %v8003 = vmul.f32 %v7939, %v7038
        %v8004 = vmul.f32 %v7940, %v7039
        %v8005 = vmul.f32 %v7941, %v7040
        %v8006 = vmul.f32 %v7942, %v7041
        %v8007 = vmul.f32 %v7943, %v7042
        %v8008 = vmul.f32 %v7944, %v7043
        %v8009 = vmul.f32 %v7945, %v7044
        %v8010 = vmul.f32 %v7946, %v7045
        %v8011 = vmul.f32 %v7947, %v7046
        %v8012 = vmul.f32 %v7948, %v7047
        %v8013 = vmul.f32 %v7949, %v7048
        %v8014 = vmul.f32 %v7950, %v7049
        %v8015 = vmul.f32 %v7951, %v7050
        %v8016 = vmul.f32 %v7952, %v7051
        %v8017 = vmul.f32 %v7953, %v7052
        %v8018 = vmul.f32 %v7954, %v7053
        %v8019 = vmul.f32 %v7955, %v7054
        %v8020 = vmul.f32 %v7956, %v7055
        %v8021 = vmul.f32 %v7957, %v7056
        %v8022 = vmul.f32 %v7958, %v7057
        %8023 = vset.pattern.permute.xlu0 7
        %8024 = vperm.xlu0 %8023, %v347
        %v8025 = vpop.permute.xlu0 %8024
        %8027 = vset.pattern.permute.xlu0 7
        %8028 = vperm.xlu0 %8027, %v348
        %v8029 = vpop.permute.xlu0 %8028
        %8031 = vset.pattern.permute.xlu0 7
        %8032 = vperm.xlu0 %8031, %v349
        %v8033 = vpop.permute.xlu0 %8032
        %8035 = vset.pattern.permute.xlu0 7
        %8036 = vperm.xlu0 %8035, %v350
        %v8037 = vpop.permute.xlu0 %8036
        %v8039 = vadd.f32 %v7959, %v8025
        %v8040 = vadd.f32 %v7960, %v8025
        %v8041 = vadd.f32 %v7961, %v8025
        %v8042 = vadd.f32 %v7962, %v8025
        %v8043 = vadd.f32 %v7963, %v8025
        %v8044 = vadd.f32 %v7964, %v8025
        %v8045 = vadd.f32 %v7965, %v8025
        %v8046 = vadd.f32 %v7966, %v8025
        %v8047 = vadd.f32 %v7967, %v8025
        %v8048 = vadd.f32 %v7968, %v8025
        %v8049 = vadd.f32 %v7969, %v8025
        %v8050 = vadd.f32 %v7970, %v8025
        %v8051 = vadd.f32 %v7971, %v8025
        %v8052 = vadd.f32 %v7972, %v8025
        %v8053 = vadd.f32 %v7973, %v8025
        %v8054 = vadd.f32 %v7974, %v8025
        %v8055 = vadd.f32 %v7975, %v8029
        %v8056 = vadd.f32 %v7976, %v8029
        %v8057 = vadd.f32 %v7977, %v8029
        %v8058 = vadd.f32 %v7978, %v8029
        %v8059 = vadd.f32 %v7979, %v8029
        %v8060 = vadd.f32 %v7980, %v8029
        %v8061 = vadd.f32 %v7981, %v8029
        %v8062 = vadd.f32 %v7982, %v8029
        %v8063 = vadd.f32 %v7983, %v8029
        %v8064 = vadd.f32 %v7984, %v8029
        %v8065 = vadd.f32 %v7985, %v8029
        %v8066 = vadd.f32 %v7986, %v8029
        %v8067 = vadd.f32 %v7987, %v8029
        %v8068 = vadd.f32 %v7988, %v8029
        %v8069 = vadd.f32 %v7989, %v8029
        %v8070 = vadd.f32 %v7990, %v8029
        %v8071 = vadd.f32 %v7991, %v8033
        %v8072 = vadd.f32 %v7992, %v8033
        %v8073 = vadd.f32 %v7993, %v8033
        %v8074 = vadd.f32 %v7994, %v8033
        %v8075 = vadd.f32 %v7995, %v8033
        %v8076 = vadd.f32 %v7996, %v8033
        %v8077 = vadd.f32 %v7997, %v8033
        %v8078 = vadd.f32 %v7998, %v8033
        %v8079 = vadd.f32 %v7999, %v8033
        %v8080 = vadd.f32 %v8000, %v8033
        %v8081 = vadd.f32 %v8001, %v8033
        %v8082 = vadd.f32 %v8002, %v8033
        %v8083 = vadd.f32 %v8003, %v8033
        %v8084 = vadd.f32 %v8004, %v8033
        %v8085 = vadd.f32 %v8005, %v8033
        %v8086 = vadd.f32 %v8006, %v8033
        %v8087 = vadd.f32 %v8007, %v8037
        %v8088 = vadd.f32 %v8008, %v8037
        %v8089 = vadd.f32 %v8009, %v8037
        %v8090 = vadd.f32 %v8010, %v8037
        %v8091 = vadd.f32 %v8011, %v8037
        %v8092 = vadd.f32 %v8012, %v8037
        %v8093 = vadd.f32 %v8013, %v8037
        %v8094 = vadd.f32 %v8014, %v8037
        %v8095 = vadd.f32 %v8015, %v8037
        %v8096 = vadd.f32 %v8016, %v8037
        %v8097 = vadd.f32 %v8017, %v8037
        %v8098 = vadd.f32 %v8018, %v8037
        %v8099 = vadd.f32 %v8019, %v8037
        %v8100 = vadd.f32 %v8020, %v8037
        %v8101 = vadd.f32 %v8021, %v8037
        %v8102 = vadd.f32 %v8022, %v8037
        %v8103 = vmul.f32 %v8039, %v6994
        %v8104 = vmul.f32 %v8040, %v6995
        %v8105 = vmul.f32 %v8041, %v6996
        %v8106 = vmul.f32 %v8042, %v6997
        %v8107 = vmul.f32 %v8043, %v6998
        %v8108 = vmul.f32 %v8044, %v6999
        %v8109 = vmul.f32 %v8045, %v7000
        %v8110 = vmul.f32 %v8046, %v7001
        %v8111 = vmul.f32 %v8047, %v7002
        %v8112 = vmul.f32 %v8048, %v7003
        %v8113 = vmul.f32 %v8049, %v7004
        %v8114 = vmul.f32 %v8050, %v7005
        %v8115 = vmul.f32 %v8051, %v7006
        %v8116 = vmul.f32 %v8052, %v7007
        %v8117 = vmul.f32 %v8053, %v7008
        %v8118 = vmul.f32 %v8054, %v7009
        %v8119 = vmul.f32 %v8055, %v7010
        %v8120 = vmul.f32 %v8056, %v7011
        %v8121 = vmul.f32 %v8057, %v7012
        %v8122 = vmul.f32 %v8058, %v7013
        %v8123 = vmul.f32 %v8059, %v7014
        %v8124 = vmul.f32 %v8060, %v7015
        %v8125 = vmul.f32 %v8061, %v7016
        %v8126 = vmul.f32 %v8062, %v7017
        %v8127 = vmul.f32 %v8063, %v7018
        %v8128 = vmul.f32 %v8064, %v7019
        %v8129 = vmul.f32 %v8065, %v7020
        %v8130 = vmul.f32 %v8066, %v7021
        %v8131 = vmul.f32 %v8067, %v7022
        %v8132 = vmul.f32 %v8068, %v7023
        %v8133 = vmul.f32 %v8069, %v7024
        %v8134 = vmul.f32 %v8070, %v7025
        %v8135 = vmul.f32 %v8071, %v7026
        %v8136 = vmul.f32 %v8072, %v7027
        %v8137 = vmul.f32 %v8073, %v7028
        %v8138 = vmul.f32 %v8074, %v7029
        %v8139 = vmul.f32 %v8075, %v7030
        %v8140 = vmul.f32 %v8076, %v7031
        %v8141 = vmul.f32 %v8077, %v7032
        %v8142 = vmul.f32 %v8078, %v7033
        %v8143 = vmul.f32 %v8079, %v7034
        %v8144 = vmul.f32 %v8080, %v7035
        %v8145 = vmul.f32 %v8081, %v7036
        %v8146 = vmul.f32 %v8082, %v7037
        %v8147 = vmul.f32 %v8083, %v7038
        %v8148 = vmul.f32 %v8084, %v7039
        %v8149 = vmul.f32 %v8085, %v7040
        %v8150 = vmul.f32 %v8086, %v7041
        %v8151 = vmul.f32 %v8087, %v7042
        %v8152 = vmul.f32 %v8088, %v7043
        %v8153 = vmul.f32 %v8089, %v7044
        %v8154 = vmul.f32 %v8090, %v7045
        %v8155 = vmul.f32 %v8091, %v7046
        %v8156 = vmul.f32 %v8092, %v7047
        %v8157 = vmul.f32 %v8093, %v7048
        %v8158 = vmul.f32 %v8094, %v7049
        %v8159 = vmul.f32 %v8095, %v7050
        %v8160 = vmul.f32 %v8096, %v7051
        %v8161 = vmul.f32 %v8097, %v7052
        %v8162 = vmul.f32 %v8098, %v7053
        %v8163 = vmul.f32 %v8099, %v7054
        %v8164 = vmul.f32 %v8100, %v7055
        %v8165 = vmul.f32 %v8101, %v7056
        %v8166 = vmul.f32 %v8102, %v7057
        %8167 = vset.pattern.permute.xlu0 6
        %8168 = vperm.xlu0 %8167, %v347
        %v8169 = vpop.permute.xlu0 %8168
        %8171 = vset.pattern.permute.xlu0 6
        %8172 = vperm.xlu0 %8171, %v348
        %v8173 = vpop.permute.xlu0 %8172
        %8175 = vset.pattern.permute.xlu0 6
        %8176 = vperm.xlu0 %8175, %v349
        %v8177 = vpop.permute.xlu0 %8176
        %8179 = vset.pattern.permute.xlu0 6
        %8180 = vperm.xlu0 %8179, %v350
        %v8181 = vpop.permute.xlu0 %8180
        %v8183 = vadd.f32 %v8103, %v8169
        %v8184 = vadd.f32 %v8104, %v8169
        %v8185 = vadd.f32 %v8105, %v8169
        %v8186 = vadd.f32 %v8106, %v8169
        %v8187 = vadd.f32 %v8107, %v8169
        %v8188 = vadd.f32 %v8108, %v8169
        %v8189 = vadd.f32 %v8109, %v8169
        %v8190 = vadd.f32 %v8110, %v8169
        %v8191 = vadd.f32 %v8111, %v8169
        %v8192 = vadd.f32 %v8112, %v8169
        %v8193 = vadd.f32 %v8113, %v8169
        %v8194 = vadd.f32 %v8114, %v8169
        %v8195 = vadd.f32 %v8115, %v8169
        %v8196 = vadd.f32 %v8116, %v8169
        %v8197 = vadd.f32 %v8117, %v8169
        %v8198 = vadd.f32 %v8118, %v8169
        %v8199 = vadd.f32 %v8119, %v8173
        %v8200 = vadd.f32 %v8120, %v8173
        %v8201 = vadd.f32 %v8121, %v8173
        %v8202 = vadd.f32 %v8122, %v8173
        %v8203 = vadd.f32 %v8123, %v8173
        %v8204 = vadd.f32 %v8124, %v8173
        %v8205 = vadd.f32 %v8125, %v8173
        %v8206 = vadd.f32 %v8126, %v8173
        %v8207 = vadd.f32 %v8127, %v8173
        %v8208 = vadd.f32 %v8128, %v8173
        %v8209 = vadd.f32 %v8129, %v8173
        %v8210 = vadd.f32 %v8130, %v8173
        %v8211 = vadd.f32 %v8131, %v8173
        %v8212 = vadd.f32 %v8132, %v8173
        %v8213 = vadd.f32 %v8133, %v8173
        %v8214 = vadd.f32 %v8134, %v8173
        %v8215 = vadd.f32 %v8135, %v8177
        %v8216 = vadd.f32 %v8136, %v8177
        %v8217 = vadd.f32 %v8137, %v8177
        %v8218 = vadd.f32 %v8138, %v8177
        %v8219 = vadd.f32 %v8139, %v8177
        %v8220 = vadd.f32 %v8140, %v8177
        %v8221 = vadd.f32 %v8141, %v8177
        %v8222 = vadd.f32 %v8142, %v8177
        %v8223 = vadd.f32 %v8143, %v8177
        %v8224 = vadd.f32 %v8144, %v8177
        %v8225 = vadd.f32 %v8145, %v8177
        %v8226 = vadd.f32 %v8146, %v8177
        %v8227 = vadd.f32 %v8147, %v8177
        %v8228 = vadd.f32 %v8148, %v8177
        %v8229 = vadd.f32 %v8149, %v8177
        %v8230 = vadd.f32 %v8150, %v8177
        %v8231 = vadd.f32 %v8151, %v8181
        %v8232 = vadd.f32 %v8152, %v8181
        %v8233 = vadd.f32 %v8153, %v8181
        %v8234 = vadd.f32 %v8154, %v8181
        %v8235 = vadd.f32 %v8155, %v8181
        %v8236 = vadd.f32 %v8156, %v8181
        %v8237 = vadd.f32 %v8157, %v8181
        %v8238 = vadd.f32 %v8158, %v8181
        %v8239 = vadd.f32 %v8159, %v8181
        %v8240 = vadd.f32 %v8160, %v8181
        %v8241 = vadd.f32 %v8161, %v8181
        %v8242 = vadd.f32 %v8162, %v8181
        %v8243 = vadd.f32 %v8163, %v8181
        %v8244 = vadd.f32 %v8164, %v8181
        %v8245 = vadd.f32 %v8165, %v8181
        %v8246 = vadd.f32 %v8166, %v8181
        %v8247 = vmul.f32 %v6994, %v8183
        %v8248 = vmul.f32 %v6995, %v8184
        %v8249 = vmul.f32 %v6996, %v8185
        %v8250 = vmul.f32 %v6997, %v8186
        %v8251 = vmul.f32 %v6998, %v8187
        %v8252 = vmul.f32 %v6999, %v8188
        %v8253 = vmul.f32 %v7000, %v8189
        %v8254 = vmul.f32 %v7001, %v8190
        %v8255 = vmul.f32 %v7002, %v8191
        %v8256 = vmul.f32 %v7003, %v8192
        %v8257 = vmul.f32 %v7004, %v8193
        %v8258 = vmul.f32 %v7005, %v8194
        %v8259 = vmul.f32 %v7006, %v8195
        %v8260 = vmul.f32 %v7007, %v8196
        %v8261 = vmul.f32 %v7008, %v8197
        %v8262 = vmul.f32 %v7009, %v8198
        %v8263 = vmul.f32 %v7010, %v8199
        %v8264 = vmul.f32 %v7011, %v8200
        %v8265 = vmul.f32 %v7012, %v8201
        %v8266 = vmul.f32 %v7013, %v8202
        %v8267 = vmul.f32 %v7014, %v8203
        %v8268 = vmul.f32 %v7015, %v8204
        %v8269 = vmul.f32 %v7016, %v8205
        %v8270 = vmul.f32 %v7017, %v8206
        %v8271 = vmul.f32 %v7018, %v8207
        %v8272 = vmul.f32 %v7019, %v8208
        %v8273 = vmul.f32 %v7020, %v8209
        %v8274 = vmul.f32 %v7021, %v8210
        %v8275 = vmul.f32 %v7022, %v8211
        %v8276 = vmul.f32 %v7023, %v8212
        %v8277 = vmul.f32 %v7024, %v8213
        %v8278 = vmul.f32 %v7025, %v8214
        %v8279 = vmul.f32 %v7026, %v8215
        %v8280 = vmul.f32 %v7027, %v8216
        %v8281 = vmul.f32 %v7028, %v8217
        %v8282 = vmul.f32 %v7029, %v8218
        %v8283 = vmul.f32 %v7030, %v8219
        %v8284 = vmul.f32 %v7031, %v8220
        %v8285 = vmul.f32 %v7032, %v8221
        %v8286 = vmul.f32 %v7033, %v8222
        %v8287 = vmul.f32 %v7034, %v8223
        %v8288 = vmul.f32 %v7035, %v8224
        %v8289 = vmul.f32 %v7036, %v8225
        %v8290 = vmul.f32 %v7037, %v8226
        %v8291 = vmul.f32 %v7038, %v8227
        %v8292 = vmul.f32 %v7039, %v8228
        %v8293 = vmul.f32 %v7040, %v8229
        %v8294 = vmul.f32 %v7041, %v8230
        %v8295 = vmul.f32 %v7042, %v8231
        %v8296 = vmul.f32 %v7043, %v8232
        %v8297 = vmul.f32 %v7044, %v8233
        %v8298 = vmul.f32 %v7045, %v8234
        %v8299 = vmul.f32 %v7046, %v8235
        %v8300 = vmul.f32 %v7047, %v8236
        %v8301 = vmul.f32 %v7048, %v8237
        %v8302 = vmul.f32 %v7049, %v8238
        %v8303 = vmul.f32 %v7050, %v8239
        %v8304 = vmul.f32 %v7051, %v8240
        %v8305 = vmul.f32 %v7052, %v8241
        %v8306 = vmul.f32 %v7053, %v8242
        %v8307 = vmul.f32 %v7054, %v8243
        %v8308 = vmul.f32 %v7055, %v8244
        %v8309 = vmul.f32 %v7056, %v8245
        %v8310 = vmul.f32 %v7057, %v8246
        %v8311 = vand.u32 2147483647, %v8247
        %v8312 = vand.u32 2147483647, %v8248
        %v8313 = vand.u32 2147483647, %v8249
        %v8314 = vand.u32 2147483647, %v8250
        %v8315 = vand.u32 2147483647, %v8251
        %v8316 = vand.u32 2147483647, %v8252
        %v8317 = vand.u32 2147483647, %v8253
        %v8318 = vand.u32 2147483647, %v8254
        %v8319 = vand.u32 2147483647, %v8255
        %v8320 = vand.u32 2147483647, %v8256
        %v8321 = vand.u32 2147483647, %v8257
        %v8322 = vand.u32 2147483647, %v8258
        %v8323 = vand.u32 2147483647, %v8259
        %v8324 = vand.u32 2147483647, %v8260
        %v8325 = vand.u32 2147483647, %v8261
        %v8326 = vand.u32 2147483647, %v8262
        %v8327 = vand.u32 2147483647, %v8263
        %v8328 = vand.u32 2147483647, %v8264
        %v8329 = vand.u32 2147483647, %v8265
        %v8330 = vand.u32 2147483647, %v8266
        %v8331 = vand.u32 2147483647, %v8267
        %v8332 = vand.u32 2147483647, %v8268
        %v8333 = vand.u32 2147483647, %v8269
        %v8334 = vand.u32 2147483647, %v8270
        %v8335 = vand.u32 2147483647, %v8271
        %v8336 = vand.u32 2147483647, %v8272
        %v8337 = vand.u32 2147483647, %v8273
        %v8338 = vand.u32 2147483647, %v8274
        %v8339 = vand.u32 2147483647, %v8275
        %v8340 = vand.u32 2147483647, %v8276
        %v8341 = vand.u32 2147483647, %v8277
        %v8342 = vand.u32 2147483647, %v8278
        %v8343 = vand.u32 2147483647, %v8279
        %v8344 = vand.u32 2147483647, %v8280
        %v8345 = vand.u32 2147483647, %v8281
        %v8346 = vand.u32 2147483647, %v8282
        %v8347 = vand.u32 2147483647, %v8283
        %v8348 = vand.u32 2147483647, %v8284
        %v8349 = vand.u32 2147483647, %v8285
        %v8350 = vand.u32 2147483647, %v8286
        %v8351 = vand.u32 2147483647, %v8287
        %v8352 = vand.u32 2147483647, %v8288
        %v8353 = vand.u32 2147483647, %v8289
        %v8354 = vand.u32 2147483647, %v8290
        %v8355 = vand.u32 2147483647, %v8291
        %v8356 = vand.u32 2147483647, %v8292
        %v8357 = vand.u32 2147483647, %v8293
        %v8358 = vand.u32 2147483647, %v8294
        %v8359 = vand.u32 2147483647, %v8295
        %v8360 = vand.u32 2147483647, %v8296
        %v8361 = vand.u32 2147483647, %v8297
        %v8362 = vand.u32 2147483647, %v8298
        %v8363 = vand.u32 2147483647, %v8299
        %v8364 = vand.u32 2147483647, %v8300
        %v8365 = vand.u32 2147483647, %v8301
        %v8366 = vand.u32 2147483647, %v8302
        %v8367 = vand.u32 2147483647, %v8303
        %v8368 = vand.u32 2147483647, %v8304
        %v8369 = vand.u32 2147483647, %v8305
        %v8370 = vand.u32 2147483647, %v8306
        %v8371 = vand.u32 2147483647, %v8307
        %v8372 = vand.u32 2147483647, %v8308
        %v8373 = vand.u32 2147483647, %v8309
        %v8374 = vand.u32 2147483647, %v8310
        %v8375 = vadd.f32 %v8311, 1.0
        %v8376 = vadd.f32 %v8312, 1.0
        %v8377 = vadd.f32 %v8313, 1.0
        %v8378 = vadd.f32 %v8314, 1.0
        %v8379 = vadd.f32 %v8315, 1.0
        %v8380 = vadd.f32 %v8316, 1.0
        %v8381 = vadd.f32 %v8317, 1.0
        %v8382 = vadd.f32 %v8318, 1.0
        %v8383 = vadd.f32 %v8319, 1.0
        %v8384 = vadd.f32 %v8320, 1.0
        %v8385 = vadd.f32 %v8321, 1.0
        %v8386 = vadd.f32 %v8322, 1.0
        %v8387 = vadd.f32 %v8323, 1.0
        %v8388 = vadd.f32 %v8324, 1.0
        %v8389 = vadd.f32 %v8325, 1.0
        %v8390 = vadd.f32 %v8326, 1.0
        %v8391 = vadd.f32 %v8327, 1.0
        %v8392 = vadd.f32 %v8328, 1.0
        %v8393 = vadd.f32 %v8329, 1.0
        %v8394 = vadd.f32 %v8330, 1.0
        %v8395 = vadd.f32 %v8331, 1.0
        %v8396 = vadd.f32 %v8332, 1.0
        %v8397 = vadd.f32 %v8333, 1.0
        %v8398 = vadd.f32 %v8334, 1.0
        %v8399 = vadd.f32 %v8335, 1.0
        %v8400 = vadd.f32 %v8336, 1.0
        %v8401 = vadd.f32 %v8337, 1.0
        %v8402 = vadd.f32 %v8338, 1.0
        %v8403 = vadd.f32 %v8339, 1.0
        %v8404 = vadd.f32 %v8340, 1.0
        %v8405 = vadd.f32 %v8341, 1.0
        %v8406 = vadd.f32 %v8342, 1.0
        %v8407 = vadd.f32 %v8343, 1.0
        %v8408 = vadd.f32 %v8344, 1.0
        %v8409 = vadd.f32 %v8345, 1.0
        %v8410 = vadd.f32 %v8346, 1.0
        %v8411 = vadd.f32 %v8347, 1.0
        %v8412 = vadd.f32 %v8348, 1.0
        %v8413 = vadd.f32 %v8349, 1.0
        %v8414 = vadd.f32 %v8350, 1.0
        %v8415 = vadd.f32 %v8351, 1.0
        %v8416 = vadd.f32 %v8352, 1.0
        %v8417 = vadd.f32 %v8353, 1.0
        %v8418 = vadd.f32 %v8354, 1.0
        %v8419 = vadd.f32 %v8355, 1.0
        %v8420 = vadd.f32 %v8356, 1.0
        %v8421 = vadd.f32 %v8357, 1.0
        %v8422 = vadd.f32 %v8358, 1.0
        %v8423 = vadd.f32 %v8359, 1.0
        %v8424 = vadd.f32 %v8360, 1.0
        %v8425 = vadd.f32 %v8361, 1.0
        %v8426 = vadd.f32 %v8362, 1.0
        %v8427 = vadd.f32 %v8363, 1.0
        %v8428 = vadd.f32 %v8364, 1.0
        %v8429 = vadd.f32 %v8365, 1.0
        %v8430 = vadd.f32 %v8366, 1.0
        %v8431 = vadd.f32 %v8367, 1.0
        %v8432 = vadd.f32 %v8368, 1.0
        %v8433 = vadd.f32 %v8369, 1.0
        %v8434 = vadd.f32 %v8370, 1.0
        %v8435 = vadd.f32 %v8371, 1.0
        %v8436 = vadd.f32 %v8372, 1.0
        %v8437 = vadd.f32 %v8373, 1.0
        %v8438 = vadd.f32 %v8374, 1.0
        %v8439 = vrcp.pop %v8375
        %v8440 = vmul.f32 %v8375, %v8439
        %v8441 = vsub.f32 1.0, %v8440
        %v8442 = vmul.f32 %v8439, %v8441
        %v8443 = vadd.f32 %v8439, %v8442
        %vm8444 = vweird.f32 %v8375
        %vm8445 = vweird.f32 %v8439
        %vm8446 = vmor %vm8444, %vm8445
        %v8447 = vsel %vm8446, %v8439, %v8443
        %v8448 = vand.u32 2147483647, %v8375
        %vm8449 = vcmp.eq.f32.partialorder %v8448, 8.507059e+37
        %v8450 = vand.u32 %v8375, 2147483648
        %v8451 = vor.u32 1.1754944e-38, %v8450
        %v8452 = vsel %vm8449, %v8451, %v8447
        %v8453 = vmul.f32 %v7735, %v8452
        %v8454 = vrcp.pop %v8376
        %v8455 = vmul.f32 %v8376, %v8454
        %v8456 = vsub.f32 1.0, %v8455
        %v8457 = vmul.f32 %v8454, %v8456
        %v8458 = vadd.f32 %v8454, %v8457
        %vm8459 = vweird.f32 %v8376
        %vm8460 = vweird.f32 %v8454
        %vm8461 = vmor %vm8459, %vm8460
        %v8462 = vsel %vm8461, %v8454, %v8458
        %v8463 = vand.u32 2147483647, %v8376
        %vm8464 = vcmp.eq.f32.partialorder %v8463, 8.507059e+37
        %v8465 = vand.u32 %v8376, 2147483648
        %v8466 = vor.u32 1.1754944e-38, %v8465
        %v8467 = vsel %vm8464, %v8466, %v8462
        %v8468 = vmul.f32 %v7736, %v8467
        %v8469 = vrcp.pop %v8377
        %v8470 = vmul.f32 %v8377, %v8469
        %v8471 = vsub.f32 1.0, %v8470
        %v8472 = vmul.f32 %v8469, %v8471
        %v8473 = vadd.f32 %v8469, %v8472
        %vm8474 = vweird.f32 %v8377
        %vm8475 = vweird.f32 %v8469
        %vm8476 = vmor %vm8474, %vm8475
        %v8477 = vsel %vm8476, %v8469, %v8473
        %v8478 = vand.u32 2147483647, %v8377
        %vm8479 = vcmp.eq.f32.partialorder %v8478, 8.507059e+37
        %v8480 = vand.u32 %v8377, 2147483648
        %v8481 = vor.u32 1.1754944e-38, %v8480
        %v8482 = vsel %vm8479, %v8481, %v8477
        %v8483 = vmul.f32 %v7737, %v8482
        %v8484 = vrcp.pop %v8378
        %v8485 = vmul.f32 %v8378, %v8484
        %v8486 = vsub.f32 1.0, %v8485
        %v8487 = vmul.f32 %v8484, %v8486
        %v8488 = vadd.f32 %v8484, %v8487
        %vm8489 = vweird.f32 %v8378
        %vm8490 = vweird.f32 %v8484
        %vm8491 = vmor %vm8489, %vm8490
        %v8492 = vsel %vm8491, %v8484, %v8488
        %v8493 = vand.u32 2147483647, %v8378
        %vm8494 = vcmp.eq.f32.partialorder %v8493, 8.507059e+37
        %v8495 = vand.u32 %v8378, 2147483648
        %v8496 = vor.u32 1.1754944e-38, %v8495
        %v8497 = vsel %vm8494, %v8496, %v8492
        %v8498 = vmul.f32 %v7738, %v8497
        %v8499 = vrcp.pop %v8379
        %v8500 = vmul.f32 %v8379, %v8499
        %v8501 = vsub.f32 1.0, %v8500
        %v8502 = vmul.f32 %v8499, %v8501
        %v8503 = vadd.f32 %v8499, %v8502
        %vm8504 = vweird.f32 %v8379
        %vm8505 = vweird.f32 %v8499
        %vm8506 = vmor %vm8504, %vm8505
        %v8507 = vsel %vm8506, %v8499, %v8503
        %v8508 = vand.u32 2147483647, %v8379
        %vm8509 = vcmp.eq.f32.partialorder %v8508, 8.507059e+37
        %v8510 = vand.u32 %v8379, 2147483648
        %v8511 = vor.u32 1.1754944e-38, %v8510
        %v8512 = vsel %vm8509, %v8511, %v8507
        %v8513 = vmul.f32 %v7739, %v8512
        %v8514 = vrcp.pop %v8380
        %v8515 = vmul.f32 %v8380, %v8514
        %v8516 = vsub.f32 1.0, %v8515
        %v8517 = vmul.f32 %v8514, %v8516
        %v8518 = vadd.f32 %v8514, %v8517
        %vm8519 = vweird.f32 %v8380
        %vm8520 = vweird.f32 %v8514
        %vm8521 = vmor %vm8519, %vm8520
        %v8522 = vsel %vm8521, %v8514, %v8518
        %v8523 = vand.u32 2147483647, %v8380
        %vm8524 = vcmp.eq.f32.partialorder %v8523, 8.507059e+37
        %v8525 = vand.u32 %v8380, 2147483648
        %v8526 = vor.u32 1.1754944e-38, %v8525
        %v8527 = vsel %vm8524, %v8526, %v8522
        %v8528 = vmul.f32 %v7740, %v8527
        %v8529 = vrcp.pop %v8381
        %v8530 = vmul.f32 %v8381, %v8529
        %v8531 = vsub.f32 1.0, %v8530
        %v8532 = vmul.f32 %v8529, %v8531
        %v8533 = vadd.f32 %v8529, %v8532
        %vm8534 = vweird.f32 %v8381
        %vm8535 = vweird.f32 %v8529
        %vm8536 = vmor %vm8534, %vm8535
        %v8537 = vsel %vm8536, %v8529, %v8533
        %v8538 = vand.u32 2147483647, %v8381
        %vm8539 = vcmp.eq.f32.partialorder %v8538, 8.507059e+37
        %v8540 = vand.u32 %v8381, 2147483648
        %v8541 = vor.u32 1.1754944e-38, %v8540
        %v8542 = vsel %vm8539, %v8541, %v8537
        %v8543 = vmul.f32 %v7741, %v8542
        %v8544 = vrcp.pop %v8382
        %v8545 = vmul.f32 %v8382, %v8544
        %v8546 = vsub.f32 1.0, %v8545
        %v8547 = vmul.f32 %v8544, %v8546
        %v8548 = vadd.f32 %v8544, %v8547
        %vm8549 = vweird.f32 %v8382
        %vm8550 = vweird.f32 %v8544
        %vm8551 = vmor %vm8549, %vm8550
        %v8552 = vsel %vm8551, %v8544, %v8548
        %v8553 = vand.u32 2147483647, %v8382
        %vm8554 = vcmp.eq.f32.partialorder %v8553, 8.507059e+37
        %v8555 = vand.u32 %v8382, 2147483648
        %v8556 = vor.u32 1.1754944e-38, %v8555
        %v8557 = vsel %vm8554, %v8556, %v8552
        %v8558 = vmul.f32 %v7742, %v8557
        %v8559 = vrcp.pop %v8383
        %v8560 = vmul.f32 %v8383, %v8559
        %v8561 = vsub.f32 1.0, %v8560
        %v8562 = vmul.f32 %v8559, %v8561
        %v8563 = vadd.f32 %v8559, %v8562
        %vm8564 = vweird.f32 %v8383
        %vm8565 = vweird.f32 %v8559
        %vm8566 = vmor %vm8564, %vm8565
        %v8567 = vsel %vm8566, %v8559, %v8563
        %v8568 = vand.u32 2147483647, %v8383
        %vm8569 = vcmp.eq.f32.partialorder %v8568, 8.507059e+37
        %v8570 = vand.u32 %v8383, 2147483648
        %v8571 = vor.u32 1.1754944e-38, %v8570
        %v8572 = vsel %vm8569, %v8571, %v8567
        %v8573 = vmul.f32 %v7743, %v8572
        %v8574 = vrcp.pop %v8384
        %v8575 = vmul.f32 %v8384, %v8574
        %v8576 = vsub.f32 1.0, %v8575
        %v8577 = vmul.f32 %v8574, %v8576
        %v8578 = vadd.f32 %v8574, %v8577
        %vm8579 = vweird.f32 %v8384
        %vm8580 = vweird.f32 %v8574
        %vm8581 = vmor %vm8579, %vm8580
        %v8582 = vsel %vm8581, %v8574, %v8578
        %v8583 = vand.u32 2147483647, %v8384
        %vm8584 = vcmp.eq.f32.partialorder %v8583, 8.507059e+37
        %v8585 = vand.u32 %v8384, 2147483648
        %v8586 = vor.u32 1.1754944e-38, %v8585
        %v8587 = vsel %vm8584, %v8586, %v8582
        %v8588 = vmul.f32 %v7744, %v8587
        %v8589 = vrcp.pop %v8385
        %v8590 = vmul.f32 %v8385, %v8589
        %v8591 = vsub.f32 1.0, %v8590
        %v8592 = vmul.f32 %v8589, %v8591
        %v8593 = vadd.f32 %v8589, %v8592
        %vm8594 = vweird.f32 %v8385
        %vm8595 = vweird.f32 %v8589
        %vm8596 = vmor %vm8594, %vm8595
        %v8597 = vsel %vm8596, %v8589, %v8593
        %v8598 = vand.u32 2147483647, %v8385
        %vm8599 = vcmp.eq.f32.partialorder %v8598, 8.507059e+37
        %v8600 = vand.u32 %v8385, 2147483648
        %v8601 = vor.u32 1.1754944e-38, %v8600
        %v8602 = vsel %vm8599, %v8601, %v8597
        %v8603 = vmul.f32 %v7745, %v8602
        %v8604 = vrcp.pop %v8386
        %v8605 = vmul.f32 %v8386, %v8604
        %v8606 = vsub.f32 1.0, %v8605
        %v8607 = vmul.f32 %v8604, %v8606
        %v8608 = vadd.f32 %v8604, %v8607
        %vm8609 = vweird.f32 %v8386
        %vm8610 = vweird.f32 %v8604
        %vm8611 = vmor %vm8609, %vm8610
        %v8612 = vsel %vm8611, %v8604, %v8608
        %v8613 = vand.u32 2147483647, %v8386
        %vm8614 = vcmp.eq.f32.partialorder %v8613, 8.507059e+37
        %v8615 = vand.u32 %v8386, 2147483648
        %v8616 = vor.u32 1.1754944e-38, %v8615
        %v8617 = vsel %vm8614, %v8616, %v8612
        %v8618 = vmul.f32 %v7746, %v8617
        %v8619 = vrcp.pop %v8387
        %v8620 = vmul.f32 %v8387, %v8619
        %v8621 = vsub.f32 1.0, %v8620
        %v8622 = vmul.f32 %v8619, %v8621
        %v8623 = vadd.f32 %v8619, %v8622
        %vm8624 = vweird.f32 %v8387
        %vm8625 = vweird.f32 %v8619
        %vm8626 = vmor %vm8624, %vm8625
        %v8627 = vsel %vm8626, %v8619, %v8623
        %v8628 = vand.u32 2147483647, %v8387
        %vm8629 = vcmp.eq.f32.partialorder %v8628, 8.507059e+37
        %v8630 = vand.u32 %v8387, 2147483648
        %v8631 = vor.u32 1.1754944e-38, %v8630
        %v8632 = vsel %vm8629, %v8631, %v8627
        %v8633 = vmul.f32 %v7747, %v8632
        %v8634 = vrcp.pop %v8388
        %v8635 = vmul.f32 %v8388, %v8634
        %v8636 = vsub.f32 1.0, %v8635
        %v8637 = vmul.f32 %v8634, %v8636
        %v8638 = vadd.f32 %v8634, %v8637
        %vm8639 = vweird.f32 %v8388
        %vm8640 = vweird.f32 %v8634
        %vm8641 = vmor %vm8639, %vm8640
        %v8642 = vsel %vm8641, %v8634, %v8638
        %v8643 = vand.u32 2147483647, %v8388
        %vm8644 = vcmp.eq.f32.partialorder %v8643, 8.507059e+37
        %v8645 = vand.u32 %v8388, 2147483648
        %v8646 = vor.u32 1.1754944e-38, %v8645
        %v8647 = vsel %vm8644, %v8646, %v8642
        %v8648 = vmul.f32 %v7748, %v8647
        %v8649 = vrcp.pop %v8389
        %v8650 = vmul.f32 %v8389, %v8649
        %v8651 = vsub.f32 1.0, %v8650
        %v8652 = vmul.f32 %v8649, %v8651
        %v8653 = vadd.f32 %v8649, %v8652
        %vm8654 = vweird.f32 %v8389
        %vm8655 = vweird.f32 %v8649
        %vm8656 = vmor %vm8654, %vm8655
        %v8657 = vsel %vm8656, %v8649, %v8653
        %v8658 = vand.u32 2147483647, %v8389
        %vm8659 = vcmp.eq.f32.partialorder %v8658, 8.507059e+37
        %v8660 = vand.u32 %v8389, 2147483648
        %v8661 = vor.u32 1.1754944e-38, %v8660
        %v8662 = vsel %vm8659, %v8661, %v8657
        %v8663 = vmul.f32 %v7749, %v8662
        %v8664 = vrcp.pop %v8390
        %v8665 = vmul.f32 %v8390, %v8664
        %v8666 = vsub.f32 1.0, %v8665
        %v8667 = vmul.f32 %v8664, %v8666
        %v8668 = vadd.f32 %v8664, %v8667
        %vm8669 = vweird.f32 %v8390
        %vm8670 = vweird.f32 %v8664
        %vm8671 = vmor %vm8669, %vm8670
        %v8672 = vsel %vm8671, %v8664, %v8668
        %v8673 = vand.u32 2147483647, %v8390
        %vm8674 = vcmp.eq.f32.partialorder %v8673, 8.507059e+37
        %v8675 = vand.u32 %v8390, 2147483648
        %v8676 = vor.u32 1.1754944e-38, %v8675
        %v8677 = vsel %vm8674, %v8676, %v8672
        %v8678 = vmul.f32 %v7750, %v8677
        %v8679 = vrcp.pop %v8391
        %v8680 = vmul.f32 %v8391, %v8679
        %v8681 = vsub.f32 1.0, %v8680
        %v8682 = vmul.f32 %v8679, %v8681
        %v8683 = vadd.f32 %v8679, %v8682
        %vm8684 = vweird.f32 %v8391
        %vm8685 = vweird.f32 %v8679
        %vm8686 = vmor %vm8684, %vm8685
        %v8687 = vsel %vm8686, %v8679, %v8683
        %v8688 = vand.u32 2147483647, %v8391
        %vm8689 = vcmp.eq.f32.partialorder %v8688, 8.507059e+37
        %v8690 = vand.u32 %v8391, 2147483648
        %v8691 = vor.u32 1.1754944e-38, %v8690
        %v8692 = vsel %vm8689, %v8691, %v8687
        %v8693 = vmul.f32 %v7751, %v8692
        %v8694 = vrcp.pop %v8392
        %v8695 = vmul.f32 %v8392, %v8694
        %v8696 = vsub.f32 1.0, %v8695
        %v8697 = vmul.f32 %v8694, %v8696
        %v8698 = vadd.f32 %v8694, %v8697
        %vm8699 = vweird.f32 %v8392
        %vm8700 = vweird.f32 %v8694
        %vm8701 = vmor %vm8699, %vm8700
        %v8702 = vsel %vm8701, %v8694, %v8698
        %v8703 = vand.u32 2147483647, %v8392
        %vm8704 = vcmp.eq.f32.partialorder %v8703, 8.507059e+37
        %v8705 = vand.u32 %v8392, 2147483648
        %v8706 = vor.u32 1.1754944e-38, %v8705
        %v8707 = vsel %vm8704, %v8706, %v8702
        %v8708 = vmul.f32 %v7752, %v8707
        %v8709 = vrcp.pop %v8393
        %v8710 = vmul.f32 %v8393, %v8709
        %v8711 = vsub.f32 1.0, %v8710
        %v8712 = vmul.f32 %v8709, %v8711
        %v8713 = vadd.f32 %v8709, %v8712
        %vm8714 = vweird.f32 %v8393
        %vm8715 = vweird.f32 %v8709
        %vm8716 = vmor %vm8714, %vm8715
        %v8717 = vsel %vm8716, %v8709, %v8713
        %v8718 = vand.u32 2147483647, %v8393
        %vm8719 = vcmp.eq.f32.partialorder %v8718, 8.507059e+37
        %v8720 = vand.u32 %v8393, 2147483648
        %v8721 = vor.u32 1.1754944e-38, %v8720
        %v8722 = vsel %vm8719, %v8721, %v8717
        %v8723 = vmul.f32 %v7753, %v8722
        %v8724 = vrcp.pop %v8394
        %v8725 = vmul.f32 %v8394, %v8724
        %v8726 = vsub.f32 1.0, %v8725
        %v8727 = vmul.f32 %v8724, %v8726
        %v8728 = vadd.f32 %v8724, %v8727
        %vm8729 = vweird.f32 %v8394
        %vm8730 = vweird.f32 %v8724
        %vm8731 = vmor %vm8729, %vm8730
        %v8732 = vsel %vm8731, %v8724, %v8728
        %v8733 = vand.u32 2147483647, %v8394
        %vm8734 = vcmp.eq.f32.partialorder %v8733, 8.507059e+37
        %v8735 = vand.u32 %v8394, 2147483648
        %v8736 = vor.u32 1.1754944e-38, %v8735
        %v8737 = vsel %vm8734, %v8736, %v8732
        %v8738 = vmul.f32 %v7754, %v8737
        %v8739 = vrcp.pop %v8395
        %v8740 = vmul.f32 %v8395, %v8739
        %v8741 = vsub.f32 1.0, %v8740
        %v8742 = vmul.f32 %v8739, %v8741
        %v8743 = vadd.f32 %v8739, %v8742
        %vm8744 = vweird.f32 %v8395
        %vm8745 = vweird.f32 %v8739
        %vm8746 = vmor %vm8744, %vm8745
        %v8747 = vsel %vm8746, %v8739, %v8743
        %v8748 = vand.u32 2147483647, %v8395
        %vm8749 = vcmp.eq.f32.partialorder %v8748, 8.507059e+37
        %v8750 = vand.u32 %v8395, 2147483648
        %v8751 = vor.u32 1.1754944e-38, %v8750
        %v8752 = vsel %vm8749, %v8751, %v8747
        %v8753 = vmul.f32 %v7755, %v8752
        %v8754 = vrcp.pop %v8396
        %v8755 = vmul.f32 %v8396, %v8754
        %v8756 = vsub.f32 1.0, %v8755
        %v8757 = vmul.f32 %v8754, %v8756
        %v8758 = vadd.f32 %v8754, %v8757
        %vm8759 = vweird.f32 %v8396
        %vm8760 = vweird.f32 %v8754
        %vm8761 = vmor %vm8759, %vm8760
        %v8762 = vsel %vm8761, %v8754, %v8758
        %v8763 = vand.u32 2147483647, %v8396
        %vm8764 = vcmp.eq.f32.partialorder %v8763, 8.507059e+37
        %v8765 = vand.u32 %v8396, 2147483648
        %v8766 = vor.u32 1.1754944e-38, %v8765
        %v8767 = vsel %vm8764, %v8766, %v8762
        %v8768 = vmul.f32 %v7756, %v8767
        %v8769 = vrcp.pop %v8397
        %v8770 = vmul.f32 %v8397, %v8769
        %v8771 = vsub.f32 1.0, %v8770
        %v8772 = vmul.f32 %v8769, %v8771
        %v8773 = vadd.f32 %v8769, %v8772
        %vm8774 = vweird.f32 %v8397
        %vm8775 = vweird.f32 %v8769
        %vm8776 = vmor %vm8774, %vm8775
        %v8777 = vsel %vm8776, %v8769, %v8773
        %v8778 = vand.u32 2147483647, %v8397
        %vm8779 = vcmp.eq.f32.partialorder %v8778, 8.507059e+37
        %v8780 = vand.u32 %v8397, 2147483648
        %v8781 = vor.u32 1.1754944e-38, %v8780
        %v8782 = vsel %vm8779, %v8781, %v8777
        %v8783 = vmul.f32 %v7757, %v8782
        %v8784 = vrcp.pop %v8398
        %v8785 = vmul.f32 %v8398, %v8784
        %v8786 = vsub.f32 1.0, %v8785
        %v8787 = vmul.f32 %v8784, %v8786
        %v8788 = vadd.f32 %v8784, %v8787
        %vm8789 = vweird.f32 %v8398
        %vm8790 = vweird.f32 %v8784
        %vm8791 = vmor %vm8789, %vm8790
        %v8792 = vsel %vm8791, %v8784, %v8788
        %v8793 = vand.u32 2147483647, %v8398
        %vm8794 = vcmp.eq.f32.partialorder %v8793, 8.507059e+37
        %v8795 = vand.u32 %v8398, 2147483648
        %v8796 = vor.u32 1.1754944e-38, %v8795
        %v8797 = vsel %vm8794, %v8796, %v8792
        %v8798 = vmul.f32 %v7758, %v8797
        %v8799 = vrcp.pop %v8399
        %v8800 = vmul.f32 %v8399, %v8799
        %v8801 = vsub.f32 1.0, %v8800
        %v8802 = vmul.f32 %v8799, %v8801
        %v8803 = vadd.f32 %v8799, %v8802
        %vm8804 = vweird.f32 %v8399
        %vm8805 = vweird.f32 %v8799
        %vm8806 = vmor %vm8804, %vm8805
        %v8807 = vsel %vm8806, %v8799, %v8803
        %v8808 = vand.u32 2147483647, %v8399
        %vm8809 = vcmp.eq.f32.partialorder %v8808, 8.507059e+37
        %v8810 = vand.u32 %v8399, 2147483648
        %v8811 = vor.u32 1.1754944e-38, %v8810
        %v8812 = vsel %vm8809, %v8811, %v8807
        %v8813 = vmul.f32 %v7759, %v8812
        %v8814 = vrcp.pop %v8400
        %v8815 = vmul.f32 %v8400, %v8814
        %v8816 = vsub.f32 1.0, %v8815
        %v8817 = vmul.f32 %v8814, %v8816
        %v8818 = vadd.f32 %v8814, %v8817
        %vm8819 = vweird.f32 %v8400
        %vm8820 = vweird.f32 %v8814
        %vm8821 = vmor %vm8819, %vm8820
        %v8822 = vsel %vm8821, %v8814, %v8818
        %v8823 = vand.u32 2147483647, %v8400
        %vm8824 = vcmp.eq.f32.partialorder %v8823, 8.507059e+37
        %v8825 = vand.u32 %v8400, 2147483648
        %v8826 = vor.u32 1.1754944e-38, %v8825
        %v8827 = vsel %vm8824, %v8826, %v8822
        %v8828 = vmul.f32 %v7760, %v8827
        %v8829 = vrcp.pop %v8401
        %v8830 = vmul.f32 %v8401, %v8829
        %v8831 = vsub.f32 1.0, %v8830
        %v8832 = vmul.f32 %v8829, %v8831
        %v8833 = vadd.f32 %v8829, %v8832
        %vm8834 = vweird.f32 %v8401
        %vm8835 = vweird.f32 %v8829
        %vm8836 = vmor %vm8834, %vm8835
        %v8837 = vsel %vm8836, %v8829, %v8833
        %v8838 = vand.u32 2147483647, %v8401
        %vm8839 = vcmp.eq.f32.partialorder %v8838, 8.507059e+37
        %v8840 = vand.u32 %v8401, 2147483648
        %v8841 = vor.u32 1.1754944e-38, %v8840
        %v8842 = vsel %vm8839, %v8841, %v8837
        %v8843 = vmul.f32 %v7761, %v8842
        %v8844 = vrcp.pop %v8402
        %v8845 = vmul.f32 %v8402, %v8844
        %v8846 = vsub.f32 1.0, %v8845
        %v8847 = vmul.f32 %v8844, %v8846
        %v8848 = vadd.f32 %v8844, %v8847
        %vm8849 = vweird.f32 %v8402
        %vm8850 = vweird.f32 %v8844
        %vm8851 = vmor %vm8849, %vm8850
        %v8852 = vsel %vm8851, %v8844, %v8848
        %v8853 = vand.u32 2147483647, %v8402
        %vm8854 = vcmp.eq.f32.partialorder %v8853, 8.507059e+37
        %v8855 = vand.u32 %v8402, 2147483648
        %v8856 = vor.u32 1.1754944e-38, %v8855
        %v8857 = vsel %vm8854, %v8856, %v8852
        %v8858 = vmul.f32 %v7762, %v8857
        %v8859 = vrcp.pop %v8403
        %v8860 = vmul.f32 %v8403, %v8859
        %v8861 = vsub.f32 1.0, %v8860
        %v8862 = vmul.f32 %v8859, %v8861
        %v8863 = vadd.f32 %v8859, %v8862
        %vm8864 = vweird.f32 %v8403
        %vm8865 = vweird.f32 %v8859
        %vm8866 = vmor %vm8864, %vm8865
        %v8867 = vsel %vm8866, %v8859, %v8863
        %v8868 = vand.u32 2147483647, %v8403
        %vm8869 = vcmp.eq.f32.partialorder %v8868, 8.507059e+37
        %v8870 = vand.u32 %v8403, 2147483648
        %v8871 = vor.u32 1.1754944e-38, %v8870
        %v8872 = vsel %vm8869, %v8871, %v8867
        %v8873 = vmul.f32 %v7763, %v8872
        %v8874 = vrcp.pop %v8404
        %v8875 = vmul.f32 %v8404, %v8874
        %v8876 = vsub.f32 1.0, %v8875
        %v8877 = vmul.f32 %v8874, %v8876
        %v8878 = vadd.f32 %v8874, %v8877
        %vm8879 = vweird.f32 %v8404
        %vm8880 = vweird.f32 %v8874
        %vm8881 = vmor %vm8879, %vm8880
        %v8882 = vsel %vm8881, %v8874, %v8878
        %v8883 = vand.u32 2147483647, %v8404
        %vm8884 = vcmp.eq.f32.partialorder %v8883, 8.507059e+37
        %v8885 = vand.u32 %v8404, 2147483648
        %v8886 = vor.u32 1.1754944e-38, %v8885
        %v8887 = vsel %vm8884, %v8886, %v8882
        %v8888 = vmul.f32 %v7764, %v8887
        %v8889 = vrcp.pop %v8405
        %v8890 = vmul.f32 %v8405, %v8889
        %v8891 = vsub.f32 1.0, %v8890
        %v8892 = vmul.f32 %v8889, %v8891
        %v8893 = vadd.f32 %v8889, %v8892
        %vm8894 = vweird.f32 %v8405
        %vm8895 = vweird.f32 %v8889
        %vm8896 = vmor %vm8894, %vm8895
        %v8897 = vsel %vm8896, %v8889, %v8893
        %v8898 = vand.u32 2147483647, %v8405
        %vm8899 = vcmp.eq.f32.partialorder %v8898, 8.507059e+37
        %v8900 = vand.u32 %v8405, 2147483648
        %v8901 = vor.u32 1.1754944e-38, %v8900
        %v8902 = vsel %vm8899, %v8901, %v8897
        %v8903 = vmul.f32 %v7765, %v8902
        %v8904 = vrcp.pop %v8406
        %v8905 = vmul.f32 %v8406, %v8904
        %v8906 = vsub.f32 1.0, %v8905
        %v8907 = vmul.f32 %v8904, %v8906
        %v8908 = vadd.f32 %v8904, %v8907
        %vm8909 = vweird.f32 %v8406
        %vm8910 = vweird.f32 %v8904
        %vm8911 = vmor %vm8909, %vm8910
        %v8912 = vsel %vm8911, %v8904, %v8908
        %v8913 = vand.u32 2147483647, %v8406
        %vm8914 = vcmp.eq.f32.partialorder %v8913, 8.507059e+37
        %v8915 = vand.u32 %v8406, 2147483648
        %v8916 = vor.u32 1.1754944e-38, %v8915
        %v8917 = vsel %vm8914, %v8916, %v8912
        %v8918 = vmul.f32 %v7766, %v8917
        %v8919 = vrcp.pop %v8407
        %v8920 = vmul.f32 %v8407, %v8919
        %v8921 = vsub.f32 1.0, %v8920
        %v8922 = vmul.f32 %v8919, %v8921
        %v8923 = vadd.f32 %v8919, %v8922
        %vm8924 = vweird.f32 %v8407
        %vm8925 = vweird.f32 %v8919
        %vm8926 = vmor %vm8924, %vm8925
        %v8927 = vsel %vm8926, %v8919, %v8923
        %v8928 = vand.u32 2147483647, %v8407
        %vm8929 = vcmp.eq.f32.partialorder %v8928, 8.507059e+37
        %v8930 = vand.u32 %v8407, 2147483648
        %v8931 = vor.u32 1.1754944e-38, %v8930
        %v8932 = vsel %vm8929, %v8931, %v8927
        %v8933 = vmul.f32 %v7767, %v8932
        %v8934 = vrcp.pop %v8408
        %v8935 = vmul.f32 %v8408, %v8934
        %v8936 = vsub.f32 1.0, %v8935
        %v8937 = vmul.f32 %v8934, %v8936
        %v8938 = vadd.f32 %v8934, %v8937
        %vm8939 = vweird.f32 %v8408
        %vm8940 = vweird.f32 %v8934
        %vm8941 = vmor %vm8939, %vm8940
        %v8942 = vsel %vm8941, %v8934, %v8938
        %v8943 = vand.u32 2147483647, %v8408
        %vm8944 = vcmp.eq.f32.partialorder %v8943, 8.507059e+37
        %v8945 = vand.u32 %v8408, 2147483648
        %v8946 = vor.u32 1.1754944e-38, %v8945
        %v8947 = vsel %vm8944, %v8946, %v8942
        %v8948 = vmul.f32 %v7768, %v8947
        %v8949 = vrcp.pop %v8409
        %v8950 = vmul.f32 %v8409, %v8949
        %v8951 = vsub.f32 1.0, %v8950
        %v8952 = vmul.f32 %v8949, %v8951
        %v8953 = vadd.f32 %v8949, %v8952
        %vm8954 = vweird.f32 %v8409
        %vm8955 = vweird.f32 %v8949
        %vm8956 = vmor %vm8954, %vm8955
        %v8957 = vsel %vm8956, %v8949, %v8953
        %v8958 = vand.u32 2147483647, %v8409
        %vm8959 = vcmp.eq.f32.partialorder %v8958, 8.507059e+37
        %v8960 = vand.u32 %v8409, 2147483648
        %v8961 = vor.u32 1.1754944e-38, %v8960
        %v8962 = vsel %vm8959, %v8961, %v8957
        %v8963 = vmul.f32 %v7769, %v8962
        %v8964 = vrcp.pop %v8410
        %v8965 = vmul.f32 %v8410, %v8964
        %v8966 = vsub.f32 1.0, %v8965
        %v8967 = vmul.f32 %v8964, %v8966
        %v8968 = vadd.f32 %v8964, %v8967
        %vm8969 = vweird.f32 %v8410
        %vm8970 = vweird.f32 %v8964
        %vm8971 = vmor %vm8969, %vm8970
        %v8972 = vsel %vm8971, %v8964, %v8968
        %v8973 = vand.u32 2147483647, %v8410
        %vm8974 = vcmp.eq.f32.partialorder %v8973, 8.507059e+37
        %v8975 = vand.u32 %v8410, 2147483648
        %v8976 = vor.u32 1.1754944e-38, %v8975
        %v8977 = vsel %vm8974, %v8976, %v8972
        %v8978 = vmul.f32 %v7770, %v8977
        %v8979 = vrcp.pop %v8411
        %v8980 = vmul.f32 %v8411, %v8979
        %v8981 = vsub.f32 1.0, %v8980
        %v8982 = vmul.f32 %v8979, %v8981
        %v8983 = vadd.f32 %v8979, %v8982
        %vm8984 = vweird.f32 %v8411
        %vm8985 = vweird.f32 %v8979
        %vm8986 = vmor %vm8984, %vm8985
        %v8987 = vsel %vm8986, %v8979, %v8983
        %v8988 = vand.u32 2147483647, %v8411
        %vm8989 = vcmp.eq.f32.partialorder %v8988, 8.507059e+37
        %v8990 = vand.u32 %v8411, 2147483648
        %v8991 = vor.u32 1.1754944e-38, %v8990
        %v8992 = vsel %vm8989, %v8991, %v8987
        %v8993 = vmul.f32 %v7771, %v8992
        %v8994 = vrcp.pop %v8412
        %v8995 = vmul.f32 %v8412, %v8994
        %v8996 = vsub.f32 1.0, %v8995
        %v8997 = vmul.f32 %v8994, %v8996
        %v8998 = vadd.f32 %v8994, %v8997
        %vm8999 = vweird.f32 %v8412
        %vm9000 = vweird.f32 %v8994
        %vm9001 = vmor %vm8999, %vm9000
        %v9002 = vsel %vm9001, %v8994, %v8998
        %v9003 = vand.u32 2147483647, %v8412
        %vm9004 = vcmp.eq.f32.partialorder %v9003, 8.507059e+37
        %v9005 = vand.u32 %v8412, 2147483648
        %v9006 = vor.u32 1.1754944e-38, %v9005
        %v9007 = vsel %vm9004, %v9006, %v9002
        %v9008 = vmul.f32 %v7772, %v9007
        %v9009 = vrcp.pop %v8413
        %v9010 = vmul.f32 %v8413, %v9009
        %v9011 = vsub.f32 1.0, %v9010
        %v9012 = vmul.f32 %v9009, %v9011
        %v9013 = vadd.f32 %v9009, %v9012
        %vm9014 = vweird.f32 %v8413
        %vm9015 = vweird.f32 %v9009
        %vm9016 = vmor %vm9014, %vm9015
        %v9017 = vsel %vm9016, %v9009, %v9013
        %v9018 = vand.u32 2147483647, %v8413
        %vm9019 = vcmp.eq.f32.partialorder %v9018, 8.507059e+37
        %v9020 = vand.u32 %v8413, 2147483648
        %v9021 = vor.u32 1.1754944e-38, %v9020
        %v9022 = vsel %vm9019, %v9021, %v9017
        %v9023 = vmul.f32 %v7773, %v9022
        %v9024 = vrcp.pop %v8414
        %v9025 = vmul.f32 %v8414, %v9024
        %v9026 = vsub.f32 1.0, %v9025
        %v9027 = vmul.f32 %v9024, %v9026
        %v9028 = vadd.f32 %v9024, %v9027
        %vm9029 = vweird.f32 %v8414
        %vm9030 = vweird.f32 %v9024
        %vm9031 = vmor %vm9029, %vm9030
        %v9032 = vsel %vm9031, %v9024, %v9028
        %v9033 = vand.u32 2147483647, %v8414
        %vm9034 = vcmp.eq.f32.partialorder %v9033, 8.507059e+37
        %v9035 = vand.u32 %v8414, 2147483648
        %v9036 = vor.u32 1.1754944e-38, %v9035
        %v9037 = vsel %vm9034, %v9036, %v9032
        %v9038 = vmul.f32 %v7774, %v9037
        %v9039 = vrcp.pop %v8415
        %v9040 = vmul.f32 %v8415, %v9039
        %v9041 = vsub.f32 1.0, %v9040
        %v9042 = vmul.f32 %v9039, %v9041
        %v9043 = vadd.f32 %v9039, %v9042
        %vm9044 = vweird.f32 %v8415
        %vm9045 = vweird.f32 %v9039
        %vm9046 = vmor %vm9044, %vm9045
        %v9047 = vsel %vm9046, %v9039, %v9043
        %v9048 = vand.u32 2147483647, %v8415
        %vm9049 = vcmp.eq.f32.partialorder %v9048, 8.507059e+37
        %v9050 = vand.u32 %v8415, 2147483648
        %v9051 = vor.u32 1.1754944e-38, %v9050
        %v9052 = vsel %vm9049, %v9051, %v9047
        %v9053 = vmul.f32 %v7775, %v9052
        %v9054 = vrcp.pop %v8416
        %v9055 = vmul.f32 %v8416, %v9054
        %v9056 = vsub.f32 1.0, %v9055
        %v9057 = vmul.f32 %v9054, %v9056
        %v9058 = vadd.f32 %v9054, %v9057
        %vm9059 = vweird.f32 %v8416
        %vm9060 = vweird.f32 %v9054
        %vm9061 = vmor %vm9059, %vm9060
        %v9062 = vsel %vm9061, %v9054, %v9058
        %v9063 = vand.u32 2147483647, %v8416
        %vm9064 = vcmp.eq.f32.partialorder %v9063, 8.507059e+37
        %v9065 = vand.u32 %v8416, 2147483648
        %v9066 = vor.u32 1.1754944e-38, %v9065
        %v9067 = vsel %vm9064, %v9066, %v9062
        %v9068 = vmul.f32 %v7776, %v9067
        %v9069 = vrcp.pop %v8417
        %v9070 = vmul.f32 %v8417, %v9069
        %v9071 = vsub.f32 1.0, %v9070
        %v9072 = vmul.f32 %v9069, %v9071
        %v9073 = vadd.f32 %v9069, %v9072
        %vm9074 = vweird.f32 %v8417
        %vm9075 = vweird.f32 %v9069
        %vm9076 = vmor %vm9074, %vm9075
        %v9077 = vsel %vm9076, %v9069, %v9073
        %v9078 = vand.u32 2147483647, %v8417
        %vm9079 = vcmp.eq.f32.partialorder %v9078, 8.507059e+37
        %v9080 = vand.u32 %v8417, 2147483648
        %v9081 = vor.u32 1.1754944e-38, %v9080
        %v9082 = vsel %vm9079, %v9081, %v9077
        %v9083 = vmul.f32 %v7777, %v9082
        %v9084 = vrcp.pop %v8418
        %v9085 = vmul.f32 %v8418, %v9084
        %v9086 = vsub.f32 1.0, %v9085
        %v9087 = vmul.f32 %v9084, %v9086
        %v9088 = vadd.f32 %v9084, %v9087
        %vm9089 = vweird.f32 %v8418
        %vm9090 = vweird.f32 %v9084
        %vm9091 = vmor %vm9089, %vm9090
        %v9092 = vsel %vm9091, %v9084, %v9088
        %v9093 = vand.u32 2147483647, %v8418
        %vm9094 = vcmp.eq.f32.partialorder %v9093, 8.507059e+37
        %v9095 = vand.u32 %v8418, 2147483648
        %v9096 = vor.u32 1.1754944e-38, %v9095
        %v9097 = vsel %vm9094, %v9096, %v9092
        %v9098 = vmul.f32 %v7778, %v9097
        %v9099 = vrcp.pop %v8419
        %v9100 = vmul.f32 %v8419, %v9099
        %v9101 = vsub.f32 1.0, %v9100
        %v9102 = vmul.f32 %v9099, %v9101
        %v9103 = vadd.f32 %v9099, %v9102
        %vm9104 = vweird.f32 %v8419
        %vm9105 = vweird.f32 %v9099
        %vm9106 = vmor %vm9104, %vm9105
        %v9107 = vsel %vm9106, %v9099, %v9103
        %v9108 = vand.u32 2147483647, %v8419
        %vm9109 = vcmp.eq.f32.partialorder %v9108, 8.507059e+37
        %v9110 = vand.u32 %v8419, 2147483648
        %v9111 = vor.u32 1.1754944e-38, %v9110
        %v9112 = vsel %vm9109, %v9111, %v9107
        %v9113 = vmul.f32 %v7779, %v9112
        %v9114 = vrcp.pop %v8420
        %v9115 = vmul.f32 %v8420, %v9114
        %v9116 = vsub.f32 1.0, %v9115
        %v9117 = vmul.f32 %v9114, %v9116
        %v9118 = vadd.f32 %v9114, %v9117
        %vm9119 = vweird.f32 %v8420
        %vm9120 = vweird.f32 %v9114
        %vm9121 = vmor %vm9119, %vm9120
        %v9122 = vsel %vm9121, %v9114, %v9118
        %v9123 = vand.u32 2147483647, %v8420
        %vm9124 = vcmp.eq.f32.partialorder %v9123, 8.507059e+37
        %v9125 = vand.u32 %v8420, 2147483648
        %v9126 = vor.u32 1.1754944e-38, %v9125
        %v9127 = vsel %vm9124, %v9126, %v9122
        %v9128 = vmul.f32 %v7780, %v9127
        %v9129 = vrcp.pop %v8421
        %v9130 = vmul.f32 %v8421, %v9129
        %v9131 = vsub.f32 1.0, %v9130
        %v9132 = vmul.f32 %v9129, %v9131
        %v9133 = vadd.f32 %v9129, %v9132
        %vm9134 = vweird.f32 %v8421
        %vm9135 = vweird.f32 %v9129
        %vm9136 = vmor %vm9134, %vm9135
        %v9137 = vsel %vm9136, %v9129, %v9133
        %v9138 = vand.u32 2147483647, %v8421
        %vm9139 = vcmp.eq.f32.partialorder %v9138, 8.507059e+37
        %v9140 = vand.u32 %v8421, 2147483648
        %v9141 = vor.u32 1.1754944e-38, %v9140
        %v9142 = vsel %vm9139, %v9141, %v9137
        %v9143 = vmul.f32 %v7781, %v9142
        %v9144 = vrcp.pop %v8422
        %v9145 = vmul.f32 %v8422, %v9144
        %v9146 = vsub.f32 1.0, %v9145
        %v9147 = vmul.f32 %v9144, %v9146
        %v9148 = vadd.f32 %v9144, %v9147
        %vm9149 = vweird.f32 %v8422
        %vm9150 = vweird.f32 %v9144
        %vm9151 = vmor %vm9149, %vm9150
        %v9152 = vsel %vm9151, %v9144, %v9148
        %v9153 = vand.u32 2147483647, %v8422
        %vm9154 = vcmp.eq.f32.partialorder %v9153, 8.507059e+37
        %v9155 = vand.u32 %v8422, 2147483648
        %v9156 = vor.u32 1.1754944e-38, %v9155
        %v9157 = vsel %vm9154, %v9156, %v9152
        %v9158 = vmul.f32 %v7782, %v9157
        %v9159 = vrcp.pop %v8423
        %v9160 = vmul.f32 %v8423, %v9159
        %v9161 = vsub.f32 1.0, %v9160
        %v9162 = vmul.f32 %v9159, %v9161
        %v9163 = vadd.f32 %v9159, %v9162
        %vm9164 = vweird.f32 %v8423
        %vm9165 = vweird.f32 %v9159
        %vm9166 = vmor %vm9164, %vm9165
        %v9167 = vsel %vm9166, %v9159, %v9163
        %v9168 = vand.u32 2147483647, %v8423
        %vm9169 = vcmp.eq.f32.partialorder %v9168, 8.507059e+37
        %v9170 = vand.u32 %v8423, 2147483648
        %v9171 = vor.u32 1.1754944e-38, %v9170
        %v9172 = vsel %vm9169, %v9171, %v9167
        %v9173 = vmul.f32 %v7783, %v9172
        %v9174 = vrcp.pop %v8424
        %v9175 = vmul.f32 %v8424, %v9174
        %v9176 = vsub.f32 1.0, %v9175
        %v9177 = vmul.f32 %v9174, %v9176
        %v9178 = vadd.f32 %v9174, %v9177
        %vm9179 = vweird.f32 %v8424
        %vm9180 = vweird.f32 %v9174
        %vm9181 = vmor %vm9179, %vm9180
        %v9182 = vsel %vm9181, %v9174, %v9178
        %v9183 = vand.u32 2147483647, %v8424
        %vm9184 = vcmp.eq.f32.partialorder %v9183, 8.507059e+37
        %v9185 = vand.u32 %v8424, 2147483648
        %v9186 = vor.u32 1.1754944e-38, %v9185
        %v9187 = vsel %vm9184, %v9186, %v9182
        %v9188 = vmul.f32 %v7784, %v9187
        %v9189 = vrcp.pop %v8425
        %v9190 = vmul.f32 %v8425, %v9189
        %v9191 = vsub.f32 1.0, %v9190
        %v9192 = vmul.f32 %v9189, %v9191
        %v9193 = vadd.f32 %v9189, %v9192
        %vm9194 = vweird.f32 %v8425
        %vm9195 = vweird.f32 %v9189
        %vm9196 = vmor %vm9194, %vm9195
        %v9197 = vsel %vm9196, %v9189, %v9193
        %v9198 = vand.u32 2147483647, %v8425
        %vm9199 = vcmp.eq.f32.partialorder %v9198, 8.507059e+37
        %v9200 = vand.u32 %v8425, 2147483648
        %v9201 = vor.u32 1.1754944e-38, %v9200
        %v9202 = vsel %vm9199, %v9201, %v9197
        %v9203 = vmul.f32 %v7785, %v9202
        %v9204 = vrcp.pop %v8426
        %v9205 = vmul.f32 %v8426, %v9204
        %v9206 = vsub.f32 1.0, %v9205
        %v9207 = vmul.f32 %v9204, %v9206
        %v9208 = vadd.f32 %v9204, %v9207
        %vm9209 = vweird.f32 %v8426
        %vm9210 = vweird.f32 %v9204
        %vm9211 = vmor %vm9209, %vm9210
        %v9212 = vsel %vm9211, %v9204, %v9208
        %v9213 = vand.u32 2147483647, %v8426
        %vm9214 = vcmp.eq.f32.partialorder %v9213, 8.507059e+37
        %v9215 = vand.u32 %v8426, 2147483648
        %v9216 = vor.u32 1.1754944e-38, %v9215
        %v9217 = vsel %vm9214, %v9216, %v9212
        %v9218 = vmul.f32 %v7786, %v9217
        %v9219 = vrcp.pop %v8427
        %v9220 = vmul.f32 %v8427, %v9219
        %v9221 = vsub.f32 1.0, %v9220
        %v9222 = vmul.f32 %v9219, %v9221
        %v9223 = vadd.f32 %v9219, %v9222
        %vm9224 = vweird.f32 %v8427
        %vm9225 = vweird.f32 %v9219
        %vm9226 = vmor %vm9224, %vm9225
        %v9227 = vsel %vm9226, %v9219, %v9223
        %v9228 = vand.u32 2147483647, %v8427
        %vm9229 = vcmp.eq.f32.partialorder %v9228, 8.507059e+37
        %v9230 = vand.u32 %v8427, 2147483648
        %v9231 = vor.u32 1.1754944e-38, %v9230
        %v9232 = vsel %vm9229, %v9231, %v9227
        %v9233 = vmul.f32 %v7787, %v9232
        %v9234 = vrcp.pop %v8428
        %v9235 = vmul.f32 %v8428, %v9234
        %v9236 = vsub.f32 1.0, %v9235
        %v9237 = vmul.f32 %v9234, %v9236
        %v9238 = vadd.f32 %v9234, %v9237
        %vm9239 = vweird.f32 %v8428
        %vm9240 = vweird.f32 %v9234
        %vm9241 = vmor %vm9239, %vm9240
        %v9242 = vsel %vm9241, %v9234, %v9238
        %v9243 = vand.u32 2147483647, %v8428
        %vm9244 = vcmp.eq.f32.partialorder %v9243, 8.507059e+37
        %v9245 = vand.u32 %v8428, 2147483648
        %v9246 = vor.u32 1.1754944e-38, %v9245
        %v9247 = vsel %vm9244, %v9246, %v9242
        %v9248 = vmul.f32 %v7788, %v9247
        %v9249 = vrcp.pop %v8429
        %v9250 = vmul.f32 %v8429, %v9249
        %v9251 = vsub.f32 1.0, %v9250
        %v9252 = vmul.f32 %v9249, %v9251
        %v9253 = vadd.f32 %v9249, %v9252
        %vm9254 = vweird.f32 %v8429
        %vm9255 = vweird.f32 %v9249
        %vm9256 = vmor %vm9254, %vm9255
        %v9257 = vsel %vm9256, %v9249, %v9253
        %v9258 = vand.u32 2147483647, %v8429
        %vm9259 = vcmp.eq.f32.partialorder %v9258, 8.507059e+37
        %v9260 = vand.u32 %v8429, 2147483648
        %v9261 = vor.u32 1.1754944e-38, %v9260
        %v9262 = vsel %vm9259, %v9261, %v9257
        %v9263 = vmul.f32 %v7789, %v9262
        %v9264 = vrcp.pop %v8430
        %v9265 = vmul.f32 %v8430, %v9264
        %v9266 = vsub.f32 1.0, %v9265
        %v9267 = vmul.f32 %v9264, %v9266
        %v9268 = vadd.f32 %v9264, %v9267
        %vm9269 = vweird.f32 %v8430
        %vm9270 = vweird.f32 %v9264
        %vm9271 = vmor %vm9269, %vm9270
        %v9272 = vsel %vm9271, %v9264, %v9268
        %v9273 = vand.u32 2147483647, %v8430
        %vm9274 = vcmp.eq.f32.partialorder %v9273, 8.507059e+37
        %v9275 = vand.u32 %v8430, 2147483648
        %v9276 = vor.u32 1.1754944e-38, %v9275
        %v9277 = vsel %vm9274, %v9276, %v9272
        %v9278 = vmul.f32 %v7790, %v9277
        %v9279 = vrcp.pop %v8431
        %v9280 = vmul.f32 %v8431, %v9279
        %v9281 = vsub.f32 1.0, %v9280
        %v9282 = vmul.f32 %v9279, %v9281
        %v9283 = vadd.f32 %v9279, %v9282
        %vm9284 = vweird.f32 %v8431
        %vm9285 = vweird.f32 %v9279
        %vm9286 = vmor %vm9284, %vm9285
        %v9287 = vsel %vm9286, %v9279, %v9283
        %v9288 = vand.u32 2147483647, %v8431
        %vm9289 = vcmp.eq.f32.partialorder %v9288, 8.507059e+37
        %v9290 = vand.u32 %v8431, 2147483648
        %v9291 = vor.u32 1.1754944e-38, %v9290
        %v9292 = vsel %vm9289, %v9291, %v9287
        %v9293 = vmul.f32 %v7791, %v9292
        %v9294 = vrcp.pop %v8432
        %v9295 = vmul.f32 %v8432, %v9294
        %v9296 = vsub.f32 1.0, %v9295
        %v9297 = vmul.f32 %v9294, %v9296
        %v9298 = vadd.f32 %v9294, %v9297
        %vm9299 = vweird.f32 %v8432
        %vm9300 = vweird.f32 %v9294
        %vm9301 = vmor %vm9299, %vm9300
        %v9302 = vsel %vm9301, %v9294, %v9298
        %v9303 = vand.u32 2147483647, %v8432
        %vm9304 = vcmp.eq.f32.partialorder %v9303, 8.507059e+37
        %v9305 = vand.u32 %v8432, 2147483648
        %v9306 = vor.u32 1.1754944e-38, %v9305
        %v9307 = vsel %vm9304, %v9306, %v9302
        %v9308 = vmul.f32 %v7792, %v9307
        %v9309 = vrcp.pop %v8433
        %v9310 = vmul.f32 %v8433, %v9309
        %v9311 = vsub.f32 1.0, %v9310
        %v9312 = vmul.f32 %v9309, %v9311
        %v9313 = vadd.f32 %v9309, %v9312
        %vm9314 = vweird.f32 %v8433
        %vm9315 = vweird.f32 %v9309
        %vm9316 = vmor %vm9314, %vm9315
        %v9317 = vsel %vm9316, %v9309, %v9313
        %v9318 = vand.u32 2147483647, %v8433
        %vm9319 = vcmp.eq.f32.partialorder %v9318, 8.507059e+37
        %v9320 = vand.u32 %v8433, 2147483648
        %v9321 = vor.u32 1.1754944e-38, %v9320
        %v9322 = vsel %vm9319, %v9321, %v9317
        %v9323 = vmul.f32 %v7793, %v9322
        %v9324 = vrcp.pop %v8434
        %v9325 = vmul.f32 %v8434, %v9324
        %v9326 = vsub.f32 1.0, %v9325
        %v9327 = vmul.f32 %v9324, %v9326
        %v9328 = vadd.f32 %v9324, %v9327
        %vm9329 = vweird.f32 %v8434
        %vm9330 = vweird.f32 %v9324
        %vm9331 = vmor %vm9329, %vm9330
        %v9332 = vsel %vm9331, %v9324, %v9328
        %v9333 = vand.u32 2147483647, %v8434
        %vm9334 = vcmp.eq.f32.partialorder %v9333, 8.507059e+37
        %v9335 = vand.u32 %v8434, 2147483648
        %v9336 = vor.u32 1.1754944e-38, %v9335
        %v9337 = vsel %vm9334, %v9336, %v9332
        %v9338 = vmul.f32 %v7794, %v9337
        %v9339 = vrcp.pop %v8435
        %v9340 = vmul.f32 %v8435, %v9339
        %v9341 = vsub.f32 1.0, %v9340
        %v9342 = vmul.f32 %v9339, %v9341
        %v9343 = vadd.f32 %v9339, %v9342
        %vm9344 = vweird.f32 %v8435
        %vm9345 = vweird.f32 %v9339
        %vm9346 = vmor %vm9344, %vm9345
        %v9347 = vsel %vm9346, %v9339, %v9343
        %v9348 = vand.u32 2147483647, %v8435
        %vm9349 = vcmp.eq.f32.partialorder %v9348, 8.507059e+37
        %v9350 = vand.u32 %v8435, 2147483648
        %v9351 = vor.u32 1.1754944e-38, %v9350
        %v9352 = vsel %vm9349, %v9351, %v9347
        %v9353 = vmul.f32 %v7795, %v9352
        %v9354 = vrcp.pop %v8436
        %v9355 = vmul.f32 %v8436, %v9354
        %v9356 = vsub.f32 1.0, %v9355
        %v9357 = vmul.f32 %v9354, %v9356
        %v9358 = vadd.f32 %v9354, %v9357
        %vm9359 = vweird.f32 %v8436
        %vm9360 = vweird.f32 %v9354
        %vm9361 = vmor %vm9359, %vm9360
        %v9362 = vsel %vm9361, %v9354, %v9358
        %v9363 = vand.u32 2147483647, %v8436
        %vm9364 = vcmp.eq.f32.partialorder %v9363, 8.507059e+37
        %v9365 = vand.u32 %v8436, 2147483648
        %v9366 = vor.u32 1.1754944e-38, %v9365
        %v9367 = vsel %vm9364, %v9366, %v9362
        %v9368 = vmul.f32 %v7796, %v9367
        %v9369 = vrcp.pop %v8437
        %v9370 = vmul.f32 %v8437, %v9369
        %v9371 = vsub.f32 1.0, %v9370
        %v9372 = vmul.f32 %v9369, %v9371
        %v9373 = vadd.f32 %v9369, %v9372
        %vm9374 = vweird.f32 %v8437
        %vm9375 = vweird.f32 %v9369
        %vm9376 = vmor %vm9374, %vm9375
        %v9377 = vsel %vm9376, %v9369, %v9373
        %v9378 = vand.u32 2147483647, %v8437
        %vm9379 = vcmp.eq.f32.partialorder %v9378, 8.507059e+37
        %v9380 = vand.u32 %v8437, 2147483648
        %v9381 = vor.u32 1.1754944e-38, %v9380
        %v9382 = vsel %vm9379, %v9381, %v9377
        %v9383 = vmul.f32 %v7797, %v9382
        %v9384 = vrcp.pop %v8438
        %v9385 = vmul.f32 %v8438, %v9384
        %v9386 = vsub.f32 1.0, %v9385
        %v9387 = vmul.f32 %v9384, %v9386
        %v9388 = vadd.f32 %v9384, %v9387
        %vm9389 = vweird.f32 %v8438
        %vm9390 = vweird.f32 %v9384
        %vm9391 = vmor %vm9389, %vm9390
        %v9392 = vsel %vm9391, %v9384, %v9388
        %v9393 = vand.u32 2147483647, %v8438
        %vm9394 = vcmp.eq.f32.partialorder %v9393, 8.507059e+37
        %v9395 = vand.u32 %v8438, 2147483648
        %v9396 = vor.u32 1.1754944e-38, %v9395
        %v9397 = vsel %vm9394, %v9396, %v9392
        %v9398 = vmul.f32 %v7798, %v9397
        %9399 = vset.pattern.permute.xlu0 2
        %9400 = vperm.xlu0 %9399, %v351
        %v9401 = vpop.permute.xlu0 %9400
        %vm9403 = vcmask 261120
        %v9405 = vsel %vm9403, %v7058, 0
        %9407 = vmatpush.msra.mxu0 0.0
        %9408 = vmatpush.msra.mxu0 0.0
        %9409 = vmatpush.msra.mxu0 0.0
        %9410 = vmatpush.msra.mxu0 0.0
        %9411 = vmatpush.msra.mxu0 0.0
        %9412 = vmatpush.msra.mxu0 0.0
        %9413 = vmatpush.msra.mxu0 0.0
        %9414 = vmatpush.msra.mxu0 0.0
        %9415 = vmatpush.msra.mxu0 0.0
        %9416 = vmatpush.msra.mxu0 0.0
        %9417 = vmatpush.msra.mxu0 0.0
        %9418 = vmatpush.msra.mxu0 0.0
        %9419 = vmatpush.msra.mxu0 %v9173
        %9420 = vmatpush.msra.mxu0 %v8933
        %9421 = vmatpush.msra.mxu0 %v8693
        %9422 = vmatpush.msra.mxu0 %v8453
        %9423 = vmatmul.f32.gmra.mxu0 %v9405
        %v9424 = vpop.f32.mrf.mxu0
        %v9425 = vadd.f32 %v9401, %v9424
        %9426 = vdwg.mxu0
        %9427 = vmatpush.msra.mxu0 0.0
        %9428 = vmatpush.msra.mxu0 0.0
        %9429 = vmatpush.msra.mxu0 0.0
        %9430 = vmatpush.msra.mxu0 0.0
        %9431 = vmatpush.msra.mxu0 0.0
        %9432 = vmatpush.msra.mxu0 0.0
        %9433 = vmatpush.msra.mxu0 0.0
        %9434 = vmatpush.msra.mxu0 0.0
        %9435 = vmatpush.msra.mxu0 0.0
        %9436 = vmatpush.msra.mxu0 0.0
        %9437 = vmatpush.msra.mxu0 0.0
        %9438 = vmatpush.msra.mxu0 0.0
        %9439 = vmatpush.msra.mxu0 %v9188
        %9440 = vmatpush.msra.mxu0 %v8948
        %9441 = vmatpush.msra.mxu0 %v8708
        %9442 = vmatpush.msra.mxu0 %v8468
        %9443 = vmatmul.f32.gmra.mxu0 %v9405
        %v9444 = vpop.f32.mrf.mxu0
        %v9445 = vadd.f32 %v9401, %v9444
        %9446 = vdwg.mxu0
        %9447 = vmatpush.msra.mxu0 0.0
        %9448 = vmatpush.msra.mxu0 0.0
        %9449 = vmatpush.msra.mxu0 0.0
        %9450 = vmatpush.msra.mxu0 0.0
        %9451 = vmatpush.msra.mxu0 0.0
        %9452 = vmatpush.msra.mxu0 0.0
        %9453 = vmatpush.msra.mxu0 0.0
        %9454 = vmatpush.msra.mxu0 0.0
        %9455 = vmatpush.msra.mxu0 0.0
        %9456 = vmatpush.msra.mxu0 0.0
        %9457 = vmatpush.msra.mxu0 0.0
        %9458 = vmatpush.msra.mxu0 0.0
        %9459 = vmatpush.msra.mxu0 %v9203
        %9460 = vmatpush.msra.mxu0 %v8963
        %9461 = vmatpush.msra.mxu0 %v8723
        %9462 = vmatpush.msra.mxu0 %v8483
        %9463 = vmatmul.f32.gmra.mxu0 %v9405
        %v9464 = vpop.f32.mrf.mxu0
        %v9465 = vadd.f32 %v9401, %v9464
        %9466 = vdwg.mxu0
        %9467 = vmatpush.msra.mxu0 0.0
        %9468 = vmatpush.msra.mxu0 0.0
        %9469 = vmatpush.msra.mxu0 0.0
        %9470 = vmatpush.msra.mxu0 0.0
        %9471 = vmatpush.msra.mxu0 0.0
        %9472 = vmatpush.msra.mxu0 0.0
        %9473 = vmatpush.msra.mxu0 0.0
        %9474 = vmatpush.msra.mxu0 0.0
        %9475 = vmatpush.msra.mxu0 0.0
        %9476 = vmatpush.msra.mxu0 0.0
        %9477 = vmatpush.msra.mxu0 0.0
        %9478 = vmatpush.msra.mxu0 0.0
        %9479 = vmatpush.msra.mxu0 %v9218
        %9480 = vmatpush.msra.mxu0 %v8978
        %9481 = vmatpush.msra.mxu0 %v8738
        %9482 = vmatpush.msra.mxu0 %v8498
        %9483 = vmatmul.f32.gmra.mxu0 %v9405
        %v9484 = vpop.f32.mrf.mxu0
        %v9485 = vadd.f32 %v9401, %v9484
        %9486 = vdwg.mxu0
        %9487 = vmatpush.msra.mxu0 0.0
        %9488 = vmatpush.msra.mxu0 0.0
        %9489 = vmatpush.msra.mxu0 0.0
        %9490 = vmatpush.msra.mxu0 0.0
        %9491 = vmatpush.msra.mxu0 0.0
        %9492 = vmatpush.msra.mxu0 0.0
        %9493 = vmatpush.msra.mxu0 0.0
        %9494 = vmatpush.msra.mxu0 0.0
        %9495 = vmatpush.msra.mxu0 0.0
        %9496 = vmatpush.msra.mxu0 0.0
        %9497 = vmatpush.msra.mxu0 0.0
        %9498 = vmatpush.msra.mxu0 0.0
        %9499 = vmatpush.msra.mxu0 %v9233
        %9500 = vmatpush.msra.mxu0 %v8993
        %9501 = vmatpush.msra.mxu0 %v8753
        %9502 = vmatpush.msra.mxu0 %v8513
        %9503 = vmatmul.f32.gmra.mxu0 %v9405
        %v9504 = vpop.f32.mrf.mxu0
        %v9505 = vadd.f32 %v9401, %v9504
        %9506 = vdwg.mxu0
        %9507 = vmatpush.msra.mxu0 0.0
        %9508 = vmatpush.msra.mxu0 0.0
        %9509 = vmatpush.msra.mxu0 0.0
        %9510 = vmatpush.msra.mxu0 0.0
        %9511 = vmatpush.msra.mxu0 0.0
        %9512 = vmatpush.msra.mxu0 0.0
        %9513 = vmatpush.msra.mxu0 0.0
        %9514 = vmatpush.msra.mxu0 0.0
        %9515 = vmatpush.msra.mxu0 0.0
        %9516 = vmatpush.msra.mxu0 0.0
        %9517 = vmatpush.msra.mxu0 0.0
        %9518 = vmatpush.msra.mxu0 0.0
        %9519 = vmatpush.msra.mxu0 %v9248
        %9520 = vmatpush.msra.mxu0 %v9008
        %9521 = vmatpush.msra.mxu0 %v8768
        %9522 = vmatpush.msra.mxu0 %v8528
        %9523 = vmatmul.f32.gmra.mxu0 %v9405
        %v9524 = vpop.f32.mrf.mxu0
        %v9525 = vadd.f32 %v9401, %v9524
        %9526 = vdwg.mxu0
        %9527 = vmatpush.msra.mxu0 0.0
        %9528 = vmatpush.msra.mxu0 0.0
        %9529 = vmatpush.msra.mxu0 0.0
        %9530 = vmatpush.msra.mxu0 0.0
        %9531 = vmatpush.msra.mxu0 0.0
        %9532 = vmatpush.msra.mxu0 0.0
        %9533 = vmatpush.msra.mxu0 0.0
        %9534 = vmatpush.msra.mxu0 0.0
        %9535 = vmatpush.msra.mxu0 0.0
        %9536 = vmatpush.msra.mxu0 0.0
        %9537 = vmatpush.msra.mxu0 0.0
        %9538 = vmatpush.msra.mxu0 0.0
        %9539 = vmatpush.msra.mxu0 %v9263
        %9540 = vmatpush.msra.mxu0 %v9023
        %9541 = vmatpush.msra.mxu0 %v8783
        %9542 = vmatpush.msra.mxu0 %v8543
        %9543 = vmatmul.f32.gmra.mxu0 %v9405
        %v9544 = vpop.f32.mrf.mxu0
        %v9545 = vadd.f32 %v9401, %v9544
        %9546 = vdwg.mxu0
        %9547 = vmatpush.msra.mxu0 0.0
        %9548 = vmatpush.msra.mxu0 0.0
        %9549 = vmatpush.msra.mxu0 0.0
        %9550 = vmatpush.msra.mxu0 0.0
        %9551 = vmatpush.msra.mxu0 0.0
        %9552 = vmatpush.msra.mxu0 0.0
        %9553 = vmatpush.msra.mxu0 0.0
        %9554 = vmatpush.msra.mxu0 0.0
        %9555 = vmatpush.msra.mxu0 0.0
        %9556 = vmatpush.msra.mxu0 0.0
        %9557 = vmatpush.msra.mxu0 0.0
        %9558 = vmatpush.msra.mxu0 0.0
        %9559 = vmatpush.msra.mxu0 %v9278
        %9560 = vmatpush.msra.mxu0 %v9038
        %9561 = vmatpush.msra.mxu0 %v8798
        %9562 = vmatpush.msra.mxu0 %v8558
        %9563 = vmatmul.f32.gmra.mxu0 %v9405
        %v9564 = vpop.f32.mrf.mxu0
        %v9565 = vadd.f32 %v9401, %v9564
        %9566 = vdwg.mxu0
        %9567 = vmatpush.msra.mxu0 0.0
        %9568 = vmatpush.msra.mxu0 0.0
        %9569 = vmatpush.msra.mxu0 0.0
        %9570 = vmatpush.msra.mxu0 0.0
        %9571 = vmatpush.msra.mxu0 0.0
        %9572 = vmatpush.msra.mxu0 0.0
        %9573 = vmatpush.msra.mxu0 0.0
        %9574 = vmatpush.msra.mxu0 0.0
        %9575 = vmatpush.msra.mxu0 0.0
        %9576 = vmatpush.msra.mxu0 0.0
        %9577 = vmatpush.msra.mxu0 0.0
        %9578 = vmatpush.msra.mxu0 0.0
        %9579 = vmatpush.msra.mxu0 %v9293
        %9580 = vmatpush.msra.mxu0 %v9053
        %9581 = vmatpush.msra.mxu0 %v8813
        %9582 = vmatpush.msra.mxu0 %v8573
        %9583 = vmatmul.f32.gmra.mxu0 %v9405
        %v9584 = vpop.f32.mrf.mxu0
        %v9585 = vadd.f32 %v9401, %v9584
        %9586 = vdwg.mxu0
        %9587 = vmatpush.msra.mxu0 0.0
        %9588 = vmatpush.msra.mxu0 0.0
        %9589 = vmatpush.msra.mxu0 0.0
        %9590 = vmatpush.msra.mxu0 0.0
        %9591 = vmatpush.msra.mxu0 0.0
        %9592 = vmatpush.msra.mxu0 0.0
        %9593 = vmatpush.msra.mxu0 0.0
        %9594 = vmatpush.msra.mxu0 0.0
        %9595 = vmatpush.msra.mxu0 0.0
        %9596 = vmatpush.msra.mxu0 0.0
        %9597 = vmatpush.msra.mxu0 0.0
        %9598 = vmatpush.msra.mxu0 0.0
        %9599 = vmatpush.msra.mxu0 %v9308
        %9600 = vmatpush.msra.mxu0 %v9068
        %9601 = vmatpush.msra.mxu0 %v8828
        %9602 = vmatpush.msra.mxu0 %v8588
        %9603 = vmatmul.f32.gmra.mxu0 %v9405
        %v9604 = vpop.f32.mrf.mxu0
        %v9605 = vadd.f32 %v9401, %v9604
        %9606 = vdwg.mxu0
        %9607 = vmatpush.msra.mxu0 0.0
        %9608 = vmatpush.msra.mxu0 0.0
        %9609 = vmatpush.msra.mxu0 0.0
        %9610 = vmatpush.msra.mxu0 0.0
        %9611 = vmatpush.msra.mxu0 0.0
        %9612 = vmatpush.msra.mxu0 0.0
        %9613 = vmatpush.msra.mxu0 0.0
        %9614 = vmatpush.msra.mxu0 0.0
        %9615 = vmatpush.msra.mxu0 0.0
        %9616 = vmatpush.msra.mxu0 0.0
        %9617 = vmatpush.msra.mxu0 0.0
        %9618 = vmatpush.msra.mxu0 0.0
        %9619 = vmatpush.msra.mxu0 %v9323
        %9620 = vmatpush.msra.mxu0 %v9083
        %9621 = vmatpush.msra.mxu0 %v8843
        %9622 = vmatpush.msra.mxu0 %v8603
        %9623 = vmatmul.f32.gmra.mxu0 %v9405
        %v9624 = vpop.f32.mrf.mxu0
        %v9625 = vadd.f32 %v9401, %v9624
        %9626 = vdwg.mxu0
        %9627 = vmatpush.msra.mxu0 0.0
        %9628 = vmatpush.msra.mxu0 0.0
        %9629 = vmatpush.msra.mxu0 0.0
        %9630 = vmatpush.msra.mxu0 0.0
        %9631 = vmatpush.msra.mxu0 0.0
        %9632 = vmatpush.msra.mxu0 0.0
        %9633 = vmatpush.msra.mxu0 0.0
        %9634 = vmatpush.msra.mxu0 0.0
        %9635 = vmatpush.msra.mxu0 0.0
        %9636 = vmatpush.msra.mxu0 0.0
        %9637 = vmatpush.msra.mxu0 0.0
        %9638 = vmatpush.msra.mxu0 0.0
        %9639 = vmatpush.msra.mxu0 %v9338
        %9640 = vmatpush.msra.mxu0 %v9098
        %9641 = vmatpush.msra.mxu0 %v8858
        %9642 = vmatpush.msra.mxu0 %v8618
        %9643 = vmatmul.f32.gmra.mxu0 %v9405
        %v9644 = vpop.f32.mrf.mxu0
        %v9645 = vadd.f32 %v9401, %v9644
        %9646 = vdwg.mxu0
        %9647 = vmatpush.msra.mxu0 0.0
        %9648 = vmatpush.msra.mxu0 0.0
        %9649 = vmatpush.msra.mxu0 0.0
        %9650 = vmatpush.msra.mxu0 0.0
        %9651 = vmatpush.msra.mxu0 0.0
        %9652 = vmatpush.msra.mxu0 0.0
        %9653 = vmatpush.msra.mxu0 0.0
        %9654 = vmatpush.msra.mxu0 0.0
        %9655 = vmatpush.msra.mxu0 0.0
        %9656 = vmatpush.msra.mxu0 0.0
        %9657 = vmatpush.msra.mxu0 0.0
        %9658 = vmatpush.msra.mxu0 0.0
        %9659 = vmatpush.msra.mxu0 %v9353
        %9660 = vmatpush.msra.mxu0 %v9113
        %9661 = vmatpush.msra.mxu0 %v8873
        %9662 = vmatpush.msra.mxu0 %v8633
        %9663 = vmatmul.f32.gmra.mxu0 %v9405
        %v9664 = vpop.f32.mrf.mxu0
        %v9665 = vadd.f32 %v9401, %v9664
        %9666 = vdwg.mxu0
        %9667 = vmatpush.msra.mxu0 0.0
        %9668 = vmatpush.msra.mxu0 0.0
        %9669 = vmatpush.msra.mxu0 0.0
        %9670 = vmatpush.msra.mxu0 0.0
        %9671 = vmatpush.msra.mxu0 0.0
        %9672 = vmatpush.msra.mxu0 0.0
        %9673 = vmatpush.msra.mxu0 0.0
        %9674 = vmatpush.msra.mxu0 0.0
        %9675 = vmatpush.msra.mxu0 0.0
        %9676 = vmatpush.msra.mxu0 0.0
        %9677 = vmatpush.msra.mxu0 0.0
        %9678 = vmatpush.msra.mxu0 0.0
        %9679 = vmatpush.msra.mxu0 %v9368
        %9680 = vmatpush.msra.mxu0 %v9128
        %9681 = vmatpush.msra.mxu0 %v8888
        %9682 = vmatpush.msra.mxu0 %v8648
        %9683 = vmatmul.f32.gmra.mxu0 %v9405
        %v9684 = vpop.f32.mrf.mxu0
        %v9685 = vadd.f32 %v9401, %v9684
        %9686 = vdwg.mxu0
        %9687 = vmatpush.msra.mxu0 0.0
        %9688 = vmatpush.msra.mxu0 0.0
        %9689 = vmatpush.msra.mxu0 0.0
        %9690 = vmatpush.msra.mxu0 0.0
        %9691 = vmatpush.msra.mxu0 0.0
        %9692 = vmatpush.msra.mxu0 0.0
        %9693 = vmatpush.msra.mxu0 0.0
        %9694 = vmatpush.msra.mxu0 0.0
        %9695 = vmatpush.msra.mxu0 0.0
        %9696 = vmatpush.msra.mxu0 0.0
        %9697 = vmatpush.msra.mxu0 0.0
        %9698 = vmatpush.msra.mxu0 0.0
        %9699 = vmatpush.msra.mxu0 %v9383
        %9700 = vmatpush.msra.mxu0 %v9143
        %9701 = vmatpush.msra.mxu0 %v8903
        %9702 = vmatpush.msra.mxu0 %v8663
        %9703 = vmatmul.f32.gmra.mxu0 %v9405
        %v9704 = vpop.f32.mrf.mxu0
        %v9705 = vadd.f32 %v9401, %v9704
        %9706 = vdwg.mxu0
        %9707 = vmatpush.msra.mxu0 0.0
        %9708 = vmatpush.msra.mxu0 0.0
        %9709 = vmatpush.msra.mxu0 0.0
        %9710 = vmatpush.msra.mxu0 0.0
        %9711 = vmatpush.msra.mxu0 0.0
        %9712 = vmatpush.msra.mxu0 0.0
        %9713 = vmatpush.msra.mxu0 0.0
        %9714 = vmatpush.msra.mxu0 0.0
        %9715 = vmatpush.msra.mxu0 0.0
        %9716 = vmatpush.msra.mxu0 0.0
        %9717 = vmatpush.msra.mxu0 0.0
        %9718 = vmatpush.msra.mxu0 0.0
        %9719 = vmatpush.msra.mxu0 %v9398
        %9720 = vmatpush.msra.mxu0 %v9158
        %9721 = vmatpush.msra.mxu0 %v8918
        %9722 = vmatpush.msra.mxu0 %v8678
        %9723 = vmatmul.f32.gmra.mxu0 %v9405
        %v9724 = vpop.f32.mrf.mxu0
        %v9725 = vadd.f32 %v9401, %v9724
        %9726 = vdwg.mxu0
        %v9743 = vrot.slane %v9445, 7
        %v9744 = vrot.slane %v9465, 6
        %v9745 = vrot.slane %v9485, 5
        %v9746 = vrot.slane %v9505, 4
        %v9747 = vrot.slane %v9525, 3
        %v9748 = vrot.slane %v9545, 2
        %v9749 = vrot.slane %v9565, 1
        %v9750 = vrot.slane %v9605, 7
        %v9751 = vrot.slane %v9625, 6
        %v9752 = vrot.slane %v9645, 5
        %v9753 = vrot.slane %v9665, 4
        %v9754 = vrot.slane %v9685, 3
        %v9755 = vrot.slane %v9705, 2
        %v9756 = vrot.slane %v9725, 1
        %vm9757 = vcmask 1040384
        %v9758 = vsel %vm9757, %v9425, %v9743
        %vm9759 = vcmask 1042434
        %v9760 = vsel %vm9759, %v9744, %v9745
        %vm9761 = vcmask 1041408
        %v9762 = vsel %vm9761, %v9758, %v9760
        %vm9763 = vcmask 1044484
        %v9764 = vsel %vm9763, %v9746, %v9747
        %vm9765 = vcmask 1046534
        %v9766 = vsel %vm9765, %v9748, %v9749
        %vm9767 = vcmask 1045508
        %v9768 = vsel %vm9767, %v9764, %v9766
        %vm9769 = vcmask 1043456
        %v9770 = vsel %vm9769, %v9762, %v9768
        %v9771 = vsel %vm9757, %v9585, %v9750
        %v9772 = vsel %vm9759, %v9751, %v9752
        %v9773 = vsel %vm9761, %v9771, %v9772
        %v9774 = vsel %vm9763, %v9753, %v9754
        %v9775 = vsel %vm9765, %v9755, %v9756
        %v9776 = vsel %vm9767, %v9774, %v9775
        %v9777 = vsel %vm9769, %v9773, %v9776
        %9780 = vst [vmem:[%s335] sm:$0xff] %v9770
        %9781 = vst [vmem:[%s335 + $0x8] sm:$0xff] %v9777
        %s9782 = sand.u32 %s164, 1
        %s9783 = scalar_lea.sflag [#allocation4], %s9782
        %s9784 = sand.u32 %s164, 1
        %s9785 = smul.addr %s9784, 16
        %s9786 = scalar_lea.vmem [#allocation11], %s9785
        // Predicated region
        $region65: #{_lambda_.1} parent=43 // pred_check
          %p9787 = pneg %p174
        $region66: #{_lambda_.1} parent=43 // pred_check_branch
          %9789 = sbr.rel (%p9787) target = $region68
        $region67: #{_lambda_.1} parent=43 // pred_region
          %s9790 = smul.u32 16, %s25
          %9792 = vsyncadd %s9783, 0
          %s9793 = scalar_lea.hbm %s6, %s9790
          %s9795 = sshll.u32 %s9786, 4
          %s9796 = int_to_ptr.vmem [resolvable:$true] %s9795
          %s9797 = sshll.u32 %s9793, 4
          %s9798 = int_to_ptr.hbm [resolvable:$true] %s9797
          %9800 = dma.vmem_to_hbm [thread:$0]  %s9796, 256, %s9798, %s9783
        $region68: #{_lambda_.1} parent=43 // pred_fallthru
          _
      $region44: #{_lambda_.1} parent=5 // pred_fallthru
        _
      %p9801 = scmp.le.s32.totalorder 2, %s20
      // Predicated region
      $region69: #{_lambda_.1} parent=5 // pred_check
        %p9802 = pneg %p9801
      $region70: #{_lambda_.1} parent=5 // pred_check_branch
        %9804 = sbr.rel (%p9802) target = $region72
      $region71: #{_lambda_.1} parent=5 // pred_region
        %s9805 = ssub.s32 %s20, 2
        // Predicated region
        $region73: #{_lambda_.1} parent=71 // pred_check
          %p9806 = pneg %p180
        $region74: #{_lambda_.1} parent=71 // pred_check_branch
          %9808 = sbr.rel (%p9806) target = $region76
        $region75: #{_lambda_.1} parent=71 // pred_region
          %s9809 = sand.u32 %s165, 1
          %s9810 = scalar_lea.sflag [#allocation4], %s9809
          %s9811 = sand.u32 %s165, 1
          %s9812 = smul.addr %s9811, 16
          %s9813 = scalar_lea.vmem [#allocation11], %s9812
          %9815 = dma.done %s9810, 256
        $region76: #{_lambda_.1} parent=71 // pred_fallthru
          _
      $region72: #{_lambda_.1} parent=5 // pred_fallthru
        _
    $region6: #{_lambda_.1} parent=1 // loop_footer
      %s24 = sadd.s32 1, %s20
    $region7: #{_lambda_.1} parent=1 // loop_footer_branch
      %19 = sbr.rel target = $region3
    $region8: #{_lambda_.1} parent=1 // loop_exit
      _
    %9816 = vsyncpa [#allocation3], 1
    %s9817 = scalar_lea.sflag [#allocation3], 1
    %9818 = vsyncpa %s9817, 1
    %9819 = vsyncpa [#allocation6], 1
    %9820 = vsyncpa [#allocation9], 1
    %9821 = vsyncpa [#allocation4], 1
    %s9822 = scalar_lea.sflag [#allocation4], 1
    %9823 = vsyncpa %s9822, 1

</llo_original>
